<compile_context>
chip_gen: v7x
topology: tpu7x:2x2x1
jax: 0.10.0
libtpu: 0.0.40
codegen_flags: <defaults>
</compile_context>

<pallas_src>
import functools
import math

import jax
import jax.numpy as jnp
from jax.experimental import pallas as pl
from jax.experimental.pallas import tpu as pltpu

LANE = 128


def _round_up(v, m):
    return ((v + m - 1) // m) * m


def _pick_tile_m(m):
    for t in (256, 512, 1024, 128, 64, 32, 16, 8):
        if m % t == 0:
            return t
    return m


def _largest_divisor_leq(n, cap):
    best = 1
    for d in range(1, n + 1):
        if n % d == 0 and d <= cap:
            best = d
    return best


# ---------------------------------------------------------------------------
# Kernel 1: expansion 1x1 conv + streaming BatchNorm statistics (sum, sum^2)
# ---------------------------------------------------------------------------
def _expansion_stats_kernel(x_ref, w_ref, b_ref, sum_ref, ssq_ref):
    @pl.when(pl.program_id(0) == 0)
    def _():
        sum_ref[...] = jnp.zeros_like(sum_ref)
        ssq_ref[...] = jnp.zeros_like(ssq_ref)

    acc = jnp.dot(x_ref[...], w_ref[...],
                  preferred_element_type=jnp.float32) + b_ref[...]
    sum_ref[...] += jnp.sum(acc, axis=0, keepdims=True)
    ssq_ref[...] += jnp.sum(acc * acc, axis=0, keepdims=True)


def expansion_batch_stats(x_flat, w_exp, b_exp, *, tile_m):
    m, cin_p = x_flat.shape
    ce_p = w_exp.shape[1]
    return pl.pallas_call(
        _expansion_stats_kernel,
        grid=(m // tile_m,),
        in_specs=[
            pl.BlockSpec((tile_m, cin_p), lambda i: (i, 0)),
            pl.BlockSpec((cin_p, ce_p), lambda i: (0, 0)),
            pl.BlockSpec((1, ce_p), lambda i: (0, 0)),
        ],
        out_specs=(
            pl.BlockSpec((1, ce_p), lambda i: (0, 0)),
            pl.BlockSpec((1, ce_p), lambda i: (0, 0)),
        ),
        out_shape=(
            jax.ShapeDtypeStruct((1, ce_p), jnp.float32),
            jax.ShapeDtypeStruct((1, ce_p), jnp.float32),
        ),
        compiler_params=pltpu.CompilerParams(
            dimension_semantics=("arbitrary",)),
    )(x_flat, w_exp, b_exp)


# ---------------------------------------------------------------------------
# Kernel 2: fused RecombinationBlock (per image)
# ---------------------------------------------------------------------------
def _conv3x3_taps(ext_ref, pad_rows, hw, wimg, dil, col, w_ref, b_ref):
    """3x3 (optionally dilated) 'same' conv as 9 shifted-window matmuls.

    ext_ref holds the activation flattened to (H*W, C) with `pad_rows` rows of
    zeros on both sides, so row shifts that fall outside the image read zeros.
    Column (x) wrap-around between adjacent image rows is killed with tiny
    (HW, 1) multiplicative masks broadcast along lanes.
    """
    n_out = w_ref.shape[2]
    # (hw, 1) multiplicative boundary masks (lane-broadcast at use sites)
    m_l = (col >= dil).astype(jnp.float32)
    m_r = (col <= wimg - 1 - dil).astype(jnp.float32)
    acc = jnp.zeros((hw, n_out), jnp.float32)
    t = 0
    for dy in (-1, 0, 1):
        for dx in (-1, 0, 1):
            shift = (dy * wimg + dx) * dil
            win = ext_ref[pl.ds(pad_rows + shift, hw), :]
            if dx < 0:
                win = win * m_l
            elif dx > 0:
                win = win * m_r
            acc = acc + jnp.dot(win.astype(jnp.bfloat16), w_ref[t],
                                preferred_element_type=jnp.float32)
            t += 1
    return acc + b_ref[...]


def _recombination_kernel(w_img, pad1, pad2,
                          x_ref, col_ref, scale_ref, shift_ref,
                          we_ref, be_ref, wn_ref, bnorm_ref,
                          wd_ref, bd_ref, ws1_ref, bs1_ref,
                          wz_ref, bz_ref, wk_ref, bk_ref,
                          out_ref, ext1_ref, ext2_ref):
    hw = x_ref.shape[0]
    ce_p = we_ref.shape[1]
    xin = x_ref[...]                          # (HW, Cin_p) bf16
    col = col_ref[...]                        # (HW, 1) int32: x coordinate

    # ---- expansion_conv (1x1) + BatchNorm affine + ReLU6 -------------------
    xexp = jnp.dot(xin, we_ref[...],
                   preferred_element_type=jnp.float32) + be_ref[...]
    act = jnp.clip(xexp * scale_ref[...] + shift_ref[...], 0.0, 6.0)

    # ---- norm_conv (3x3, padding=1) -----------------------------------------
    # zero only the top/bottom halo rows; the middle is fully overwritten
    ext1_ref[pl.ds(0, pad1), :] = jnp.zeros((pad1, ce_p), jnp.float32)
    ext1_ref[pl.ds(pad1 + hw, pad1), :] = jnp.zeros((pad1, ce_p), jnp.float32)
    ext1_ref[pl.ds(pad1, hw), :] = act
    xnorm = _conv3x3_taps(ext1_ref, pad1, hw, w_img, 1, col,
                          wn_ref, bnorm_ref)

    # ---- SegSE: dilated 3x3 (dil=2, pad=2) -> 1x1 -> sigmoid ----------------
    ext2_ref[pl.ds(0, pad2), :] = jnp.zeros((pad2, ce_p), jnp.float32)
    ext2_ref[pl.ds(pad2 + hw, pad2), :] = jnp.zeros((pad2, ce_p), jnp.float32)
    ext2_ref[pl.ds(pad2, hw), :] = xnorm
    se = _conv3x3_taps(ext2_ref, pad2, hw, w_img, 2, col, wd_ref, bd_ref)
    se = jnp.dot(se.astype(jnp.bfloat16), ws1_ref[...],
                 preferred_element_type=jnp.float32) + bs1_ref[...]
    se = jax.nn.sigmoid(se)                   # (HW, Ce_p) f32

    # ---- gate, zoom_conv, skip_conv, residual add ---------------------------
    xnorm_rl = ext2_ref[pl.ds(pad2, hw), :]   # reload (explicit VMEM spill)
    gated = (xnorm_rl * se).astype(jnp.bfloat16)
    zoom = jnp.dot(gated, wz_ref[...],
                   preferred_element_type=jnp.float32) + bz_ref[...]
    skip = jnp.dot(xin, wk_ref[...],
                   preferred_element_type=jnp.float32) + bk_ref[...]
    out_ref[...] = zoom + skip


def recombination_block(x_img, col, scale, shift, pp, *, H, W):
    # TODO(synk): for large H*W, row-tile this kernel (with a halo) so the
    # per-image working set stays bounded against v7x's 64 MiB VMEM.
    n, hw, cin_p = x_img.shape
    ce_p = pp["w_exp"].shape[1]
    cse_p = pp["w_dila"].shape[2]
    cout_p = pp["w_zoom"].shape[1]
    pad1 = _round_up(W + 1, 8)
    pad2 = _round_up(2 * (W + 1), 8)

    kernel = functools.partial(_recombination_kernel, W, pad1, pad2)

    def full(shape):
        nd = len(shape)
        return pl.BlockSpec(shape, lambda i, _nd=nd: (0,) * _nd)

    in_specs = [
        pl.BlockSpec((None, hw, cin_p), lambda i: (i, 0, 0)),   # x (per image)
        full((hw, 1)),                                          # column index
        full((1, ce_p)), full((1, ce_p)),                       # scale, shift
        full((cin_p, ce_p)), full((1, ce_p)),                   # w_exp, b_exp
        full((9, ce_p, ce_p)), full((1, ce_p)),                 # w_norm, b_norm
        full((9, ce_p, cse_p)), full((1, cse_p)),               # w_dila, b_dila
        full((cse_p, ce_p)), full((1, ce_p)),                   # w_se1, b_se1
        full((ce_p, cout_p)), full((1, cout_p)),                # w_zoom, b_zoom
        full((cin_p, cout_p)), full((1, cout_p)),               # w_skip, b_skip
    ]
    return pl.pallas_call(
        kernel,
        grid=(n,),
        in_specs=in_specs,
        out_specs=pl.BlockSpec((None, hw, cout_p), lambda i: (i, 0, 0)),
        out_shape=jax.ShapeDtypeStruct((n, hw, cout_p), jnp.float32),
        scratch_shapes=[
            pltpu.VMEM((hw + 2 * pad1, ce_p), jnp.float32),
            pltpu.VMEM((hw + 2 * pad2, ce_p), jnp.float32),
        ],
        compiler_params=pltpu.CompilerParams(
            dimension_semantics=("parallel",),
            vmem_limit_bytes=48 * 1024 * 1024),
    )(x_img, col, scale, shift,
      pp["w_exp"], pp["b_exp"], pp["w_norm"], pp["b_norm"],
      pp["w_dila"], pp["b_dila"], pp["w_se1"], pp["b_se1"],
      pp["w_zoom"], pp["b_zoom"], pp["w_skip"], pp["b_skip"])


# ---------------------------------------------------------------------------
# Kernel 3: MaxPool2d(2, stride=2)
# ---------------------------------------------------------------------------
def _maxpool_kernel(c_p, x_ref, o_ref):
    v = x_ref[...]                                   # (TB, 2, Wp, 2*C)
    h = jnp.maximum(v[..., :c_p], v[..., c_p:])      # horizontal pair max
    o_ref[...] = jnp.maximum(h[:, 0], h[:, 1])       # vertical pair max


def maxpool2x2(out_rows, *, N, H, W, c_p):
    # out_rows: (N, H*W, c_p); the HBM-side reshape regroups adjacent pixels
    # so the horizontal max becomes an aligned lane-slice max and every block
    # is lane-dense with second-minor >= 8.
    Hp, Wp = H // 2, W // 2
    rows = N * Hp
    x4 = out_rows.reshape(rows, 2, Wp, 2 * c_p)
    per_pair_bytes = 2 * Wp * 2 * c_p * 4
    tb = _largest_divisor_leq(rows, max(1, (1 << 20) // per_pair_bytes))
    return pl.pallas_call(
        functools.partial(_maxpool_kernel, c_p),
        grid=(rows // tb,),
        in_specs=[pl.BlockSpec((tb, 2, Wp, 2 * c_p),
                               lambda i: (i, 0, 0, 0))],
        out_specs=pl.BlockSpec((tb, Wp, c_p), lambda i: (i, 0, 0)),
        out_shape=jax.ShapeDtypeStruct((rows, Wp, c_p), jnp.float32),
        compiler_params=pltpu.CompilerParams(
            dimension_semantics=("parallel",)),
    )(x4)


# ---------------------------------------------------------------------------
# Parameters (synthetic, PyTorch-like init) and padding to lane-dense layouts
# ---------------------------------------------------------------------------
def init_params(key, in_channels, out_channels):
    ce = out_channels * 2
    cse = ce // 2
    ks = jax.random.split(key, 12)

    def u(k, shape, fan_in):
        b = 1.0 / math.sqrt(fan_in)
        return jax.random.uniform(k, shape, jnp.float32, -b, b)

    p = {}
    p["w_exp"] = u(ks[0], (in_channels, ce), in_channels)
    p["b_exp"] = u(ks[1], (ce,), in_channels)
    p["w_skip"] = u(ks[2], (in_channels, out_channels), in_channels)
    p["b_skip"] = u(ks[3], (out_channels,), in_channels)
    p["w_zoom"] = u(ks[4], (ce, out_channels), ce)
    p["b_zoom"] = u(ks[5], (out_channels,), ce)
    p["bn_gamma"] = jnp.ones((ce,), jnp.float32)
    p["bn_beta"] = jnp.zeros((ce,), jnp.float32)
    # 3x3 weights stored tap-major (ky, kx, cin, cout); permute PyTorch
    # (cout, cin, ky, kx) weights before loading a real checkpoint.
    p["w_norm"] = u(ks[6], (3, 3, ce, ce), 9 * ce)
    p["b_norm"] = u(ks[7], (ce,), 9 * ce)
    p["w_dila"] = u(ks[8], (3, 3, ce, cse), 9 * ce)
    p["b_dila"] = u(ks[9], (cse,), 9 * ce)
    p["w_se1"] = u(ks[10], (cse, ce), cse)
    p["b_se1"] = u(ks[11], (ce,), cse)
    return p


def prepare_params(p, in_channels, out_channels):
    """Zero-pad channel dims to 128-lane multiples; weights bf16, biases f32."""
    ce = out_channels * 2
    cse = ce // 2
    cin_p = _round_up(in_channels, LANE)
    ce_p = _round_up(ce, LANE)
    cse_p = _round_up(cse, LANE)
    cout_p = _round_up(out_channels, LANE)

    def pad2(a, r, c):
        return jnp.pad(a, ((0, r - a.shape[0]), (0, c - a.shape[1]))
                       ).astype(jnp.bfloat16)

    def pad_row(a, c):
        return jnp.pad(a, (0, c - a.shape[0])).reshape(1, c).astype(jnp.float32)

    def pad_taps(a, ci, co):
        a = jnp.pad(a, ((0, 0), (0, 0),
                        (0, ci - a.shape[2]), (0, co - a.shape[3])))
        return a.reshape(9, ci, co).astype(jnp.bfloat16)

    q = {}
    q["w_exp"] = pad2(p["w_exp"], cin_p, ce_p)
    q["b_exp"] = pad_row(p["b_exp"], ce_p)
    q["w_skip"] = pad2(p["w_skip"], cin_p, cout_p)
    q["b_skip"] = pad_row(p["b_skip"], cout_p)
    q["w_zoom"] = pad2(p["w_zoom"], ce_p, cout_p)
    q["b_zoom"] = pad_row(p["b_zoom"], cout_p)
    q["bn_gamma"] = pad_row(p["bn_gamma"], ce_p)   # padded lanes: gamma=0 -> dead
    q["bn_beta"] = pad_row(p["bn_beta"], ce_p)
    q["w_norm"] = pad_taps(p["w_norm"], ce_p, ce_p)
    q["b_norm"] = pad_row(p["b_norm"], ce_p)
    q["w_dila"] = pad_taps(p["w_dila"], ce_p, cse_p)
    q["b_dila"] = pad_row(p["b_dila"], cse_p)
    q["w_se1"] = pad2(p["w_se1"], cse_p, ce_p)
    q["b_se1"] = pad_row(p["b_se1"], ce_p)
    return q


# ---------------------------------------------------------------------------
# Down.forward: RecombinationBlock, then MaxPool2d(2,2); returns (x, pooled)
# ---------------------------------------------------------------------------
def down_forward(pp, x_nchw, out_channels):
    N, cin, H, W = x_nchw.shape
    assert H % 2 == 0 and W % 2 == 0, "MaxPool2d(2,2) path assumes even H, W"
    ce = out_channels * 2
    cin_p = _round_up(cin, LANE)
    ce_p = _round_up(ce, LANE)
    cout_p = _round_up(out_channels, LANE)
    HW = H * W
    M = N * HW

    # layout plumbing: NCHW -> channels-last, zero-pad channels, bf16 activations
    x_nhwc = jnp.transpose(x_nchw, (0, 2, 3, 1)).astype(jnp.float32)
    x_pad = jnp.pad(x_nhwc, ((0, 0), (0, 0), (0, 0), (0, cin_p - cin)))
    x_img = x_pad.reshape(N, HW, cin_p).astype(jnp.bfloat16)
    x_flat = x_img.reshape(M, cin_p)

    # x coordinate of every flattened row (same for all images) -> conv masks
    col = (jnp.arange(HW, dtype=jnp.int32) % W).reshape(HW, 1)

    # training-mode BatchNorm statistics of the expansion conv output
    tile_m = _pick_tile_m(M)
    s, ssq = expansion_batch_stats(x_flat, pp["w_exp"], pp["b_exp"],
                                   tile_m=tile_m)
    mean = s / M
    var = jnp.maximum(ssq / M - mean * mean, 0.0)   # biased var (BN training)
    inv = jax.lax.rsqrt(var + 1e-5)
    scale = pp["bn_gamma"] * inv
    shift = pp["bn_beta"] - mean * scale
    # TODO(synk): BatchNorm running_mean/running_var buffers are not updated
    # (module training state; the forward output does not depend on them).

    # fused RecombinationBlock
    out_rows = recombination_block(x_img, col, scale, shift, pp, H=H, W=W)

    # MaxPool2d(2, 2)
    pooled_rows = maxpool2x2(out_rows, N=N, H=H, W=W, c_p=cout_p)

    # back to PyTorch NCHW, dropping channel padding
    x_full = jnp.transpose(
        out_rows.reshape(N, H, W, cout_p)[..., :out_channels], (0, 3, 1, 2))
    pooled = jnp.transpose(
        pooled_rows.reshape(N, H // 2, W // 2, cout_p)[..., :out_channels],
        (0, 3, 1, 2))
    return x_full, pooled


if __name__ == "__main__":
    key = jax.random.PRNGKey(0)
    k_x, k_p = jax.random.split(key)

    in_channels, out_channels = 4, 8
    N, H, W = 2, 16, 16
    x = jax.random.normal(k_x, (N, in_channels, H, W), jnp.float32)
    params = prepare_params(init_params(k_p, in_channels, out_channels),
                            in_channels, out_channels)

    fwd = jax.jit(functools.partial(down_forward, out_channels=out_channels))
    x_full, pooled = fwd(params, x)
    jax.block_until_ready((x_full, pooled))

    assert x_full.shape == (N, out_channels, H, W)
    assert pooled.shape == (N, out_channels, H // 2, W // 2)
    assert bool(jnp.all(jnp.isfinite(x_full)))
    assert bool(jnp.all(jnp.isfinite(pooled)))
    print("KERNEL_OK")
</pallas_src>

<mosaic_0001>
module attributes {stable_mosaic.version = 11 : i64} {
  func.func @_expansion_stats_kernel(%arg0: i32, %arg1: memref<256x128xbf16, #tpu.memory_space<vmem>>, %arg2: memref<128x128xbf16, #tpu.memory_space<vmem>>, %arg3: memref<1x128xf32, #tpu.memory_space<vmem>>, %arg4: memref<1x128xf32, #tpu.memory_space<vmem>>, %arg5: memref<1x128xf32, #tpu.memory_space<vmem>>) attributes {dimension_semantics = [#tpu.dimension_semantics<arbitrary>], iteration_bounds = array<i64: 2>, scalar_prefetch = 0 : i64, scratch_operands = 0 : i64, tpu.core_type = #tpu.core_type<tc>, window_params = [{transform_indices = @transform_0, window_bounds = array<i64: 256, 128>}, {pipeline_mode = #tpu.pipeline_mode<synchronous>, transform_indices = @transform_1, window_bounds = array<i64: 128, 128>}, {pipeline_mode = #tpu.pipeline_mode<synchronous>, transform_indices = @transform_2, window_bounds = array<i64: 1, 128>}, {pipeline_mode = #tpu.pipeline_mode<synchronous>, transform_indices = @transform_3, window_bounds = array<i64: 1, 128>}, {pipeline_mode = #tpu.pipeline_mode<synchronous>, transform_indices = @transform_4, window_bounds = array<i64: 1, 128>}]} {
    %c0_i32 = arith.constant 0 : i32
    %0 = arith.cmpi eq, %arg0, %c0_i32 : i32
    %1 = arith.extui %0 : i1 to i32
    %c0_i32_0 = arith.constant 0 : i32
    %2 = arith.cmpi ne, %1, %c0_i32_0 : i32
    scf.if %2 {
      %cst_16 = arith.constant 0.000000e+00 : f32
      %20 = vector.broadcast %cst_16 : f32 to vector<1x128xf32>
      %c0_17 = arith.constant 0 : index
      %c0_18 = arith.constant 0 : index
      %21 = vector.load %arg4[%c0_17, %c0_18] : memref<1x128xf32, #tpu.memory_space<vmem>>, vector<1x128xf32>
      tpu.vector_store %arg4[%c0_17, %c0_18], %20 {strides = array<i32>} : memref<1x128xf32, #tpu.memory_space<vmem>>, vector<1x128xf32>,
      %cst_19 = arith.constant 0.000000e+00 : f32
      %22 = vector.broadcast %cst_19 : f32 to vector<1x128xf32>
      %c0_20 = arith.constant 0 : index
      %c0_21 = arith.constant 0 : index
      %23 = vector.load %arg5[%c0_20, %c0_21] : memref<1x128xf32, #tpu.memory_space<vmem>>, vector<1x128xf32>
      tpu.vector_store %arg5[%c0_20, %c0_21], %22 {strides = array<i32>} : memref<1x128xf32, #tpu.memory_space<vmem>>, vector<1x128xf32>,
    } else {
    }
    %c0 = arith.constant 0 : index
    %c0_1 = arith.constant 0 : index
    %3 = vector.load %arg1[%c0, %c0_1] : memref<256x128xbf16, #tpu.memory_space<vmem>>, vector<256x128xbf16>
    %c0_2 = arith.constant 0 : index
    %c0_3 = arith.constant 0 : index
    %4 = vector.load %arg2[%c0_2, %c0_3] : memref<128x128xbf16, #tpu.memory_space<vmem>>, vector<128x128xbf16>
    %cst = arith.constant dense<0.000000e+00> : vector<256x128xf32>
    %5 = tpu.matmul %3, %4, %cst {dimension_numbers = #tpu.dot_dimension_numbers<[1], [0], [0], [1], [0, 0, 1, 1], [], []>} : vector<256x128xbf16>, vector<128x128xbf16>, vector<256x128xf32> -> vector<256x128xf32>
    %c0_4 = arith.constant 0 : index
    %c0_5 = arith.constant 0 : index
    %6 = vector.load %arg3[%c0_4, %c0_5] : memref<1x128xf32, #tpu.memory_space<vmem>>, vector<1x128xf32>
    %7 = vector.broadcast %6 : vector<1x128xf32> to vector<256x128xf32>
    %8 = arith.addf %5, %7 : vector<256x128xf32>
    %c0_6 = arith.constant 0 : index
    %c0_7 = arith.constant 0 : index
    %9 = vector.load %arg4[%c0_6, %c0_7] : memref<1x128xf32, #tpu.memory_space<vmem>>, vector<1x128xf32>
    %cst_8 = arith.constant dense<0.000000e+00> : vector<128xf32>
    %10 = vector.multi_reduction <add>, %8, %cst_8 [0] : vector<256x128xf32> to vector<128xf32>
    %11 = vector.shape_cast %10 : vector<128xf32> to vector<1x128xf32>
    %12 = arith.addf %9, %11 : vector<1x128xf32>
    %c0_9 = arith.constant 0 : index
    %c0_10 = arith.constant 0 : index
    %13 = vector.load %arg4[%c0_9, %c0_10] : memref<1x128xf32, #tpu.memory_space<vmem>>, vector<1x128xf32>
    tpu.vector_store %arg4[%c0_9, %c0_10], %12 {strides = array<i32>} : memref<1x128xf32, #tpu.memory_space<vmem>>, vector<1x128xf32>,
    %c0_11 = arith.constant 0 : index
    %c0_12 = arith.constant 0 : index
    %14 = vector.load %arg5[%c0_11, %c0_12] : memref<1x128xf32, #tpu.memory_space<vmem>>, vector<1x128xf32>
    %15 = arith.mulf %8, %8 : vector<256x128xf32>
    %cst_13 = arith.constant dense<0.000000e+00> : vector<128xf32>
    %16 = vector.multi_reduction <add>, %15, %cst_13 [0] : vector<256x128xf32> to vector<128xf32>
    %17 = vector.shape_cast %16 : vector<128xf32> to vector<1x128xf32>
    %18 = arith.addf %14, %17 : vector<1x128xf32>
    %c0_14 = arith.constant 0 : index
    %c0_15 = arith.constant 0 : index
    %19 = vector.load %arg5[%c0_14, %c0_15] : memref<1x128xf32, #tpu.memory_space<vmem>>, vector<1x128xf32>
    tpu.vector_store %arg5[%c0_14, %c0_15], %18 {strides = array<i32>} : memref<1x128xf32, #tpu.memory_space<vmem>>, vector<1x128xf32>,
    return
  }
  func.func @transform_0(%arg0: i32) -> (i32, i32) {
    %c0_i32 = arith.constant 0 : i32
    %c0_i32_0 = arith.constant 0 : i32
    return %arg0, %c0_i32 : i32, i32
  }
  func.func @transform_1(%arg0: i32) -> (i32, i32) {
    %c0_i32 = arith.constant 0 : i32
    %c0_i32_0 = arith.constant 0 : i32
    %c0_i32_1 = arith.constant 0 : i32
    return %c0_i32, %c0_i32_0 : i32, i32
  }
  func.func @transform_2(%arg0: i32) -> (i32, i32) {
    %c0_i32 = arith.constant 0 : i32
    %c0_i32_0 = arith.constant 0 : i32
    %c0_i32_1 = arith.constant 0 : i32
    return %c0_i32, %c0_i32_0 : i32, i32
  }
  func.func @transform_3(%arg0: i32) -> (i32, i32) {
    %c0_i32 = arith.constant 0 : i32
    %c0_i32_0 = arith.constant 0 : i32
    %c0_i32_1 = arith.constant 0 : i32
    return %c0_i32, %c0_i32_0 : i32, i32
  }
  func.func @transform_4(%arg0: i32) -> (i32, i32) {
    %c0_i32 = arith.constant 0 : i32
    %c0_i32_0 = arith.constant 0 : i32
    %c0_i32_1 = arith.constant 0 : i32
    return %c0_i32, %c0_i32_0 : i32, i32
  }
}

module attributes {stable_mosaic.version = 11 : i64} {
  func.func @_maxpool_kernel(%arg0: i32, %arg1: memref<16x2x8x256xf32, #tpu.memory_space<vmem>>, %arg2: memref<16x8x128xf32, #tpu.memory_space<vmem>>) attributes {dimension_semantics = [#tpu.dimension_semantics<parallel>], iteration_bounds = array<i64: 1>, scalar_prefetch = 0 : i64, scratch_operands = 0 : i64, tpu.core_type = #tpu.core_type<tc>, window_params = [{transform_indices = @transform_0, window_bounds = array<i64: 16, 2, 8, 256>}, {transform_indices = @transform_1, window_bounds = array<i64: 16, 8, 128>}]} {
    %c0 = arith.constant 0 : index
    %c0_0 = arith.constant 0 : index
    %c0_1 = arith.constant 0 : index
    %c0_2 = arith.constant 0 : index
    %0 = vector.load %arg1[%c0, %c0_0, %c0_1, %c0_2] : memref<16x2x8x256xf32, #tpu.memory_space<vmem>>, vector<16x2x8x256xf32>
    %1 = vector.extract_strided_slice %0 {offsets = [0, 0, 0, 0], sizes = [16, 2, 8, 128], strides = [1, 1, 1, 1]} : vector<16x2x8x256xf32> to vector<16x2x8x128xf32>
    %2 = vector.extract_strided_slice %0 {offsets = [0, 0, 0, 128], sizes = [16, 2, 8, 128], strides = [1, 1, 1, 1]} : vector<16x2x8x256xf32> to vector<16x2x8x128xf32>
    %3 = arith.maximumf %1, %2 : vector<16x2x8x128xf32>
    %4 = vector.extract_strided_slice %3 {offsets = [0, 0, 0, 0], sizes = [16, 1, 8, 128], strides = [1, 1, 1, 1]} : vector<16x2x8x128xf32> to vector<16x1x8x128xf32>
    %5 = vector.shape_cast %4 : vector<16x1x8x128xf32> to vector<16x8x128xf32>
    %6 = vector.extract_strided_slice %3 {offsets = [0, 1, 0, 0], sizes = [16, 1, 8, 128], strides = [1, 1, 1, 1]} : vector<16x2x8x128xf32> to vector<16x1x8x128xf32>
    %7 = vector.shape_cast %6 : vector<16x1x8x128xf32> to vector<16x8x128xf32>
    %8 = arith.maximumf %5, %7 : vector<16x8x128xf32>
    %c0_3 = arith.constant 0 : index
    %c0_4 = arith.constant 0 : index
    %c0_5 = arith.constant 0 : index
    %9 = vector.load %arg2[%c0_3, %c0_4, %c0_5] : memref<16x8x128xf32, #tpu.memory_space<vmem>>, vector<16x8x128xf32>
    tpu.vector_store %arg2[%c0_3, %c0_4, %c0_5], %8 {strides = array<i32>} : memref<16x8x128xf32, #tpu.memory_space<vmem>>, vector<16x8x128xf32>,
    return
  }
  func.func @transform_0(%arg0: i32) -> (i32, i32, i32, i32) {
    %c0_i32 = arith.constant 0 : i32
    %c0_i32_0 = arith.constant 0 : i32
    %c0_i32_1 = arith.constant 0 : i32
    %c0_i32_2 = arith.constant 0 : i32
    return %arg0, %c0_i32, %c0_i32_0, %c0_i32_1 : i32, i32, i32, i32
  }
  func.func @transform_1(%arg0: i32) -> (i32, i32, i32) {
    %c0_i32 = arith.constant 0 : i32
    %c0_i32_0 = arith.constant 0 : i32
    %c0_i32_1 = arith.constant 0 : i32
    return %arg0, %c0_i32, %c0_i32_0 : i32, i32, i32
  }
}

module attributes {stable_mosaic.version = 11 : i64} {
  func.func @_recombination_kernel(%arg0: i32, %arg1: memref<1x256x128xbf16, #tpu.memory_space<vmem>>, %arg2: memref<256x1xi32, #tpu.memory_space<vmem>>, %arg3: memref<1x128xf32, #tpu.memory_space<vmem>>, %arg4: memref<1x128xf32, #tpu.memory_space<vmem>>, %arg5: memref<128x128xbf16, #tpu.memory_space<vmem>>, %arg6: memref<1x128xf32, #tpu.memory_space<vmem>>, %arg7: memref<9x128x128xbf16, #tpu.memory_space<vmem>>, %arg8: memref<1x128xf32, #tpu.memory_space<vmem>>, %arg9: memref<9x128x128xbf16, #tpu.memory_space<vmem>>, %arg10: memref<1x128xf32, #tpu.memory_space<vmem>>, %arg11: memref<128x128xbf16, #tpu.memory_space<vmem>>, %arg12: memref<1x128xf32, #tpu.memory_space<vmem>>, %arg13: memref<128x128xbf16, #tpu.memory_space<vmem>>, %arg14: memref<1x128xf32, #tpu.memory_space<vmem>>, %arg15: memref<128x128xbf16, #tpu.memory_space<vmem>>, %arg16: memref<1x128xf32, #tpu.memory_space<vmem>>, %arg17: memref<1x256x128xf32, #tpu.memory_space<vmem>>, %arg18: memref<304x128xf32, #tpu.memory_space<vmem>>, %arg19: memref<336x128xf32, #tpu.memory_space<vmem>>) attributes {dimension_semantics = [#tpu.dimension_semantics<parallel>], iteration_bounds = array<i64: 2>, scalar_prefetch = 0 : i64, scratch_operands = 2 : i64, tpu.core_type = #tpu.core_type<tc>, window_params = [{transform_indices = @transform_0, window_bounds = array<i64: 1, 256, 128>}, {pipeline_mode = #tpu.pipeline_mode<synchronous>, transform_indices = @transform_1, window_bounds = array<i64: 256, 1>}, {pipeline_mode = #tpu.pipeline_mode<synchronous>, transform_indices = @transform_2, window_bounds = array<i64: 1, 128>}, {pipeline_mode = #tpu.pipeline_mode<synchronous>, transform_indices = @transform_3, window_bounds = array<i64: 1, 128>}, {pipeline_mode = #tpu.pipeline_mode<synchronous>, transform_indices = @transform_4, window_bounds = array<i64: 128, 128>}, {pipeline_mode = #tpu.pipeline_mode<synchronous>, transform_indices = @transform_5, window_bounds = array<i64: 1, 128>}, {pipeline_mode = #tpu.pipeline_mode<synchronous>, transform_indices = @transform_6, window_bounds = array<i64: 9, 128, 128>}, {pipeline_mode = #tpu.pipeline_mode<synchronous>, transform_indices = @transform_7, window_bounds = array<i64: 1, 128>}, {pipeline_mode = #tpu.pipeline_mode<synchronous>, transform_indices = @transform_8, window_bounds = array<i64: 9, 128, 128>}, {pipeline_mode = #tpu.pipeline_mode<synchronous>, transform_indices = @transform_9, window_bounds = array<i64: 1, 128>}, {pipeline_mode = #tpu.pipeline_mode<synchronous>, transform_indices = @transform_10, window_bounds = array<i64: 128, 128>}, {pipeline_mode = #tpu.pipeline_mode<synchronous>, transform_indices = @transform_11, window_bounds = array<i64: 1, 128>}, {pipeline_mode = #tpu.pipeline_mode<synchronous>, transform_indices = @transform_12, window_bounds = array<i64: 128, 128>}, {pipeline_mode = #tpu.pipeline_mode<synchronous>, transform_indices = @transform_13, window_bounds = array<i64: 1, 128>}, {pipeline_mode = #tpu.pipeline_mode<synchronous>, transform_indices = @transform_14, window_bounds = array<i64: 128, 128>}, {pipeline_mode = #tpu.pipeline_mode<synchronous>, transform_indices = @transform_15, window_bounds = array<i64: 1, 128>}, {transform_indices = @transform_16, window_bounds = array<i64: 1, 256, 128>}]} {
    %c0 = arith.constant 0 : index
    %c0_0 = arith.constant 0 : index
    %c0_1 = arith.constant 0 : index
    %0 = vector.load %arg1[%c0, %c0_0, %c0_1] : memref<1x256x128xbf16, #tpu.memory_space<vmem>>, vector<1x256x128xbf16>
    %1 = vector.shape_cast %0 : vector<1x256x128xbf16> to vector<256x128xbf16>
    %c0_2 = arith.constant 0 : index
    %c0_3 = arith.constant 0 : index
    %2 = vector.load %arg2[%c0_2, %c0_3] : memref<256x1xi32, #tpu.memory_space<vmem>>, vector<256x1xi32>
    %c0_4 = arith.constant 0 : index
    %c0_5 = arith.constant 0 : index
    %3 = vector.load %arg5[%c0_4, %c0_5] : memref<128x128xbf16, #tpu.memory_space<vmem>>, vector<128x128xbf16>
    %cst = arith.constant dense<0.000000e+00> : vector<256x128xf32>
    %4 = tpu.matmul %1, %3, %cst {dimension_numbers = #tpu.dot_dimension_numbers<[1], [0], [0], [1], [0, 0, 1, 1], [], []>} : vector<256x128xbf16>, vector<128x128xbf16>, vector<256x128xf32> -> vector<256x128xf32>
    %c0_6 = arith.constant 0 : index
    %c0_7 = arith.constant 0 : index
    %5 = vector.load %arg6[%c0_6, %c0_7] : memref<1x128xf32, #tpu.memory_space<vmem>>, vector<1x128xf32>
    %6 = vector.broadcast %5 : vector<1x128xf32> to vector<256x128xf32>
    %7 = arith.addf %4, %6 : vector<256x128xf32>
    %c0_8 = arith.constant 0 : index
    %c0_9 = arith.constant 0 : index
    %8 = vector.load %arg3[%c0_8, %c0_9] : memref<1x128xf32, #tpu.memory_space<vmem>>, vector<1x128xf32>
    %9 = vector.broadcast %8 : vector<1x128xf32> to vector<256x128xf32>
    %10 = arith.mulf %7, %9 : vector<256x128xf32>
    %c0_10 = arith.constant 0 : index
    %c0_11 = arith.constant 0 : index
    %11 = vector.load %arg4[%c0_10, %c0_11] : memref<1x128xf32, #tpu.memory_space<vmem>>, vector<1x128xf32>
    %12 = vector.broadcast %11 : vector<1x128xf32> to vector<256x128xf32>
    %13 = arith.addf %10, %12 : vector<256x128xf32>
    %cst_12 = arith.constant 0.000000e+00 : f32
    %cst_13 = arith.constant 6.000000e+00 : f32
    %14 = vector.broadcast %cst_12 : f32 to vector<256x128xf32>
    %15 = arith.maximumf %14, %13 : vector<256x128xf32>
    %16 = vector.broadcast %cst_13 : f32 to vector<256x128xf32>
    %17 = arith.minimumf %16, %15 : vector<256x128xf32>
    %cst_14 = arith.constant 0.000000e+00 : f32
    %18 = vector.broadcast %cst_14 : f32 to vector<24x128xf32>
    %c0_15 = arith.constant 0 : index
    %c0_16 = arith.constant 0 : index
    %19 = vector.load %arg18[%c0_15, %c0_16] : memref<304x128xf32, #tpu.memory_space<vmem>>, vector<24x128xf32>
    tpu.vector_store %arg18[%c0_15, %c0_16], %18 {strides = array<i32>} : memref<304x128xf32, #tpu.memory_space<vmem>>, vector<24x128xf32>,
    %cst_17 = arith.constant 0.000000e+00 : f32
    %20 = vector.broadcast %cst_17 : f32 to vector<24x128xf32>
    %c280 = arith.constant 280 : index
    %c0_18 = arith.constant 0 : index
    %21 = vector.load %arg18[%c280, %c0_18] : memref<304x128xf32, #tpu.memory_space<vmem>>, vector<24x128xf32>
    tpu.vector_store %arg18[%c280, %c0_18], %20 {strides = array<i32>} : memref<304x128xf32, #tpu.memory_space<vmem>>, vector<24x128xf32>,
    %c24 = arith.constant 24 : index
    %c0_19 = arith.constant 0 : index
    %22 = vector.load %arg18[%c24, %c0_19] : memref<304x128xf32, #tpu.memory_space<vmem>>, vector<256x128xf32>
    tpu.vector_store %arg18[%c24, %c0_19], %17 {strides = array<i32>} : memref<304x128xf32, #tpu.memory_space<vmem>>, vector<256x128xf32>,
    %c1_i32 = arith.constant 1 : i32
    %23 = vector.broadcast %c1_i32 : i32 to vector<256x1xi32>
    %24 = arith.cmpi sge, %2, %23 : vector<256x1xi32>
    %25 = arith.extui %24 : vector<256x1xi1> to vector<256x1xi32>
    %26 = arith.sitofp %25 : vector<256x1xi32> to vector<256x1xf32>
    %c14_i32 = arith.constant 14 : i32
    %27 = vector.broadcast %c14_i32 : i32 to vector<256x1xi32>
    %28 = arith.cmpi sle, %2, %27 : vector<256x1xi32>
    %29 = arith.extui %28 : vector<256x1xi1> to vector<256x1xi32>
    %30 = arith.sitofp %29 : vector<256x1xi32> to vector<256x1xf32>
    %cst_20 = arith.constant 0.000000e+00 : f32
    %31 = vector.broadcast %cst_20 : f32 to vector<256x128xf32>
    %c7 = arith.constant 7 : index
    %c0_21 = arith.constant 0 : index
    %32 = vector.load %arg18[%c7, %c0_21] : memref<304x128xf32, #tpu.memory_space<vmem>>, vector<256x128xf32>
    %33 = vector.broadcast %26 : vector<256x1xf32> to vector<256x128xf32>
    %34 = arith.mulf %32, %33 : vector<256x128xf32>
    %35 = arith.truncf %34 : vector<256x128xf32> to vector<256x128xbf16>
    %c0_22 = arith.constant 0 : index
    %c0_23 = arith.constant 0 : index
    %c0_24 = arith.constant 0 : index
    %36 = vector.load %arg7[%c0_22, %c0_23, %c0_24] : memref<9x128x128xbf16, #tpu.memory_space<vmem>>, vector<1x128x128xbf16>
    %37 = vector.shape_cast %36 : vector<1x128x128xbf16> to vector<128x128xbf16>
    %cst_25 = arith.constant dense<0.000000e+00> : vector<256x128xf32>
    %38 = tpu.matmul %35, %37, %cst_25 {dimension_numbers = #tpu.dot_dimension_numbers<[1], [0], [0], [1], [0, 0, 1, 1], [], []>} : vector<256x128xbf16>, vector<128x128xbf16>, vector<256x128xf32> -> vector<256x128xf32>
    %39 = arith.addf %31, %38 : vector<256x128xf32>
    %c8 = arith.constant 8 : index
    %c0_26 = arith.constant 0 : index
    %40 = vector.load %arg18[%c8, %c0_26] : memref<304x128xf32, #tpu.memory_space<vmem>>, vector<256x128xf32>
    %41 = arith.truncf %40 : vector<256x128xf32> to vector<256x128xbf16>
    %c1 = arith.constant 1 : index
    %c0_27 = arith.constant 0 : index
    %c0_28 = arith.constant 0 : index
    %42 = vector.load %arg7[%c1, %c0_27, %c0_28] : memref<9x128x128xbf16, #tpu.memory_space<vmem>>, vector<1x128x128xbf16>
    %43 = vector.shape_cast %42 : vector<1x128x128xbf16> to vector<128x128xbf16>
    %cst_29 = arith.constant dense<0.000000e+00> : vector<256x128xf32>
    %44 = tpu.matmul %41, %43, %cst_29 {dimension_numbers = #tpu.dot_dimension_numbers<[1], [0], [0], [1], [0, 0, 1, 1], [], []>} : vector<256x128xbf16>, vector<128x128xbf16>, vector<256x128xf32> -> vector<256x128xf32>
    %45 = arith.addf %39, %44 : vector<256x128xf32>
    %c9 = arith.constant 9 : index
    %c0_30 = arith.constant 0 : index
    %46 = vector.load %arg18[%c9, %c0_30] : memref<304x128xf32, #tpu.memory_space<vmem>>, vector<256x128xf32>
    %47 = vector.broadcast %30 : vector<256x1xf32> to vector<256x128xf32>
    %48 = arith.mulf %46, %47 : vector<256x128xf32>
    %49 = arith.truncf %48 : vector<256x128xf32> to vector<256x128xbf16>
    %c2 = arith.constant 2 : index
    %c0_31 = arith.constant 0 : index
    %c0_32 = arith.constant 0 : index
    %50 = vector.load %arg7[%c2, %c0_31, %c0_32] : memref<9x128x128xbf16, #tpu.memory_space<vmem>>, vector<1x128x128xbf16>
    %51 = vector.shape_cast %50 : vector<1x128x128xbf16> to vector<128x128xbf16>
    %cst_33 = arith.constant dense<0.000000e+00> : vector<256x128xf32>
    %52 = tpu.matmul %49, %51, %cst_33 {dimension_numbers = #tpu.dot_dimension_numbers<[1], [0], [0], [1], [0, 0, 1, 1], [], []>} : vector<256x128xbf16>, vector<128x128xbf16>, vector<256x128xf32> -> vector<256x128xf32>
    %53 = arith.addf %45, %52 : vector<256x128xf32>
    %c23 = arith.constant 23 : index
    %c0_34 = arith.constant 0 : index
    %54 = vector.load %arg18[%c23, %c0_34] : memref<304x128xf32, #tpu.memory_space<vmem>>, vector<256x128xf32>
    %55 = vector.broadcast %26 : vector<256x1xf32> to vector<256x128xf32>
    %56 = arith.mulf %54, %55 : vector<256x128xf32>
    %57 = arith.truncf %56 : vector<256x128xf32> to vector<256x128xbf16>
    %c3 = arith.constant 3 : index
    %c0_35 = arith.constant 0 : index
    %c0_36 = arith.constant 0 : index
    %58 = vector.load %arg7[%c3, %c0_35, %c0_36] : memref<9x128x128xbf16, #tpu.memory_space<vmem>>, vector<1x128x128xbf16>
    %59 = vector.shape_cast %58 : vector<1x128x128xbf16> to vector<128x128xbf16>
    %cst_37 = arith.constant dense<0.000000e+00> : vector<256x128xf32>
    %60 = tpu.matmul %57, %59, %cst_37 {dimension_numbers = #tpu.dot_dimension_numbers<[1], [0], [0], [1], [0, 0, 1, 1], [], []>} : vector<256x128xbf16>, vector<128x128xbf16>, vector<256x128xf32> -> vector<256x128xf32>
    %61 = arith.addf %53, %60 : vector<256x128xf32>
    %c24_38 = arith.constant 24 : index
    %c0_39 = arith.constant 0 : index
    %62 = vector.load %arg18[%c24_38, %c0_39] : memref<304x128xf32, #tpu.memory_space<vmem>>, vector<256x128xf32>
    %63 = arith.truncf %62 : vector<256x128xf32> to vector<256x128xbf16>
    %c4 = arith.constant 4 : index
    %c0_40 = arith.constant 0 : index
    %c0_41 = arith.constant 0 : index
    %64 = vector.load %arg7[%c4, %c0_40, %c0_41] : memref<9x128x128xbf16, #tpu.memory_space<vmem>>, vector<1x128x128xbf16>
    %65 = vector.shape_cast %64 : vector<1x128x128xbf16> to vector<128x128xbf16>
    %cst_42 = arith.constant dense<0.000000e+00> : vector<256x128xf32>
    %66 = tpu.matmul %63, %65, %cst_42 {dimension_numbers = #tpu.dot_dimension_numbers<[1], [0], [0], [1], [0, 0, 1, 1], [], []>} : vector<256x128xbf16>, vector<128x128xbf16>, vector<256x128xf32> -> vector<256x128xf32>
    %67 = arith.addf %61, %66 : vector<256x128xf32>
    %c25 = arith.constant 25 : index
    %c0_43 = arith.constant 0 : index
    %68 = vector.load %arg18[%c25, %c0_43] : memref<304x128xf32, #tpu.memory_space<vmem>>, vector<256x128xf32>
    %69 = vector.broadcast %30 : vector<256x1xf32> to vector<256x128xf32>
    %70 = arith.mulf %68, %69 : vector<256x128xf32>
    %71 = arith.truncf %70 : vector<256x128xf32> to vector<256x128xbf16>
    %c5 = arith.constant 5 : index
    %c0_44 = arith.constant 0 : index
    %c0_45 = arith.constant 0 : index
    %72 = vector.load %arg7[%c5, %c0_44, %c0_45] : memref<9x128x128xbf16, #tpu.memory_space<vmem>>, vector<1x128x128xbf16>
    %73 = vector.shape_cast %72 : vector<1x128x128xbf16> to vector<128x128xbf16>
    %cst_46 = arith.constant dense<0.000000e+00> : vector<256x128xf32>
    %74 = tpu.matmul %71, %73, %cst_46 {dimension_numbers = #tpu.dot_dimension_numbers<[1], [0], [0], [1], [0, 0, 1, 1], [], []>} : vector<256x128xbf16>, vector<128x128xbf16>, vector<256x128xf32> -> vector<256x128xf32>
    %75 = arith.addf %67, %74 : vector<256x128xf32>
    %c39 = arith.constant 39 : index
    %c0_47 = arith.constant 0 : index
    %76 = vector.load %arg18[%c39, %c0_47] : memref<304x128xf32, #tpu.memory_space<vmem>>, vector<256x128xf32>
    %77 = vector.broadcast %26 : vector<256x1xf32> to vector<256x128xf32>
    %78 = arith.mulf %76, %77 : vector<256x128xf32>
    %79 = arith.truncf %78 : vector<256x128xf32> to vector<256x128xbf16>
    %c6 = arith.constant 6 : index
    %c0_48 = arith.constant 0 : index
    %c0_49 = arith.constant 0 : index
    %80 = vector.load %arg7[%c6, %c0_48, %c0_49] : memref<9x128x128xbf16, #tpu.memory_space<vmem>>, vector<1x128x128xbf16>
    %81 = vector.shape_cast %80 : vector<1x128x128xbf16> to vector<128x128xbf16>
    %cst_50 = arith.constant dense<0.000000e+00> : vector<256x128xf32>
    %82 = tpu.matmul %79, %81, %cst_50 {dimension_numbers = #tpu.dot_dimension_numbers<[1], [0], [0], [1], [0, 0, 1, 1], [], []>} : vector<256x128xbf16>, vector<128x128xbf16>, vector<256x128xf32> -> vector<256x128xf32>
    %83 = arith.addf %75, %82 : vector<256x128xf32>
    %c40 = arith.constant 40 : index
    %c0_51 = arith.constant 0 : index
    %84 = vector.load %arg18[%c40, %c0_51] : memref<304x128xf32, #tpu.memory_space<vmem>>, vector<256x128xf32>
    %85 = arith.truncf %84 : vector<256x128xf32> to vector<256x128xbf16>
    %c7_52 = arith.constant 7 : index
    %c0_53 = arith.constant 0 : index
    %c0_54 = arith.constant 0 : index
    %86 = vector.load %arg7[%c7_52, %c0_53, %c0_54] : memref<9x128x128xbf16, #tpu.memory_space<vmem>>, vector<1x128x128xbf16>
    %87 = vector.shape_cast %86 : vector<1x128x128xbf16> to vector<128x128xbf16>
    %cst_55 = arith.constant dense<0.000000e+00> : vector<256x128xf32>
    %88 = tpu.matmul %85, %87, %cst_55 {dimension_numbers = #tpu.dot_dimension_numbers<[1], [0], [0], [1], [0, 0, 1, 1], [], []>} : vector<256x128xbf16>, vector<128x128xbf16>, vector<256x128xf32> -> vector<256x128xf32>
    %89 = arith.addf %83, %88 : vector<256x128xf32>
    %c41 = arith.constant 41 : index
    %c0_56 = arith.constant 0 : index
    %90 = vector.load %arg18[%c41, %c0_56] : memref<304x128xf32, #tpu.memory_space<vmem>>, vector<256x128xf32>
    %91 = vector.broadcast %30 : vector<256x1xf32> to vector<256x128xf32>
    %92 = arith.mulf %90, %91 : vector<256x128xf32>
    %93 = arith.truncf %92 : vector<256x128xf32> to vector<256x128xbf16>
    %c8_57 = arith.constant 8 : index
    %c0_58 = arith.constant 0 : index
    %c0_59 = arith.constant 0 : index
    %94 = vector.load %arg7[%c8_57, %c0_58, %c0_59] : memref<9x128x128xbf16, #tpu.memory_space<vmem>>, vector<1x128x128xbf16>
    %95 = vector.shape_cast %94 : vector<1x128x128xbf16> to vector<128x128xbf16>
    %cst_60 = arith.constant dense<0.000000e+00> : vector<256x128xf32>
    %96 = tpu.matmul %93, %95, %cst_60 {dimension_numbers = #tpu.dot_dimension_numbers<[1], [0], [0], [1], [0, 0, 1, 1], [], []>} : vector<256x128xbf16>, vector<128x128xbf16>, vector<256x128xf32> -> vector<256x128xf32>
    %97 = arith.addf %89, %96 : vector<256x128xf32>
    %c0_61 = arith.constant 0 : index
    %c0_62 = arith.constant 0 : index
    %98 = vector.load %arg8[%c0_61, %c0_62] : memref<1x128xf32, #tpu.memory_space<vmem>>, vector<1x128xf32>
    %99 = vector.broadcast %98 : vector<1x128xf32> to vector<256x128xf32>
    %100 = arith.addf %97, %99 : vector<256x128xf32>
    %cst_63 = arith.constant 0.000000e+00 : f32
    %101 = vector.broadcast %cst_63 : f32 to vector<40x128xf32>
    %c0_64 = arith.constant 0 : index
    %c0_65 = arith.constant 0 : index
    %102 = vector.load %arg19[%c0_64, %c0_65] : memref<336x128xf32, #tpu.memory_space<vmem>>, vector<40x128xf32>
    tpu.vector_store %arg19[%c0_64, %c0_65], %101 {strides = array<i32>} : memref<336x128xf32, #tpu.memory_space<vmem>>, vector<40x128xf32>,
    %cst_66 = arith.constant 0.000000e+00 : f32
    %103 = vector.broadcast %cst_66 : f32 to vector<40x128xf32>
    %c296 = arith.constant 296 : index
    %c0_67 = arith.constant 0 : index
    %104 = vector.load %arg19[%c296, %c0_67] : memref<336x128xf32, #tpu.memory_space<vmem>>, vector<40x128xf32>
    tpu.vector_store %arg19[%c296, %c0_67], %103 {strides = array<i32>} : memref<336x128xf32, #tpu.memory_space<vmem>>, vector<40x128xf32>,
    %c40_68 = arith.constant 40 : index
    %c0_69 = arith.constant 0 : index
    %105 = vector.load %arg19[%c40_68, %c0_69] : memref<336x128xf32, #tpu.memory_space<vmem>>, vector<256x128xf32>
    tpu.vector_store %arg19[%c40_68, %c0_69], %100 {strides = array<i32>} : memref<336x128xf32, #tpu.memory_space<vmem>>, vector<256x128xf32>,
    %c2_i32 = arith.constant 2 : i32
    %106 = vector.broadcast %c2_i32 : i32 to vector<256x1xi32>
    %107 = arith.cmpi sge, %2, %106 : vector<256x1xi32>
    %108 = arith.extui %107 : vector<256x1xi1> to vector<256x1xi32>
    %109 = arith.sitofp %108 : vector<256x1xi32> to vector<256x1xf32>
    %c13_i32 = arith.constant 13 : i32
    %110 = vector.broadcast %c13_i32 : i32 to vector<256x1xi32>
    %111 = arith.cmpi sle, %2, %110 : vector<256x1xi32>
    %112 = arith.extui %111 : vector<256x1xi1> to vector<256x1xi32>
    %113 = arith.sitofp %112 : vector<256x1xi32> to vector<256x1xf32>
    %cst_70 = arith.constant 0.000000e+00 : f32
    %114 = vector.broadcast %cst_70 : f32 to vector<256x128xf32>
    %c6_71 = arith.constant 6 : index
    %c0_72 = arith.constant 0 : index
    %115 = vector.load %arg19[%c6_71, %c0_72] : memref<336x128xf32, #tpu.memory_space<vmem>>, vector<256x128xf32>
    %116 = vector.broadcast %109 : vector<256x1xf32> to vector<256x128xf32>
    %117 = arith.mulf %115, %116 : vector<256x128xf32>
    %118 = arith.truncf %117 : vector<256x128xf32> to vector<256x128xbf16>
    %c0_73 = arith.constant 0 : index
    %c0_74 = arith.constant 0 : index
    %c0_75 = arith.constant 0 : index
    %119 = vector.load %arg9[%c0_73, %c0_74, %c0_75] : memref<9x128x128xbf16, #tpu.memory_space<vmem>>, vector<1x128x128xbf16>
    %120 = vector.shape_cast %119 : vector<1x128x128xbf16> to vector<128x128xbf16>
    %cst_76 = arith.constant dense<0.000000e+00> : vector<256x128xf32>
    %121 = tpu.matmul %118, %120, %cst_76 {dimension_numbers = #tpu.dot_dimension_numbers<[1], [0], [0], [1], [0, 0, 1, 1], [], []>} : vector<256x128xbf16>, vector<128x128xbf16>, vector<256x128xf32> -> vector<256x128xf32>
    %122 = arith.addf %114, %121 : vector<256x128xf32>
    %c8_77 = arith.constant 8 : index
    %c0_78 = arith.constant 0 : index
    %123 = vector.load %arg19[%c8_77, %c0_78] : memref<336x128xf32, #tpu.memory_space<vmem>>, vector<256x128xf32>
    %124 = arith.truncf %123 : vector<256x128xf32> to vector<256x128xbf16>
    %c1_79 = arith.constant 1 : index
    %c0_80 = arith.constant 0 : index
    %c0_81 = arith.constant 0 : index
    %125 = vector.load %arg9[%c1_79, %c0_80, %c0_81] : memref<9x128x128xbf16, #tpu.memory_space<vmem>>, vector<1x128x128xbf16>
    %126 = vector.shape_cast %125 : vector<1x128x128xbf16> to vector<128x128xbf16>
    %cst_82 = arith.constant dense<0.000000e+00> : vector<256x128xf32>
    %127 = tpu.matmul %124, %126, %cst_82 {dimension_numbers = #tpu.dot_dimension_numbers<[1], [0], [0], [1], [0, 0, 1, 1], [], []>} : vector<256x128xbf16>, vector<128x128xbf16>, vector<256x128xf32> -> vector<256x128xf32>
    %128 = arith.addf %122, %127 : vector<256x128xf32>
    %c10 = arith.constant 10 : index
    %c0_83 = arith.constant 0 : index
    %129 = vector.load %arg19[%c10, %c0_83] : memref<336x128xf32, #tpu.memory_space<vmem>>, vector<256x128xf32>
    %130 = vector.broadcast %113 : vector<256x1xf32> to vector<256x128xf32>
    %131 = arith.mulf %129, %130 : vector<256x128xf32>
    %132 = arith.truncf %131 : vector<256x128xf32> to vector<256x128xbf16>
    %c2_84 = arith.constant 2 : index
    %c0_85 = arith.constant 0 : index
    %c0_86 = arith.constant 0 : index
    %133 = vector.load %arg9[%c2_84, %c0_85, %c0_86] : memref<9x128x128xbf16, #tpu.memory_space<vmem>>, vector<1x128x128xbf16>
    %134 = vector.shape_cast %133 : vector<1x128x128xbf16> to vector<128x128xbf16>
    %cst_87 = arith.constant dense<0.000000e+00> : vector<256x128xf32>
    %135 = tpu.matmul %132, %134, %cst_87 {dimension_numbers = #tpu.dot_dimension_numbers<[1], [0], [0], [1], [0, 0, 1, 1], [], []>} : vector<256x128xbf16>, vector<128x128xbf16>, vector<256x128xf32> -> vector<256x128xf32>
    %136 = arith.addf %128, %135 : vector<256x128xf32>
    %c38 = arith.constant 38 : index
    %c0_88 = arith.constant 0 : index
    %137 = vector.load %arg19[%c38, %c0_88] : memref<336x128xf32, #tpu.memory_space<vmem>>, vector<256x128xf32>
    %138 = vector.broadcast %109 : vector<256x1xf32> to vector<256x128xf32>
    %139 = arith.mulf %137, %138 : vector<256x128xf32>
    %140 = arith.truncf %139 : vector<256x128xf32> to vector<256x128xbf16>
    %c3_89 = arith.constant 3 : index
    %c0_90 = arith.constant 0 : index
    %c0_91 = arith.constant 0 : index
    %141 = vector.load %arg9[%c3_89, %c0_90, %c0_91] : memref<9x128x128xbf16, #tpu.memory_space<vmem>>, vector<1x128x128xbf16>
    %142 = vector.shape_cast %141 : vector<1x128x128xbf16> to vector<128x128xbf16>
    %cst_92 = arith.constant dense<0.000000e+00> : vector<256x128xf32>
    %143 = tpu.matmul %140, %142, %cst_92 {dimension_numbers = #tpu.dot_dimension_numbers<[1], [0], [0], [1], [0, 0, 1, 1], [], []>} : vector<256x128xbf16>, vector<128x128xbf16>, vector<256x128xf32> -> vector<256x128xf32>
    %144 = arith.addf %136, %143 : vector<256x128xf32>
    %c40_93 = arith.constant 40 : index
    %c0_94 = arith.constant 0 : index
    %145 = vector.load %arg19[%c40_93, %c0_94] : memref<336x128xf32, #tpu.memory_space<vmem>>, vector<256x128xf32>
    %146 = arith.truncf %145 : vector<256x128xf32> to vector<256x128xbf16>
    %c4_95 = arith.constant 4 : index
    %c0_96 = arith.constant 0 : index
    %c0_97 = arith.constant 0 : index
    %147 = vector.load %arg9[%c4_95, %c0_96, %c0_97] : memref<9x128x128xbf16, #tpu.memory_space<vmem>>, vector<1x128x128xbf16>
    %148 = vector.shape_cast %147 : vector<1x128x128xbf16> to vector<128x128xbf16>
    %cst_98 = arith.constant dense<0.000000e+00> : vector<256x128xf32>
    %149 = tpu.matmul %146, %148, %cst_98 {dimension_numbers = #tpu.dot_dimension_numbers<[1], [0], [0], [1], [0, 0, 1, 1], [], []>} : vector<256x128xbf16>, vector<128x128xbf16>, vector<256x128xf32> -> vector<256x128xf32>
    %150 = arith.addf %144, %149 : vector<256x128xf32>
    %c42 = arith.constant 42 : index
    %c0_99 = arith.constant 0 : index
    %151 = vector.load %arg19[%c42, %c0_99] : memref<336x128xf32, #tpu.memory_space<vmem>>, vector<256x128xf32>
    %152 = vector.broadcast %113 : vector<256x1xf32> to vector<256x128xf32>
    %153 = arith.mulf %151, %152 : vector<256x128xf32>
    %154 = arith.truncf %153 : vector<256x128xf32> to vector<256x128xbf16>
    %c5_100 = arith.constant 5 : index
    %c0_101 = arith.constant 0 : index
    %c0_102 = arith.constant 0 : index
    %155 = vector.load %arg9[%c5_100, %c0_101, %c0_102] : memref<9x128x128xbf16, #tpu.memory_space<vmem>>, vector<1x128x128xbf16>
    %156 = vector.shape_cast %155 : vector<1x128x128xbf16> to vector<128x128xbf16>
    %cst_103 = arith.constant dense<0.000000e+00> : vector<256x128xf32>
    %157 = tpu.matmul %154, %156, %cst_103 {dimension_numbers = #tpu.dot_dimension_numbers<[1], [0], [0], [1], [0, 0, 1, 1], [], []>} : vector<256x128xbf16>, vector<128x128xbf16>, vector<256x128xf32> -> vector<256x128xf32>
    %158 = arith.addf %150, %157 : vector<256x128xf32>
    %c70 = arith.constant 70 : index
    %c0_104 = arith.constant 0 : index
    %159 = vector.load %arg19[%c70, %c0_104] : memref<336x128xf32, #tpu.memory_space<vmem>>, vector<256x128xf32>
    %160 = vector.broadcast %109 : vector<256x1xf32> to vector<256x128xf32>
    %161 = arith.mulf %159, %160 : vector<256x128xf32>
    %162 = arith.truncf %161 : vector<256x128xf32> to vector<256x128xbf16>
    %c6_105 = arith.constant 6 : index
    %c0_106 = arith.constant 0 : index
    %c0_107 = arith.constant 0 : index
    %163 = vector.load %arg9[%c6_105, %c0_106, %c0_107] : memref<9x128x128xbf16, #tpu.memory_space<vmem>>, vector<1x128x128xbf16>
    %164 = vector.shape_cast %163 : vector<1x128x128xbf16> to vector<128x128xbf16>
    %cst_108 = arith.constant dense<0.000000e+00> : vector<256x128xf32>
    %165 = tpu.matmul %162, %164, %cst_108 {dimension_numbers = #tpu.dot_dimension_numbers<[1], [0], [0], [1], [0, 0, 1, 1], [], []>} : vector<256x128xbf16>, vector<128x128xbf16>, vector<256x128xf32> -> vector<256x128xf32>
    %166 = arith.addf %158, %165 : vector<256x128xf32>
    %c72 = arith.constant 72 : index
    %c0_109 = arith.constant 0 : index
    %167 = vector.load %arg19[%c72, %c0_109] : memref<336x128xf32, #tpu.memory_space<vmem>>, vector<256x128xf32>
    %168 = arith.truncf %167 : vector<256x128xf32> to vector<256x128xbf16>
    %c7_110 = arith.constant 7 : index
    %c0_111 = arith.constant 0 : index
    %c0_112 = arith.constant 0 : index
    %169 = vector.load %arg9[%c7_110, %c0_111, %c0_112] : memref<9x128x128xbf16, #tpu.memory_space<vmem>>, vector<1x128x128xbf16>
    %170 = vector.shape_cast %169 : vector<1x128x128xbf16> to vector<128x128xbf16>
    %cst_113 = arith.constant dense<0.000000e+00> : vector<256x128xf32>
    %171 = tpu.matmul %168, %170, %cst_113 {dimension_numbers = #tpu.dot_dimension_numbers<[1], [0], [0], [1], [0, 0, 1, 1], [], []>} : vector<256x128xbf16>, vector<128x128xbf16>, vector<256x128xf32> -> vector<256x128xf32>
    %172 = arith.addf %166, %171 : vector<256x128xf32>
    %c74 = arith.constant 74 : index
    %c0_114 = arith.constant 0 : index
    %173 = vector.load %arg19[%c74, %c0_114] : memref<336x128xf32, #tpu.memory_space<vmem>>, vector<256x128xf32>
    %174 = vector.broadcast %113 : vector<256x1xf32> to vector<256x128xf32>
    %175 = arith.mulf %173, %174 : vector<256x128xf32>
    %176 = arith.truncf %175 : vector<256x128xf32> to vector<256x128xbf16>
    %c8_115 = arith.constant 8 : index
    %c0_116 = arith.constant 0 : index
    %c0_117 = arith.constant 0 : index
    %177 = vector.load %arg9[%c8_115, %c0_116, %c0_117] : memref<9x128x128xbf16, #tpu.memory_space<vmem>>, vector<1x128x128xbf16>
    %178 = vector.shape_cast %177 : vector<1x128x128xbf16> to vector<128x128xbf16>
    %cst_118 = arith.constant dense<0.000000e+00> : vector<256x128xf32>
    %179 = tpu.matmul %176, %178, %cst_118 {dimension_numbers = #tpu.dot_dimension_numbers<[1], [0], [0], [1], [0, 0, 1, 1], [], []>} : vector<256x128xbf16>, vector<128x128xbf16>, vector<256x128xf32> -> vector<256x128xf32>
    %180 = arith.addf %172, %179 : vector<256x128xf32>
    %c0_119 = arith.constant 0 : index
    %c0_120 = arith.constant 0 : index
    %181 = vector.load %arg10[%c0_119, %c0_120] : memref<1x128xf32, #tpu.memory_space<vmem>>, vector<1x128xf32>
    %182 = vector.broadcast %181 : vector<1x128xf32> to vector<256x128xf32>
    %183 = arith.addf %180, %182 : vector<256x128xf32>
    %184 = arith.truncf %183 : vector<256x128xf32> to vector<256x128xbf16>
    %c0_121 = arith.constant 0 : index
    %c0_122 = arith.constant 0 : index
    %185 = vector.load %arg11[%c0_121, %c0_122] : memref<128x128xbf16, #tpu.memory_space<vmem>>, vector<128x128xbf16>
    %cst_123 = arith.constant dense<0.000000e+00> : vector<256x128xf32>
    %186 = tpu.matmul %184, %185, %cst_123 {dimension_numbers = #tpu.dot_dimension_numbers<[1], [0], [0], [1], [0, 0, 1, 1], [], []>} : vector<256x128xbf16>, vector<128x128xbf16>, vector<256x128xf32> -> vector<256x128xf32>
    %c0_124 = arith.constant 0 : index
    %c0_125 = arith.constant 0 : index
    %187 = vector.load %arg12[%c0_124, %c0_125] : memref<1x128xf32, #tpu.memory_space<vmem>>, vector<1x128xf32>
    %188 = vector.broadcast %187 : vector<1x128xf32> to vector<256x128xf32>
    %189 = arith.addf %186, %188 : vector<256x128xf32>
    %190 = arith.negf %189 : vector<256x128xf32>
    %191 = math.exp %190 : vector<256x128xf32>
    %cst_126 = arith.constant 1.000000e+00 : f32
    %192 = vector.broadcast %cst_126 : f32 to vector<256x128xf32>
    %193 = arith.addf %192, %191 : vector<256x128xf32>
    %194 = arith.divf %192, %193 : vector<256x128xf32>
    %c40_127 = arith.constant 40 : index
    %c0_128 = arith.constant 0 : index
    %195 = vector.load %arg19[%c40_127, %c0_128] : memref<336x128xf32, #tpu.memory_space<vmem>>, vector<256x128xf32>
    %196 = arith.mulf %195, %194 : vector<256x128xf32>
    %197 = arith.truncf %196 : vector<256x128xf32> to vector<256x128xbf16>
    %c0_129 = arith.constant 0 : index
    %c0_130 = arith.constant 0 : index
    %198 = vector.load %arg13[%c0_129, %c0_130] : memref<128x128xbf16, #tpu.memory_space<vmem>>, vector<128x128xbf16>
    %cst_131 = arith.constant dense<0.000000e+00> : vector<256x128xf32>
    %199 = tpu.matmul %197, %198, %cst_131 {dimension_numbers = #tpu.dot_dimension_numbers<[1], [0], [0], [1], [0, 0, 1, 1], [], []>} : vector<256x128xbf16>, vector<128x128xbf16>, vector<256x128xf32> -> vector<256x128xf32>
    %c0_132 = arith.constant 0 : index
    %c0_133 = arith.constant 0 : index
    %200 = vector.load %arg14[%c0_132, %c0_133] : memref<1x128xf32, #tpu.memory_space<vmem>>, vector<1x128xf32>
    %201 = vector.broadcast %200 : vector<1x128xf32> to vector<256x128xf32>
    %202 = arith.addf %199, %201 : vector<256x128xf32>
    %c0_134 = arith.constant 0 : index
    %c0_135 = arith.constant 0 : index
    %203 = vector.load %arg15[%c0_134, %c0_135] : memref<128x128xbf16, #tpu.memory_space<vmem>>, vector<128x128xbf16>
    %cst_136 = arith.constant dense<0.000000e+00> : vector<256x128xf32>
    %204 = tpu.matmul %1, %203, %cst_136 {dimension_numbers = #tpu.dot_dimension_numbers<[1], [0], [0], [1], [0, 0, 1, 1], [], []>} : vector<256x128xbf16>, vector<128x128xbf16>, vector<256x128xf32> -> vector<256x128xf32>
    %c0_137 = arith.constant 0 : index
    %c0_138 = arith.constant 0 : index
    %205 = vector.load %arg16[%c0_137, %c0_138] : memref<1x128xf32, #tpu.memory_space<vmem>>, vector<1x128xf32>
    %206 = vector.broadcast %205 : vector<1x128xf32> to vector<256x128xf32>
    %207 = arith.addf %204, %206 : vector<256x128xf32>
    %208 = arith.addf %202, %207 : vector<256x128xf32>
    %c0_139 = arith.constant 0 : index
    %c0_140 = arith.constant 0 : index
    %c0_141 = arith.constant 0 : index
    %209 = vector.load %arg17[%c0_139, %c0_140, %c0_141] : memref<1x256x128xf32, #tpu.memory_space<vmem>>, vector<1x256x128xf32>
    %210 = vector.shape_cast %209 : vector<1x256x128xf32> to vector<256x128xf32>
    %211 = vector.shape_cast %208 : vector<256x128xf32> to vector<1x256x128xf32>
    tpu.vector_store %arg17[%c0_139, %c0_140, %c0_141], %211 {strides = array<i32>} : memref<1x256x128xf32, #tpu.memory_space<vmem>>, vector<1x256x128xf32>,
    return
  }
  func.func @transform_0(%arg0: i32) -> (i32, i32, i32) {
    %c0_i32 = arith.constant 0 : i32
    %c0_i32_0 = arith.constant 0 : i32
    %c0_i32_1 = arith.constant 0 : i32
    return %arg0, %c0_i32, %c0_i32_0 : i32, i32, i32
  }
  func.func @transform_1(%arg0: i32) -> (i32, i32) {
    %c0_i32 = arith.constant 0 : i32
    %c0_i32_0 = arith.constant 0 : i32
    %c0_i32_1 = arith.constant 0 : i32
    return %c0_i32, %c0_i32_0 : i32, i32
  }
  func.func @transform_2(%arg0: i32) -> (i32, i32) {
    %c0_i32 = arith.constant 0 : i32
    %c0_i32_0 = arith.constant 0 : i32
    %c0_i32_1 = arith.constant 0 : i32
    return %c0_i32, %c0_i32_0 : i32, i32
  }
  func.func @transform_3(%arg0: i32) -> (i32, i32) {
    %c0_i32 = arith.constant 0 : i32
    %c0_i32_0 = arith.constant 0 : i32
    %c0_i32_1 = arith.constant 0 : i32
    return %c0_i32, %c0_i32_0 : i32, i32
  }
  func.func @transform_4(%arg0: i32) -> (i32, i32) {
    %c0_i32 = arith.constant 0 : i32
    %c0_i32_0 = arith.constant 0 : i32
    %c0_i32_1 = arith.constant 0 : i32
    return %c0_i32, %c0_i32_0 : i32, i32
  }
  func.func @transform_5(%arg0: i32) -> (i32, i32) {
    %c0_i32 = arith.constant 0 : i32
    %c0_i32_0 = arith.constant 0 : i32
    %c0_i32_1 = arith.constant 0 : i32
    return %c0_i32, %c0_i32_0 : i32, i32
  }
  func.func @transform_6(%arg0: i32) -> (i32, i32, i32) {
    %c0_i32 = arith.constant 0 : i32
    %c0_i32_0 = arith.constant 0 : i32
    %c0_i32_1 = arith.constant 0 : i32
    %c0_i32_2 = arith.constant 0 : i32
    return %c0_i32, %c0_i32_0, %c0_i32_1 : i32, i32, i32
  }
  func.func @transform_7(%arg0: i32) -> (i32, i32) {
    %c0_i32 = arith.constant 0 : i32
    %c0_i32_0 = arith.constant 0 : i32
    %c0_i32_1 = arith.constant 0 : i32
    return %c0_i32, %c0_i32_0 : i32, i32
  }
  func.func @transform_8(%arg0: i32) -> (i32, i32, i32) {
    %c0_i32 = arith.constant 0 : i32
    %c0_i32_0 = arith.constant 0 : i32
    %c0_i32_1 = arith.constant 0 : i32
    %c0_i32_2 = arith.constant 0 : i32
    return %c0_i32, %c0_i32_0, %c0_i32_1 : i32, i32, i32
  }
  func.func @transform_9(%arg0: i32) -> (i32, i32) {
    %c0_i32 = arith.constant 0 : i32
    %c0_i32_0 = arith.constant 0 : i32
    %c0_i32_1 = arith.constant 0 : i32
    return %c0_i32, %c0_i32_0 : i32, i32
  }
  func.func @transform_10(%arg0: i32) -> (i32, i32) {
    %c0_i32 = arith.constant 0 : i32
    %c0_i32_0 = arith.constant 0 : i32
    %c0_i32_1 = arith.constant 0 : i32
    return %c0_i32, %c0_i32_0 : i32, i32
  }
  func.func @transform_11(%arg0: i32) -> (i32, i32) {
    %c0_i32 = arith.constant 0 : i32
    %c0_i32_0 = arith.constant 0 : i32
    %c0_i32_1 = arith.constant 0 : i32
    return %c0_i32, %c0_i32_0 : i32, i32
  }
  func.func @transform_12(%arg0: i32) -> (i32, i32) {
    %c0_i32 = arith.constant 0 : i32
    %c0_i32_0 = arith.constant 0 : i32
    %c0_i32_1 = arith.constant 0 : i32
    return %c0_i32, %c0_i32_0 : i32, i32
  }
  func.func @transform_13(%arg0: i32) -> (i32, i32) {
    %c0_i32 = arith.constant 0 : i32
    %c0_i32_0 = arith.constant 0 : i32
    %c0_i32_1 = arith.constant 0 : i32
    return %c0_i32, %c0_i32_0 : i32, i32
  }
  func.func @transform_14(%arg0: i32) -> (i32, i32) {
    %c0_i32 = arith.constant 0 : i32
    %c0_i32_0 = arith.constant 0 : i32
    %c0_i32_1 = arith.constant 0 : i32
    return %c0_i32, %c0_i32_0 : i32, i32
  }
  func.func @transform_15(%arg0: i32) -> (i32, i32) {
    %c0_i32 = arith.constant 0 : i32
    %c0_i32_0 = arith.constant 0 : i32
    %c0_i32_1 = arith.constant 0 : i32
    return %c0_i32, %c0_i32_0 : i32, i32
  }
  func.func @transform_16(%arg0: i32) -> (i32, i32, i32) {
    %c0_i32 = arith.constant 0 : i32
    %c0_i32_0 = arith.constant 0 : i32
    %c0_i32_1 = arith.constant 0 : i32
    return %arg0, %c0_i32, %c0_i32_0 : i32, i32, i32
  }
}

</mosaic_0001>

<llo_original>
// kernel: down_forward.5
$region0: #{down_forward.5}
  #allocation0 [shape = 'u32[]', space=smem, size = 0x4, offset = 0x4, fixed_abs, tag = 'smem constant byte address 0x4 - core index']
  #allocation1 [shape = 'u32[144,128]{1,0:T(1,128)}', space=vmem, size = 0x12000, scoped, tag = 'internal scratch']
  %s0 = inlined_call_operand.vmem [shape: f32[16,2,8,256], index: 0, kind: input, shape index: {}]
  %s1 = inlined_call_operand.vmem [shape: f32[16,8,128], index: 1, kind: output, shape index: {}]
  %s2 = sld [smem:[#allocation0]]
  $region14: #{down_forward.5} parent=0
    _
  %s4 = ssub.s32 1, %s2
  %s5 = scalar_select 0, %s4, %s2
  // Predicated region
  $region2: #{down_forward.5} parent=0 // pred_check
    _
  $region3: #{down_forward.5} parent=0 // pred_check_branch
    %7 = sbr.rel (0) target = $region5
  $region4: #{down_forward.5} parent=0 // pred_region
    _
  $region5: #{down_forward.5} parent=0 // pred_fallthru
    _
  %v8 = vld [vmem:[%s0] sm:$0xff]
  %v9 = vld [vmem:[%s0 + $0x8] sm:$0xff]
  %v10 = vld [vmem:[%s0 + $0x10] sm:$0xff]
  %v11 = vld [vmem:[%s0 + $0x18] sm:$0xff]
  %v12 = vld [vmem:[%s0 + $0x20] sm:$0xff]
  %v13 = vld [vmem:[%s0 + $0x28] sm:$0xff]
  %v14 = vld [vmem:[%s0 + $0x30] sm:$0xff]
  %v15 = vld [vmem:[%s0 + $0x38] sm:$0xff]
  %v16 = vld [vmem:[%s0 + $0x40] sm:$0xff]
  %v17 = vld [vmem:[%s0 + $0x48] sm:$0xff]
  %v18 = vld [vmem:[%s0 + $0x50] sm:$0xff]
  %v19 = vld [vmem:[%s0 + $0x58] sm:$0xff]
  %v20 = vld [vmem:[%s0 + $0x60] sm:$0xff]
  %v21 = vld [vmem:[%s0 + $0x68] sm:$0xff]
  %v22 = vld [vmem:[%s0 + $0x70] sm:$0xff]
  %v23 = vld [vmem:[%s0 + $0x78] sm:$0xff]
  %v24 = vld [vmem:[%s0 + $0x80] sm:$0xff]
  %v25 = vld [vmem:[%s0 + $0x88] sm:$0xff]
  %v26 = vld [vmem:[%s0 + $0x90] sm:$0xff]
  %v27 = vld [vmem:[%s0 + $0x98] sm:$0xff]
  %v28 = vld [vmem:[%s0 + $0xa0] sm:$0xff]
  %v29 = vld [vmem:[%s0 + $0xa8] sm:$0xff]
  %v30 = vld [vmem:[%s0 + $0xb0] sm:$0xff]
  %v31 = vld [vmem:[%s0 + $0xb8] sm:$0xff]
  %v32 = vld [vmem:[%s0 + $0xc0] sm:$0xff]
  %v33 = vld [vmem:[%s0 + $0xc8] sm:$0xff]
  %v34 = vld [vmem:[%s0 + $0xd0] sm:$0xff]
  %v35 = vld [vmem:[%s0 + $0xd8] sm:$0xff]
  %v36 = vld [vmem:[%s0 + $0xe0] sm:$0xff]
  %v37 = vld [vmem:[%s0 + $0xe8] sm:$0xff]
  %v38 = vld [vmem:[%s0 + $0xf0] sm:$0xff]
  %v39 = vld [vmem:[%s0 + $0xf8] sm:$0xff]
  %v40 = vld [vmem:[%s0 + $0x100] sm:$0xff]
  %v41 = vld [vmem:[%s0 + $0x108] sm:$0xff]
  %v42 = vld [vmem:[%s0 + $0x110] sm:$0xff]
  %v43 = vld [vmem:[%s0 + $0x118] sm:$0xff]
  %v44 = vld [vmem:[%s0 + $0x120] sm:$0xff]
  %v45 = vld [vmem:[%s0 + $0x128] sm:$0xff]
  %v46 = vld [vmem:[%s0 + $0x130] sm:$0xff]
  %v47 = vld [vmem:[%s0 + $0x138] sm:$0xff]
  %v48 = vld [vmem:[%s0 + $0x140] sm:$0xff]
  %v49 = vld [vmem:[%s0 + $0x148] sm:$0xff]
  %v50 = vld [vmem:[%s0 + $0x150] sm:$0xff]
  %v51 = vld [vmem:[%s0 + $0x158] sm:$0xff]
  %v52 = vld [vmem:[%s0 + $0x160] sm:$0xff]
  %v53 = vld [vmem:[%s0 + $0x168] sm:$0xff]
  %v54 = vld [vmem:[%s0 + $0x170] sm:$0xff]
  %v55 = vld [vmem:[%s0 + $0x178] sm:$0xff]
  %v56 = vld [vmem:[%s0 + $0x180] sm:$0xff]
  %v57 = vld [vmem:[%s0 + $0x188] sm:$0xff]
  %v58 = vld [vmem:[%s0 + $0x190] sm:$0xff]
  %v59 = vld [vmem:[%s0 + $0x198] sm:$0xff]
  %v60 = vld [vmem:[%s0 + $0x1a0] sm:$0xff]
  %v61 = vld [vmem:[%s0 + $0x1a8] sm:$0xff]
  %v62 = vld [vmem:[%s0 + $0x1b0] sm:$0xff]
  %v63 = vld [vmem:[%s0 + $0x1b8] sm:$0xff]
  %v64 = vld [vmem:[%s0 + $0x1c0] sm:$0xff]
  %v65 = vld [vmem:[%s0 + $0x1c8] sm:$0xff]
  %v66 = vld [vmem:[%s0 + $0x1d0] sm:$0xff]
  %v67 = vld [vmem:[%s0 + $0x1d8] sm:$0xff]
  %v68 = vld [vmem:[%s0 + $0x1e0] sm:$0xff]
  %v69 = vld [vmem:[%s0 + $0x1e8] sm:$0xff]
  %v70 = vld [vmem:[%s0 + $0x1f0] sm:$0xff]
  %v71 = vld [vmem:[%s0 + $0x1f8] sm:$0xff]
  %v72 = vmax.f32 %v8, %v9
  %v73 = vmax.f32 %v10, %v11
  %v74 = vmax.f32 %v12, %v13
  %v75 = vmax.f32 %v14, %v15
  %v76 = vmax.f32 %v16, %v17
  %v77 = vmax.f32 %v18, %v19
  %v78 = vmax.f32 %v20, %v21
  %v79 = vmax.f32 %v22, %v23
  %v80 = vmax.f32 %v24, %v25
  %v81 = vmax.f32 %v26, %v27
  %v82 = vmax.f32 %v28, %v29
  %v83 = vmax.f32 %v30, %v31
  %v84 = vmax.f32 %v32, %v33
  %v85 = vmax.f32 %v34, %v35
  %v86 = vmax.f32 %v36, %v37
  %v87 = vmax.f32 %v38, %v39
  %v88 = vmax.f32 %v40, %v41
  %v89 = vmax.f32 %v42, %v43
  %v90 = vmax.f32 %v44, %v45
  %v91 = vmax.f32 %v46, %v47
  %v92 = vmax.f32 %v48, %v49
  %v93 = vmax.f32 %v50, %v51
  %v94 = vmax.f32 %v52, %v53
  %v95 = vmax.f32 %v54, %v55
  %v96 = vmax.f32 %v56, %v57
  %v97 = vmax.f32 %v58, %v59
  %v98 = vmax.f32 %v60, %v61
  %v99 = vmax.f32 %v62, %v63
  %v100 = vmax.f32 %v64, %v65
  %v101 = vmax.f32 %v66, %v67
  %v102 = vmax.f32 %v68, %v69
  %v103 = vmax.f32 %v70, %v71
  %v104 = vmax.f32 %v72, %v73
  %v105 = vmax.f32 %v74, %v75
  %v106 = vmax.f32 %v76, %v77
  %v107 = vmax.f32 %v78, %v79
  %v108 = vmax.f32 %v80, %v81
  %v109 = vmax.f32 %v82, %v83
  %v110 = vmax.f32 %v84, %v85
  %v111 = vmax.f32 %v86, %v87
  %v112 = vmax.f32 %v88, %v89
  %v113 = vmax.f32 %v90, %v91
  %v114 = vmax.f32 %v92, %v93
  %v115 = vmax.f32 %v94, %v95
  %v116 = vmax.f32 %v96, %v97
  %v117 = vmax.f32 %v98, %v99
  %v118 = vmax.f32 %v100, %v101
  %v119 = vmax.f32 %v102, %v103
  %120 = vst [vmem:[%s1] sm:$0xff] %v104
  %121 = vst [vmem:[%s1 + $0x8] sm:$0xff] %v105
  %122 = vst [vmem:[%s1 + $0x10] sm:$0xff] %v106
  %123 = vst [vmem:[%s1 + $0x18] sm:$0xff] %v107
  %124 = vst [vmem:[%s1 + $0x20] sm:$0xff] %v108
  %125 = vst [vmem:[%s1 + $0x28] sm:$0xff] %v109
  %126 = vst [vmem:[%s1 + $0x30] sm:$0xff] %v110
  %127 = vst [vmem:[%s1 + $0x38] sm:$0xff] %v111
  %128 = vst [vmem:[%s1 + $0x40] sm:$0xff] %v112
  %129 = vst [vmem:[%s1 + $0x48] sm:$0xff] %v113
  %130 = vst [vmem:[%s1 + $0x50] sm:$0xff] %v114
  %131 = vst [vmem:[%s1 + $0x58] sm:$0xff] %v115
  %132 = vst [vmem:[%s1 + $0x60] sm:$0xff] %v116
  %133 = vst [vmem:[%s1 + $0x68] sm:$0xff] %v117
  %134 = vst [vmem:[%s1 + $0x70] sm:$0xff] %v118
  %135 = vst [vmem:[%s1 + $0x78] sm:$0xff] %v119
  // Predicated region
  $region6: #{down_forward.5} parent=0 // pred_check
    _
  $region7: #{down_forward.5} parent=0 // pred_check_branch
    %137 = sbr.rel (0) target = $region9
  $region8: #{down_forward.5} parent=0 // pred_region
    _
  $region9: #{down_forward.5} parent=0 // pred_fallthru
    _
  // Predicated region
  $region10: #{down_forward.5} parent=0 // pred_check
    _
  $region11: #{down_forward.5} parent=0 // pred_check_branch
    %139 = sbr.rel (0) target = $region13
  $region12: #{down_forward.5} parent=0 // pred_region
    _
  $region13: #{down_forward.5} parent=0 // pred_fallthru
    _

// kernel: down_forward.3
$region0: #{down_forward.3}
  #allocation0 [shape = 'u32[]', space=smem, size = 0x4, offset = 0x4, fixed_abs, tag = 'smem constant byte address 0x4 - core index']
  #allocation1 [shape = 'u32[144,128]{1,0:T(1,128)}', space=vmem, size = 0x12000, scoped, tag = 'internal scratch']
  %s0 = inlined_call_operand.vmem [shape: bf16[512,128], index: 0, kind: input, shape index: {}]
  %s1 = inlined_call_operand.vmem [shape: bf16[128,128], index: 1, kind: input, shape index: {}]
  %s2 = inlined_call_operand.vmem [shape: f32[1,128], index: 2, kind: input, shape index: {}]
  %s3 = inlined_call_operand.vmem [shape: f32[1,128], index: 3, kind: output, shape index: {0}]
  %s4 = inlined_call_operand.vmem [shape: f32[1,128], index: 4, kind: output, shape index: {1}]
  %5 = xla_tuple %s3, %s4
  %s6 = sld [smem:[#allocation0]]
  $region57: #{down_forward.3} parent=0
    _
  %s8 = ssub.s32 1, %s6
  %s9 = scalar_select 0, %s8, %s6
  loop: start=0, step=1, limit=4
  $region2: #{down_forward.3} parent=0 // loop_pre_header
    _
  $region3: #{down_forward.3} parent=0 // loop_header
    %s11 = sphi 0, %s15
    %p12 = scmp.ge.s32.totalorder %s11, 4
    %s21 = sphi 0, %s23
    %s24 = sphi 0, %s21
    %s25 = sphi 0, %s24
    %s41 = sphi 0, %s25
    %s45 = sphi 0, %s45
    %s47 = sphi 0, %s45
    %s48 = sphi 0, %s47
    %s62 = sphi 0, %s48
    %s66 = sphi 0, %s66
    %s68 = sphi 0, %s66
    %s69 = sphi 0, %s68
    %s83 = sphi 0, %s69
    %s87 = sphi 0, %s87
    %s89 = sphi 0, %s87
    %s90 = sphi 0, %s89
    %s104 = sphi 0, %s90
    %s108 = sphi 0, %s108
    %s110 = sphi 0, %s108
    %s111 = sphi 0, %s110
    %s125 = sphi 0, %s111
  $region4: #{down_forward.3} parent=0 // loop_header_branch
    %14 = sbr.rel (%p12) target = $region8
  $region5: #{down_forward.3} parent=0 // loop_body
    %s16 = ssub.s32 %s11, 1
    %s17 = ssub.s32 %s11, 2
    %s18 = sadd.s32 %s11, 1
    %s19 = ssub.s32 %s11, %s18
    %p20 = scmp.eq.s32.totalorder %s19, 0
    %s22 = sadd.s32 %s21, 1
    %s23 = scalar_select %p20, %s21, %s22
    %p26 = pneg %p20
    %p27 = scmp.eq.s32.totalorder %s11, 1
    %p28 = por %p26, %p27
    %p29 = scmp.ne.s32.totalorder %s21, %s24
    %p30 = scmp.eq.s32.totalorder %s11, 0
    %p31 = por %p29, %p30
    %p32 = scmp.ne.s32.totalorder %s21, %s24
    %p33 = scmp.eq.s32.totalorder %s16, 1
    %p34 = por %p32, %p33
    %p35 = scmp.ne.s32.totalorder %s24, %s25
    %p36 = scmp.eq.s32.totalorder %s16, 0
    %p37 = por %p35, %p36
    %p38 = scmp.ne.s32.totalorder %s24, %s25
    %p39 = scmp.eq.s32.totalorder %s17, 1
    %p40 = por %p38, %p39
    %p42 = scmp.ne.s32.totalorder %s25, %s41
    %p43 = scmp.eq.s32.totalorder %s17, 0
    %p44 = por %p42, %p43
    %s46 = sadd.s32 %s45, 1
    %p49 = scmp.eq.s32.totalorder %s11, 1
    %p50 = scmp.ne.s32.totalorder %s45, %s47
    %p51 = scmp.eq.s32.totalorder %s11, 0
    %p52 = por %p50, %p51
    %p53 = scmp.ne.s32.totalorder %s45, %s47
    %p54 = scmp.eq.s32.totalorder %s16, 1
    %p55 = por %p53, %p54
    %p56 = scmp.ne.s32.totalorder %s47, %s48
    %p57 = scmp.eq.s32.totalorder %s16, 0
    %p58 = por %p56, %p57
    %p59 = scmp.ne.s32.totalorder %s47, %s48
    %p60 = scmp.eq.s32.totalorder %s17, 1
    %p61 = por %p59, %p60
    %p63 = scmp.ne.s32.totalorder %s48, %s62
    %p64 = scmp.eq.s32.totalorder %s17, 0
    %p65 = por %p63, %p64
    %s67 = sadd.s32 %s66, 1
    %p70 = scmp.eq.s32.totalorder %s11, 1
    %p71 = scmp.ne.s32.totalorder %s66, %s68
    %p72 = scmp.eq.s32.totalorder %s11, 0
    %p73 = por %p71, %p72
    %p74 = scmp.ne.s32.totalorder %s66, %s68
    %p75 = scmp.eq.s32.totalorder %s16, 1
    %p76 = por %p74, %p75
    %p77 = scmp.ne.s32.totalorder %s68, %s69
    %p78 = scmp.eq.s32.totalorder %s16, 0
    %p79 = por %p77, %p78
    %p80 = scmp.ne.s32.totalorder %s68, %s69
    %p81 = scmp.eq.s32.totalorder %s17, 1
    %p82 = por %p80, %p81
    %p84 = scmp.ne.s32.totalorder %s69, %s83
    %p85 = scmp.eq.s32.totalorder %s17, 0
    %p86 = por %p84, %p85
    %s88 = sadd.s32 %s87, 1
    %p91 = scmp.eq.s32.totalorder %s11, 1
    %p92 = scmp.ne.s32.totalorder %s87, %s89
    %p93 = scmp.eq.s32.totalorder %s11, 0
    %p94 = por %p92, %p93
    %p95 = scmp.ne.s32.totalorder %s87, %s89
    %p96 = scmp.eq.s32.totalorder %s16, 1
    %p97 = por %p95, %p96
    %p98 = scmp.ne.s32.totalorder %s89, %s90
    %p99 = scmp.eq.s32.totalorder %s16, 0
    %p100 = por %p98, %p99
    %p101 = scmp.ne.s32.totalorder %s89, %s90
    %p102 = scmp.eq.s32.totalorder %s17, 1
    %p103 = por %p101, %p102
    %p105 = scmp.ne.s32.totalorder %s90, %s104
    %p106 = scmp.eq.s32.totalorder %s17, 0
    %p107 = por %p105, %p106
    %s109 = sadd.s32 %s108, 1
    %p112 = scmp.eq.s32.totalorder %s11, 1
    %p113 = scmp.ne.s32.totalorder %s108, %s110
    %p114 = scmp.eq.s32.totalorder %s11, 0
    %p115 = por %p113, %p114
    %p116 = scmp.ne.s32.totalorder %s108, %s110
    %p117 = scmp.eq.s32.totalorder %s16, 1
    %p118 = por %p116, %p117
    %p119 = scmp.ne.s32.totalorder %s110, %s111
    %p120 = scmp.eq.s32.totalorder %s16, 0
    %p121 = por %p119, %p120
    %p122 = scmp.ne.s32.totalorder %s110, %s111
    %p123 = scmp.eq.s32.totalorder %s17, 1
    %p124 = por %p122, %p123
    %p126 = scmp.ne.s32.totalorder %s111, %s125
    %p127 = scmp.eq.s32.totalorder %s17, 0
    %p128 = por %p126, %p127
    %p129 = scmp.le.s32.totalorder 1, %s11
    %p130 = scmp.lt.s32.totalorder %s11, 3
    %p131 = pnand %p129, %p130
    %p132 = pneg %p131
    // Predicated region
    $region9: #{down_forward.3} parent=5 // pred_check
      _
    $region10: #{down_forward.3} parent=5 // pred_check_branch
      %134 = sbr.rel (%p131) target = $region12
    $region11: #{down_forward.3} parent=5 // pred_region
      %s135 = ssub.s32 %s11, 1
      // Predicated region
      $region13: #{down_forward.3} parent=11 // pred_check
        %p136 = pneg %p58
      $region14: #{down_forward.3} parent=11 // pred_check_branch
        %138 = sbr.rel (%p136) target = $region16
      $region15: #{down_forward.3} parent=11 // pred_region
        _
      $region16: #{down_forward.3} parent=11 // pred_fallthru
        _
      // Predicated region
      $region17: #{down_forward.3} parent=11 // pred_check
        %p139 = pneg %p79
      $region18: #{down_forward.3} parent=11 // pred_check_branch
        %141 = sbr.rel (%p139) target = $region20
      $region19: #{down_forward.3} parent=11 // pred_region
        _
      $region20: #{down_forward.3} parent=11 // pred_fallthru
        _
    $region12: #{down_forward.3} parent=5 // pred_fallthru
      _
    %p142 = scmp.lt.s32.totalorder %s11, 2
    // Predicated region
    $region21: #{down_forward.3} parent=5 // pred_check
      %p143 = pneg %p142
    $region22: #{down_forward.3} parent=5 // pred_check_branch
      %145 = sbr.rel (%p143) target = $region24
    $region23: #{down_forward.3} parent=5 // pred_region
      // Predicated region
      $region25: #{down_forward.3} parent=23 // pred_check
        %p146 = pneg %p31
      $region26: #{down_forward.3} parent=23 // pred_check_branch
        %148 = sbr.rel (%p146) target = $region28
      $region27: #{down_forward.3} parent=23 // pred_region
        %s149 = smul.u32 32, %s11
        %p150 = scmp.lt.s32.totalorder %s149, 63
        %s151 = scalar_select %p150, %s149, 63
        %s152 = smul.addr %s151, 4
        %s153 = scalar_lea.vmem %s0, %s152
        %s154 = smul.u32 32, %s11
      $region28: #{down_forward.3} parent=23 // pred_fallthru
        _
    $region24: #{down_forward.3} parent=5 // pred_fallthru
      _
    %p155 = scmp.le.s32.totalorder 1, %s11
    %p156 = scmp.lt.s32.totalorder %s11, 3
    %p157 = pnand %p155, %p156
    %p158 = pneg %p157
    // Predicated region
    $region29: #{down_forward.3} parent=5 // pred_check
      _
    $region30: #{down_forward.3} parent=5 // pred_check_branch
      %160 = sbr.rel (%p157) target = $region32
    $region31: #{down_forward.3} parent=5 // pred_region
      %s161 = ssub.s32 %s11, 1
      %s162 = smul.u32 32, %s16
      %p163 = scmp.lt.s32.totalorder %s162, 63
      %s164 = scalar_select %p163, %s162, 63
      %s165 = smul.addr %s164, 4
      %s166 = scalar_lea.vmem %s0, %s165
      %p167 = pneg %p37
      %p168 = pneg %p34
      %p169 = pneg %p58
      %p170 = pneg %p55
      %p171 = pneg %p79
      %p172 = pneg %p76
      %p173 = pneg %p100
      %p174 = pneg %p97
      %p175 = pneg %p121
      %p176 = pneg %p118
      %s177 = smul.u32 32, %s16
      %p178 = scmp.lt.s32.totalorder %s177, 63
      %s179 = scalar_select %p178, %s177, 63
      %s180 = smul.addr %s179, 4
      %s181 = scalar_lea.vmem %s0, %s180
      %s182 = smul.u32 32, %s16
      %p184 = scmp.eq.s32.totalorder %s16, 0
      // Predicated region
      $region33: #{down_forward.3} parent=31 // pred_check
        %p185 = pneg %p184
      $region34: #{down_forward.3} parent=31 // pred_check_branch
        %187 = sbr.rel (%p185) target = $region36
      $region35: #{down_forward.3} parent=31 // pred_region
        %188 = vst [vmem:[%s3] sm:$0x1] 0.0
        %189 = vst [vmem:[%s4] sm:$0x1] 0.0
      $region36: #{down_forward.3} parent=31 // pred_fallthru
        _
      %v190 = vld [vmem:[%s181] sm:$0xf]
      %v191 = vld [vmem:[%s181 + $0x4] sm:$0xf]
      %v192 = vld [vmem:[%s181 + $0x8] sm:$0xf]
      %v193 = vld [vmem:[%s181 + $0xc] sm:$0xf]
      %v194 = vld [vmem:[%s181 + $0x10] sm:$0xf]
      %v195 = vld [vmem:[%s181 + $0x14] sm:$0xf]
      %v196 = vld [vmem:[%s181 + $0x18] sm:$0xf]
      %v197 = vld [vmem:[%s181 + $0x1c] sm:$0xf]
      %v198 = vld [vmem:[%s181 + $0x20] sm:$0xf]
      %v199 = vld [vmem:[%s181 + $0x24] sm:$0xf]
      %v200 = vld [vmem:[%s181 + $0x28] sm:$0xf]
      %v201 = vld [vmem:[%s181 + $0x2c] sm:$0xf]
      %v202 = vld [vmem:[%s181 + $0x30] sm:$0xf]
      %v203 = vld [vmem:[%s181 + $0x34] sm:$0xf]
      %v204 = vld [vmem:[%s181 + $0x38] sm:$0xf]
      %v205 = vld [vmem:[%s181 + $0x3c] sm:$0xf]
      %v206 = vld [vmem:[%s181 + $0x40] sm:$0xf]
      %v207 = vld [vmem:[%s181 + $0x44] sm:$0xf]
      %v208 = vld [vmem:[%s181 + $0x48] sm:$0xf]
      %v209 = vld [vmem:[%s181 + $0x4c] sm:$0xf]
      %v210 = vld [vmem:[%s181 + $0x50] sm:$0xf]
      %v211 = vld [vmem:[%s181 + $0x54] sm:$0xf]
      %v212 = vld [vmem:[%s181 + $0x58] sm:$0xf]
      %v213 = vld [vmem:[%s181 + $0x5c] sm:$0xf]
      %v214 = vld [vmem:[%s181 + $0x60] sm:$0xf]
      %v215 = vld [vmem:[%s181 + $0x64] sm:$0xf]
      %v216 = vld [vmem:[%s181 + $0x68] sm:$0xf]
      %v217 = vld [vmem:[%s181 + $0x6c] sm:$0xf]
      %v218 = vld [vmem:[%s181 + $0x70] sm:$0xf]
      %v219 = vld [vmem:[%s181 + $0x74] sm:$0xf]
      %v220 = vld [vmem:[%s181 + $0x78] sm:$0xf]
      %v221 = vld [vmem:[%s181 + $0x7c] sm:$0xf]
      %v222 = vld [vmem:[%s1] sm:$0xf]
      %v223 = vld [vmem:[%s1 + $0x4] sm:$0xf]
      %v224 = vld [vmem:[%s1 + $0x8] sm:$0xf]
      %v225 = vld [vmem:[%s1 + $0xc] sm:$0xf]
      %v226 = vld [vmem:[%s1 + $0x10] sm:$0xf]
      %v227 = vld [vmem:[%s1 + $0x14] sm:$0xf]
      %v228 = vld [vmem:[%s1 + $0x18] sm:$0xf]
      %v229 = vld [vmem:[%s1 + $0x1c] sm:$0xf]
      %v230 = vld [vmem:[%s1 + $0x20] sm:$0xf]
      %v231 = vld [vmem:[%s1 + $0x24] sm:$0xf]
      %v232 = vld [vmem:[%s1 + $0x28] sm:$0xf]
      %v233 = vld [vmem:[%s1 + $0x2c] sm:$0xf]
      %v234 = vld [vmem:[%s1 + $0x30] sm:$0xf]
      %v235 = vld [vmem:[%s1 + $0x34] sm:$0xf]
      %v236 = vld [vmem:[%s1 + $0x38] sm:$0xf]
      %v237 = vld [vmem:[%s1 + $0x3c] sm:$0xf]
      %v238 = vld [vmem:[%s2] sm:$0x1]
      %v240 = vlaneseq
      %v241 = vshrl.u32 %v240, 7
      %v242 = vsub.s32 0, %v241
      %v243 = vrot.slane %v238, %v242
      %v277 = vunpack.c.l.b16 %v190
      %v278 = vunpack.c.l.b16 %v191
      %v279 = vunpack.c.l.b16 %v192
      %v280 = vunpack.c.l.b16 %v193
      %v281 = vunpack.c.l.b16 %v194
      %v282 = vunpack.c.l.b16 %v195
      %v283 = vunpack.c.l.b16 %v196
      %v284 = vunpack.c.l.b16 %v197
      %v285 = vunpack.c.l.b16 %v198
      %v286 = vunpack.c.l.b16 %v199
      %v287 = vunpack.c.l.b16 %v200
      %v288 = vunpack.c.l.b16 %v201
      %v289 = vunpack.c.l.b16 %v202
      %v290 = vunpack.c.l.b16 %v203
      %v291 = vunpack.c.l.b16 %v204
      %v292 = vunpack.c.l.b16 %v205
      %v293 = vunpack.c.l.b16 %v206
      %v294 = vunpack.c.l.b16 %v207
      %v295 = vunpack.c.l.b16 %v208
      %v296 = vunpack.c.l.b16 %v209
      %v297 = vunpack.c.l.b16 %v210
      %v298 = vunpack.c.l.b16 %v211
      %v299 = vunpack.c.l.b16 %v212
      %v300 = vunpack.c.l.b16 %v213
      %v301 = vunpack.c.l.b16 %v214
      %v302 = vunpack.c.l.b16 %v215
      %v303 = vunpack.c.l.b16 %v216
      %v304 = vunpack.c.l.b16 %v217
      %v305 = vunpack.c.l.b16 %v218
      %v306 = vunpack.c.l.b16 %v219
      %v307 = vunpack.c.l.b16 %v220
      %v308 = vunpack.c.l.b16 %v221
      %v309 = vpack.c.b16 %v278, %v277
      %v310 = vpack.c.b16 %v280, %v279
      %v311 = vpack.c.b16 %v282, %v281
      %v312 = vpack.c.b16 %v284, %v283
      %v313 = vpack.c.b16 %v286, %v285
      %v314 = vpack.c.b16 %v288, %v287
      %v315 = vpack.c.b16 %v290, %v289
      %v316 = vpack.c.b16 %v292, %v291
      %v317 = vpack.c.b16 %v294, %v293
      %v318 = vpack.c.b16 %v296, %v295
      %v319 = vpack.c.b16 %v298, %v297
      %v320 = vpack.c.b16 %v300, %v299
      %v321 = vpack.c.b16 %v302, %v301
      %v322 = vpack.c.b16 %v304, %v303
      %v323 = vpack.c.b16 %v306, %v305
      %v324 = vpack.c.b16 %v308, %v307
      %v357 = vunpack.c.l.b16 %v222
      %v358 = vunpack.c.l.b16 %v223
      %v359 = vunpack.c.l.b16 %v224
      %v360 = vunpack.c.l.b16 %v225
      %v361 = vunpack.c.l.b16 %v226
      %v362 = vunpack.c.l.b16 %v227
      %v363 = vunpack.c.l.b16 %v228
      %v364 = vunpack.c.l.b16 %v229
      %v365 = vunpack.c.l.b16 %v230
      %v366 = vunpack.c.l.b16 %v231
      %v367 = vunpack.c.l.b16 %v232
      %v368 = vunpack.c.l.b16 %v233
      %v369 = vunpack.c.l.b16 %v234
      %v370 = vunpack.c.l.b16 %v235
      %v371 = vunpack.c.l.b16 %v236
      %v372 = vunpack.c.l.b16 %v237
      %v373 = vpack.c.b16 %v358, %v357
      %v374 = vpack.c.b16 %v360, %v359
      %v375 = vpack.c.b16 %v362, %v361
      %v376 = vpack.c.b16 %v364, %v363
      %v377 = vpack.c.b16 %v366, %v365
      %v378 = vpack.c.b16 %v368, %v367
      %v379 = vpack.c.b16 %v370, %v369
      %v380 = vpack.c.b16 %v372, %v371
      %389 = vmatprep.subr.bf16.mxu0 0
      %390 = vmatpush1.bf16.msra.mxu0 %v373
      %391 = vmatprep.subr.bf16.mxu0 0
      %392 = vmatpush1.bf16.msra.mxu0 %v374
      %393 = vmatprep.subr.bf16.mxu0 0
      %394 = vmatpush1.bf16.msra.mxu0 %v375
      %395 = vmatprep.subr.bf16.mxu0 0
      %396 = vmatpush1.bf16.msra.mxu0 %v376
      %397 = vmatprep.subr.bf16.mxu0 0
      %398 = vmatpush1.bf16.msra.mxu0 %v377
      %399 = vmatprep.subr.bf16.mxu0 0
      %400 = vmatpush1.bf16.msra.mxu0 %v378
      %401 = vmatprep.subr.bf16.mxu0 0
      %402 = vmatpush1.bf16.msra.mxu0 %v379
      %403 = vmatprep.subr.bf16.mxu0 0
      %404 = vmatpush1.bf16.msra.mxu0 %v380
      %405 = vmatprep.subr.bf16.mxu0 0
      %406 = vmatpush1.bf16.msra.mxu0 0
      %407 = vmatprep.subr.bf16.mxu0 0
      %408 = vmatpush1.bf16.msra.mxu0 0
      %409 = vmatprep.subr.bf16.mxu0 0
      %410 = vmatpush1.bf16.msra.mxu0 0
      %411 = vmatprep.subr.bf16.mxu0 0
      %412 = vmatpush1.bf16.msra.mxu0 0
      %413 = vmatprep.subr.bf16.mxu0 0
      %414 = vmatpush1.bf16.msra.mxu0 0
      %415 = vmatprep.subr.bf16.mxu0 0
      %416 = vmatpush1.bf16.msra.mxu0 0
      %417 = vmatprep.subr.bf16.mxu0 0
      %418 = vmatpush1.bf16.msra.mxu0 0
      %419 = vmatprep.subr.bf16.mxu0 0
      %420 = vmatpush1.bf16.msra.mxu0 0
      %421 = vmatprep.mubr.bf16.mxu0 0
      %422 = vmatmul.mubr.bf16.gmra.mrb[0].mxu0 %v309
      %v423 = vpop.f32.mrb[0].mxu0
      %v424 = vadd.f32 %v243, %v423
      %v425 = vpop.f32.mrb[0].mxu0
      %v426 = vpop.f32.mrb[0].mxu0
      %v427 = vadd.f32 %v243, %v426
      %v428 = vpop.f32.mrb[0].mxu0
      %429 = vmatprep.mubr.bf16.mxu0 0
      %430 = vmatmul.mubr.bf16.gmra.mrb[0].mxu0 %v310
      %v431 = vpop.f32.mrb[0].mxu0
      %v432 = vadd.f32 %v243, %v431
      %v433 = vpop.f32.mrb[0].mxu0
      %v434 = vpop.f32.mrb[0].mxu0
      %v435 = vadd.f32 %v243, %v434
      %v436 = vpop.f32.mrb[0].mxu0
      %437 = vmatprep.mubr.bf16.mxu0 0
      %438 = vmatmul.mubr.bf16.gmra.mrb[0].mxu0 %v311
      %v439 = vpop.f32.mrb[0].mxu0
      %v440 = vadd.f32 %v243, %v439
      %v441 = vpop.f32.mrb[0].mxu0
      %v442 = vpop.f32.mrb[0].mxu0
      %v443 = vadd.f32 %v243, %v442
      %v444 = vpop.f32.mrb[0].mxu0
      %445 = vmatprep.mubr.bf16.mxu0 0
      %446 = vmatmul.mubr.bf16.gmra.mrb[0].mxu0 %v312
      %v447 = vpop.f32.mrb[0].mxu0
      %v448 = vadd.f32 %v243, %v447
      %v449 = vpop.f32.mrb[0].mxu0
      %v450 = vpop.f32.mrb[0].mxu0
      %v451 = vadd.f32 %v243, %v450
      %v452 = vpop.f32.mrb[0].mxu0
      %453 = vmatprep.mubr.bf16.mxu0 0
      %454 = vmatmul.mubr.bf16.gmra.mrb[0].mxu0 %v313
      %v455 = vpop.f32.mrb[0].mxu0
      %v456 = vadd.f32 %v243, %v455
      %v457 = vpop.f32.mrb[0].mxu0
      %v458 = vpop.f32.mrb[0].mxu0
      %v459 = vadd.f32 %v243, %v458
      %v460 = vpop.f32.mrb[0].mxu0
      %461 = vmatprep.mubr.bf16.mxu0 0
      %462 = vmatmul.mubr.bf16.gmra.mrb[0].mxu0 %v314
      %v463 = vpop.f32.mrb[0].mxu0
      %v464 = vadd.f32 %v243, %v463
      %v465 = vpop.f32.mrb[0].mxu0
      %v466 = vpop.f32.mrb[0].mxu0
      %v467 = vadd.f32 %v243, %v466
      %v468 = vpop.f32.mrb[0].mxu0
      %469 = vmatprep.mubr.bf16.mxu0 0
      %470 = vmatmul.mubr.bf16.gmra.mrb[0].mxu0 %v315
      %v471 = vpop.f32.mrb[0].mxu0
      %v472 = vadd.f32 %v243, %v471
      %v473 = vpop.f32.mrb[0].mxu0
      %v474 = vpop.f32.mrb[0].mxu0
      %v475 = vadd.f32 %v243, %v474
      %v476 = vpop.f32.mrb[0].mxu0
      %477 = vmatprep.mubr.bf16.mxu0 0
      %478 = vmatmul.mubr.bf16.gmra.mrb[0].mxu0 %v316
      %v479 = vpop.f32.mrb[0].mxu0
      %v480 = vadd.f32 %v243, %v479
      %v481 = vpop.f32.mrb[0].mxu0
      %v482 = vpop.f32.mrb[0].mxu0
      %v483 = vadd.f32 %v243, %v482
      %v484 = vpop.f32.mrb[0].mxu0
      %485 = vmatprep.mubr.bf16.mxu0 0
      %486 = vmatmul.mubr.bf16.gmra.mrb[0].mxu0 %v317
      %v487 = vpop.f32.mrb[0].mxu0
      %v488 = vadd.f32 %v243, %v487
      %v489 = vpop.f32.mrb[0].mxu0
      %v490 = vpop.f32.mrb[0].mxu0
      %v491 = vadd.f32 %v243, %v490
      %v492 = vpop.f32.mrb[0].mxu0
      %493 = vmatprep.mubr.bf16.mxu0 0
      %494 = vmatmul.mubr.bf16.gmra.mrb[0].mxu0 %v318
      %v495 = vpop.f32.mrb[0].mxu0
      %v496 = vadd.f32 %v243, %v495
      %v497 = vpop.f32.mrb[0].mxu0
      %v498 = vpop.f32.mrb[0].mxu0
      %v499 = vadd.f32 %v243, %v498
      %v500 = vpop.f32.mrb[0].mxu0
      %501 = vmatprep.mubr.bf16.mxu0 0
      %502 = vmatmul.mubr.bf16.gmra.mrb[0].mxu0 %v319
      %v503 = vpop.f32.mrb[0].mxu0
      %v504 = vadd.f32 %v243, %v503
      %v505 = vpop.f32.mrb[0].mxu0
      %v506 = vpop.f32.mrb[0].mxu0
      %v507 = vadd.f32 %v243, %v506
      %v508 = vpop.f32.mrb[0].mxu0
      %509 = vmatprep.mubr.bf16.mxu0 0
      %510 = vmatmul.mubr.bf16.gmra.mrb[0].mxu0 %v320
      %v511 = vpop.f32.mrb[0].mxu0
      %v512 = vadd.f32 %v243, %v511
      %v513 = vpop.f32.mrb[0].mxu0
      %v514 = vpop.f32.mrb[0].mxu0
      %v515 = vadd.f32 %v243, %v514
      %v516 = vpop.f32.mrb[0].mxu0
      %517 = vmatprep.mubr.bf16.mxu0 0
      %518 = vmatmul.mubr.bf16.gmra.mrb[0].mxu0 %v321
      %v519 = vpop.f32.mrb[0].mxu0
      %v520 = vadd.f32 %v243, %v519
      %v521 = vpop.f32.mrb[0].mxu0
      %v522 = vpop.f32.mrb[0].mxu0
      %v523 = vadd.f32 %v243, %v522
      %v524 = vpop.f32.mrb[0].mxu0
      %525 = vmatprep.mubr.bf16.mxu0 0
      %526 = vmatmul.mubr.bf16.gmra.mrb[0].mxu0 %v322
      %v527 = vpop.f32.mrb[0].mxu0
      %v528 = vadd.f32 %v243, %v527
      %v529 = vpop.f32.mrb[0].mxu0
      %v530 = vpop.f32.mrb[0].mxu0
      %v531 = vadd.f32 %v243, %v530
      %v532 = vpop.f32.mrb[0].mxu0
      %533 = vmatprep.mubr.bf16.mxu0 0
      %534 = vmatmul.mubr.bf16.gmra.mrb[0].mxu0 %v323
      %v535 = vpop.f32.mrb[0].mxu0
      %v536 = vadd.f32 %v243, %v535
      %v537 = vpop.f32.mrb[0].mxu0
      %v538 = vpop.f32.mrb[0].mxu0
      %v539 = vadd.f32 %v243, %v538
      %v540 = vpop.f32.mrb[0].mxu0
      %541 = vmatprep.mubr.bf16.mxu0 0
      %542 = vmatmul.mubr.bf16.gmra.mrb[0].mxu0 %v324
      %v543 = vpop.f32.mrb[0].mxu0
      %v544 = vadd.f32 %v243, %v543
      %v545 = vpop.f32.mrb[0].mxu0
      %v546 = vpop.f32.mrb[0].mxu0
      %v547 = vadd.f32 %v243, %v546
      %v548 = vpop.f32.mrb[0].mxu0
      %549 = vdwg.mxu0
      %v550 = vld [vmem:[%s3] sm:$0x1]
      %v551 = vadd.f32 %v424, %v427
      %v552 = vadd.f32 %v551, %v432
      %v553 = vadd.f32 %v552, %v435
      %v554 = vadd.f32 %v553, %v440
      %v555 = vadd.f32 %v554, %v443
      %v556 = vadd.f32 %v555, %v448
      %v557 = vadd.f32 %v556, %v451
      %v558 = vadd.f32 %v557, %v456
      %v559 = vadd.f32 %v558, %v459
      %v560 = vadd.f32 %v559, %v464
      %v561 = vadd.f32 %v560, %v467
      %v562 = vadd.f32 %v561, %v472
      %v563 = vadd.f32 %v562, %v475
      %v564 = vadd.f32 %v563, %v480
      %v565 = vadd.f32 %v564, %v483
      %v566 = vadd.f32 %v565, %v488
      %v567 = vadd.f32 %v566, %v491
      %v568 = vadd.f32 %v567, %v496
      %v569 = vadd.f32 %v568, %v499
      %v570 = vadd.f32 %v569, %v504
      %v571 = vadd.f32 %v570, %v507
      %v572 = vadd.f32 %v571, %v512
      %v573 = vadd.f32 %v572, %v515
      %v574 = vadd.f32 %v573, %v520
      %v575 = vadd.f32 %v574, %v523
      %v576 = vadd.f32 %v575, %v528
      %v577 = vadd.f32 %v576, %v531
      %v578 = vadd.f32 %v577, %v536
      %v579 = vadd.f32 %v578, %v539
      %v580 = vadd.f32 %v579, %v544
      %v581 = vadd.f32 %v580, %v547
      %v582 = vrot.slane %v581, 4
      %v583 = vadd.f32 %v581, %v582
      %v584 = vrot.slane %v583, 2
      %v585 = vadd.f32 %v583, %v584
      %v586 = vrot.slane %v585, 1
      %v587 = vadd.f32 %v585, %v586
      %v588 = vadd.f32 %v550, %v587
      %589 = vst [vmem:[%s3] sm:$0x1] %v588
      %v590 = vld [vmem:[%s4] sm:$0x1]
      %v591 = vmul.f32 %v424, %v424
      %v592 = vmul.f32 %v427, %v427
      %v593 = vmul.f32 %v432, %v432
      %v594 = vmul.f32 %v435, %v435
      %v595 = vmul.f32 %v440, %v440
      %v596 = vmul.f32 %v443, %v443
      %v597 = vmul.f32 %v448, %v448
      %v598 = vmul.f32 %v451, %v451
      %v599 = vmul.f32 %v456, %v456
      %v600 = vmul.f32 %v459, %v459
      %v601 = vmul.f32 %v464, %v464
      %v602 = vmul.f32 %v467, %v467
      %v603 = vmul.f32 %v472, %v472
      %v604 = vmul.f32 %v475, %v475
      %v605 = vmul.f32 %v480, %v480
      %v606 = vmul.f32 %v483, %v483
      %v607 = vmul.f32 %v488, %v488
      %v608 = vmul.f32 %v491, %v491
      %v609 = vmul.f32 %v496, %v496
      %v610 = vmul.f32 %v499, %v499
      %v611 = vmul.f32 %v504, %v504
      %v612 = vmul.f32 %v507, %v507
      %v613 = vmul.f32 %v512, %v512
      %v614 = vmul.f32 %v515, %v515
      %v615 = vmul.f32 %v520, %v520
      %v616 = vmul.f32 %v523, %v523
      %v617 = vmul.f32 %v528, %v528
      %v618 = vmul.f32 %v531, %v531
      %v619 = vmul.f32 %v536, %v536
      %v620 = vmul.f32 %v539, %v539
      %v621 = vmul.f32 %v544, %v544
      %v622 = vmul.f32 %v547, %v547
      %v623 = vadd.f32 %v591, %v592
      %v624 = vadd.f32 %v623, %v593
      %v625 = vadd.f32 %v624, %v594
      %v626 = vadd.f32 %v625, %v595
      %v627 = vadd.f32 %v626, %v596
      %v628 = vadd.f32 %v627, %v597
      %v629 = vadd.f32 %v628, %v598
      %v630 = vadd.f32 %v629, %v599
      %v631 = vadd.f32 %v630, %v600
      %v632 = vadd.f32 %v631, %v601
      %v633 = vadd.f32 %v632, %v602
      %v634 = vadd.f32 %v633, %v603
      %v635 = vadd.f32 %v634, %v604
      %v636 = vadd.f32 %v635, %v605
      %v637 = vadd.f32 %v636, %v606
      %v638 = vadd.f32 %v637, %v607
      %v639 = vadd.f32 %v638, %v608
      %v640 = vadd.f32 %v639, %v609
      %v641 = vadd.f32 %v640, %v610
      %v642 = vadd.f32 %v641, %v611
      %v643 = vadd.f32 %v642, %v612
      %v644 = vadd.f32 %v643, %v613
      %v645 = vadd.f32 %v644, %v614
      %v646 = vadd.f32 %v645, %v615
      %v647 = vadd.f32 %v646, %v616
      %v648 = vadd.f32 %v647, %v617
      %v649 = vadd.f32 %v648, %v618
      %v650 = vadd.f32 %v649, %v619
      %v651 = vadd.f32 %v650, %v620
      %v652 = vadd.f32 %v651, %v621
      %v653 = vadd.f32 %v652, %v622
      %v654 = vrot.slane %v653, 4
      %v655 = vadd.f32 %v653, %v654
      %v656 = vrot.slane %v655, 2
      %v657 = vadd.f32 %v655, %v656
      %v658 = vrot.slane %v657, 1
      %v659 = vadd.f32 %v657, %v658
      %v660 = vadd.f32 %v590, %v659
      %661 = vst [vmem:[%s4] sm:$0x1] %v660
      // Predicated region
      $region37: #{down_forward.3} parent=31 // pred_check
        %p662 = pneg %p97
      $region38: #{down_forward.3} parent=31 // pred_check_branch
        %664 = sbr.rel (%p662) target = $region40
      $region39: #{down_forward.3} parent=31 // pred_region
        _
      $region40: #{down_forward.3} parent=31 // pred_fallthru
        _
      // Predicated region
      $region41: #{down_forward.3} parent=31 // pred_check
        %p665 = pneg %p118
      $region42: #{down_forward.3} parent=31 // pred_check_branch
        %667 = sbr.rel (%p665) target = $region44
      $region43: #{down_forward.3} parent=31 // pred_region
        _
      $region44: #{down_forward.3} parent=31 // pred_fallthru
        _
      // Predicated region
      $region45: #{down_forward.3} parent=31 // pred_check
        %p668 = pneg %p97
      $region46: #{down_forward.3} parent=31 // pred_check_branch
        %670 = sbr.rel (%p668) target = $region48
      $region47: #{down_forward.3} parent=31 // pred_region
        _
      $region48: #{down_forward.3} parent=31 // pred_fallthru
        _
      // Predicated region
      $region49: #{down_forward.3} parent=31 // pred_check
        %p671 = pneg %p118
      $region50: #{down_forward.3} parent=31 // pred_check_branch
        %673 = sbr.rel (%p671) target = $region52
      $region51: #{down_forward.3} parent=31 // pred_region
        _
      $region52: #{down_forward.3} parent=31 // pred_fallthru
        _
    $region32: #{down_forward.3} parent=5 // pred_fallthru
      _
    %p674 = scmp.le.s32.totalorder 2, %s11
    // Predicated region
    $region53: #{down_forward.3} parent=5 // pred_check
      %p675 = pneg %p674
    $region54: #{down_forward.3} parent=5 // pred_check_branch
      %677 = sbr.rel (%p675) target = $region56
    $region55: #{down_forward.3} parent=5 // pred_region
      %s678 = ssub.s32 %s11, 2
    $region56: #{down_forward.3} parent=5 // pred_fallthru
      _
  $region6: #{down_forward.3} parent=0 // loop_footer
    %s15 = sadd.s32 1, %s11
  $region7: #{down_forward.3} parent=0 // loop_footer_branch
    %10 = sbr.rel target = $region3
  $region8: #{down_forward.3} parent=0 // loop_exit
    _

// kernel: down_forward.4
$region0: #{down_forward.4}
  #allocation0 [shape = 'u32[]', space=smem, size = 0x4, offset = 0x4, fixed_abs, tag = 'smem constant byte address 0x4 - core index']
  #allocation1 [shape = 'u32[144,128]{1,0:T(1,128)}', space=vmem, size = 0x12000, scoped, tag = 'internal scratch']
  #allocation2 [shape = 'f32[304,128]{1,0:T(8,128)}', space=vmem, size = 0x26000, scoped, tag = 'scratch operand']
  #allocation3 [shape = 'f32[336,128]{1,0:T(8,128)}', space=vmem, size = 0x2a000, scoped, tag = 'scratch operand']
  %s0 = inlined_call_operand.vmem [shape: bf16[2,256,128], index: 0, kind: input, shape index: {}]
  %s1 = inlined_call_operand.vmem [shape: s32[256,1], index: 1, kind: input, shape index: {}]
  %s2 = inlined_call_operand.vmem [shape: f32[1,128], index: 2, kind: input, shape index: {}]
  %s3 = inlined_call_operand.vmem [shape: f32[1,128], index: 3, kind: input, shape index: {}]
  %s4 = inlined_call_operand.vmem [shape: bf16[128,128], index: 4, kind: input, shape index: {}]
  %s5 = inlined_call_operand.vmem [shape: f32[1,128], index: 5, kind: input, shape index: {}]
  %s6 = inlined_call_operand.vmem [shape: bf16[9,128,128], index: 6, kind: input, shape index: {}]
  %s7 = inlined_call_operand.vmem [shape: f32[1,128], index: 7, kind: input, shape index: {}]
  %s8 = inlined_call_operand.vmem [shape: bf16[9,128,128], index: 8, kind: input, shape index: {}]
  %s9 = inlined_call_operand.vmem [shape: f32[1,128], index: 9, kind: input, shape index: {}]
  %s10 = inlined_call_operand.vmem [shape: bf16[128,128], index: 10, kind: input, shape index: {}]
  %s11 = inlined_call_operand.vmem [shape: f32[1,128], index: 11, kind: input, shape index: {}]
  %s12 = inlined_call_operand.vmem [shape: bf16[128,128], index: 12, kind: input, shape index: {}]
  %s13 = inlined_call_operand.vmem [shape: f32[1,128], index: 13, kind: input, shape index: {}]
  %s14 = inlined_call_operand.vmem [shape: bf16[128,128], index: 14, kind: input, shape index: {}]
  %s15 = inlined_call_operand.vmem [shape: f32[1,128], index: 15, kind: input, shape index: {}]
  %s16 = inlined_call_operand.vmem [shape: f32[2,256,128], index: 16, kind: output, shape index: {}]
  %s17 = sld [smem:[#allocation0]]
  $region97: #{down_forward.4} parent=0
    _
  %s19 = ssub.s32 1, %s17
  %s20 = scalar_select 0, %s19, %s17
  loop: start=0, step=1, limit=4
  $region2: #{down_forward.4} parent=0 // loop_pre_header
    _
  $region3: #{down_forward.4} parent=0 // loop_header
    %s22 = sphi 0, %s26
    %p23 = scmp.ge.s32.totalorder %s22, 4
    %s32 = sphi 0, %s34
    %s35 = sphi 0, %s32
    %s36 = sphi 0, %s35
    %s52 = sphi 0, %s36
    %s56 = sphi 0, %s56
    %s58 = sphi 0, %s56
    %s59 = sphi 0, %s58
    %s73 = sphi 0, %s59
    %s77 = sphi 0, %s77
    %s79 = sphi 0, %s77
    %s80 = sphi 0, %s79
    %s94 = sphi 0, %s80
    %s98 = sphi 0, %s98
    %s100 = sphi 0, %s98
    %s101 = sphi 0, %s100
    %s115 = sphi 0, %s101
    %s119 = sphi 0, %s119
    %s121 = sphi 0, %s119
    %s122 = sphi 0, %s121
    %s136 = sphi 0, %s122
    %s140 = sphi 0, %s140
    %s142 = sphi 0, %s140
    %s143 = sphi 0, %s142
    %s157 = sphi 0, %s143
    %s161 = sphi 0, %s161
    %s163 = sphi 0, %s161
    %s164 = sphi 0, %s163
    %s178 = sphi 0, %s164
    %s182 = sphi 0, %s182
    %s184 = sphi 0, %s182
    %s185 = sphi 0, %s184
    %s199 = sphi 0, %s185
    %s203 = sphi 0, %s203
    %s205 = sphi 0, %s203
    %s206 = sphi 0, %s205
    %s220 = sphi 0, %s206
    %s224 = sphi 0, %s224
    %s226 = sphi 0, %s224
    %s227 = sphi 0, %s226
    %s241 = sphi 0, %s227
    %s245 = sphi 0, %s245
    %s247 = sphi 0, %s245
    %s248 = sphi 0, %s247
    %s262 = sphi 0, %s248
    %s266 = sphi 0, %s266
    %s268 = sphi 0, %s266
    %s269 = sphi 0, %s268
    %s283 = sphi 0, %s269
    %s287 = sphi 0, %s287
    %s289 = sphi 0, %s287
    %s290 = sphi 0, %s289
    %s304 = sphi 0, %s290
    %s308 = sphi 0, %s308
    %s310 = sphi 0, %s308
    %s311 = sphi 0, %s310
    %s325 = sphi 0, %s311
    %s329 = sphi 0, %s329
    %s331 = sphi 0, %s329
    %s332 = sphi 0, %s331
    %s346 = sphi 0, %s332
    %s350 = sphi 0, %s350
    %s352 = sphi 0, %s350
    %s353 = sphi 0, %s352
    %s367 = sphi 0, %s353
    %s373 = sphi 0, %s375
    %s376 = sphi 0, %s373
    %s377 = sphi 0, %s376
    %s393 = sphi 0, %s377
  $region4: #{down_forward.4} parent=0 // loop_header_branch
    %25 = sbr.rel (%p23) target = $region8
  $region5: #{down_forward.4} parent=0 // loop_body
    %s27 = ssub.s32 %s22, 1
    %s28 = ssub.s32 %s22, 2
    %s29 = sadd.s32 %s22, 1
    %s30 = ssub.s32 %s22, %s29
    %p31 = scmp.eq.s32.totalorder %s30, 0
    %s33 = sadd.s32 %s32, 1
    %s34 = scalar_select %p31, %s32, %s33
    %p37 = pneg %p31
    %p38 = scmp.eq.s32.totalorder %s22, 1
    %p39 = por %p37, %p38
    %p40 = scmp.ne.s32.totalorder %s32, %s35
    %p41 = scmp.eq.s32.totalorder %s22, 0
    %p42 = por %p40, %p41
    %p43 = scmp.ne.s32.totalorder %s32, %s35
    %p44 = scmp.eq.s32.totalorder %s27, 1
    %p45 = por %p43, %p44
    %p46 = scmp.ne.s32.totalorder %s35, %s36
    %p47 = scmp.eq.s32.totalorder %s27, 0
    %p48 = por %p46, %p47
    %p49 = scmp.ne.s32.totalorder %s35, %s36
    %p50 = scmp.eq.s32.totalorder %s28, 1
    %p51 = por %p49, %p50
    %p53 = scmp.ne.s32.totalorder %s36, %s52
    %p54 = scmp.eq.s32.totalorder %s28, 0
    %p55 = por %p53, %p54
    %s57 = sadd.s32 %s56, 1
    %p60 = scmp.eq.s32.totalorder %s22, 1
    %p61 = scmp.ne.s32.totalorder %s56, %s58
    %p62 = scmp.eq.s32.totalorder %s22, 0
    %p63 = por %p61, %p62
    %p64 = scmp.ne.s32.totalorder %s56, %s58
    %p65 = scmp.eq.s32.totalorder %s27, 1
    %p66 = por %p64, %p65
    %p67 = scmp.ne.s32.totalorder %s58, %s59
    %p68 = scmp.eq.s32.totalorder %s27, 0
    %p69 = por %p67, %p68
    %p70 = scmp.ne.s32.totalorder %s58, %s59
    %p71 = scmp.eq.s32.totalorder %s28, 1
    %p72 = por %p70, %p71
    %p74 = scmp.ne.s32.totalorder %s59, %s73
    %p75 = scmp.eq.s32.totalorder %s28, 0
    %p76 = por %p74, %p75
    %s78 = sadd.s32 %s77, 1
    %p81 = scmp.eq.s32.totalorder %s22, 1
    %p82 = scmp.ne.s32.totalorder %s77, %s79
    %p83 = scmp.eq.s32.totalorder %s22, 0
    %p84 = por %p82, %p83
    %p85 = scmp.ne.s32.totalorder %s77, %s79
    %p86 = scmp.eq.s32.totalorder %s27, 1
    %p87 = por %p85, %p86
    %p88 = scmp.ne.s32.totalorder %s79, %s80
    %p89 = scmp.eq.s32.totalorder %s27, 0
    %p90 = por %p88, %p89
    %p91 = scmp.ne.s32.totalorder %s79, %s80
    %p92 = scmp.eq.s32.totalorder %s28, 1
    %p93 = por %p91, %p92
    %p95 = scmp.ne.s32.totalorder %s80, %s94
    %p96 = scmp.eq.s32.totalorder %s28, 0
    %p97 = por %p95, %p96
    %s99 = sadd.s32 %s98, 1
    %p102 = scmp.eq.s32.totalorder %s22, 1
    %p103 = scmp.ne.s32.totalorder %s98, %s100
    %p104 = scmp.eq.s32.totalorder %s22, 0
    %p105 = por %p103, %p104
    %p106 = scmp.ne.s32.totalorder %s98, %s100
    %p107 = scmp.eq.s32.totalorder %s27, 1
    %p108 = por %p106, %p107
    %p109 = scmp.ne.s32.totalorder %s100, %s101
    %p110 = scmp.eq.s32.totalorder %s27, 0
    %p111 = por %p109, %p110
    %p112 = scmp.ne.s32.totalorder %s100, %s101
    %p113 = scmp.eq.s32.totalorder %s28, 1
    %p114 = por %p112, %p113
    %p116 = scmp.ne.s32.totalorder %s101, %s115
    %p117 = scmp.eq.s32.totalorder %s28, 0
    %p118 = por %p116, %p117
    %s120 = sadd.s32 %s119, 1
    %p123 = scmp.eq.s32.totalorder %s22, 1
    %p124 = scmp.ne.s32.totalorder %s119, %s121
    %p125 = scmp.eq.s32.totalorder %s22, 0
    %p126 = por %p124, %p125
    %p127 = scmp.ne.s32.totalorder %s119, %s121
    %p128 = scmp.eq.s32.totalorder %s27, 1
    %p129 = por %p127, %p128
    %p130 = scmp.ne.s32.totalorder %s121, %s122
    %p131 = scmp.eq.s32.totalorder %s27, 0
    %p132 = por %p130, %p131
    %p133 = scmp.ne.s32.totalorder %s121, %s122
    %p134 = scmp.eq.s32.totalorder %s28, 1
    %p135 = por %p133, %p134
    %p137 = scmp.ne.s32.totalorder %s122, %s136
    %p138 = scmp.eq.s32.totalorder %s28, 0
    %p139 = por %p137, %p138
    %s141 = sadd.s32 %s140, 1
    %p144 = scmp.eq.s32.totalorder %s22, 1
    %p145 = scmp.ne.s32.totalorder %s140, %s142
    %p146 = scmp.eq.s32.totalorder %s22, 0
    %p147 = por %p145, %p146
    %p148 = scmp.ne.s32.totalorder %s140, %s142
    %p149 = scmp.eq.s32.totalorder %s27, 1
    %p150 = por %p148, %p149
    %p151 = scmp.ne.s32.totalorder %s142, %s143
    %p152 = scmp.eq.s32.totalorder %s27, 0
    %p153 = por %p151, %p152
    %p154 = scmp.ne.s32.totalorder %s142, %s143
    %p155 = scmp.eq.s32.totalorder %s28, 1
    %p156 = por %p154, %p155
    %p158 = scmp.ne.s32.totalorder %s143, %s157
    %p159 = scmp.eq.s32.totalorder %s28, 0
    %p160 = por %p158, %p159
    %s162 = sadd.s32 %s161, 1
    %p165 = scmp.eq.s32.totalorder %s22, 1
    %p166 = scmp.ne.s32.totalorder %s161, %s163
    %p167 = scmp.eq.s32.totalorder %s22, 0
    %p168 = por %p166, %p167
    %p169 = scmp.ne.s32.totalorder %s161, %s163
    %p170 = scmp.eq.s32.totalorder %s27, 1
    %p171 = por %p169, %p170
    %p172 = scmp.ne.s32.totalorder %s163, %s164
    %p173 = scmp.eq.s32.totalorder %s27, 0
    %p174 = por %p172, %p173
    %p175 = scmp.ne.s32.totalorder %s163, %s164
    %p176 = scmp.eq.s32.totalorder %s28, 1
    %p177 = por %p175, %p176
    %p179 = scmp.ne.s32.totalorder %s164, %s178
    %p180 = scmp.eq.s32.totalorder %s28, 0
    %p181 = por %p179, %p180
    %s183 = sadd.s32 %s182, 1
    %p186 = scmp.eq.s32.totalorder %s22, 1
    %p187 = scmp.ne.s32.totalorder %s182, %s184
    %p188 = scmp.eq.s32.totalorder %s22, 0
    %p189 = por %p187, %p188
    %p190 = scmp.ne.s32.totalorder %s182, %s184
    %p191 = scmp.eq.s32.totalorder %s27, 1
    %p192 = por %p190, %p191
    %p193 = scmp.ne.s32.totalorder %s184, %s185
    %p194 = scmp.eq.s32.totalorder %s27, 0
    %p195 = por %p193, %p194
    %p196 = scmp.ne.s32.totalorder %s184, %s185
    %p197 = scmp.eq.s32.totalorder %s28, 1
    %p198 = por %p196, %p197
    %p200 = scmp.ne.s32.totalorder %s185, %s199
    %p201 = scmp.eq.s32.totalorder %s28, 0
    %p202 = por %p200, %p201
    %s204 = sadd.s32 %s203, 1
    %p207 = scmp.eq.s32.totalorder %s22, 1
    %p208 = scmp.ne.s32.totalorder %s203, %s205
    %p209 = scmp.eq.s32.totalorder %s22, 0
    %p210 = por %p208, %p209
    %p211 = scmp.ne.s32.totalorder %s203, %s205
    %p212 = scmp.eq.s32.totalorder %s27, 1
    %p213 = por %p211, %p212
    %p214 = scmp.ne.s32.totalorder %s205, %s206
    %p215 = scmp.eq.s32.totalorder %s27, 0
    %p216 = por %p214, %p215
    %p217 = scmp.ne.s32.totalorder %s205, %s206
    %p218 = scmp.eq.s32.totalorder %s28, 1
    %p219 = por %p217, %p218
    %p221 = scmp.ne.s32.totalorder %s206, %s220
    %p222 = scmp.eq.s32.totalorder %s28, 0
    %p223 = por %p221, %p222
    %s225 = sadd.s32 %s224, 1
    %p228 = scmp.eq.s32.totalorder %s22, 1
    %p229 = scmp.ne.s32.totalorder %s224, %s226
    %p230 = scmp.eq.s32.totalorder %s22, 0
    %p231 = por %p229, %p230
    %p232 = scmp.ne.s32.totalorder %s224, %s226
    %p233 = scmp.eq.s32.totalorder %s27, 1
    %p234 = por %p232, %p233
    %p235 = scmp.ne.s32.totalorder %s226, %s227
    %p236 = scmp.eq.s32.totalorder %s27, 0
    %p237 = por %p235, %p236
    %p238 = scmp.ne.s32.totalorder %s226, %s227
    %p239 = scmp.eq.s32.totalorder %s28, 1
    %p240 = por %p238, %p239
    %p242 = scmp.ne.s32.totalorder %s227, %s241
    %p243 = scmp.eq.s32.totalorder %s28, 0
    %p244 = por %p242, %p243
    %s246 = sadd.s32 %s245, 1
    %p249 = scmp.eq.s32.totalorder %s22, 1
    %p250 = scmp.ne.s32.totalorder %s245, %s247
    %p251 = scmp.eq.s32.totalorder %s22, 0
    %p252 = por %p250, %p251
    %p253 = scmp.ne.s32.totalorder %s245, %s247
    %p254 = scmp.eq.s32.totalorder %s27, 1
    %p255 = por %p253, %p254
    %p256 = scmp.ne.s32.totalorder %s247, %s248
    %p257 = scmp.eq.s32.totalorder %s27, 0
    %p258 = por %p256, %p257
    %p259 = scmp.ne.s32.totalorder %s247, %s248
    %p260 = scmp.eq.s32.totalorder %s28, 1
    %p261 = por %p259, %p260
    %p263 = scmp.ne.s32.totalorder %s248, %s262
    %p264 = scmp.eq.s32.totalorder %s28, 0
    %p265 = por %p263, %p264
    %s267 = sadd.s32 %s266, 1
    %p270 = scmp.eq.s32.totalorder %s22, 1
    %p271 = scmp.ne.s32.totalorder %s266, %s268
    %p272 = scmp.eq.s32.totalorder %s22, 0
    %p273 = por %p271, %p272
    %p274 = scmp.ne.s32.totalorder %s266, %s268
    %p275 = scmp.eq.s32.totalorder %s27, 1
    %p276 = por %p274, %p275
    %p277 = scmp.ne.s32.totalorder %s268, %s269
    %p278 = scmp.eq.s32.totalorder %s27, 0
    %p279 = por %p277, %p278
    %p280 = scmp.ne.s32.totalorder %s268, %s269
    %p281 = scmp.eq.s32.totalorder %s28, 1
    %p282 = por %p280, %p281
    %p284 = scmp.ne.s32.totalorder %s269, %s283
    %p285 = scmp.eq.s32.totalorder %s28, 0
    %p286 = por %p284, %p285
    %s288 = sadd.s32 %s287, 1
    %p291 = scmp.eq.s32.totalorder %s22, 1
    %p292 = scmp.ne.s32.totalorder %s287, %s289
    %p293 = scmp.eq.s32.totalorder %s22, 0
    %p294 = por %p292, %p293
    %p295 = scmp.ne.s32.totalorder %s287, %s289
    %p296 = scmp.eq.s32.totalorder %s27, 1
    %p297 = por %p295, %p296
    %p298 = scmp.ne.s32.totalorder %s289, %s290
    %p299 = scmp.eq.s32.totalorder %s27, 0
    %p300 = por %p298, %p299
    %p301 = scmp.ne.s32.totalorder %s289, %s290
    %p302 = scmp.eq.s32.totalorder %s28, 1
    %p303 = por %p301, %p302
    %p305 = scmp.ne.s32.totalorder %s290, %s304
    %p306 = scmp.eq.s32.totalorder %s28, 0
    %p307 = por %p305, %p306
    %s309 = sadd.s32 %s308, 1
    %p312 = scmp.eq.s32.totalorder %s22, 1
    %p313 = scmp.ne.s32.totalorder %s308, %s310
    %p314 = scmp.eq.s32.totalorder %s22, 0
    %p315 = por %p313, %p314
    %p316 = scmp.ne.s32.totalorder %s308, %s310
    %p317 = scmp.eq.s32.totalorder %s27, 1
    %p318 = por %p316, %p317
    %p319 = scmp.ne.s32.totalorder %s310, %s311
    %p320 = scmp.eq.s32.totalorder %s27, 0
    %p321 = por %p319, %p320
    %p322 = scmp.ne.s32.totalorder %s310, %s311
    %p323 = scmp.eq.s32.totalorder %s28, 1
    %p324 = por %p322, %p323
    %p326 = scmp.ne.s32.totalorder %s311, %s325
    %p327 = scmp.eq.s32.totalorder %s28, 0
    %p328 = por %p326, %p327
    %s330 = sadd.s32 %s329, 1
    %p333 = scmp.eq.s32.totalorder %s22, 1
    %p334 = scmp.ne.s32.totalorder %s329, %s331
    %p335 = scmp.eq.s32.totalorder %s22, 0
    %p336 = por %p334, %p335
    %p337 = scmp.ne.s32.totalorder %s329, %s331
    %p338 = scmp.eq.s32.totalorder %s27, 1
    %p339 = por %p337, %p338
    %p340 = scmp.ne.s32.totalorder %s331, %s332
    %p341 = scmp.eq.s32.totalorder %s27, 0
    %p342 = por %p340, %p341
    %p343 = scmp.ne.s32.totalorder %s331, %s332
    %p344 = scmp.eq.s32.totalorder %s28, 1
    %p345 = por %p343, %p344
    %p347 = scmp.ne.s32.totalorder %s332, %s346
    %p348 = scmp.eq.s32.totalorder %s28, 0
    %p349 = por %p347, %p348
    %s351 = sadd.s32 %s350, 1
    %p354 = scmp.eq.s32.totalorder %s22, 1
    %p355 = scmp.ne.s32.totalorder %s350, %s352
    %p356 = scmp.eq.s32.totalorder %s22, 0
    %p357 = por %p355, %p356
    %p358 = scmp.ne.s32.totalorder %s350, %s352
    %p359 = scmp.eq.s32.totalorder %s27, 1
    %p360 = por %p358, %p359
    %p361 = scmp.ne.s32.totalorder %s352, %s353
    %p362 = scmp.eq.s32.totalorder %s27, 0
    %p363 = por %p361, %p362
    %p364 = scmp.ne.s32.totalorder %s352, %s353
    %p365 = scmp.eq.s32.totalorder %s28, 1
    %p366 = por %p364, %p365
    %p368 = scmp.ne.s32.totalorder %s353, %s367
    %p369 = scmp.eq.s32.totalorder %s28, 0
    %p370 = por %p368, %p369
    %s371 = ssub.s32 %s22, %s29
    %p372 = scmp.eq.s32.totalorder %s371, 0
    %s374 = sadd.s32 %s373, 1
    %s375 = scalar_select %p372, %s373, %s374
    %p378 = pneg %p372
    %p379 = scmp.eq.s32.totalorder %s22, 1
    %p380 = por %p378, %p379
    %p381 = scmp.ne.s32.totalorder %s373, %s376
    %p382 = scmp.eq.s32.totalorder %s22, 0
    %p383 = por %p381, %p382
    %p384 = scmp.ne.s32.totalorder %s373, %s376
    %p385 = scmp.eq.s32.totalorder %s27, 1
    %p386 = por %p384, %p385
    %p387 = scmp.ne.s32.totalorder %s376, %s377
    %p388 = scmp.eq.s32.totalorder %s27, 0
    %p389 = por %p387, %p388
    %p390 = scmp.ne.s32.totalorder %s376, %s377
    %p391 = scmp.eq.s32.totalorder %s28, 1
    %p392 = por %p390, %p391
    %p394 = scmp.ne.s32.totalorder %s377, %s393
    %p395 = scmp.eq.s32.totalorder %s28, 0
    %p396 = por %p394, %p395
    %p397 = scmp.le.s32.totalorder 1, %s22
    %p398 = scmp.lt.s32.totalorder %s22, 3
    %p399 = pnand %p397, %p398
    %p400 = pneg %p399
    // Predicated region
    $region9: #{down_forward.4} parent=5 // pred_check
      _
    $region10: #{down_forward.4} parent=5 // pred_check_branch
      %402 = sbr.rel (%p399) target = $region12
    $region11: #{down_forward.4} parent=5 // pred_region
      %s403 = ssub.s32 %s22, 1
      // Predicated region
      $region13: #{down_forward.4} parent=11 // pred_check
        %p404 = pneg %p69
      $region14: #{down_forward.4} parent=11 // pred_check_branch
        %406 = sbr.rel (%p404) target = $region16
      $region15: #{down_forward.4} parent=11 // pred_region
        _
      $region16: #{down_forward.4} parent=11 // pred_fallthru
        _
      // Predicated region
      $region17: #{down_forward.4} parent=11 // pred_check
        %p407 = pneg %p90
      $region18: #{down_forward.4} parent=11 // pred_check_branch
        %409 = sbr.rel (%p407) target = $region20
      $region19: #{down_forward.4} parent=11 // pred_region
        _
      $region20: #{down_forward.4} parent=11 // pred_fallthru
        _
      // Predicated region
      $region21: #{down_forward.4} parent=11 // pred_check
        %p410 = pneg %p111
      $region22: #{down_forward.4} parent=11 // pred_check_branch
        %412 = sbr.rel (%p410) target = $region24
      $region23: #{down_forward.4} parent=11 // pred_region
        _
      $region24: #{down_forward.4} parent=11 // pred_fallthru
        _
      // Predicated region
      $region25: #{down_forward.4} parent=11 // pred_check
        %p413 = pneg %p132
      $region26: #{down_forward.4} parent=11 // pred_check_branch
        %415 = sbr.rel (%p413) target = $region28
      $region27: #{down_forward.4} parent=11 // pred_region
        _
      $region28: #{down_forward.4} parent=11 // pred_fallthru
        _
      // Predicated region
      $region29: #{down_forward.4} parent=11 // pred_check
        %p416 = pneg %p153
      $region30: #{down_forward.4} parent=11 // pred_check_branch
        %418 = sbr.rel (%p416) target = $region32
      $region31: #{down_forward.4} parent=11 // pred_region
        _
      $region32: #{down_forward.4} parent=11 // pred_fallthru
        _
      // Predicated region
      $region33: #{down_forward.4} parent=11 // pred_check
        %p419 = pneg %p174
      $region34: #{down_forward.4} parent=11 // pred_check_branch
        %421 = sbr.rel (%p419) target = $region36
      $region35: #{down_forward.4} parent=11 // pred_region
        _
      $region36: #{down_forward.4} parent=11 // pred_fallthru
        _
      // Predicated region
      $region37: #{down_forward.4} parent=11 // pred_check
        %p422 = pneg %p195
      $region38: #{down_forward.4} parent=11 // pred_check_branch
        %424 = sbr.rel (%p422) target = $region40
      $region39: #{down_forward.4} parent=11 // pred_region
        _
      $region40: #{down_forward.4} parent=11 // pred_fallthru
        _
      // Predicated region
      $region41: #{down_forward.4} parent=11 // pred_check
        %p425 = pneg %p216
      $region42: #{down_forward.4} parent=11 // pred_check_branch
        %427 = sbr.rel (%p425) target = $region44
      $region43: #{down_forward.4} parent=11 // pred_region
        _
      $region44: #{down_forward.4} parent=11 // pred_fallthru
        _
      // Predicated region
      $region45: #{down_forward.4} parent=11 // pred_check
        %p428 = pneg %p237
      $region46: #{down_forward.4} parent=11 // pred_check_branch
        %430 = sbr.rel (%p428) target = $region48
      $region47: #{down_forward.4} parent=11 // pred_region
        _
      $region48: #{down_forward.4} parent=11 // pred_fallthru
        _
      // Predicated region
      $region49: #{down_forward.4} parent=11 // pred_check
        %p431 = pneg %p258
      $region50: #{down_forward.4} parent=11 // pred_check_branch
        %433 = sbr.rel (%p431) target = $region52
      $region51: #{down_forward.4} parent=11 // pred_region
        _
      $region52: #{down_forward.4} parent=11 // pred_fallthru
        _
      // Predicated region
      $region53: #{down_forward.4} parent=11 // pred_check
        %p434 = pneg %p279
      $region54: #{down_forward.4} parent=11 // pred_check_branch
        %436 = sbr.rel (%p434) target = $region56
      $region55: #{down_forward.4} parent=11 // pred_region
        _
      $region56: #{down_forward.4} parent=11 // pred_fallthru
        _
      // Predicated region
      $region57: #{down_forward.4} parent=11 // pred_check
        %p437 = pneg %p300
      $region58: #{down_forward.4} parent=11 // pred_check_branch
        %439 = sbr.rel (%p437) target = $region60
      $region59: #{down_forward.4} parent=11 // pred_region
        _
      $region60: #{down_forward.4} parent=11 // pred_fallthru
        _
      // Predicated region
      $region61: #{down_forward.4} parent=11 // pred_check
        %p440 = pneg %p321
      $region62: #{down_forward.4} parent=11 // pred_check_branch
        %442 = sbr.rel (%p440) target = $region64
      $region63: #{down_forward.4} parent=11 // pred_region
        _
      $region64: #{down_forward.4} parent=11 // pred_fallthru
        _
      // Predicated region
      $region65: #{down_forward.4} parent=11 // pred_check
        %p443 = pneg %p342
      $region66: #{down_forward.4} parent=11 // pred_check_branch
        %445 = sbr.rel (%p443) target = $region68
      $region67: #{down_forward.4} parent=11 // pred_region
        _
      $region68: #{down_forward.4} parent=11 // pred_fallthru
        _
      // Predicated region
      $region69: #{down_forward.4} parent=11 // pred_check
        %p446 = pneg %p363
      $region70: #{down_forward.4} parent=11 // pred_check_branch
        %448 = sbr.rel (%p446) target = $region72
      $region71: #{down_forward.4} parent=11 // pred_region
        _
      $region72: #{down_forward.4} parent=11 // pred_fallthru
        _
    $region12: #{down_forward.4} parent=5 // pred_fallthru
      _
    %p449 = scmp.lt.s32.totalorder %s22, 2
    // Predicated region
    $region73: #{down_forward.4} parent=5 // pred_check
      %p450 = pneg %p449
    $region74: #{down_forward.4} parent=5 // pred_check_branch
      %452 = sbr.rel (%p450) target = $region76
    $region75: #{down_forward.4} parent=5 // pred_region
      // Predicated region
      $region77: #{down_forward.4} parent=75 // pred_check
        %p453 = pneg %p42
      $region78: #{down_forward.4} parent=75 // pred_check_branch
        %455 = sbr.rel (%p453) target = $region80
      $region79: #{down_forward.4} parent=75 // pred_region
        %p456 = scmp.lt.s32.totalorder %s22, 1
        %s457 = scalar_select %p456, %s22, 1
        %s458 = smul.addr %s457, 32
        %s459 = smul.addr %s458, 4
        %s460 = scalar_lea.vmem %s0, %s459
      $region80: #{down_forward.4} parent=75 // pred_fallthru
        _
    $region76: #{down_forward.4} parent=5 // pred_fallthru
      _
    %p461 = scmp.le.s32.totalorder 1, %s22
    %p462 = scmp.lt.s32.totalorder %s22, 3
    %p463 = pnand %p461, %p462
    %p464 = pneg %p463
    // Predicated region
    $region81: #{down_forward.4} parent=5 // pred_check
      _
    $region82: #{down_forward.4} parent=5 // pred_check_branch
      %466 = sbr.rel (%p463) target = $region84
    $region83: #{down_forward.4} parent=5 // pred_region
      %s467 = ssub.s32 %s22, 1
      %p468 = scmp.lt.s32.totalorder %s27, 1
      %s469 = scalar_select %p468, %s27, 1
      %s470 = smul.addr %s469, 32
      %s471 = smul.addr %s470, 4
      %s472 = scalar_lea.vmem %s0, %s471
      %p473 = pneg %p48
      %p474 = pneg %p45
      %p475 = pneg %p69
      %p476 = pneg %p66
      %p477 = pneg %p90
      %p478 = pneg %p87
      %p479 = pneg %p111
      %p480 = pneg %p108
      %p481 = pneg %p132
      %p482 = pneg %p129
      %p483 = pneg %p153
      %p484 = pneg %p150
      %p485 = pneg %p174
      %p486 = pneg %p171
      %p487 = pneg %p195
      %p488 = pneg %p192
      %p489 = pneg %p216
      %p490 = pneg %p213
      %p491 = pneg %p237
      %p492 = pneg %p234
      %p493 = pneg %p258
      %p494 = pneg %p255
      %p495 = pneg %p279
      %p496 = pneg %p276
      %p497 = pneg %p300
      %p498 = pneg %p297
      %p499 = pneg %p321
      %p500 = pneg %p318
      %p501 = pneg %p342
      %p502 = pneg %p339
      %p503 = pneg %p363
      %p504 = pneg %p360
      %p505 = pneg %p389
      %p506 = pneg %p386
      %p507 = scmp.lt.s32.totalorder %s27, 1
      %s508 = scalar_select %p507, %s27, 1
      %s509 = smul.addr %s508, 32
      %s510 = smul.addr %s509, 8
      %s511 = scalar_lea.vmem %s16, %s510
      %p512 = scmp.lt.s32.totalorder %s27, 1
      %s513 = scalar_select %p512, %s27, 1
      %s514 = smul.addr %s513, 32
      %s515 = smul.addr %s514, 4
      %s516 = scalar_lea.vmem %s0, %s515
      %p517 = scmp.lt.s32.totalorder %s27, 1
      %s518 = scalar_select %p517, %s27, 1
      %s519 = smul.addr %s518, 32
      %s520 = smul.addr %s519, 8
      %s521 = scalar_lea.vmem %s16, %s520
      %v523 = vld [vmem:[%s516] sm:$0xf]
      %v524 = vld [vmem:[%s516 + $0x4] sm:$0xf]
      %v525 = vld [vmem:[%s516 + $0x8] sm:$0xf]
      %v526 = vld [vmem:[%s516 + $0xc] sm:$0xf]
      %v527 = vld [vmem:[%s516 + $0x10] sm:$0xf]
      %v528 = vld [vmem:[%s516 + $0x14] sm:$0xf]
      %v529 = vld [vmem:[%s516 + $0x18] sm:$0xf]
      %v530 = vld [vmem:[%s516 + $0x1c] sm:$0xf]
      %v531 = vld [vmem:[%s516 + $0x20] sm:$0xf]
      %v532 = vld [vmem:[%s516 + $0x24] sm:$0xf]
      %v533 = vld [vmem:[%s516 + $0x28] sm:$0xf]
      %v534 = vld [vmem:[%s516 + $0x2c] sm:$0xf]
      %v535 = vld [vmem:[%s516 + $0x30] sm:$0xf]
      %v536 = vld [vmem:[%s516 + $0x34] sm:$0xf]
      %v537 = vld [vmem:[%s516 + $0x38] sm:$0xf]
      %v538 = vld [vmem:[%s516 + $0x3c] sm:$0xf]
      %v539 = vld [vmem:[%s516 + $0x40] sm:$0xf]
      %v540 = vld [vmem:[%s516 + $0x44] sm:$0xf]
      %v541 = vld [vmem:[%s516 + $0x48] sm:$0xf]
      %v542 = vld [vmem:[%s516 + $0x4c] sm:$0xf]
      %v543 = vld [vmem:[%s516 + $0x50] sm:$0xf]
      %v544 = vld [vmem:[%s516 + $0x54] sm:$0xf]
      %v545 = vld [vmem:[%s516 + $0x58] sm:$0xf]
      %v546 = vld [vmem:[%s516 + $0x5c] sm:$0xf]
      %v547 = vld [vmem:[%s516 + $0x60] sm:$0xf]
      %v548 = vld [vmem:[%s516 + $0x64] sm:$0xf]
      %v549 = vld [vmem:[%s516 + $0x68] sm:$0xf]
      %v550 = vld [vmem:[%s516 + $0x6c] sm:$0xf]
      %v551 = vld [vmem:[%s516 + $0x70] sm:$0xf]
      %v552 = vld [vmem:[%s516 + $0x74] sm:$0xf]
      %v553 = vld [vmem:[%s516 + $0x78] sm:$0xf]
      %v554 = vld [vmem:[%s516 + $0x7c] sm:$0xf]
      %v555 = vld [vmem:[%s1] sm:$0xff]
      %v556 = vld [vmem:[%s1 + $0x8] sm:$0xff]
      %v557 = vld [vmem:[%s1 + $0x10] sm:$0xff]
      %v558 = vld [vmem:[%s1 + $0x18] sm:$0xff]
      %v559 = vld [vmem:[%s1 + $0x20] sm:$0xff]
      %v560 = vld [vmem:[%s1 + $0x28] sm:$0xff]
      %v561 = vld [vmem:[%s1 + $0x30] sm:$0xff]
      %v562 = vld [vmem:[%s1 + $0x38] sm:$0xff]
      %v563 = vld [vmem:[%s1 + $0x40] sm:$0xff]
      %v564 = vld [vmem:[%s1 + $0x48] sm:$0xff]
      %v565 = vld [vmem:[%s1 + $0x50] sm:$0xff]
      %v566 = vld [vmem:[%s1 + $0x58] sm:$0xff]
      %v567 = vld [vmem:[%s1 + $0x60] sm:$0xff]
      %v568 = vld [vmem:[%s1 + $0x68] sm:$0xff]
      %v569 = vld [vmem:[%s1 + $0x70] sm:$0xff]
      %v570 = vld [vmem:[%s1 + $0x78] sm:$0xff]
      %v571 = vld [vmem:[%s1 + $0x80] sm:$0xff]
      %v572 = vld [vmem:[%s1 + $0x88] sm:$0xff]
      %v573 = vld [vmem:[%s1 + $0x90] sm:$0xff]
      %v574 = vld [vmem:[%s1 + $0x98] sm:$0xff]
      %v575 = vld [vmem:[%s1 + $0xa0] sm:$0xff]
      %v576 = vld [vmem:[%s1 + $0xa8] sm:$0xff]
      %v577 = vld [vmem:[%s1 + $0xb0] sm:$0xff]
      %v578 = vld [vmem:[%s1 + $0xb8] sm:$0xff]
      %v579 = vld [vmem:[%s1 + $0xc0] sm:$0xff]
      %v580 = vld [vmem:[%s1 + $0xc8] sm:$0xff]
      %v581 = vld [vmem:[%s1 + $0xd0] sm:$0xff]
      %v582 = vld [vmem:[%s1 + $0xd8] sm:$0xff]
      %v583 = vld [vmem:[%s1 + $0xe0] sm:$0xff]
      %v584 = vld [vmem:[%s1 + $0xe8] sm:$0xff]
      %v585 = vld [vmem:[%s1 + $0xf0] sm:$0xff]
      %v586 = vld [vmem:[%s1 + $0xf8] sm:$0xff]
      %v587 = vld [vmem:[%s4] sm:$0xf]
      %v588 = vld [vmem:[%s4 + $0x4] sm:$0xf]
      %v589 = vld [vmem:[%s4 + $0x8] sm:$0xf]
      %v590 = vld [vmem:[%s4 + $0xc] sm:$0xf]
      %v591 = vld [vmem:[%s4 + $0x10] sm:$0xf]
      %v592 = vld [vmem:[%s4 + $0x14] sm:$0xf]
      %v593 = vld [vmem:[%s4 + $0x18] sm:$0xf]
      %v594 = vld [vmem:[%s4 + $0x1c] sm:$0xf]
      %v595 = vld [vmem:[%s4 + $0x20] sm:$0xf]
      %v596 = vld [vmem:[%s4 + $0x24] sm:$0xf]
      %v597 = vld [vmem:[%s4 + $0x28] sm:$0xf]
      %v598 = vld [vmem:[%s4 + $0x2c] sm:$0xf]
      %v599 = vld [vmem:[%s4 + $0x30] sm:$0xf]
      %v600 = vld [vmem:[%s4 + $0x34] sm:$0xf]
      %v601 = vld [vmem:[%s4 + $0x38] sm:$0xf]
      %v602 = vld [vmem:[%s4 + $0x3c] sm:$0xf]
      %v603 = vld [vmem:[%s5] sm:$0x1]
      %v605 = vlaneseq
      %v606 = vshrl.u32 %v605, 7
      %v607 = vsub.s32 0, %v606
      %v608 = vrot.slane %v603, %v607
      %v642 = vunpack.c.l.b16 %v523
      %v643 = vunpack.c.l.b16 %v524
      %v644 = vunpack.c.l.b16 %v525
      %v645 = vunpack.c.l.b16 %v526
      %v646 = vunpack.c.l.b16 %v527
      %v647 = vunpack.c.l.b16 %v528
      %v648 = vunpack.c.l.b16 %v529
      %v649 = vunpack.c.l.b16 %v530
      %v650 = vunpack.c.l.b16 %v531
      %v651 = vunpack.c.l.b16 %v532
      %v652 = vunpack.c.l.b16 %v533
      %v653 = vunpack.c.l.b16 %v534
      %v654 = vunpack.c.l.b16 %v535
      %v655 = vunpack.c.l.b16 %v536
      %v656 = vunpack.c.l.b16 %v537
      %v657 = vunpack.c.l.b16 %v538
      %v658 = vunpack.c.l.b16 %v539
      %v659 = vunpack.c.l.b16 %v540
      %v660 = vunpack.c.l.b16 %v541
      %v661 = vunpack.c.l.b16 %v542
      %v662 = vunpack.c.l.b16 %v543
      %v663 = vunpack.c.l.b16 %v544
      %v664 = vunpack.c.l.b16 %v545
      %v665 = vunpack.c.l.b16 %v546
      %v666 = vunpack.c.l.b16 %v547
      %v667 = vunpack.c.l.b16 %v548
      %v668 = vunpack.c.l.b16 %v549
      %v669 = vunpack.c.l.b16 %v550
      %v670 = vunpack.c.l.b16 %v551
      %v671 = vunpack.c.l.b16 %v552
      %v672 = vunpack.c.l.b16 %v553
      %v673 = vunpack.c.l.b16 %v554
      %v674 = vpack.c.b16 %v643, %v642
      %v675 = vpack.c.b16 %v645, %v644
      %v676 = vpack.c.b16 %v647, %v646
      %v677 = vpack.c.b16 %v649, %v648
      %v678 = vpack.c.b16 %v651, %v650
      %v679 = vpack.c.b16 %v653, %v652
      %v680 = vpack.c.b16 %v655, %v654
      %v681 = vpack.c.b16 %v657, %v656
      %v682 = vpack.c.b16 %v659, %v658
      %v683 = vpack.c.b16 %v661, %v660
      %v684 = vpack.c.b16 %v663, %v662
      %v685 = vpack.c.b16 %v665, %v664
      %v686 = vpack.c.b16 %v667, %v666
      %v687 = vpack.c.b16 %v669, %v668
      %v688 = vpack.c.b16 %v671, %v670
      %v689 = vpack.c.b16 %v673, %v672
      %v722 = vunpack.c.l.b16 %v587
      %v723 = vunpack.c.l.b16 %v588
      %v724 = vunpack.c.l.b16 %v589
      %v725 = vunpack.c.l.b16 %v590
      %v726 = vunpack.c.l.b16 %v591
      %v727 = vunpack.c.l.b16 %v592
      %v728 = vunpack.c.l.b16 %v593
      %v729 = vunpack.c.l.b16 %v594
      %v730 = vunpack.c.l.b16 %v595
      %v731 = vunpack.c.l.b16 %v596
      %v732 = vunpack.c.l.b16 %v597
      %v733 = vunpack.c.l.b16 %v598
      %v734 = vunpack.c.l.b16 %v599
      %v735 = vunpack.c.l.b16 %v600
      %v736 = vunpack.c.l.b16 %v601
      %v737 = vunpack.c.l.b16 %v602
      %v738 = vpack.c.b16 %v723, %v722
      %v739 = vpack.c.b16 %v725, %v724
      %v740 = vpack.c.b16 %v727, %v726
      %v741 = vpack.c.b16 %v729, %v728
      %v742 = vpack.c.b16 %v731, %v730
      %v743 = vpack.c.b16 %v733, %v732
      %v744 = vpack.c.b16 %v735, %v734
      %v745 = vpack.c.b16 %v737, %v736
      %754 = vmatprep.subr.bf16.mxu0 0
      %755 = vmatpush1.bf16.msra.mxu0 %v738
      %756 = vmatprep.subr.bf16.mxu0 0
      %757 = vmatpush1.bf16.msra.mxu0 %v739
      %758 = vmatprep.subr.bf16.mxu0 0
      %759 = vmatpush1.bf16.msra.mxu0 %v740
      %760 = vmatprep.subr.bf16.mxu0 0
      %761 = vmatpush1.bf16.msra.mxu0 %v741
      %762 = vmatprep.subr.bf16.mxu0 0
      %763 = vmatpush1.bf16.msra.mxu0 %v742
      %764 = vmatprep.subr.bf16.mxu0 0
      %765 = vmatpush1.bf16.msra.mxu0 %v743
      %766 = vmatprep.subr.bf16.mxu0 0
      %767 = vmatpush1.bf16.msra.mxu0 %v744
      %768 = vmatprep.subr.bf16.mxu0 0
      %769 = vmatpush1.bf16.msra.mxu0 %v745
      %770 = vmatprep.subr.bf16.mxu0 0
      %771 = vmatpush1.bf16.msra.mxu0 0
      %772 = vmatprep.subr.bf16.mxu0 0
      %773 = vmatpush1.bf16.msra.mxu0 0
      %774 = vmatprep.subr.bf16.mxu0 0
      %775 = vmatpush1.bf16.msra.mxu0 0
      %776 = vmatprep.subr.bf16.mxu0 0
      %777 = vmatpush1.bf16.msra.mxu0 0
      %778 = vmatprep.subr.bf16.mxu0 0
      %779 = vmatpush1.bf16.msra.mxu0 0
      %780 = vmatprep.subr.bf16.mxu0 0
      %781 = vmatpush1.bf16.msra.mxu0 0
      %782 = vmatprep.subr.bf16.mxu0 0
      %783 = vmatpush1.bf16.msra.mxu0 0
      %784 = vmatprep.subr.bf16.mxu0 0
      %785 = vmatpush1.bf16.msra.mxu0 0
      %786 = vmatprep.mubr.bf16.mxu0 0
      %787 = vmatmul.mubr.bf16.gmra.mrb[0].mxu0 %v674
      %v788 = vpop.f32.mrb[0].mxu0
      %v789 = vadd.f32 %v608, %v788
      %v790 = vpop.f32.mrb[0].mxu0
      %v791 = vpop.f32.mrb[0].mxu0
      %v792 = vadd.f32 %v608, %v791
      %v793 = vpop.f32.mrb[0].mxu0
      %794 = vmatprep.mubr.bf16.mxu0 0
      %795 = vmatmul.mubr.bf16.gmra.mrb[0].mxu0 %v675
      %v796 = vpop.f32.mrb[0].mxu0
      %v797 = vadd.f32 %v608, %v796
      %v798 = vpop.f32.mrb[0].mxu0
      %v799 = vpop.f32.mrb[0].mxu0
      %v800 = vadd.f32 %v608, %v799
      %v801 = vpop.f32.mrb[0].mxu0
      %802 = vmatprep.mubr.bf16.mxu0 0
      %803 = vmatmul.mubr.bf16.gmra.mrb[0].mxu0 %v676
      %v804 = vpop.f32.mrb[0].mxu0
      %v805 = vadd.f32 %v608, %v804
      %v806 = vpop.f32.mrb[0].mxu0
      %v807 = vpop.f32.mrb[0].mxu0
      %v808 = vadd.f32 %v608, %v807
      %v809 = vpop.f32.mrb[0].mxu0
      %810 = vmatprep.mubr.bf16.mxu0 0
      %811 = vmatmul.mubr.bf16.gmra.mrb[0].mxu0 %v677
      %v812 = vpop.f32.mrb[0].mxu0
      %v813 = vadd.f32 %v608, %v812
      %v814 = vpop.f32.mrb[0].mxu0
      %v815 = vpop.f32.mrb[0].mxu0
      %v816 = vadd.f32 %v608, %v815
      %v817 = vpop.f32.mrb[0].mxu0
      %818 = vmatprep.mubr.bf16.mxu0 0
      %819 = vmatmul.mubr.bf16.gmra.mrb[0].mxu0 %v678
      %v820 = vpop.f32.mrb[0].mxu0
      %v821 = vadd.f32 %v608, %v820
      %v822 = vpop.f32.mrb[0].mxu0
      %v823 = vpop.f32.mrb[0].mxu0
      %v824 = vadd.f32 %v608, %v823
      %v825 = vpop.f32.mrb[0].mxu0
      %826 = vmatprep.mubr.bf16.mxu0 0
      %827 = vmatmul.mubr.bf16.gmra.mrb[0].mxu0 %v679
      %v828 = vpop.f32.mrb[0].mxu0
      %v829 = vadd.f32 %v608, %v828
      %v830 = vpop.f32.mrb[0].mxu0
      %v831 = vpop.f32.mrb[0].mxu0
      %v832 = vadd.f32 %v608, %v831
      %v833 = vpop.f32.mrb[0].mxu0
      %834 = vmatprep.mubr.bf16.mxu0 0
      %835 = vmatmul.mubr.bf16.gmra.mrb[0].mxu0 %v680
      %v836 = vpop.f32.mrb[0].mxu0
      %v837 = vadd.f32 %v608, %v836
      %v838 = vpop.f32.mrb[0].mxu0
      %v839 = vpop.f32.mrb[0].mxu0
      %v840 = vadd.f32 %v608, %v839
      %v841 = vpop.f32.mrb[0].mxu0
      %842 = vmatprep.mubr.bf16.mxu0 0
      %843 = vmatmul.mubr.bf16.gmra.mrb[0].mxu0 %v681
      %v844 = vpop.f32.mrb[0].mxu0
      %v845 = vadd.f32 %v608, %v844
      %v846 = vpop.f32.mrb[0].mxu0
      %v847 = vpop.f32.mrb[0].mxu0
      %v848 = vadd.f32 %v608, %v847
      %v849 = vpop.f32.mrb[0].mxu0
      %850 = vmatprep.mubr.bf16.mxu0 0
      %851 = vmatmul.mubr.bf16.gmra.mrb[0].mxu0 %v682
      %v852 = vpop.f32.mrb[0].mxu0
      %v853 = vadd.f32 %v608, %v852
      %v854 = vpop.f32.mrb[0].mxu0
      %v855 = vpop.f32.mrb[0].mxu0
      %v856 = vadd.f32 %v608, %v855
      %v857 = vpop.f32.mrb[0].mxu0
      %858 = vmatprep.mubr.bf16.mxu0 0
      %859 = vmatmul.mubr.bf16.gmra.mrb[0].mxu0 %v683
      %v860 = vpop.f32.mrb[0].mxu0
      %v861 = vadd.f32 %v608, %v860
      %v862 = vpop.f32.mrb[0].mxu0
      %v863 = vpop.f32.mrb[0].mxu0
      %v864 = vadd.f32 %v608, %v863
      %v865 = vpop.f32.mrb[0].mxu0
      %866 = vmatprep.mubr.bf16.mxu0 0
      %867 = vmatmul.mubr.bf16.gmra.mrb[0].mxu0 %v684
      %v868 = vpop.f32.mrb[0].mxu0
      %v869 = vadd.f32 %v608, %v868
      %v870 = vpop.f32.mrb[0].mxu0
      %v871 = vpop.f32.mrb[0].mxu0
      %v872 = vadd.f32 %v608, %v871
      %v873 = vpop.f32.mrb[0].mxu0
      %874 = vmatprep.mubr.bf16.mxu0 0
      %875 = vmatmul.mubr.bf16.gmra.mrb[0].mxu0 %v685
      %v876 = vpop.f32.mrb[0].mxu0
      %v877 = vadd.f32 %v608, %v876
      %v878 = vpop.f32.mrb[0].mxu0
      %v879 = vpop.f32.mrb[0].mxu0
      %v880 = vadd.f32 %v608, %v879
      %v881 = vpop.f32.mrb[0].mxu0
      %882 = vmatprep.mubr.bf16.mxu0 0
      %883 = vmatmul.mubr.bf16.gmra.mrb[0].mxu0 %v686
      %v884 = vpop.f32.mrb[0].mxu0
      %v885 = vadd.f32 %v608, %v884
      %v886 = vpop.f32.mrb[0].mxu0
      %v887 = vpop.f32.mrb[0].mxu0
      %v888 = vadd.f32 %v608, %v887
      %v889 = vpop.f32.mrb[0].mxu0
      %890 = vmatprep.mubr.bf16.mxu0 0
      %891 = vmatmul.mubr.bf16.gmra.mrb[0].mxu0 %v687
      %v892 = vpop.f32.mrb[0].mxu0
      %v893 = vadd.f32 %v608, %v892
      %v894 = vpop.f32.mrb[0].mxu0
      %v895 = vpop.f32.mrb[0].mxu0
      %v896 = vadd.f32 %v608, %v895
      %v897 = vpop.f32.mrb[0].mxu0
      %898 = vmatprep.mubr.bf16.mxu0 0
      %899 = vmatmul.mubr.bf16.gmra.mrb[0].mxu0 %v688
      %v900 = vpop.f32.mrb[0].mxu0
      %v901 = vadd.f32 %v608, %v900
      %v902 = vpop.f32.mrb[0].mxu0
      %v903 = vpop.f32.mrb[0].mxu0
      %v904 = vadd.f32 %v608, %v903
      %v905 = vpop.f32.mrb[0].mxu0
      %906 = vmatprep.mubr.bf16.mxu0 0
      %907 = vmatmul.mubr.bf16.gmra.mrb[0].mxu0 %v689
      %v908 = vpop.f32.mrb[0].mxu0
      %v909 = vadd.f32 %v608, %v908
      %v910 = vpop.f32.mrb[0].mxu0
      %v911 = vpop.f32.mrb[0].mxu0
      %v912 = vadd.f32 %v608, %v911
      %v913 = vpop.f32.mrb[0].mxu0
      %914 = vdwg.mxu0
      %v915 = vld [vmem:[%s2] sm:$0x1]
      %v917 = vlaneseq
      %v918 = vshrl.u32 %v917, 7
      %v919 = vsub.s32 0, %v918
      %v920 = vrot.slane %v915, %v919
      %v922 = vmul.f32 %v789, %v920
      %v923 = vmul.f32 %v792, %v920
      %v924 = vmul.f32 %v797, %v920
      %v925 = vmul.f32 %v800, %v920
      %v926 = vmul.f32 %v805, %v920
      %v927 = vmul.f32 %v808, %v920
      %v928 = vmul.f32 %v813, %v920
      %v929 = vmul.f32 %v816, %v920
      %v930 = vmul.f32 %v821, %v920
      %v931 = vmul.f32 %v824, %v920
      %v932 = vmul.f32 %v829, %v920
      %v933 = vmul.f32 %v832, %v920
      %v934 = vmul.f32 %v837, %v920
      %v935 = vmul.f32 %v840, %v920
      %v936 = vmul.f32 %v845, %v920
      %v937 = vmul.f32 %v848, %v920
      %v938 = vmul.f32 %v853, %v920
      %v939 = vmul.f32 %v856, %v920
      %v940 = vmul.f32 %v861, %v920
      %v941 = vmul.f32 %v864, %v920
      %v942 = vmul.f32 %v869, %v920
      %v943 = vmul.f32 %v872, %v920
      %v944 = vmul.f32 %v877, %v920
      %v945 = vmul.f32 %v880, %v920
      %v946 = vmul.f32 %v885, %v920
      %v947 = vmul.f32 %v888, %v920
      %v948 = vmul.f32 %v893, %v920
      %v949 = vmul.f32 %v896, %v920
      %v950 = vmul.f32 %v901, %v920
      %v951 = vmul.f32 %v904, %v920
      %v952 = vmul.f32 %v909, %v920
      %v953 = vmul.f32 %v912, %v920
      %v954 = vld [vmem:[%s3] sm:$0x1]
      %v956 = vlaneseq
      %v957 = vshrl.u32 %v956, 7
      %v958 = vsub.s32 0, %v957
      %v959 = vrot.slane %v954, %v958
      %v961 = vadd.f32 %v922, %v959
      %v962 = vadd.f32 %v923, %v959
      %v963 = vadd.f32 %v924, %v959
      %v964 = vadd.f32 %v925, %v959
      %v965 = vadd.f32 %v926, %v959
      %v966 = vadd.f32 %v927, %v959
      %v967 = vadd.f32 %v928, %v959
      %v968 = vadd.f32 %v929, %v959
      %v969 = vadd.f32 %v930, %v959
      %v970 = vadd.f32 %v931, %v959
      %v971 = vadd.f32 %v932, %v959
      %v972 = vadd.f32 %v933, %v959
      %v973 = vadd.f32 %v934, %v959
      %v974 = vadd.f32 %v935, %v959
      %v975 = vadd.f32 %v936, %v959
      %v976 = vadd.f32 %v937, %v959
      %v977 = vadd.f32 %v938, %v959
      %v978 = vadd.f32 %v939, %v959
      %v979 = vadd.f32 %v940, %v959
      %v980 = vadd.f32 %v941, %v959
      %v981 = vadd.f32 %v942, %v959
      %v982 = vadd.f32 %v943, %v959
      %v983 = vadd.f32 %v944, %v959
      %v984 = vadd.f32 %v945, %v959
      %v985 = vadd.f32 %v946, %v959
      %v986 = vadd.f32 %v947, %v959
      %v987 = vadd.f32 %v948, %v959
      %v988 = vadd.f32 %v949, %v959
      %v989 = vadd.f32 %v950, %v959
      %v990 = vadd.f32 %v951, %v959
      %v991 = vadd.f32 %v952, %v959
      %v992 = vadd.f32 %v953, %v959
      %v993 = vmax.f32 %v961, 0.0
      %v994 = vmax.f32 %v962, 0.0
      %v995 = vmax.f32 %v963, 0.0
      %v996 = vmax.f32 %v964, 0.0
      %v997 = vmax.f32 %v965, 0.0
      %v998 = vmax.f32 %v966, 0.0
      %v999 = vmax.f32 %v967, 0.0
      %v1000 = vmax.f32 %v968, 0.0
      %v1001 = vmax.f32 %v969, 0.0
      %v1002 = vmax.f32 %v970, 0.0
      %v1003 = vmax.f32 %v971, 0.0
      %v1004 = vmax.f32 %v972, 0.0
      %v1005 = vmax.f32 %v973, 0.0
      %v1006 = vmax.f32 %v974, 0.0
      %v1007 = vmax.f32 %v975, 0.0
      %v1008 = vmax.f32 %v976, 0.0
      %v1009 = vmax.f32 %v977, 0.0
      %v1010 = vmax.f32 %v978, 0.0
      %v1011 = vmax.f32 %v979, 0.0
      %v1012 = vmax.f32 %v980, 0.0
      %v1013 = vmax.f32 %v981, 0.0
      %v1014 = vmax.f32 %v982, 0.0
      %v1015 = vmax.f32 %v983, 0.0
      %v1016 = vmax.f32 %v984, 0.0
      %v1017 = vmax.f32 %v985, 0.0
      %v1018 = vmax.f32 %v986, 0.0
      %v1019 = vmax.f32 %v987, 0.0
      %v1020 = vmax.f32 %v988, 0.0
      %v1021 = vmax.f32 %v989, 0.0
      %v1022 = vmax.f32 %v990, 0.0
      %v1023 = vmax.f32 %v991, 0.0
      %v1024 = vmax.f32 %v992, 0.0
      %v1025 = vmin.f32 %v993, 6.0
      %v1026 = vmin.f32 %v994, 6.0
      %v1027 = vmin.f32 %v995, 6.0
      %v1028 = vmin.f32 %v996, 6.0
      %v1029 = vmin.f32 %v997, 6.0
      %v1030 = vmin.f32 %v998, 6.0
      %v1031 = vmin.f32 %v999, 6.0
      %v1032 = vmin.f32 %v1000, 6.0
      %v1033 = vmin.f32 %v1001, 6.0
      %v1034 = vmin.f32 %v1002, 6.0
      %v1035 = vmin.f32 %v1003, 6.0
      %v1036 = vmin.f32 %v1004, 6.0
      %v1037 = vmin.f32 %v1005, 6.0
      %v1038 = vmin.f32 %v1006, 6.0
      %v1039 = vmin.f32 %v1007, 6.0
      %v1040 = vmin.f32 %v1008, 6.0
      %v1041 = vmin.f32 %v1009, 6.0
      %v1042 = vmin.f32 %v1010, 6.0
      %v1043 = vmin.f32 %v1011, 6.0
      %v1044 = vmin.f32 %v1012, 6.0
      %v1045 = vmin.f32 %v1013, 6.0
      %v1046 = vmin.f32 %v1014, 6.0
      %v1047 = vmin.f32 %v1015, 6.0
      %v1048 = vmin.f32 %v1016, 6.0
      %v1049 = vmin.f32 %v1017, 6.0
      %v1050 = vmin.f32 %v1018, 6.0
      %v1051 = vmin.f32 %v1019, 6.0
      %v1052 = vmin.f32 %v1020, 6.0
      %v1053 = vmin.f32 %v1021, 6.0
      %v1054 = vmin.f32 %v1022, 6.0
      %v1055 = vmin.f32 %v1023, 6.0
      %v1056 = vmin.f32 %v1024, 6.0
      %1057 = vst [vmem:[#allocation2] sm:$0xff] 0.0
      %1058 = vst [vmem:[#allocation2 + $0x8] sm:$0xff] 0.0
      %1059 = vst [vmem:[#allocation2 + $0x10] sm:$0xff] 0.0
      %1060 = vst [vmem:[#allocation2 + $0x118] sm:$0xff] 0.0
      %1061 = vst [vmem:[#allocation2 + $0x120] sm:$0xff] 0.0
      %1062 = vst [vmem:[#allocation2 + $0x128] sm:$0xff] 0.0
      %1063 = vst [vmem:[#allocation2 + $0x18] sm:$0xff] %v1025
      %1064 = vst [vmem:[#allocation2 + $0x20] sm:$0xff] %v1026
      %1065 = vst [vmem:[#allocation2 + $0x28] sm:$0xff] %v1027
      %1066 = vst [vmem:[#allocation2 + $0x30] sm:$0xff] %v1028
      %1067 = vst [vmem:[#allocation2 + $0x38] sm:$0xff] %v1029
      %1068 = vst [vmem:[#allocation2 + $0x40] sm:$0xff] %v1030
      %1069 = vst [vmem:[#allocation2 + $0x48] sm:$0xff] %v1031
      %1070 = vst [vmem:[#allocation2 + $0x50] sm:$0xff] %v1032
      %1071 = vst [vmem:[#allocation2 + $0x58] sm:$0xff] %v1033
      %1072 = vst [vmem:[#allocation2 + $0x60] sm:$0xff] %v1034
      %1073 = vst [vmem:[#allocation2 + $0x68] sm:$0xff] %v1035
      %1074 = vst [vmem:[#allocation2 + $0x70] sm:$0xff] %v1036
      %1075 = vst [vmem:[#allocation2 + $0x78] sm:$0xff] %v1037
      %1076 = vst [vmem:[#allocation2 + $0x80] sm:$0xff] %v1038
      %1077 = vst [vmem:[#allocation2 + $0x88] sm:$0xff] %v1039
      %1078 = vst [vmem:[#allocation2 + $0x90] sm:$0xff] %v1040
      %1079 = vst [vmem:[#allocation2 + $0x98] sm:$0xff] %v1041
      %1080 = vst [vmem:[#allocation2 + $0xa0] sm:$0xff] %v1042
      %1081 = vst [vmem:[#allocation2 + $0xa8] sm:$0xff] %v1043
      %1082 = vst [vmem:[#allocation2 + $0xb0] sm:$0xff] %v1044
      %1083 = vst [vmem:[#allocation2 + $0xb8] sm:$0xff] %v1045
      %1084 = vst [vmem:[#allocation2 + $0xc0] sm:$0xff] %v1046
      %1085 = vst [vmem:[#allocation2 + $0xc8] sm:$0xff] %v1047
      %1086 = vst [vmem:[#allocation2 + $0xd0] sm:$0xff] %v1048
      %1087 = vst [vmem:[#allocation2 + $0xd8] sm:$0xff] %v1049
      %1088 = vst [vmem:[#allocation2 + $0xe0] sm:$0xff] %v1050
      %1089 = vst [vmem:[#allocation2 + $0xe8] sm:$0xff] %v1051
      %1090 = vst [vmem:[#allocation2 + $0xf0] sm:$0xff] %v1052
      %1091 = vst [vmem:[#allocation2 + $0xf8] sm:$0xff] %v1053
      %1092 = vst [vmem:[#allocation2 + $0x100] sm:$0xff] %v1054
      %1093 = vst [vmem:[#allocation2 + $0x108] sm:$0xff] %v1055
      %1094 = vst [vmem:[#allocation2 + $0x110] sm:$0xff] %v1056
      %vm1095 = vcmp.ge.s32.totalorder %v555, 1
      %vm1096 = vcmp.ge.s32.totalorder %v556, 1
      %vm1097 = vcmp.ge.s32.totalorder %v557, 1
      %vm1098 = vcmp.ge.s32.totalorder %v558, 1
      %vm1099 = vcmp.ge.s32.totalorder %v559, 1
      %vm1100 = vcmp.ge.s32.totalorder %v560, 1
      %vm1101 = vcmp.ge.s32.totalorder %v561, 1
      %vm1102 = vcmp.ge.s32.totalorder %v562, 1
      %vm1103 = vcmp.ge.s32.totalorder %v563, 1
      %vm1104 = vcmp.ge.s32.totalorder %v564, 1
      %vm1105 = vcmp.ge.s32.totalorder %v565, 1
      %vm1106 = vcmp.ge.s32.totalorder %v566, 1
      %vm1107 = vcmp.ge.s32.totalorder %v567, 1
      %vm1108 = vcmp.ge.s32.totalorder %v568, 1
      %vm1109 = vcmp.ge.s32.totalorder %v569, 1
      %vm1110 = vcmp.ge.s32.totalorder %v570, 1
      %vm1111 = vcmp.ge.s32.totalorder %v571, 1
      %vm1112 = vcmp.ge.s32.totalorder %v572, 1
      %vm1113 = vcmp.ge.s32.totalorder %v573, 1
      %vm1114 = vcmp.ge.s32.totalorder %v574, 1
      %vm1115 = vcmp.ge.s32.totalorder %v575, 1
      %vm1116 = vcmp.ge.s32.totalorder %v576, 1
      %vm1117 = vcmp.ge.s32.totalorder %v577, 1
      %vm1118 = vcmp.ge.s32.totalorder %v578, 1
      %vm1119 = vcmp.ge.s32.totalorder %v579, 1
      %vm1120 = vcmp.ge.s32.totalorder %v580, 1
      %vm1121 = vcmp.ge.s32.totalorder %v581, 1
      %vm1122 = vcmp.ge.s32.totalorder %v582, 1
      %vm1123 = vcmp.ge.s32.totalorder %v583, 1
      %vm1124 = vcmp.ge.s32.totalorder %v584, 1
      %vm1125 = vcmp.ge.s32.totalorder %v585, 1
      %vm1126 = vcmp.ge.s32.totalorder %v586, 1
      %v1127 = vsel %vm1095, 1, 0
      %v1128 = vsel %vm1096, 1, 0
      %v1129 = vsel %vm1097, 1, 0
      %v1130 = vsel %vm1098, 1, 0
      %v1131 = vsel %vm1099, 1, 0
      %v1132 = vsel %vm1100, 1, 0
      %v1133 = vsel %vm1101, 1, 0
      %v1134 = vsel %vm1102, 1, 0
      %v1135 = vsel %vm1103, 1, 0
      %v1136 = vsel %vm1104, 1, 0
      %v1137 = vsel %vm1105, 1, 0
      %v1138 = vsel %vm1106, 1, 0
      %v1139 = vsel %vm1107, 1, 0
      %v1140 = vsel %vm1108, 1, 0
      %v1141 = vsel %vm1109, 1, 0
      %v1142 = vsel %vm1110, 1, 0
      %v1143 = vsel %vm1111, 1, 0
      %v1144 = vsel %vm1112, 1, 0
      %v1145 = vsel %vm1113, 1, 0
      %v1146 = vsel %vm1114, 1, 0
      %v1147 = vsel %vm1115, 1, 0
      %v1148 = vsel %vm1116, 1, 0
      %v1149 = vsel %vm1117, 1, 0
      %v1150 = vsel %vm1118, 1, 0
      %v1151 = vsel %vm1119, 1, 0
      %v1152 = vsel %vm1120, 1, 0
      %v1153 = vsel %vm1121, 1, 0
      %v1154 = vsel %vm1122, 1, 0
      %v1155 = vsel %vm1123, 1, 0
      %v1156 = vsel %vm1124, 1, 0
      %v1157 = vsel %vm1125, 1, 0
      %v1158 = vsel %vm1126, 1, 0
      %v1159 = vcvt.s32.f32 %v1127
      %v1160 = vcvt.s32.f32 %v1128
      %v1161 = vcvt.s32.f32 %v1129
      %v1162 = vcvt.s32.f32 %v1130
      %v1163 = vcvt.s32.f32 %v1131
      %v1164 = vcvt.s32.f32 %v1132
      %v1165 = vcvt.s32.f32 %v1133
      %v1166 = vcvt.s32.f32 %v1134
      %v1167 = vcvt.s32.f32 %v1135
      %v1168 = vcvt.s32.f32 %v1136
      %v1169 = vcvt.s32.f32 %v1137
      %v1170 = vcvt.s32.f32 %v1138
      %v1171 = vcvt.s32.f32 %v1139
      %v1172 = vcvt.s32.f32 %v1140
      %v1173 = vcvt.s32.f32 %v1141
      %v1174 = vcvt.s32.f32 %v1142
      %v1175 = vcvt.s32.f32 %v1143
      %v1176 = vcvt.s32.f32 %v1144
      %v1177 = vcvt.s32.f32 %v1145
      %v1178 = vcvt.s32.f32 %v1146
      %v1179 = vcvt.s32.f32 %v1147
      %v1180 = vcvt.s32.f32 %v1148
      %v1181 = vcvt.s32.f32 %v1149
      %v1182 = vcvt.s32.f32 %v1150
      %v1183 = vcvt.s32.f32 %v1151
      %v1184 = vcvt.s32.f32 %v1152
      %v1185 = vcvt.s32.f32 %v1153
      %v1186 = vcvt.s32.f32 %v1154
      %v1187 = vcvt.s32.f32 %v1155
      %v1188 = vcvt.s32.f32 %v1156
      %v1189 = vcvt.s32.f32 %v1157
      %v1190 = vcvt.s32.f32 %v1158
      %vm1191 = vcmp.le.s32.totalorder %v555, 14
      %vm1192 = vcmp.le.s32.totalorder %v556, 14
      %vm1193 = vcmp.le.s32.totalorder %v557, 14
      %vm1194 = vcmp.le.s32.totalorder %v558, 14
      %vm1195 = vcmp.le.s32.totalorder %v559, 14
      %vm1196 = vcmp.le.s32.totalorder %v560, 14
      %vm1197 = vcmp.le.s32.totalorder %v561, 14
      %vm1198 = vcmp.le.s32.totalorder %v562, 14
      %vm1199 = vcmp.le.s32.totalorder %v563, 14
      %vm1200 = vcmp.le.s32.totalorder %v564, 14
      %vm1201 = vcmp.le.s32.totalorder %v565, 14
      %vm1202 = vcmp.le.s32.totalorder %v566, 14
      %vm1203 = vcmp.le.s32.totalorder %v567, 14
      %vm1204 = vcmp.le.s32.totalorder %v568, 14
      %vm1205 = vcmp.le.s32.totalorder %v569, 14
      %vm1206 = vcmp.le.s32.totalorder %v570, 14
      %vm1207 = vcmp.le.s32.totalorder %v571, 14
      %vm1208 = vcmp.le.s32.totalorder %v572, 14
      %vm1209 = vcmp.le.s32.totalorder %v573, 14
      %vm1210 = vcmp.le.s32.totalorder %v574, 14
      %vm1211 = vcmp.le.s32.totalorder %v575, 14
      %vm1212 = vcmp.le.s32.totalorder %v576, 14
      %vm1213 = vcmp.le.s32.totalorder %v577, 14
      %vm1214 = vcmp.le.s32.totalorder %v578, 14
      %vm1215 = vcmp.le.s32.totalorder %v579, 14
      %vm1216 = vcmp.le.s32.totalorder %v580, 14
      %vm1217 = vcmp.le.s32.totalorder %v581, 14
      %vm1218 = vcmp.le.s32.totalorder %v582, 14
      %vm1219 = vcmp.le.s32.totalorder %v583, 14
      %vm1220 = vcmp.le.s32.totalorder %v584, 14
      %vm1221 = vcmp.le.s32.totalorder %v585, 14
      %vm1222 = vcmp.le.s32.totalorder %v586, 14
      %v1223 = vsel %vm1191, 1, 0
      %v1224 = vsel %vm1192, 1, 0
      %v1225 = vsel %vm1193, 1, 0
      %v1226 = vsel %vm1194, 1, 0
      %v1227 = vsel %vm1195, 1, 0
      %v1228 = vsel %vm1196, 1, 0
      %v1229 = vsel %vm1197, 1, 0
      %v1230 = vsel %vm1198, 1, 0
      %v1231 = vsel %vm1199, 1, 0
      %v1232 = vsel %vm1200, 1, 0
      %v1233 = vsel %vm1201, 1, 0
      %v1234 = vsel %vm1202, 1, 0
      %v1235 = vsel %vm1203, 1, 0
      %v1236 = vsel %vm1204, 1, 0
      %v1237 = vsel %vm1205, 1, 0
      %v1238 = vsel %vm1206, 1, 0
      %v1239 = vsel %vm1207, 1, 0
      %v1240 = vsel %vm1208, 1, 0
      %v1241 = vsel %vm1209, 1, 0
      %v1242 = vsel %vm1210, 1, 0
      %v1243 = vsel %vm1211, 1, 0
      %v1244 = vsel %vm1212, 1, 0
      %v1245 = vsel %vm1213, 1, 0
      %v1246 = vsel %vm1214, 1, 0
      %v1247 = vsel %vm1215, 1, 0
      %v1248 = vsel %vm1216, 1, 0
      %v1249 = vsel %vm1217, 1, 0
      %v1250 = vsel %vm1218, 1, 0
      %v1251 = vsel %vm1219, 1, 0
      %v1252 = vsel %vm1220, 1, 0
      %v1253 = vsel %vm1221, 1, 0
      %v1254 = vsel %vm1222, 1, 0
      %v1255 = vcvt.s32.f32 %v1223
      %v1256 = vcvt.s32.f32 %v1224
      %v1257 = vcvt.s32.f32 %v1225
      %v1258 = vcvt.s32.f32 %v1226
      %v1259 = vcvt.s32.f32 %v1227
      %v1260 = vcvt.s32.f32 %v1228
      %v1261 = vcvt.s32.f32 %v1229
      %v1262 = vcvt.s32.f32 %v1230
      %v1263 = vcvt.s32.f32 %v1231
      %v1264 = vcvt.s32.f32 %v1232
      %v1265 = vcvt.s32.f32 %v1233
      %v1266 = vcvt.s32.f32 %v1234
      %v1267 = vcvt.s32.f32 %v1235
      %v1268 = vcvt.s32.f32 %v1236
      %v1269 = vcvt.s32.f32 %v1237
      %v1270 = vcvt.s32.f32 %v1238
      %v1271 = vcvt.s32.f32 %v1239
      %v1272 = vcvt.s32.f32 %v1240
      %v1273 = vcvt.s32.f32 %v1241
      %v1274 = vcvt.s32.f32 %v1242
      %v1275 = vcvt.s32.f32 %v1243
      %v1276 = vcvt.s32.f32 %v1244
      %v1277 = vcvt.s32.f32 %v1245
      %v1278 = vcvt.s32.f32 %v1246
      %v1279 = vcvt.s32.f32 %v1247
      %v1280 = vcvt.s32.f32 %v1248
      %v1281 = vcvt.s32.f32 %v1249
      %v1282 = vcvt.s32.f32 %v1250
      %v1283 = vcvt.s32.f32 %v1251
      %v1284 = vcvt.s32.f32 %v1252
      %v1285 = vcvt.s32.f32 %v1253
      %v1286 = vcvt.s32.f32 %v1254
      %v1287 = vld [vmem:[#allocation2 + $0x7] sm:$0xff]
      %v1288 = vld [vmem:[#allocation2 + $0xf] sm:$0xff]
      %v1289 = vld [vmem:[#allocation2 + $0x17] sm:$0xff]
      %v1290 = vld [vmem:[#allocation2 + $0x1f] sm:$0xff]
      %v1291 = vld [vmem:[#allocation2 + $0x27] sm:$0xff]
      %v1292 = vld [vmem:[#allocation2 + $0x2f] sm:$0xff]
      %v1293 = vld [vmem:[#allocation2 + $0x37] sm:$0xff]
      %v1294 = vld [vmem:[#allocation2 + $0x3f] sm:$0xff]
      %v1295 = vld [vmem:[#allocation2 + $0x47] sm:$0xff]
      %v1296 = vld [vmem:[#allocation2 + $0x4f] sm:$0xff]
      %v1297 = vld [vmem:[#allocation2 + $0x57] sm:$0xff]
      %v1298 = vld [vmem:[#allocation2 + $0x5f] sm:$0xff]
      %v1299 = vld [vmem:[#allocation2 + $0x67] sm:$0xff]
      %v1300 = vld [vmem:[#allocation2 + $0x6f] sm:$0xff]
      %v1301 = vld [vmem:[#allocation2 + $0x77] sm:$0xff]
      %v1302 = vld [vmem:[#allocation2 + $0x7f] sm:$0xff]
      %v1303 = vld [vmem:[#allocation2 + $0x87] sm:$0xff]
      %v1304 = vld [vmem:[#allocation2 + $0x8f] sm:$0xff]
      %v1305 = vld [vmem:[#allocation2 + $0x97] sm:$0xff]
      %v1306 = vld [vmem:[#allocation2 + $0x9f] sm:$0xff]
      %v1307 = vld [vmem:[#allocation2 + $0xa7] sm:$0xff]
      %v1308 = vld [vmem:[#allocation2 + $0xaf] sm:$0xff]
      %v1309 = vld [vmem:[#allocation2 + $0xb7] sm:$0xff]
      %v1310 = vld [vmem:[#allocation2 + $0xbf] sm:$0xff]
      %v1311 = vld [vmem:[#allocation2 + $0xc7] sm:$0xff]
      %v1312 = vld [vmem:[#allocation2 + $0xcf] sm:$0xff]
      %v1313 = vld [vmem:[#allocation2 + $0xd7] sm:$0xff]
      %v1314 = vld [vmem:[#allocation2 + $0xdf] sm:$0xff]
      %v1315 = vld [vmem:[#allocation2 + $0xe7] sm:$0xff]
      %v1316 = vld [vmem:[#allocation2 + $0xef] sm:$0xff]
      %v1317 = vld [vmem:[#allocation2 + $0xf7] sm:$0xff]
      %v1318 = vld [vmem:[#allocation2 + $0xff] sm:$0xff]
      %1320 = vset.pattern.permute.xlu0 0
      %1321 = vperm.xlu0 %1320, %v1159
      %v1322 = vpop.permute.xlu0 %1321
      %1325 = vset.pattern.permute.xlu0 0
      %1326 = vperm.xlu0 %1325, %v1160
      %v1327 = vpop.permute.xlu0 %1326
      %1330 = vset.pattern.permute.xlu0 0
      %1331 = vperm.xlu0 %1330, %v1161
      %v1332 = vpop.permute.xlu0 %1331
      %1335 = vset.pattern.permute.xlu0 0
      %1336 = vperm.xlu0 %1335, %v1162
      %v1337 = vpop.permute.xlu0 %1336
      %1340 = vset.pattern.permute.xlu0 0
      %1341 = vperm.xlu0 %1340, %v1163
      %v1342 = vpop.permute.xlu0 %1341
      %1345 = vset.pattern.permute.xlu0 0
      %1346 = vperm.xlu0 %1345, %v1164
      %v1347 = vpop.permute.xlu0 %1346
      %1350 = vset.pattern.permute.xlu0 0
      %1351 = vperm.xlu0 %1350, %v1165
      %v1352 = vpop.permute.xlu0 %1351
      %1355 = vset.pattern.permute.xlu0 0
      %1356 = vperm.xlu0 %1355, %v1166
      %v1357 = vpop.permute.xlu0 %1356
      %1360 = vset.pattern.permute.xlu0 0
      %1361 = vperm.xlu0 %1360, %v1167
      %v1362 = vpop.permute.xlu0 %1361
      %1365 = vset.pattern.permute.xlu0 0
      %1366 = vperm.xlu0 %1365, %v1168
      %v1367 = vpop.permute.xlu0 %1366
      %1370 = vset.pattern.permute.xlu0 0
      %1371 = vperm.xlu0 %1370, %v1169
      %v1372 = vpop.permute.xlu0 %1371
      %1375 = vset.pattern.permute.xlu0 0
      %1376 = vperm.xlu0 %1375, %v1170
      %v1377 = vpop.permute.xlu0 %1376
      %1380 = vset.pattern.permute.xlu0 0
      %1381 = vperm.xlu0 %1380, %v1171
      %v1382 = vpop.permute.xlu0 %1381
      %1385 = vset.pattern.permute.xlu0 0
      %1386 = vperm.xlu0 %1385, %v1172
      %v1387 = vpop.permute.xlu0 %1386
      %1390 = vset.pattern.permute.xlu0 0
      %1391 = vperm.xlu0 %1390, %v1173
      %v1392 = vpop.permute.xlu0 %1391
      %1395 = vset.pattern.permute.xlu0 0
      %1396 = vperm.xlu0 %1395, %v1174
      %v1397 = vpop.permute.xlu0 %1396
      %1400 = vset.pattern.permute.xlu0 0
      %1401 = vperm.xlu0 %1400, %v1175
      %v1402 = vpop.permute.xlu0 %1401
      %1405 = vset.pattern.permute.xlu0 0
      %1406 = vperm.xlu0 %1405, %v1176
      %v1407 = vpop.permute.xlu0 %1406
      %1410 = vset.pattern.permute.xlu0 0
      %1411 = vperm.xlu0 %1410, %v1177
      %v1412 = vpop.permute.xlu0 %1411
      %1415 = vset.pattern.permute.xlu0 0
      %1416 = vperm.xlu0 %1415, %v1178
      %v1417 = vpop.permute.xlu0 %1416
      %1420 = vset.pattern.permute.xlu0 0
      %1421 = vperm.xlu0 %1420, %v1179
      %v1422 = vpop.permute.xlu0 %1421
      %1425 = vset.pattern.permute.xlu0 0
      %1426 = vperm.xlu0 %1425, %v1180
      %v1427 = vpop.permute.xlu0 %1426
      %1430 = vset.pattern.permute.xlu0 0
      %1431 = vperm.xlu0 %1430, %v1181
      %v1432 = vpop.permute.xlu0 %1431
      %1435 = vset.pattern.permute.xlu0 0
      %1436 = vperm.xlu0 %1435, %v1182
      %v1437 = vpop.permute.xlu0 %1436
      %1440 = vset.pattern.permute.xlu0 0
      %1441 = vperm.xlu0 %1440, %v1183
      %v1442 = vpop.permute.xlu0 %1441
      %1445 = vset.pattern.permute.xlu0 0
      %1446 = vperm.xlu0 %1445, %v1184
      %v1447 = vpop.permute.xlu0 %1446
      %1450 = vset.pattern.permute.xlu0 0
      %1451 = vperm.xlu0 %1450, %v1185
      %v1452 = vpop.permute.xlu0 %1451
      %1455 = vset.pattern.permute.xlu0 0
      %1456 = vperm.xlu0 %1455, %v1186
      %v1457 = vpop.permute.xlu0 %1456
      %1460 = vset.pattern.permute.xlu0 0
      %1461 = vperm.xlu0 %1460, %v1187
      %v1462 = vpop.permute.xlu0 %1461
      %1465 = vset.pattern.permute.xlu0 0
      %1466 = vperm.xlu0 %1465, %v1188
      %v1467 = vpop.permute.xlu0 %1466
      %1470 = vset.pattern.permute.xlu0 0
      %1471 = vperm.xlu0 %1470, %v1189
      %v1472 = vpop.permute.xlu0 %1471
      %1475 = vset.pattern.permute.xlu0 0
      %1476 = vperm.xlu0 %1475, %v1190
      %v1477 = vpop.permute.xlu0 %1476
      %v1479 = vmul.f32 %v1287, %v1322
      %v1480 = vmul.f32 %v1288, %v1327
      %v1481 = vmul.f32 %v1289, %v1332
      %v1482 = vmul.f32 %v1290, %v1337
      %v1483 = vmul.f32 %v1291, %v1342
      %v1484 = vmul.f32 %v1292, %v1347
      %v1485 = vmul.f32 %v1293, %v1352
      %v1486 = vmul.f32 %v1294, %v1357
      %v1487 = vmul.f32 %v1295, %v1362
      %v1488 = vmul.f32 %v1296, %v1367
      %v1489 = vmul.f32 %v1297, %v1372
      %v1490 = vmul.f32 %v1298, %v1377
      %v1491 = vmul.f32 %v1299, %v1382
      %v1492 = vmul.f32 %v1300, %v1387
      %v1493 = vmul.f32 %v1301, %v1392
      %v1494 = vmul.f32 %v1302, %v1397
      %v1495 = vmul.f32 %v1303, %v1402
      %v1496 = vmul.f32 %v1304, %v1407
      %v1497 = vmul.f32 %v1305, %v1412
      %v1498 = vmul.f32 %v1306, %v1417
      %v1499 = vmul.f32 %v1307, %v1422
      %v1500 = vmul.f32 %v1308, %v1427
      %v1501 = vmul.f32 %v1309, %v1432
      %v1502 = vmul.f32 %v1310, %v1437
      %v1503 = vmul.f32 %v1311, %v1442
      %v1504 = vmul.f32 %v1312, %v1447
      %v1505 = vmul.f32 %v1313, %v1452
      %v1506 = vmul.f32 %v1314, %v1457
      %v1507 = vmul.f32 %v1315, %v1462
      %v1508 = vmul.f32 %v1316, %v1467
      %v1509 = vmul.f32 %v1317, %v1472
      %v1510 = vmul.f32 %v1318, %v1477
      %v1511 = vpack.c.bf16 %v1480, %v1479
      %v1512 = vpack.c.bf16 %v1482, %v1481
      %v1513 = vpack.c.bf16 %v1484, %v1483
      %v1514 = vpack.c.bf16 %v1486, %v1485
      %v1515 = vpack.c.bf16 %v1488, %v1487
      %v1516 = vpack.c.bf16 %v1490, %v1489
      %v1517 = vpack.c.bf16 %v1492, %v1491
      %v1518 = vpack.c.bf16 %v1494, %v1493
      %v1519 = vpack.c.bf16 %v1496, %v1495
      %v1520 = vpack.c.bf16 %v1498, %v1497
      %v1521 = vpack.c.bf16 %v1500, %v1499
      %v1522 = vpack.c.bf16 %v1502, %v1501
      %v1523 = vpack.c.bf16 %v1504, %v1503
      %v1524 = vpack.c.bf16 %v1506, %v1505
      %v1525 = vpack.c.bf16 %v1508, %v1507
      %v1526 = vpack.c.bf16 %v1510, %v1509
      %v1527 = vld [vmem:[%s6] sm:$0xf]
      %v1528 = vld [vmem:[%s6 + $0x4] sm:$0xf]
      %v1529 = vld [vmem:[%s6 + $0x8] sm:$0xf]
      %v1530 = vld [vmem:[%s6 + $0xc] sm:$0xf]
      %v1531 = vld [vmem:[%s6 + $0x10] sm:$0xf]
      %v1532 = vld [vmem:[%s6 + $0x14] sm:$0xf]
      %v1533 = vld [vmem:[%s6 + $0x18] sm:$0xf]
      %v1534 = vld [vmem:[%s6 + $0x1c] sm:$0xf]
      %v1535 = vld [vmem:[%s6 + $0x20] sm:$0xf]
      %v1536 = vld [vmem:[%s6 + $0x24] sm:$0xf]
      %v1537 = vld [vmem:[%s6 + $0x28] sm:$0xf]
      %v1538 = vld [vmem:[%s6 + $0x2c] sm:$0xf]
      %v1539 = vld [vmem:[%s6 + $0x30] sm:$0xf]
      %v1540 = vld [vmem:[%s6 + $0x34] sm:$0xf]
      %v1541 = vld [vmem:[%s6 + $0x38] sm:$0xf]
      %v1542 = vld [vmem:[%s6 + $0x3c] sm:$0xf]
      %v1543 = vld [vmem:[#allocation2 + $0x8] sm:$0xff]
      %v1544 = vld [vmem:[#allocation2 + $0x10] sm:$0xff]
      %v1545 = vld [vmem:[#allocation2 + $0x18] sm:$0xff]
      %v1546 = vld [vmem:[#allocation2 + $0x20] sm:$0xff]
      %v1547 = vld [vmem:[#allocation2 + $0x28] sm:$0xff]
      %v1548 = vld [vmem:[#allocation2 + $0x30] sm:$0xff]
      %v1549 = vld [vmem:[#allocation2 + $0x38] sm:$0xff]
      %v1550 = vld [vmem:[#allocation2 + $0x40] sm:$0xff]
      %v1551 = vld [vmem:[#allocation2 + $0x48] sm:$0xff]
      %v1552 = vld [vmem:[#allocation2 + $0x50] sm:$0xff]
      %v1553 = vld [vmem:[#allocation2 + $0x58] sm:$0xff]
      %v1554 = vld [vmem:[#allocation2 + $0x60] sm:$0xff]
      %v1555 = vld [vmem:[#allocation2 + $0x68] sm:$0xff]
      %v1556 = vld [vmem:[#allocation2 + $0x70] sm:$0xff]
      %v1557 = vld [vmem:[#allocation2 + $0x78] sm:$0xff]
      %v1558 = vld [vmem:[#allocation2 + $0x80] sm:$0xff]
      %v1559 = vld [vmem:[#allocation2 + $0x88] sm:$0xff]
      %v1560 = vld [vmem:[#allocation2 + $0x90] sm:$0xff]
      %v1561 = vld [vmem:[#allocation2 + $0x98] sm:$0xff]
      %v1562 = vld [vmem:[#allocation2 + $0xa0] sm:$0xff]
      %v1563 = vld [vmem:[#allocation2 + $0xa8] sm:$0xff]
      %v1564 = vld [vmem:[#allocation2 + $0xb0] sm:$0xff]
      %v1565 = vld [vmem:[#allocation2 + $0xb8] sm:$0xff]
      %v1566 = vld [vmem:[#allocation2 + $0xc0] sm:$0xff]
      %v1567 = vld [vmem:[#allocation2 + $0xc8] sm:$0xff]
      %v1568 = vld [vmem:[#allocation2 + $0xd0] sm:$0xff]
      %v1569 = vld [vmem:[#allocation2 + $0xd8] sm:$0xff]
      %v1570 = vld [vmem:[#allocation2 + $0xe0] sm:$0xff]
      %v1571 = vld [vmem:[#allocation2 + $0xe8] sm:$0xff]
      %v1572 = vld [vmem:[#allocation2 + $0xf0] sm:$0xff]
      %v1573 = vld [vmem:[#allocation2 + $0xf8] sm:$0xff]
      %v1574 = vld [vmem:[#allocation2 + $0x100] sm:$0xff]
      %v1575 = vpack.c.bf16 %v1544, %v1543
      %v1576 = vpack.c.bf16 %v1546, %v1545
      %v1577 = vpack.c.bf16 %v1548, %v1547
      %v1578 = vpack.c.bf16 %v1550, %v1549
      %v1579 = vpack.c.bf16 %v1552, %v1551
      %v1580 = vpack.c.bf16 %v1554, %v1553
      %v1581 = vpack.c.bf16 %v1556, %v1555
      %v1582 = vpack.c.bf16 %v1558, %v1557
      %v1583 = vpack.c.bf16 %v1560, %v1559
      %v1584 = vpack.c.bf16 %v1562, %v1561
      %v1585 = vpack.c.bf16 %v1564, %v1563
      %v1586 = vpack.c.bf16 %v1566, %v1565
      %v1587 = vpack.c.bf16 %v1568, %v1567
      %v1588 = vpack.c.bf16 %v1570, %v1569
      %v1589 = vpack.c.bf16 %v1572, %v1571
      %v1590 = vpack.c.bf16 %v1574, %v1573
      %s1591 = scalar_lea.vmem %s6, 64
      %v1592 = vld [vmem:[%s1591] sm:$0xf]
      %v1593 = vld [vmem:[%s1591 + $0x4] sm:$0xf]
      %v1594 = vld [vmem:[%s1591 + $0x8] sm:$0xf]
      %v1595 = vld [vmem:[%s1591 + $0xc] sm:$0xf]
      %v1596 = vld [vmem:[%s1591 + $0x10] sm:$0xf]
      %v1597 = vld [vmem:[%s1591 + $0x14] sm:$0xf]
      %v1598 = vld [vmem:[%s1591 + $0x18] sm:$0xf]
      %v1599 = vld [vmem:[%s1591 + $0x1c] sm:$0xf]
      %v1600 = vld [vmem:[%s1591 + $0x20] sm:$0xf]
      %v1601 = vld [vmem:[%s1591 + $0x24] sm:$0xf]
      %v1602 = vld [vmem:[%s1591 + $0x28] sm:$0xf]
      %v1603 = vld [vmem:[%s1591 + $0x2c] sm:$0xf]
      %v1604 = vld [vmem:[%s1591 + $0x30] sm:$0xf]
      %v1605 = vld [vmem:[%s1591 + $0x34] sm:$0xf]
      %v1606 = vld [vmem:[%s1591 + $0x38] sm:$0xf]
      %v1607 = vld [vmem:[%s1591 + $0x3c] sm:$0xf]
      %v1624 = vunpack.c.l.b16 %v1592
      %v1625 = vunpack.c.l.b16 %v1593
      %v1626 = vunpack.c.l.b16 %v1594
      %v1627 = vunpack.c.l.b16 %v1595
      %v1628 = vunpack.c.l.b16 %v1596
      %v1629 = vunpack.c.l.b16 %v1597
      %v1630 = vunpack.c.l.b16 %v1598
      %v1631 = vunpack.c.l.b16 %v1599
      %v1632 = vunpack.c.l.b16 %v1600
      %v1633 = vunpack.c.l.b16 %v1601
      %v1634 = vunpack.c.l.b16 %v1602
      %v1635 = vunpack.c.l.b16 %v1603
      %v1636 = vunpack.c.l.b16 %v1604
      %v1637 = vunpack.c.l.b16 %v1605
      %v1638 = vunpack.c.l.b16 %v1606
      %v1639 = vunpack.c.l.b16 %v1607
      %v1640 = vpack.c.b16 %v1625, %v1624
      %v1641 = vpack.c.b16 %v1627, %v1626
      %v1642 = vpack.c.b16 %v1629, %v1628
      %v1643 = vpack.c.b16 %v1631, %v1630
      %v1644 = vpack.c.b16 %v1633, %v1632
      %v1645 = vpack.c.b16 %v1635, %v1634
      %v1646 = vpack.c.b16 %v1637, %v1636
      %v1647 = vpack.c.b16 %v1639, %v1638
      %1656 = vmatprep.subr.bf16.mxu0 0
      %1657 = vmatpush1.bf16.msra.mxu0 %v1640
      %1658 = vmatprep.subr.bf16.mxu0 0
      %1659 = vmatpush1.bf16.msra.mxu0 %v1641
      %1660 = vmatprep.subr.bf16.mxu0 0
      %1661 = vmatpush1.bf16.msra.mxu0 %v1642
      %1662 = vmatprep.subr.bf16.mxu0 0
      %1663 = vmatpush1.bf16.msra.mxu0 %v1643
      %1664 = vmatprep.subr.bf16.mxu0 0
      %1665 = vmatpush1.bf16.msra.mxu0 %v1644
      %1666 = vmatprep.subr.bf16.mxu0 0
      %1667 = vmatpush1.bf16.msra.mxu0 %v1645
      %1668 = vmatprep.subr.bf16.mxu0 0
      %1669 = vmatpush1.bf16.msra.mxu0 %v1646
      %1670 = vmatprep.subr.bf16.mxu0 0
      %1671 = vmatpush1.bf16.msra.mxu0 %v1647
      %1672 = vmatprep.subr.bf16.mxu0 0
      %1673 = vmatpush1.bf16.msra.mxu0 0
      %1674 = vmatprep.subr.bf16.mxu0 0
      %1675 = vmatpush1.bf16.msra.mxu0 0
      %1676 = vmatprep.subr.bf16.mxu0 0
      %1677 = vmatpush1.bf16.msra.mxu0 0
      %1678 = vmatprep.subr.bf16.mxu0 0
      %1679 = vmatpush1.bf16.msra.mxu0 0
      %1680 = vmatprep.subr.bf16.mxu0 0
      %1681 = vmatpush1.bf16.msra.mxu0 0
      %1682 = vmatprep.subr.bf16.mxu0 0
      %1683 = vmatpush1.bf16.msra.mxu0 0
      %1684 = vmatprep.subr.bf16.mxu0 0
      %1685 = vmatpush1.bf16.msra.mxu0 0
      %1686 = vmatprep.subr.bf16.mxu0 0
      %1687 = vmatpush1.bf16.msra.mxu0 0
      %1688 = vmatprep.mubr.bf16.mxu0 0
      %1689 = vmatmul.mubr.bf16.gmra.mrb[0].mxu0 %v1575
      %v1690 = vpop.f32.mrb[0].mxu0
      %v1691 = vadd.f32 0.0, %v1690
      %v1692 = vpop.f32.mrb[0].mxu0
      %v1693 = vpop.f32.mrb[0].mxu0
      %v1694 = vadd.f32 0.0, %v1693
      %v1695 = vpop.f32.mrb[0].mxu0
      %1696 = vmatprep.mubr.bf16.mxu0 0
      %1697 = vmatmul.mubr.bf16.gmra.mrb[0].mxu0 %v1576
      %v1698 = vpop.f32.mrb[0].mxu0
      %v1699 = vadd.f32 0.0, %v1698
      %v1700 = vpop.f32.mrb[0].mxu0
      %v1701 = vpop.f32.mrb[0].mxu0
      %v1702 = vadd.f32 0.0, %v1701
      %v1703 = vpop.f32.mrb[0].mxu0
      %1704 = vmatprep.mubr.bf16.mxu0 0
      %1705 = vmatmul.mubr.bf16.gmra.mrb[0].mxu0 %v1577
      %v1706 = vpop.f32.mrb[0].mxu0
      %v1707 = vadd.f32 0.0, %v1706
      %v1708 = vpop.f32.mrb[0].mxu0
      %v1709 = vpop.f32.mrb[0].mxu0
      %v1710 = vadd.f32 0.0, %v1709
      %v1711 = vpop.f32.mrb[0].mxu0
      %1712 = vmatprep.mubr.bf16.mxu0 0
      %1713 = vmatmul.mubr.bf16.gmra.mrb[0].mxu0 %v1578
      %v1714 = vpop.f32.mrb[0].mxu0
      %v1715 = vadd.f32 0.0, %v1714
      %v1716 = vpop.f32.mrb[0].mxu0
      %v1717 = vpop.f32.mrb[0].mxu0
      %v1718 = vadd.f32 0.0, %v1717
      %v1719 = vpop.f32.mrb[0].mxu0
      %1720 = vmatprep.mubr.bf16.mxu0 0
      %1721 = vmatmul.mubr.bf16.gmra.mrb[0].mxu0 %v1579
      %v1722 = vpop.f32.mrb[0].mxu0
      %v1723 = vadd.f32 0.0, %v1722
      %v1724 = vpop.f32.mrb[0].mxu0
      %v1725 = vpop.f32.mrb[0].mxu0
      %v1726 = vadd.f32 0.0, %v1725
      %v1727 = vpop.f32.mrb[0].mxu0
      %1728 = vmatprep.mubr.bf16.mxu0 0
      %1729 = vmatmul.mubr.bf16.gmra.mrb[0].mxu0 %v1580
      %v1730 = vpop.f32.mrb[0].mxu0
      %v1731 = vadd.f32 0.0, %v1730
      %v1732 = vpop.f32.mrb[0].mxu0
      %v1733 = vpop.f32.mrb[0].mxu0
      %v1734 = vadd.f32 0.0, %v1733
      %v1735 = vpop.f32.mrb[0].mxu0
      %1736 = vmatprep.mubr.bf16.mxu0 0
      %1737 = vmatmul.mubr.bf16.gmra.mrb[0].mxu0 %v1581
      %v1738 = vpop.f32.mrb[0].mxu0
      %v1739 = vadd.f32 0.0, %v1738
      %v1740 = vpop.f32.mrb[0].mxu0
      %v1741 = vpop.f32.mrb[0].mxu0
      %v1742 = vadd.f32 0.0, %v1741
      %v1743 = vpop.f32.mrb[0].mxu0
      %1744 = vmatprep.mubr.bf16.mxu0 0
      %1745 = vmatmul.mubr.bf16.gmra.mrb[0].mxu0 %v1582
      %v1746 = vpop.f32.mrb[0].mxu0
      %v1747 = vadd.f32 0.0, %v1746
      %v1748 = vpop.f32.mrb[0].mxu0
      %v1749 = vpop.f32.mrb[0].mxu0
      %v1750 = vadd.f32 0.0, %v1749
      %v1751 = vpop.f32.mrb[0].mxu0
      %1752 = vmatprep.mubr.bf16.mxu0 0
      %1753 = vmatmul.mubr.bf16.gmra.mrb[0].mxu0 %v1583
      %v1754 = vpop.f32.mrb[0].mxu0
      %v1755 = vadd.f32 0.0, %v1754
      %v1756 = vpop.f32.mrb[0].mxu0
      %v1757 = vpop.f32.mrb[0].mxu0
      %v1758 = vadd.f32 0.0, %v1757
      %v1759 = vpop.f32.mrb[0].mxu0
      %1760 = vmatprep.mubr.bf16.mxu0 0
      %1761 = vmatmul.mubr.bf16.gmra.mrb[0].mxu0 %v1584
      %v1762 = vpop.f32.mrb[0].mxu0
      %v1763 = vadd.f32 0.0, %v1762
      %v1764 = vpop.f32.mrb[0].mxu0
      %v1765 = vpop.f32.mrb[0].mxu0
      %v1766 = vadd.f32 0.0, %v1765
      %v1767 = vpop.f32.mrb[0].mxu0
      %1768 = vmatprep.mubr.bf16.mxu0 0
      %1769 = vmatmul.mubr.bf16.gmra.mrb[0].mxu0 %v1585
      %v1770 = vpop.f32.mrb[0].mxu0
      %v1771 = vadd.f32 0.0, %v1770
      %v1772 = vpop.f32.mrb[0].mxu0
      %v1773 = vpop.f32.mrb[0].mxu0
      %v1774 = vadd.f32 0.0, %v1773
      %v1775 = vpop.f32.mrb[0].mxu0
      %1776 = vmatprep.mubr.bf16.mxu0 0
      %1777 = vmatmul.mubr.bf16.gmra.mrb[0].mxu0 %v1586
      %v1778 = vpop.f32.mrb[0].mxu0
      %v1779 = vadd.f32 0.0, %v1778
      %v1780 = vpop.f32.mrb[0].mxu0
      %v1781 = vpop.f32.mrb[0].mxu0
      %v1782 = vadd.f32 0.0, %v1781
      %v1783 = vpop.f32.mrb[0].mxu0
      %1784 = vmatprep.mubr.bf16.mxu0 0
      %1785 = vmatmul.mubr.bf16.gmra.mrb[0].mxu0 %v1587
      %v1786 = vpop.f32.mrb[0].mxu0
      %v1787 = vadd.f32 0.0, %v1786
      %v1788 = vpop.f32.mrb[0].mxu0
      %v1789 = vpop.f32.mrb[0].mxu0
      %v1790 = vadd.f32 0.0, %v1789
      %v1791 = vpop.f32.mrb[0].mxu0
      %1792 = vmatprep.mubr.bf16.mxu0 0
      %1793 = vmatmul.mubr.bf16.gmra.mrb[0].mxu0 %v1588
      %v1794 = vpop.f32.mrb[0].mxu0
      %v1795 = vadd.f32 0.0, %v1794
      %v1796 = vpop.f32.mrb[0].mxu0
      %v1797 = vpop.f32.mrb[0].mxu0
      %v1798 = vadd.f32 0.0, %v1797
      %v1799 = vpop.f32.mrb[0].mxu0
      %1800 = vmatprep.mubr.bf16.mxu0 0
      %1801 = vmatmul.mubr.bf16.gmra.mrb[0].mxu0 %v1589
      %v1802 = vpop.f32.mrb[0].mxu0
      %v1803 = vadd.f32 0.0, %v1802
      %v1804 = vpop.f32.mrb[0].mxu0
      %v1805 = vpop.f32.mrb[0].mxu0
      %v1806 = vadd.f32 0.0, %v1805
      %v1807 = vpop.f32.mrb[0].mxu0
      %1808 = vmatprep.mubr.bf16.mxu0 0
      %1809 = vmatmul.mubr.bf16.gmra.mrb[0].mxu0 %v1590
      %v1810 = vpop.f32.mrb[0].mxu0
      %v1811 = vadd.f32 0.0, %v1810
      %v1812 = vpop.f32.mrb[0].mxu0
      %v1813 = vpop.f32.mrb[0].mxu0
      %v1814 = vadd.f32 0.0, %v1813
      %v1815 = vpop.f32.mrb[0].mxu0
      %1816 = vdwg.mxu0
      %v1833 = vunpack.c.l.b16 %v1527
      %v1834 = vunpack.c.l.b16 %v1528
      %v1835 = vunpack.c.l.b16 %v1529
      %v1836 = vunpack.c.l.b16 %v1530
      %v1837 = vunpack.c.l.b16 %v1531
      %v1838 = vunpack.c.l.b16 %v1532
      %v1839 = vunpack.c.l.b16 %v1533
      %v1840 = vunpack.c.l.b16 %v1534
      %v1841 = vunpack.c.l.b16 %v1535
      %v1842 = vunpack.c.l.b16 %v1536
      %v1843 = vunpack.c.l.b16 %v1537
      %v1844 = vunpack.c.l.b16 %v1538
      %v1845 = vunpack.c.l.b16 %v1539
      %v1846 = vunpack.c.l.b16 %v1540
      %v1847 = vunpack.c.l.b16 %v1541
      %v1848 = vunpack.c.l.b16 %v1542
      %v1849 = vpack.c.b16 %v1834, %v1833
      %v1850 = vpack.c.b16 %v1836, %v1835
      %v1851 = vpack.c.b16 %v1838, %v1837
      %v1852 = vpack.c.b16 %v1840, %v1839
      %v1853 = vpack.c.b16 %v1842, %v1841
      %v1854 = vpack.c.b16 %v1844, %v1843
      %v1855 = vpack.c.b16 %v1846, %v1845
      %v1856 = vpack.c.b16 %v1848, %v1847
      %1865 = vmatprep.subr.bf16.mxu0 0
      %1866 = vmatpush1.bf16.msra.mxu0 %v1849
      %1867 = vmatprep.subr.bf16.mxu0 0
      %1868 = vmatpush1.bf16.msra.mxu0 %v1850
      %1869 = vmatprep.subr.bf16.mxu0 0
      %1870 = vmatpush1.bf16.msra.mxu0 %v1851
      %1871 = vmatprep.subr.bf16.mxu0 0
      %1872 = vmatpush1.bf16.msra.mxu0 %v1852
      %1873 = vmatprep.subr.bf16.mxu0 0
      %1874 = vmatpush1.bf16.msra.mxu0 %v1853
      %1875 = vmatprep.subr.bf16.mxu0 0
      %1876 = vmatpush1.bf16.msra.mxu0 %v1854
      %1877 = vmatprep.subr.bf16.mxu0 0
      %1878 = vmatpush1.bf16.msra.mxu0 %v1855
      %1879 = vmatprep.subr.bf16.mxu0 0
      %1880 = vmatpush1.bf16.msra.mxu0 %v1856
      %1881 = vmatprep.subr.bf16.mxu0 0
      %1882 = vmatpush1.bf16.msra.mxu0 0
      %1883 = vmatprep.subr.bf16.mxu0 0
      %1884 = vmatpush1.bf16.msra.mxu0 0
      %1885 = vmatprep.subr.bf16.mxu0 0
      %1886 = vmatpush1.bf16.msra.mxu0 0
      %1887 = vmatprep.subr.bf16.mxu0 0
      %1888 = vmatpush1.bf16.msra.mxu0 0
      %1889 = vmatprep.subr.bf16.mxu0 0
      %1890 = vmatpush1.bf16.msra.mxu0 0
      %1891 = vmatprep.subr.bf16.mxu0 0
      %1892 = vmatpush1.bf16.msra.mxu0 0
      %1893 = vmatprep.subr.bf16.mxu0 0
      %1894 = vmatpush1.bf16.msra.mxu0 0
      %1895 = vmatprep.subr.bf16.mxu0 0
      %1896 = vmatpush1.bf16.msra.mxu0 0
      %1897 = vmatprep.mubr.bf16.mxu0 0
      %1898 = vmatmul.mubr.bf16.gmra.mrb[0].mxu0 %v1511
      %v1899 = vpop.f32.mrb[0].mxu0
      %v1900 = vadd.f32 %v1691, %v1899
      %v1901 = vpop.f32.mrb[0].mxu0
      %v1902 = vpop.f32.mrb[0].mxu0
      %v1903 = vadd.f32 %v1694, %v1902
      %v1904 = vpop.f32.mrb[0].mxu0
      %1905 = vmatprep.mubr.bf16.mxu0 0
      %1906 = vmatmul.mubr.bf16.gmra.mrb[0].mxu0 %v1512
      %v1907 = vpop.f32.mrb[0].mxu0
      %v1908 = vadd.f32 %v1699, %v1907
      %v1909 = vpop.f32.mrb[0].mxu0
      %v1910 = vpop.f32.mrb[0].mxu0
      %v1911 = vadd.f32 %v1702, %v1910
      %v1912 = vpop.f32.mrb[0].mxu0
      %1913 = vmatprep.mubr.bf16.mxu0 0
      %1914 = vmatmul.mubr.bf16.gmra.mrb[0].mxu0 %v1513
      %v1915 = vpop.f32.mrb[0].mxu0
      %v1916 = vadd.f32 %v1707, %v1915
      %v1917 = vpop.f32.mrb[0].mxu0
      %v1918 = vpop.f32.mrb[0].mxu0
      %v1919 = vadd.f32 %v1710, %v1918
      %v1920 = vpop.f32.mrb[0].mxu0
      %1921 = vmatprep.mubr.bf16.mxu0 0
      %1922 = vmatmul.mubr.bf16.gmra.mrb[0].mxu0 %v1514
      %v1923 = vpop.f32.mrb[0].mxu0
      %v1924 = vadd.f32 %v1715, %v1923
      %v1925 = vpop.f32.mrb[0].mxu0
      %v1926 = vpop.f32.mrb[0].mxu0
      %v1927 = vadd.f32 %v1718, %v1926
      %v1928 = vpop.f32.mrb[0].mxu0
      %1929 = vmatprep.mubr.bf16.mxu0 0
      %1930 = vmatmul.mubr.bf16.gmra.mrb[0].mxu0 %v1515
      %v1931 = vpop.f32.mrb[0].mxu0
      %v1932 = vadd.f32 %v1723, %v1931
      %v1933 = vpop.f32.mrb[0].mxu0
      %v1934 = vpop.f32.mrb[0].mxu0
      %v1935 = vadd.f32 %v1726, %v1934
      %v1936 = vpop.f32.mrb[0].mxu0
      %1937 = vmatprep.mubr.bf16.mxu0 0
      %1938 = vmatmul.mubr.bf16.gmra.mrb[0].mxu0 %v1516
      %v1939 = vpop.f32.mrb[0].mxu0
      %v1940 = vadd.f32 %v1731, %v1939
      %v1941 = vpop.f32.mrb[0].mxu0
      %v1942 = vpop.f32.mrb[0].mxu0
      %v1943 = vadd.f32 %v1734, %v1942
      %v1944 = vpop.f32.mrb[0].mxu0
      %1945 = vmatprep.mubr.bf16.mxu0 0
      %1946 = vmatmul.mubr.bf16.gmra.mrb[0].mxu0 %v1517
      %v1947 = vpop.f32.mrb[0].mxu0
      %v1948 = vadd.f32 %v1739, %v1947
      %v1949 = vpop.f32.mrb[0].mxu0
      %v1950 = vpop.f32.mrb[0].mxu0
      %v1951 = vadd.f32 %v1742, %v1950
      %v1952 = vpop.f32.mrb[0].mxu0
      %1953 = vmatprep.mubr.bf16.mxu0 0
      %1954 = vmatmul.mubr.bf16.gmra.mrb[0].mxu0 %v1518
      %v1955 = vpop.f32.mrb[0].mxu0
      %v1956 = vadd.f32 %v1747, %v1955
      %v1957 = vpop.f32.mrb[0].mxu0
      %v1958 = vpop.f32.mrb[0].mxu0
      %v1959 = vadd.f32 %v1750, %v1958
      %v1960 = vpop.f32.mrb[0].mxu0
      %1961 = vmatprep.mubr.bf16.mxu0 0
      %1962 = vmatmul.mubr.bf16.gmra.mrb[0].mxu0 %v1519
      %v1963 = vpop.f32.mrb[0].mxu0
      %v1964 = vadd.f32 %v1755, %v1963
      %v1965 = vpop.f32.mrb[0].mxu0
      %v1966 = vpop.f32.mrb[0].mxu0
      %v1967 = vadd.f32 %v1758, %v1966
      %v1968 = vpop.f32.mrb[0].mxu0
      %1969 = vmatprep.mubr.bf16.mxu0 0
      %1970 = vmatmul.mubr.bf16.gmra.mrb[0].mxu0 %v1520
      %v1971 = vpop.f32.mrb[0].mxu0
      %v1972 = vadd.f32 %v1763, %v1971
      %v1973 = vpop.f32.mrb[0].mxu0
      %v1974 = vpop.f32.mrb[0].mxu0
      %v1975 = vadd.f32 %v1766, %v1974
      %v1976 = vpop.f32.mrb[0].mxu0
      %1977 = vmatprep.mubr.bf16.mxu0 0
      %1978 = vmatmul.mubr.bf16.gmra.mrb[0].mxu0 %v1521
      %v1979 = vpop.f32.mrb[0].mxu0
      %v1980 = vadd.f32 %v1771, %v1979
      %v1981 = vpop.f32.mrb[0].mxu0
      %v1982 = vpop.f32.mrb[0].mxu0
      %v1983 = vadd.f32 %v1774, %v1982
      %v1984 = vpop.f32.mrb[0].mxu0
      %1985 = vmatprep.mubr.bf16.mxu0 0
      %1986 = vmatmul.mubr.bf16.gmra.mrb[0].mxu0 %v1522
      %v1987 = vpop.f32.mrb[0].mxu0
      %v1988 = vadd.f32 %v1779, %v1987
      %v1989 = vpop.f32.mrb[0].mxu0
      %v1990 = vpop.f32.mrb[0].mxu0
      %v1991 = vadd.f32 %v1782, %v1990
      %v1992 = vpop.f32.mrb[0].mxu0
      %1993 = vmatprep.mubr.bf16.mxu0 0
      %1994 = vmatmul.mubr.bf16.gmra.mrb[0].mxu0 %v1523
      %v1995 = vpop.f32.mrb[0].mxu0
      %v1996 = vadd.f32 %v1787, %v1995
      %v1997 = vpop.f32.mrb[0].mxu0
      %v1998 = vpop.f32.mrb[0].mxu0
      %v1999 = vadd.f32 %v1790, %v1998
      %v2000 = vpop.f32.mrb[0].mxu0
      %2001 = vmatprep.mubr.bf16.mxu0 0
      %2002 = vmatmul.mubr.bf16.gmra.mrb[0].mxu0 %v1524
      %v2003 = vpop.f32.mrb[0].mxu0
      %v2004 = vadd.f32 %v1795, %v2003
      %v2005 = vpop.f32.mrb[0].mxu0
      %v2006 = vpop.f32.mrb[0].mxu0
      %v2007 = vadd.f32 %v1798, %v2006
      %v2008 = vpop.f32.mrb[0].mxu0
      %2009 = vmatprep.mubr.bf16.mxu0 0
      %2010 = vmatmul.mubr.bf16.gmra.mrb[0].mxu0 %v1525
      %v2011 = vpop.f32.mrb[0].mxu0
      %v2012 = vadd.f32 %v1803, %v2011
      %v2013 = vpop.f32.mrb[0].mxu0
      %v2014 = vpop.f32.mrb[0].mxu0
      %v2015 = vadd.f32 %v1806, %v2014
      %v2016 = vpop.f32.mrb[0].mxu0
      %2017 = vmatprep.mubr.bf16.mxu0 0
      %2018 = vmatmul.mubr.bf16.gmra.mrb[0].mxu0 %v1526
      %v2019 = vpop.f32.mrb[0].mxu0
      %v2020 = vadd.f32 %v1811, %v2019
      %v2021 = vpop.f32.mrb[0].mxu0
      %v2022 = vpop.f32.mrb[0].mxu0
      %v2023 = vadd.f32 %v1814, %v2022
      %v2024 = vpop.f32.mrb[0].mxu0
      %2025 = vdwg.mxu0
      %v2026 = vld [vmem:[#allocation2 + $0x9] sm:$0xff]
      %v2027 = vld [vmem:[#allocation2 + $0x11] sm:$0xff]
      %v2028 = vld [vmem:[#allocation2 + $0x19] sm:$0xff]
      %v2029 = vld [vmem:[#allocation2 + $0x21] sm:$0xff]
      %v2030 = vld [vmem:[#allocation2 + $0x29] sm:$0xff]
      %v2031 = vld [vmem:[#allocation2 + $0x31] sm:$0xff]
      %v2032 = vld [vmem:[#allocation2 + $0x39] sm:$0xff]
      %v2033 = vld [vmem:[#allocation2 + $0x41] sm:$0xff]
      %v2034 = vld [vmem:[#allocation2 + $0x49] sm:$0xff]
      %v2035 = vld [vmem:[#allocation2 + $0x51] sm:$0xff]
      %v2036 = vld [vmem:[#allocation2 + $0x59] sm:$0xff]
      %v2037 = vld [vmem:[#allocation2 + $0x61] sm:$0xff]
      %v2038 = vld [vmem:[#allocation2 + $0x69] sm:$0xff]
      %v2039 = vld [vmem:[#allocation2 + $0x71] sm:$0xff]
      %v2040 = vld [vmem:[#allocation2 + $0x79] sm:$0xff]
      %v2041 = vld [vmem:[#allocation2 + $0x81] sm:$0xff]
      %v2042 = vld [vmem:[#allocation2 + $0x89] sm:$0xff]
      %v2043 = vld [vmem:[#allocation2 + $0x91] sm:$0xff]
      %v2044 = vld [vmem:[#allocation2 + $0x99] sm:$0xff]
      %v2045 = vld [vmem:[#allocation2 + $0xa1] sm:$0xff]
      %v2046 = vld [vmem:[#allocation2 + $0xa9] sm:$0xff]
      %v2047 = vld [vmem:[#allocation2 + $0xb1] sm:$0xff]
      %v2048 = vld [vmem:[#allocation2 + $0xb9] sm:$0xff]
      %v2049 = vld [vmem:[#allocation2 + $0xc1] sm:$0xff]
      %v2050 = vld [vmem:[#allocation2 + $0xc9] sm:$0xff]
      %v2051 = vld [vmem:[#allocation2 + $0xd1] sm:$0xff]
      %v2052 = vld [vmem:[#allocation2 + $0xd9] sm:$0xff]
      %v2053 = vld [vmem:[#allocation2 + $0xe1] sm:$0xff]
      %v2054 = vld [vmem:[#allocation2 + $0xe9] sm:$0xff]
      %v2055 = vld [vmem:[#allocation2 + $0xf1] sm:$0xff]
      %v2056 = vld [vmem:[#allocation2 + $0xf9] sm:$0xff]
      %v2057 = vld [vmem:[#allocation2 + $0x101] sm:$0xff]
      %2059 = vset.pattern.permute.xlu0 0
      %2060 = vperm.xlu0 %2059, %v1255
      %v2061 = vpop.permute.xlu0 %2060
      %2064 = vset.pattern.permute.xlu0 0
      %2065 = vperm.xlu0 %2064, %v1256
      %v2066 = vpop.permute.xlu0 %2065
      %2069 = vset.pattern.permute.xlu0 0
      %2070 = vperm.xlu0 %2069, %v1257
      %v2071 = vpop.permute.xlu0 %2070
      %2074 = vset.pattern.permute.xlu0 0
      %2075 = vperm.xlu0 %2074, %v1258
      %v2076 = vpop.permute.xlu0 %2075
      %2079 = vset.pattern.permute.xlu0 0
      %2080 = vperm.xlu0 %2079, %v1259
      %v2081 = vpop.permute.xlu0 %2080
      %2084 = vset.pattern.permute.xlu0 0
      %2085 = vperm.xlu0 %2084, %v1260
      %v2086 = vpop.permute.xlu0 %2085
      %2089 = vset.pattern.permute.xlu0 0
      %2090 = vperm.xlu0 %2089, %v1261
      %v2091 = vpop.permute.xlu0 %2090
      %2094 = vset.pattern.permute.xlu0 0
      %2095 = vperm.xlu0 %2094, %v1262
      %v2096 = vpop.permute.xlu0 %2095
      %2099 = vset.pattern.permute.xlu0 0
      %2100 = vperm.xlu0 %2099, %v1263
      %v2101 = vpop.permute.xlu0 %2100
      %2104 = vset.pattern.permute.xlu0 0
      %2105 = vperm.xlu0 %2104, %v1264
      %v2106 = vpop.permute.xlu0 %2105
      %2109 = vset.pattern.permute.xlu0 0
      %2110 = vperm.xlu0 %2109, %v1265
      %v2111 = vpop.permute.xlu0 %2110
      %2114 = vset.pattern.permute.xlu0 0
      %2115 = vperm.xlu0 %2114, %v1266
      %v2116 = vpop.permute.xlu0 %2115
      %2119 = vset.pattern.permute.xlu0 0
      %2120 = vperm.xlu0 %2119, %v1267
      %v2121 = vpop.permute.xlu0 %2120
      %2124 = vset.pattern.permute.xlu0 0
      %2125 = vperm.xlu0 %2124, %v1268
      %v2126 = vpop.permute.xlu0 %2125
      %2129 = vset.pattern.permute.xlu0 0
      %2130 = vperm.xlu0 %2129, %v1269
      %v2131 = vpop.permute.xlu0 %2130
      %2134 = vset.pattern.permute.xlu0 0
      %2135 = vperm.xlu0 %2134, %v1270
      %v2136 = vpop.permute.xlu0 %2135
      %2139 = vset.pattern.permute.xlu0 0
      %2140 = vperm.xlu0 %2139, %v1271
      %v2141 = vpop.permute.xlu0 %2140
      %2144 = vset.pattern.permute.xlu0 0
      %2145 = vperm.xlu0 %2144, %v1272
      %v2146 = vpop.permute.xlu0 %2145
      %2149 = vset.pattern.permute.xlu0 0
      %2150 = vperm.xlu0 %2149, %v1273
      %v2151 = vpop.permute.xlu0 %2150
      %2154 = vset.pattern.permute.xlu0 0
      %2155 = vperm.xlu0 %2154, %v1274
      %v2156 = vpop.permute.xlu0 %2155
      %2159 = vset.pattern.permute.xlu0 0
      %2160 = vperm.xlu0 %2159, %v1275
      %v2161 = vpop.permute.xlu0 %2160
      %2164 = vset.pattern.permute.xlu0 0
      %2165 = vperm.xlu0 %2164, %v1276
      %v2166 = vpop.permute.xlu0 %2165
      %2169 = vset.pattern.permute.xlu0 0
      %2170 = vperm.xlu0 %2169, %v1277
      %v2171 = vpop.permute.xlu0 %2170
      %2174 = vset.pattern.permute.xlu0 0
      %2175 = vperm.xlu0 %2174, %v1278
      %v2176 = vpop.permute.xlu0 %2175
      %2179 = vset.pattern.permute.xlu0 0
      %2180 = vperm.xlu0 %2179, %v1279
      %v2181 = vpop.permute.xlu0 %2180
      %2184 = vset.pattern.permute.xlu0 0
      %2185 = vperm.xlu0 %2184, %v1280
      %v2186 = vpop.permute.xlu0 %2185
      %2189 = vset.pattern.permute.xlu0 0
      %2190 = vperm.xlu0 %2189, %v1281
      %v2191 = vpop.permute.xlu0 %2190
      %2194 = vset.pattern.permute.xlu0 0
      %2195 = vperm.xlu0 %2194, %v1282
      %v2196 = vpop.permute.xlu0 %2195
      %2199 = vset.pattern.permute.xlu0 0
      %2200 = vperm.xlu0 %2199, %v1283
      %v2201 = vpop.permute.xlu0 %2200
      %2204 = vset.pattern.permute.xlu0 0
      %2205 = vperm.xlu0 %2204, %v1284
      %v2206 = vpop.permute.xlu0 %2205
      %2209 = vset.pattern.permute.xlu0 0
      %2210 = vperm.xlu0 %2209, %v1285
      %v2211 = vpop.permute.xlu0 %2210
      %2214 = vset.pattern.permute.xlu0 0
      %2215 = vperm.xlu0 %2214, %v1286
      %v2216 = vpop.permute.xlu0 %2215
      %v2218 = vmul.f32 %v2026, %v2061
      %v2219 = vmul.f32 %v2027, %v2066
      %v2220 = vmul.f32 %v2028, %v2071
      %v2221 = vmul.f32 %v2029, %v2076
      %v2222 = vmul.f32 %v2030, %v2081
      %v2223 = vmul.f32 %v2031, %v2086
      %v2224 = vmul.f32 %v2032, %v2091
      %v2225 = vmul.f32 %v2033, %v2096
      %v2226 = vmul.f32 %v2034, %v2101
      %v2227 = vmul.f32 %v2035, %v2106
      %v2228 = vmul.f32 %v2036, %v2111
      %v2229 = vmul.f32 %v2037, %v2116
      %v2230 = vmul.f32 %v2038, %v2121
      %v2231 = vmul.f32 %v2039, %v2126
      %v2232 = vmul.f32 %v2040, %v2131
      %v2233 = vmul.f32 %v2041, %v2136
      %v2234 = vmul.f32 %v2042, %v2141
      %v2235 = vmul.f32 %v2043, %v2146
      %v2236 = vmul.f32 %v2044, %v2151
      %v2237 = vmul.f32 %v2045, %v2156
      %v2238 = vmul.f32 %v2046, %v2161
      %v2239 = vmul.f32 %v2047, %v2166
      %v2240 = vmul.f32 %v2048, %v2171
      %v2241 = vmul.f32 %v2049, %v2176
      %v2242 = vmul.f32 %v2050, %v2181
      %v2243 = vmul.f32 %v2051, %v2186
      %v2244 = vmul.f32 %v2052, %v2191
      %v2245 = vmul.f32 %v2053, %v2196
      %v2246 = vmul.f32 %v2054, %v2201
      %v2247 = vmul.f32 %v2055, %v2206
      %v2248 = vmul.f32 %v2056, %v2211
      %v2249 = vmul.f32 %v2057, %v2216
      %v2250 = vpack.c.bf16 %v2219, %v2218
      %v2251 = vpack.c.bf16 %v2221, %v2220
      %v2252 = vpack.c.bf16 %v2223, %v2222
      %v2253 = vpack.c.bf16 %v2225, %v2224
      %v2254 = vpack.c.bf16 %v2227, %v2226
      %v2255 = vpack.c.bf16 %v2229, %v2228
      %v2256 = vpack.c.bf16 %v2231, %v2230
      %v2257 = vpack.c.bf16 %v2233, %v2232
      %v2258 = vpack.c.bf16 %v2235, %v2234
      %v2259 = vpack.c.bf16 %v2237, %v2236
      %v2260 = vpack.c.bf16 %v2239, %v2238
      %v2261 = vpack.c.bf16 %v2241, %v2240
      %v2262 = vpack.c.bf16 %v2243, %v2242
      %v2263 = vpack.c.bf16 %v2245, %v2244
      %v2264 = vpack.c.bf16 %v2247, %v2246
      %v2265 = vpack.c.bf16 %v2249, %v2248
      %s2266 = scalar_lea.vmem %s6, 128
      %v2267 = vld [vmem:[%s2266] sm:$0xf]
      %v2268 = vld [vmem:[%s2266 + $0x4] sm:$0xf]
      %v2269 = vld [vmem:[%s2266 + $0x8] sm:$0xf]
      %v2270 = vld [vmem:[%s2266 + $0xc] sm:$0xf]
      %v2271 = vld [vmem:[%s2266 + $0x10] sm:$0xf]
      %v2272 = vld [vmem:[%s2266 + $0x14] sm:$0xf]
      %v2273 = vld [vmem:[%s2266 + $0x18] sm:$0xf]
      %v2274 = vld [vmem:[%s2266 + $0x1c] sm:$0xf]
      %v2275 = vld [vmem:[%s2266 + $0x20] sm:$0xf]
      %v2276 = vld [vmem:[%s2266 + $0x24] sm:$0xf]
      %v2277 = vld [vmem:[%s2266 + $0x28] sm:$0xf]
      %v2278 = vld [vmem:[%s2266 + $0x2c] sm:$0xf]
      %v2279 = vld [vmem:[%s2266 + $0x30] sm:$0xf]
      %v2280 = vld [vmem:[%s2266 + $0x34] sm:$0xf]
      %v2281 = vld [vmem:[%s2266 + $0x38] sm:$0xf]
      %v2282 = vld [vmem:[%s2266 + $0x3c] sm:$0xf]
      %v2299 = vunpack.c.l.b16 %v2267
      %v2300 = vunpack.c.l.b16 %v2268
      %v2301 = vunpack.c.l.b16 %v2269
      %v2302 = vunpack.c.l.b16 %v2270
      %v2303 = vunpack.c.l.b16 %v2271
      %v2304 = vunpack.c.l.b16 %v2272
      %v2305 = vunpack.c.l.b16 %v2273
      %v2306 = vunpack.c.l.b16 %v2274
      %v2307 = vunpack.c.l.b16 %v2275
      %v2308 = vunpack.c.l.b16 %v2276
      %v2309 = vunpack.c.l.b16 %v2277
      %v2310 = vunpack.c.l.b16 %v2278
      %v2311 = vunpack.c.l.b16 %v2279
      %v2312 = vunpack.c.l.b16 %v2280
      %v2313 = vunpack.c.l.b16 %v2281
      %v2314 = vunpack.c.l.b16 %v2282
      %v2315 = vpack.c.b16 %v2300, %v2299
      %v2316 = vpack.c.b16 %v2302, %v2301
      %v2317 = vpack.c.b16 %v2304, %v2303
      %v2318 = vpack.c.b16 %v2306, %v2305
      %v2319 = vpack.c.b16 %v2308, %v2307
      %v2320 = vpack.c.b16 %v2310, %v2309
      %v2321 = vpack.c.b16 %v2312, %v2311
      %v2322 = vpack.c.b16 %v2314, %v2313
      %2331 = vmatprep.subr.bf16.mxu0 0
      %2332 = vmatpush1.bf16.msra.mxu0 %v2315
      %2333 = vmatprep.subr.bf16.mxu0 0
      %2334 = vmatpush1.bf16.msra.mxu0 %v2316
      %2335 = vmatprep.subr.bf16.mxu0 0
      %2336 = vmatpush1.bf16.msra.mxu0 %v2317
      %2337 = vmatprep.subr.bf16.mxu0 0
      %2338 = vmatpush1.bf16.msra.mxu0 %v2318
      %2339 = vmatprep.subr.bf16.mxu0 0
      %2340 = vmatpush1.bf16.msra.mxu0 %v2319
      %2341 = vmatprep.subr.bf16.mxu0 0
      %2342 = vmatpush1.bf16.msra.mxu0 %v2320
      %2343 = vmatprep.subr.bf16.mxu0 0
      %2344 = vmatpush1.bf16.msra.mxu0 %v2321
      %2345 = vmatprep.subr.bf16.mxu0 0
      %2346 = vmatpush1.bf16.msra.mxu0 %v2322
      %2347 = vmatprep.subr.bf16.mxu0 0
      %2348 = vmatpush1.bf16.msra.mxu0 0
      %2349 = vmatprep.subr.bf16.mxu0 0
      %2350 = vmatpush1.bf16.msra.mxu0 0
      %2351 = vmatprep.subr.bf16.mxu0 0
      %2352 = vmatpush1.bf16.msra.mxu0 0
      %2353 = vmatprep.subr.bf16.mxu0 0
      %2354 = vmatpush1.bf16.msra.mxu0 0
      %2355 = vmatprep.subr.bf16.mxu0 0
      %2356 = vmatpush1.bf16.msra.mxu0 0
      %2357 = vmatprep.subr.bf16.mxu0 0
      %2358 = vmatpush1.bf16.msra.mxu0 0
      %2359 = vmatprep.subr.bf16.mxu0 0
      %2360 = vmatpush1.bf16.msra.mxu0 0
      %2361 = vmatprep.subr.bf16.mxu0 0
      %2362 = vmatpush1.bf16.msra.mxu0 0
      %2363 = vmatprep.mubr.bf16.mxu0 0
      %2364 = vmatmul.mubr.bf16.gmra.mrb[0].mxu0 %v2250
      %v2365 = vpop.f32.mrb[0].mxu0
      %v2366 = vadd.f32 0.0, %v2365
      %v2367 = vpop.f32.mrb[0].mxu0
      %v2368 = vpop.f32.mrb[0].mxu0
      %v2369 = vadd.f32 0.0, %v2368
      %v2370 = vpop.f32.mrb[0].mxu0
      %2371 = vmatprep.mubr.bf16.mxu0 0
      %2372 = vmatmul.mubr.bf16.gmra.mrb[0].mxu0 %v2251
      %v2373 = vpop.f32.mrb[0].mxu0
      %v2374 = vadd.f32 0.0, %v2373
      %v2375 = vpop.f32.mrb[0].mxu0
      %v2376 = vpop.f32.mrb[0].mxu0
      %v2377 = vadd.f32 0.0, %v2376
      %v2378 = vpop.f32.mrb[0].mxu0
      %2379 = vmatprep.mubr.bf16.mxu0 0
      %2380 = vmatmul.mubr.bf16.gmra.mrb[0].mxu0 %v2252
      %v2381 = vpop.f32.mrb[0].mxu0
      %v2382 = vadd.f32 0.0, %v2381
      %v2383 = vpop.f32.mrb[0].mxu0
      %v2384 = vpop.f32.mrb[0].mxu0
      %v2385 = vadd.f32 0.0, %v2384
      %v2386 = vpop.f32.mrb[0].mxu0
      %2387 = vmatprep.mubr.bf16.mxu0 0
      %2388 = vmatmul.mubr.bf16.gmra.mrb[0].mxu0 %v2253
      %v2389 = vpop.f32.mrb[0].mxu0
      %v2390 = vadd.f32 0.0, %v2389
      %v2391 = vpop.f32.mrb[0].mxu0
      %v2392 = vpop.f32.mrb[0].mxu0
      %v2393 = vadd.f32 0.0, %v2392
      %v2394 = vpop.f32.mrb[0].mxu0
      %2395 = vmatprep.mubr.bf16.mxu0 0
      %2396 = vmatmul.mubr.bf16.gmra.mrb[0].mxu0 %v2254
      %v2397 = vpop.f32.mrb[0].mxu0
      %v2398 = vadd.f32 0.0, %v2397
      %v2399 = vpop.f32.mrb[0].mxu0
      %v2400 = vpop.f32.mrb[0].mxu0
      %v2401 = vadd.f32 0.0, %v2400
      %v2402 = vpop.f32.mrb[0].mxu0
      %2403 = vmatprep.mubr.bf16.mxu0 0
      %2404 = vmatmul.mubr.bf16.gmra.mrb[0].mxu0 %v2255
      %v2405 = vpop.f32.mrb[0].mxu0
      %v2406 = vadd.f32 0.0, %v2405
      %v2407 = vpop.f32.mrb[0].mxu0
      %v2408 = vpop.f32.mrb[0].mxu0
      %v2409 = vadd.f32 0.0, %v2408
      %v2410 = vpop.f32.mrb[0].mxu0
      %2411 = vmatprep.mubr.bf16.mxu0 0
      %2412 = vmatmul.mubr.bf16.gmra.mrb[0].mxu0 %v2256
      %v2413 = vpop.f32.mrb[0].mxu0
      %v2414 = vadd.f32 0.0, %v2413
      %v2415 = vpop.f32.mrb[0].mxu0
      %v2416 = vpop.f32.mrb[0].mxu0
      %v2417 = vadd.f32 0.0, %v2416
      %v2418 = vpop.f32.mrb[0].mxu0
      %2419 = vmatprep.mubr.bf16.mxu0 0
      %2420 = vmatmul.mubr.bf16.gmra.mrb[0].mxu0 %v2257
      %v2421 = vpop.f32.mrb[0].mxu0
      %v2422 = vadd.f32 0.0, %v2421
      %v2423 = vpop.f32.mrb[0].mxu0
      %v2424 = vpop.f32.mrb[0].mxu0
      %v2425 = vadd.f32 0.0, %v2424
      %v2426 = vpop.f32.mrb[0].mxu0
      %2427 = vmatprep.mubr.bf16.mxu0 0
      %2428 = vmatmul.mubr.bf16.gmra.mrb[0].mxu0 %v2258
      %v2429 = vpop.f32.mrb[0].mxu0
      %v2430 = vadd.f32 0.0, %v2429
      %v2431 = vpop.f32.mrb[0].mxu0
      %v2432 = vpop.f32.mrb[0].mxu0
      %v2433 = vadd.f32 0.0, %v2432
      %v2434 = vpop.f32.mrb[0].mxu0
      %2435 = vmatprep.mubr.bf16.mxu0 0
      %2436 = vmatmul.mubr.bf16.gmra.mrb[0].mxu0 %v2259
      %v2437 = vpop.f32.mrb[0].mxu0
      %v2438 = vadd.f32 0.0, %v2437
      %v2439 = vpop.f32.mrb[0].mxu0
      %v2440 = vpop.f32.mrb[0].mxu0
      %v2441 = vadd.f32 0.0, %v2440
      %v2442 = vpop.f32.mrb[0].mxu0
      %2443 = vmatprep.mubr.bf16.mxu0 0
      %2444 = vmatmul.mubr.bf16.gmra.mrb[0].mxu0 %v2260
      %v2445 = vpop.f32.mrb[0].mxu0
      %v2446 = vadd.f32 0.0, %v2445
      %v2447 = vpop.f32.mrb[0].mxu0
      %v2448 = vpop.f32.mrb[0].mxu0
      %v2449 = vadd.f32 0.0, %v2448
      %v2450 = vpop.f32.mrb[0].mxu0
      %2451 = vmatprep.mubr.bf16.mxu0 0
      %2452 = vmatmul.mubr.bf16.gmra.mrb[0].mxu0 %v2261
      %v2453 = vpop.f32.mrb[0].mxu0
      %v2454 = vadd.f32 0.0, %v2453
      %v2455 = vpop.f32.mrb[0].mxu0
      %v2456 = vpop.f32.mrb[0].mxu0
      %v2457 = vadd.f32 0.0, %v2456
      %v2458 = vpop.f32.mrb[0].mxu0
      %2459 = vmatprep.mubr.bf16.mxu0 0
      %2460 = vmatmul.mubr.bf16.gmra.mrb[0].mxu0 %v2262
      %v2461 = vpop.f32.mrb[0].mxu0
      %v2462 = vadd.f32 0.0, %v2461
      %v2463 = vpop.f32.mrb[0].mxu0
      %v2464 = vpop.f32.mrb[0].mxu0
      %v2465 = vadd.f32 0.0, %v2464
      %v2466 = vpop.f32.mrb[0].mxu0
      %2467 = vmatprep.mubr.bf16.mxu0 0
      %2468 = vmatmul.mubr.bf16.gmra.mrb[0].mxu0 %v2263
      %v2469 = vpop.f32.mrb[0].mxu0
      %v2470 = vadd.f32 0.0, %v2469
      %v2471 = vpop.f32.mrb[0].mxu0
      %v2472 = vpop.f32.mrb[0].mxu0
      %v2473 = vadd.f32 0.0, %v2472
      %v2474 = vpop.f32.mrb[0].mxu0
      %2475 = vmatprep.mubr.bf16.mxu0 0
      %2476 = vmatmul.mubr.bf16.gmra.mrb[0].mxu0 %v2264
      %v2477 = vpop.f32.mrb[0].mxu0
      %v2478 = vadd.f32 0.0, %v2477
      %v2479 = vpop.f32.mrb[0].mxu0
      %v2480 = vpop.f32.mrb[0].mxu0
      %v2481 = vadd.f32 0.0, %v2480
      %v2482 = vpop.f32.mrb[0].mxu0
      %2483 = vmatprep.mubr.bf16.mxu0 0
      %2484 = vmatmul.mubr.bf16.gmra.mrb[0].mxu0 %v2265
      %v2485 = vpop.f32.mrb[0].mxu0
      %v2486 = vadd.f32 0.0, %v2485
      %v2487 = vpop.f32.mrb[0].mxu0
      %v2488 = vpop.f32.mrb[0].mxu0
      %v2489 = vadd.f32 0.0, %v2488
      %v2490 = vpop.f32.mrb[0].mxu0
      %2491 = vdwg.mxu0
      %v2492 = vadd.f32 %v1900, %v2366
      %v2493 = vadd.f32 %v1903, %v2369
      %v2494 = vadd.f32 %v1908, %v2374
      %v2495 = vadd.f32 %v1911, %v2377
      %v2496 = vadd.f32 %v1916, %v2382
      %v2497 = vadd.f32 %v1919, %v2385
      %v2498 = vadd.f32 %v1924, %v2390
      %v2499 = vadd.f32 %v1927, %v2393
      %v2500 = vadd.f32 %v1932, %v2398
      %v2501 = vadd.f32 %v1935, %v2401
      %v2502 = vadd.f32 %v1940, %v2406
      %v2503 = vadd.f32 %v1943, %v2409
      %v2504 = vadd.f32 %v1948, %v2414
      %v2505 = vadd.f32 %v1951, %v2417
      %v2506 = vadd.f32 %v1956, %v2422
      %v2507 = vadd.f32 %v1959, %v2425
      %v2508 = vadd.f32 %v1964, %v2430
      %v2509 = vadd.f32 %v1967, %v2433
      %v2510 = vadd.f32 %v1972, %v2438
      %v2511 = vadd.f32 %v1975, %v2441
      %v2512 = vadd.f32 %v1980, %v2446
      %v2513 = vadd.f32 %v1983, %v2449
      %v2514 = vadd.f32 %v1988, %v2454
      %v2515 = vadd.f32 %v1991, %v2457
      %v2516 = vadd.f32 %v1996, %v2462
      %v2517 = vadd.f32 %v1999, %v2465
      %v2518 = vadd.f32 %v2004, %v2470
      %v2519 = vadd.f32 %v2007, %v2473
      %v2520 = vadd.f32 %v2012, %v2478
      %v2521 = vadd.f32 %v2015, %v2481
      %v2522 = vadd.f32 %v2020, %v2486
      %v2523 = vadd.f32 %v2023, %v2489
      %v2524 = vld [vmem:[#allocation2 + $0x17] sm:$0xff]
      %v2525 = vld [vmem:[#allocation2 + $0x1f] sm:$0xff]
      %v2526 = vld [vmem:[#allocation2 + $0x27] sm:$0xff]
      %v2527 = vld [vmem:[#allocation2 + $0x2f] sm:$0xff]
      %v2528 = vld [vmem:[#allocation2 + $0x37] sm:$0xff]
      %v2529 = vld [vmem:[#allocation2 + $0x3f] sm:$0xff]
      %v2530 = vld [vmem:[#allocation2 + $0x47] sm:$0xff]
      %v2531 = vld [vmem:[#allocation2 + $0x4f] sm:$0xff]
      %v2532 = vld [vmem:[#allocation2 + $0x57] sm:$0xff]
      %v2533 = vld [vmem:[#allocation2 + $0x5f] sm:$0xff]
      %v2534 = vld [vmem:[#allocation2 + $0x67] sm:$0xff]
      %v2535 = vld [vmem:[#allocation2 + $0x6f] sm:$0xff]
      %v2536 = vld [vmem:[#allocation2 + $0x77] sm:$0xff]
      %v2537 = vld [vmem:[#allocation2 + $0x7f] sm:$0xff]
      %v2538 = vld [vmem:[#allocation2 + $0x87] sm:$0xff]
      %v2539 = vld [vmem:[#allocation2 + $0x8f] sm:$0xff]
      %v2540 = vld [vmem:[#allocation2 + $0x97] sm:$0xff]
      %v2541 = vld [vmem:[#allocation2 + $0x9f] sm:$0xff]
      %v2542 = vld [vmem:[#allocation2 + $0xa7] sm:$0xff]
      %v2543 = vld [vmem:[#allocation2 + $0xaf] sm:$0xff]
      %v2544 = vld [vmem:[#allocation2 + $0xb7] sm:$0xff]
      %v2545 = vld [vmem:[#allocation2 + $0xbf] sm:$0xff]
      %v2546 = vld [vmem:[#allocation2 + $0xc7] sm:$0xff]
      %v2547 = vld [vmem:[#allocation2 + $0xcf] sm:$0xff]
      %v2548 = vld [vmem:[#allocation2 + $0xd7] sm:$0xff]
      %v2549 = vld [vmem:[#allocation2 + $0xdf] sm:$0xff]
      %v2550 = vld [vmem:[#allocation2 + $0xe7] sm:$0xff]
      %v2551 = vld [vmem:[#allocation2 + $0xef] sm:$0xff]
      %v2552 = vld [vmem:[#allocation2 + $0xf7] sm:$0xff]
      %v2553 = vld [vmem:[#allocation2 + $0xff] sm:$0xff]
      %v2554 = vld [vmem:[#allocation2 + $0x107] sm:$0xff]
      %v2555 = vld [vmem:[#allocation2 + $0x10f] sm:$0xff]
      %v2556 = vmul.f32 %v2524, %v1322
      %v2557 = vmul.f32 %v2525, %v1327
      %v2558 = vmul.f32 %v2526, %v1332
      %v2559 = vmul.f32 %v2527, %v1337
      %v2560 = vmul.f32 %v2528, %v1342
      %v2561 = vmul.f32 %v2529, %v1347
      %v2562 = vmul.f32 %v2530, %v1352
      %v2563 = vmul.f32 %v2531, %v1357
      %v2564 = vmul.f32 %v2532, %v1362
      %v2565 = vmul.f32 %v2533, %v1367
      %v2566 = vmul.f32 %v2534, %v1372
      %v2567 = vmul.f32 %v2535, %v1377
      %v2568 = vmul.f32 %v2536, %v1382
      %v2569 = vmul.f32 %v2537, %v1387
      %v2570 = vmul.f32 %v2538, %v1392
      %v2571 = vmul.f32 %v2539, %v1397
      %v2572 = vmul.f32 %v2540, %v1402
      %v2573 = vmul.f32 %v2541, %v1407
      %v2574 = vmul.f32 %v2542, %v1412
      %v2575 = vmul.f32 %v2543, %v1417
      %v2576 = vmul.f32 %v2544, %v1422
      %v2577 = vmul.f32 %v2545, %v1427
      %v2578 = vmul.f32 %v2546, %v1432
      %v2579 = vmul.f32 %v2547, %v1437
      %v2580 = vmul.f32 %v2548, %v1442
      %v2581 = vmul.f32 %v2549, %v1447
      %v2582 = vmul.f32 %v2550, %v1452
      %v2583 = vmul.f32 %v2551, %v1457
      %v2584 = vmul.f32 %v2552, %v1462
      %v2585 = vmul.f32 %v2553, %v1467
      %v2586 = vmul.f32 %v2554, %v1472
      %v2587 = vmul.f32 %v2555, %v1477
      %v2588 = vpack.c.bf16 %v2557, %v2556
      %v2589 = vpack.c.bf16 %v2559, %v2558
      %v2590 = vpack.c.bf16 %v2561, %v2560
      %v2591 = vpack.c.bf16 %v2563, %v2562
      %v2592 = vpack.c.bf16 %v2565, %v2564
      %v2593 = vpack.c.bf16 %v2567, %v2566
      %v2594 = vpack.c.bf16 %v2569, %v2568
      %v2595 = vpack.c.bf16 %v2571, %v2570
      %v2596 = vpack.c.bf16 %v2573, %v2572
      %v2597 = vpack.c.bf16 %v2575, %v2574
      %v2598 = vpack.c.bf16 %v2577, %v2576
      %v2599 = vpack.c.bf16 %v2579, %v2578
      %v2600 = vpack.c.bf16 %v2581, %v2580
      %v2601 = vpack.c.bf16 %v2583, %v2582
      %v2602 = vpack.c.bf16 %v2585, %v2584
      %v2603 = vpack.c.bf16 %v2587, %v2586
      %s2604 = scalar_lea.vmem %s6, 192
      %v2605 = vld [vmem:[%s2604] sm:$0xf]
      %v2606 = vld [vmem:[%s2604 + $0x4] sm:$0xf]
      %v2607 = vld [vmem:[%s2604 + $0x8] sm:$0xf]
      %v2608 = vld [vmem:[%s2604 + $0xc] sm:$0xf]
      %v2609 = vld [vmem:[%s2604 + $0x10] sm:$0xf]
      %v2610 = vld [vmem:[%s2604 + $0x14] sm:$0xf]
      %v2611 = vld [vmem:[%s2604 + $0x18] sm:$0xf]
      %v2612 = vld [vmem:[%s2604 + $0x1c] sm:$0xf]
      %v2613 = vld [vmem:[%s2604 + $0x20] sm:$0xf]
      %v2614 = vld [vmem:[%s2604 + $0x24] sm:$0xf]
      %v2615 = vld [vmem:[%s2604 + $0x28] sm:$0xf]
      %v2616 = vld [vmem:[%s2604 + $0x2c] sm:$0xf]
      %v2617 = vld [vmem:[%s2604 + $0x30] sm:$0xf]
      %v2618 = vld [vmem:[%s2604 + $0x34] sm:$0xf]
      %v2619 = vld [vmem:[%s2604 + $0x38] sm:$0xf]
      %v2620 = vld [vmem:[%s2604 + $0x3c] sm:$0xf]
      %v2637 = vunpack.c.l.b16 %v2605
      %v2638 = vunpack.c.l.b16 %v2606
      %v2639 = vunpack.c.l.b16 %v2607
      %v2640 = vunpack.c.l.b16 %v2608
      %v2641 = vunpack.c.l.b16 %v2609
      %v2642 = vunpack.c.l.b16 %v2610
      %v2643 = vunpack.c.l.b16 %v2611
      %v2644 = vunpack.c.l.b16 %v2612
      %v2645 = vunpack.c.l.b16 %v2613
      %v2646 = vunpack.c.l.b16 %v2614
      %v2647 = vunpack.c.l.b16 %v2615
      %v2648 = vunpack.c.l.b16 %v2616
      %v2649 = vunpack.c.l.b16 %v2617
      %v2650 = vunpack.c.l.b16 %v2618
      %v2651 = vunpack.c.l.b16 %v2619
      %v2652 = vunpack.c.l.b16 %v2620
      %v2653 = vpack.c.b16 %v2638, %v2637
      %v2654 = vpack.c.b16 %v2640, %v2639
      %v2655 = vpack.c.b16 %v2642, %v2641
      %v2656 = vpack.c.b16 %v2644, %v2643
      %v2657 = vpack.c.b16 %v2646, %v2645
      %v2658 = vpack.c.b16 %v2648, %v2647
      %v2659 = vpack.c.b16 %v2650, %v2649
      %v2660 = vpack.c.b16 %v2652, %v2651
      %2669 = vmatprep.subr.bf16.mxu0 0
      %2670 = vmatpush1.bf16.msra.mxu0 %v2653
      %2671 = vmatprep.subr.bf16.mxu0 0
      %2672 = vmatpush1.bf16.msra.mxu0 %v2654
      %2673 = vmatprep.subr.bf16.mxu0 0
      %2674 = vmatpush1.bf16.msra.mxu0 %v2655
      %2675 = vmatprep.subr.bf16.mxu0 0
      %2676 = vmatpush1.bf16.msra.mxu0 %v2656
      %2677 = vmatprep.subr.bf16.mxu0 0
      %2678 = vmatpush1.bf16.msra.mxu0 %v2657
      %2679 = vmatprep.subr.bf16.mxu0 0
      %2680 = vmatpush1.bf16.msra.mxu0 %v2658
      %2681 = vmatprep.subr.bf16.mxu0 0
      %2682 = vmatpush1.bf16.msra.mxu0 %v2659
      %2683 = vmatprep.subr.bf16.mxu0 0
      %2684 = vmatpush1.bf16.msra.mxu0 %v2660
      %2685 = vmatprep.subr.bf16.mxu0 0
      %2686 = vmatpush1.bf16.msra.mxu0 0
      %2687 = vmatprep.subr.bf16.mxu0 0
      %2688 = vmatpush1.bf16.msra.mxu0 0
      %2689 = vmatprep.subr.bf16.mxu0 0
      %2690 = vmatpush1.bf16.msra.mxu0 0
      %2691 = vmatprep.subr.bf16.mxu0 0
      %2692 = vmatpush1.bf16.msra.mxu0 0
      %2693 = vmatprep.subr.bf16.mxu0 0
      %2694 = vmatpush1.bf16.msra.mxu0 0
      %2695 = vmatprep.subr.bf16.mxu0 0
      %2696 = vmatpush1.bf16.msra.mxu0 0
      %2697 = vmatprep.subr.bf16.mxu0 0
      %2698 = vmatpush1.bf16.msra.mxu0 0
      %2699 = vmatprep.subr.bf16.mxu0 0
      %2700 = vmatpush1.bf16.msra.mxu0 0
      %2701 = vmatprep.mubr.bf16.mxu0 0
      %2702 = vmatmul.mubr.bf16.gmra.mrb[0].mxu0 %v2588
      %v2703 = vpop.f32.mrb[0].mxu0
      %v2704 = vadd.f32 0.0, %v2703
      %v2705 = vpop.f32.mrb[0].mxu0
      %v2706 = vpop.f32.mrb[0].mxu0
      %v2707 = vadd.f32 0.0, %v2706
      %v2708 = vpop.f32.mrb[0].mxu0
      %2709 = vmatprep.mubr.bf16.mxu0 0
      %2710 = vmatmul.mubr.bf16.gmra.mrb[0].mxu0 %v2589
      %v2711 = vpop.f32.mrb[0].mxu0
      %v2712 = vadd.f32 0.0, %v2711
      %v2713 = vpop.f32.mrb[0].mxu0
      %v2714 = vpop.f32.mrb[0].mxu0
      %v2715 = vadd.f32 0.0, %v2714
      %v2716 = vpop.f32.mrb[0].mxu0
      %2717 = vmatprep.mubr.bf16.mxu0 0
      %2718 = vmatmul.mubr.bf16.gmra.mrb[0].mxu0 %v2590
      %v2719 = vpop.f32.mrb[0].mxu0
      %v2720 = vadd.f32 0.0, %v2719
      %v2721 = vpop.f32.mrb[0].mxu0
      %v2722 = vpop.f32.mrb[0].mxu0
      %v2723 = vadd.f32 0.0, %v2722
      %v2724 = vpop.f32.mrb[0].mxu0
      %2725 = vmatprep.mubr.bf16.mxu0 0
      %2726 = vmatmul.mubr.bf16.gmra.mrb[0].mxu0 %v2591
      %v2727 = vpop.f32.mrb[0].mxu0
      %v2728 = vadd.f32 0.0, %v2727
      %v2729 = vpop.f32.mrb[0].mxu0
      %v2730 = vpop.f32.mrb[0].mxu0
      %v2731 = vadd.f32 0.0, %v2730
      %v2732 = vpop.f32.mrb[0].mxu0
      %2733 = vmatprep.mubr.bf16.mxu0 0
      %2734 = vmatmul.mubr.bf16.gmra.mrb[0].mxu0 %v2592
      %v2735 = vpop.f32.mrb[0].mxu0
      %v2736 = vadd.f32 0.0, %v2735
      %v2737 = vpop.f32.mrb[0].mxu0
      %v2738 = vpop.f32.mrb[0].mxu0
      %v2739 = vadd.f32 0.0, %v2738
      %v2740 = vpop.f32.mrb[0].mxu0
      %2741 = vmatprep.mubr.bf16.mxu0 0
      %2742 = vmatmul.mubr.bf16.gmra.mrb[0].mxu0 %v2593
      %v2743 = vpop.f32.mrb[0].mxu0
      %v2744 = vadd.f32 0.0, %v2743
      %v2745 = vpop.f32.mrb[0].mxu0
      %v2746 = vpop.f32.mrb[0].mxu0
      %v2747 = vadd.f32 0.0, %v2746
      %v2748 = vpop.f32.mrb[0].mxu0
      %2749 = vmatprep.mubr.bf16.mxu0 0
      %2750 = vmatmul.mubr.bf16.gmra.mrb[0].mxu0 %v2594
      %v2751 = vpop.f32.mrb[0].mxu0
      %v2752 = vadd.f32 0.0, %v2751
      %v2753 = vpop.f32.mrb[0].mxu0
      %v2754 = vpop.f32.mrb[0].mxu0
      %v2755 = vadd.f32 0.0, %v2754
      %v2756 = vpop.f32.mrb[0].mxu0
      %2757 = vmatprep.mubr.bf16.mxu0 0
      %2758 = vmatmul.mubr.bf16.gmra.mrb[0].mxu0 %v2595
      %v2759 = vpop.f32.mrb[0].mxu0
      %v2760 = vadd.f32 0.0, %v2759
      %v2761 = vpop.f32.mrb[0].mxu0
      %v2762 = vpop.f32.mrb[0].mxu0
      %v2763 = vadd.f32 0.0, %v2762
      %v2764 = vpop.f32.mrb[0].mxu0
      %2765 = vmatprep.mubr.bf16.mxu0 0
      %2766 = vmatmul.mubr.bf16.gmra.mrb[0].mxu0 %v2596
      %v2767 = vpop.f32.mrb[0].mxu0
      %v2768 = vadd.f32 0.0, %v2767
      %v2769 = vpop.f32.mrb[0].mxu0
      %v2770 = vpop.f32.mrb[0].mxu0
      %v2771 = vadd.f32 0.0, %v2770
      %v2772 = vpop.f32.mrb[0].mxu0
      %2773 = vmatprep.mubr.bf16.mxu0 0
      %2774 = vmatmul.mubr.bf16.gmra.mrb[0].mxu0 %v2597
      %v2775 = vpop.f32.mrb[0].mxu0
      %v2776 = vadd.f32 0.0, %v2775
      %v2777 = vpop.f32.mrb[0].mxu0
      %v2778 = vpop.f32.mrb[0].mxu0
      %v2779 = vadd.f32 0.0, %v2778
      %v2780 = vpop.f32.mrb[0].mxu0
      %2781 = vmatprep.mubr.bf16.mxu0 0
      %2782 = vmatmul.mubr.bf16.gmra.mrb[0].mxu0 %v2598
      %v2783 = vpop.f32.mrb[0].mxu0
      %v2784 = vadd.f32 0.0, %v2783
      %v2785 = vpop.f32.mrb[0].mxu0
      %v2786 = vpop.f32.mrb[0].mxu0
      %v2787 = vadd.f32 0.0, %v2786
      %v2788 = vpop.f32.mrb[0].mxu0
      %2789 = vmatprep.mubr.bf16.mxu0 0
      %2790 = vmatmul.mubr.bf16.gmra.mrb[0].mxu0 %v2599
      %v2791 = vpop.f32.mrb[0].mxu0
      %v2792 = vadd.f32 0.0, %v2791
      %v2793 = vpop.f32.mrb[0].mxu0
      %v2794 = vpop.f32.mrb[0].mxu0
      %v2795 = vadd.f32 0.0, %v2794
      %v2796 = vpop.f32.mrb[0].mxu0
      %2797 = vmatprep.mubr.bf16.mxu0 0
      %2798 = vmatmul.mubr.bf16.gmra.mrb[0].mxu0 %v2600
      %v2799 = vpop.f32.mrb[0].mxu0
      %v2800 = vadd.f32 0.0, %v2799
      %v2801 = vpop.f32.mrb[0].mxu0
      %v2802 = vpop.f32.mrb[0].mxu0
      %v2803 = vadd.f32 0.0, %v2802
      %v2804 = vpop.f32.mrb[0].mxu0
      %2805 = vmatprep.mubr.bf16.mxu0 0
      %2806 = vmatmul.mubr.bf16.gmra.mrb[0].mxu0 %v2601
      %v2807 = vpop.f32.mrb[0].mxu0
      %v2808 = vadd.f32 0.0, %v2807
      %v2809 = vpop.f32.mrb[0].mxu0
      %v2810 = vpop.f32.mrb[0].mxu0
      %v2811 = vadd.f32 0.0, %v2810
      %v2812 = vpop.f32.mrb[0].mxu0
      %2813 = vmatprep.mubr.bf16.mxu0 0
      %2814 = vmatmul.mubr.bf16.gmra.mrb[0].mxu0 %v2602
      %v2815 = vpop.f32.mrb[0].mxu0
      %v2816 = vadd.f32 0.0, %v2815
      %v2817 = vpop.f32.mrb[0].mxu0
      %v2818 = vpop.f32.mrb[0].mxu0
      %v2819 = vadd.f32 0.0, %v2818
      %v2820 = vpop.f32.mrb[0].mxu0
      %2821 = vmatprep.mubr.bf16.mxu0 0
      %2822 = vmatmul.mubr.bf16.gmra.mrb[0].mxu0 %v2603
      %v2823 = vpop.f32.mrb[0].mxu0
      %v2824 = vadd.f32 0.0, %v2823
      %v2825 = vpop.f32.mrb[0].mxu0
      %v2826 = vpop.f32.mrb[0].mxu0
      %v2827 = vadd.f32 0.0, %v2826
      %v2828 = vpop.f32.mrb[0].mxu0
      %2829 = vdwg.mxu0
      %v2830 = vadd.f32 %v2492, %v2704
      %v2831 = vadd.f32 %v2493, %v2707
      %v2832 = vadd.f32 %v2494, %v2712
      %v2833 = vadd.f32 %v2495, %v2715
      %v2834 = vadd.f32 %v2496, %v2720
      %v2835 = vadd.f32 %v2497, %v2723
      %v2836 = vadd.f32 %v2498, %v2728
      %v2837 = vadd.f32 %v2499, %v2731
      %v2838 = vadd.f32 %v2500, %v2736
      %v2839 = vadd.f32 %v2501, %v2739
      %v2840 = vadd.f32 %v2502, %v2744
      %v2841 = vadd.f32 %v2503, %v2747
      %v2842 = vadd.f32 %v2504, %v2752
      %v2843 = vadd.f32 %v2505, %v2755
      %v2844 = vadd.f32 %v2506, %v2760
      %v2845 = vadd.f32 %v2507, %v2763
      %v2846 = vadd.f32 %v2508, %v2768
      %v2847 = vadd.f32 %v2509, %v2771
      %v2848 = vadd.f32 %v2510, %v2776
      %v2849 = vadd.f32 %v2511, %v2779
      %v2850 = vadd.f32 %v2512, %v2784
      %v2851 = vadd.f32 %v2513, %v2787
      %v2852 = vadd.f32 %v2514, %v2792
      %v2853 = vadd.f32 %v2515, %v2795
      %v2854 = vadd.f32 %v2516, %v2800
      %v2855 = vadd.f32 %v2517, %v2803
      %v2856 = vadd.f32 %v2518, %v2808
      %v2857 = vadd.f32 %v2519, %v2811
      %v2858 = vadd.f32 %v2520, %v2816
      %v2859 = vadd.f32 %v2521, %v2819
      %v2860 = vadd.f32 %v2522, %v2824
      %v2861 = vadd.f32 %v2523, %v2827
      %v2862 = vld [vmem:[#allocation2 + $0x18] sm:$0xff]
      %v2863 = vld [vmem:[#allocation2 + $0x20] sm:$0xff]
      %v2864 = vld [vmem:[#allocation2 + $0x28] sm:$0xff]
      %v2865 = vld [vmem:[#allocation2 + $0x30] sm:$0xff]
      %v2866 = vld [vmem:[#allocation2 + $0x38] sm:$0xff]
      %v2867 = vld [vmem:[#allocation2 + $0x40] sm:$0xff]
      %v2868 = vld [vmem:[#allocation2 + $0x48] sm:$0xff]
      %v2869 = vld [vmem:[#allocation2 + $0x50] sm:$0xff]
      %v2870 = vld [vmem:[#allocation2 + $0x58] sm:$0xff]
      %v2871 = vld [vmem:[#allocation2 + $0x60] sm:$0xff]
      %v2872 = vld [vmem:[#allocation2 + $0x68] sm:$0xff]
      %v2873 = vld [vmem:[#allocation2 + $0x70] sm:$0xff]
      %v2874 = vld [vmem:[#allocation2 + $0x78] sm:$0xff]
      %v2875 = vld [vmem:[#allocation2 + $0x80] sm:$0xff]
      %v2876 = vld [vmem:[#allocation2 + $0x88] sm:$0xff]
      %v2877 = vld [vmem:[#allocation2 + $0x90] sm:$0xff]
      %v2878 = vld [vmem:[#allocation2 + $0x98] sm:$0xff]
      %v2879 = vld [vmem:[#allocation2 + $0xa0] sm:$0xff]
      %v2880 = vld [vmem:[#allocation2 + $0xa8] sm:$0xff]
      %v2881 = vld [vmem:[#allocation2 + $0xb0] sm:$0xff]
      %v2882 = vld [vmem:[#allocation2 + $0xb8] sm:$0xff]
      %v2883 = vld [vmem:[#allocation2 + $0xc0] sm:$0xff]
      %v2884 = vld [vmem:[#allocation2 + $0xc8] sm:$0xff]
      %v2885 = vld [vmem:[#allocation2 + $0xd0] sm:$0xff]
      %v2886 = vld [vmem:[#allocation2 + $0xd8] sm:$0xff]
      %v2887 = vld [vmem:[#allocation2 + $0xe0] sm:$0xff]
      %v2888 = vld [vmem:[#allocation2 + $0xe8] sm:$0xff]
      %v2889 = vld [vmem:[#allocation2 + $0xf0] sm:$0xff]
      %v2890 = vld [vmem:[#allocation2 + $0xf8] sm:$0xff]
      %v2891 = vld [vmem:[#allocation2 + $0x100] sm:$0xff]
      %v2892 = vld [vmem:[#allocation2 + $0x108] sm:$0xff]
      %v2893 = vld [vmem:[#allocation2 + $0x110] sm:$0xff]
      %v2894 = vpack.c.bf16 %v2863, %v2862
      %v2895 = vpack.c.bf16 %v2865, %v2864
      %v2896 = vpack.c.bf16 %v2867, %v2866
      %v2897 = vpack.c.bf16 %v2869, %v2868
      %v2898 = vpack.c.bf16 %v2871, %v2870
      %v2899 = vpack.c.bf16 %v2873, %v2872
      %v2900 = vpack.c.bf16 %v2875, %v2874
      %v2901 = vpack.c.bf16 %v2877, %v2876
      %v2902 = vpack.c.bf16 %v2879, %v2878
      %v2903 = vpack.c.bf16 %v2881, %v2880
      %v2904 = vpack.c.bf16 %v2883, %v2882
      %v2905 = vpack.c.bf16 %v2885, %v2884
      %v2906 = vpack.c.bf16 %v2887, %v2886
      %v2907 = vpack.c.bf16 %v2889, %v2888
      %v2908 = vpack.c.bf16 %v2891, %v2890
      %v2909 = vpack.c.bf16 %v2893, %v2892
      %s2910 = scalar_lea.vmem %s6, 256
      %v2911 = vld [vmem:[%s2910] sm:$0xf]
      %v2912 = vld [vmem:[%s2910 + $0x4] sm:$0xf]
      %v2913 = vld [vmem:[%s2910 + $0x8] sm:$0xf]
      %v2914 = vld [vmem:[%s2910 + $0xc] sm:$0xf]
      %v2915 = vld [vmem:[%s2910 + $0x10] sm:$0xf]
      %v2916 = vld [vmem:[%s2910 + $0x14] sm:$0xf]
      %v2917 = vld [vmem:[%s2910 + $0x18] sm:$0xf]
      %v2918 = vld [vmem:[%s2910 + $0x1c] sm:$0xf]
      %v2919 = vld [vmem:[%s2910 + $0x20] sm:$0xf]
      %v2920 = vld [vmem:[%s2910 + $0x24] sm:$0xf]
      %v2921 = vld [vmem:[%s2910 + $0x28] sm:$0xf]
      %v2922 = vld [vmem:[%s2910 + $0x2c] sm:$0xf]
      %v2923 = vld [vmem:[%s2910 + $0x30] sm:$0xf]
      %v2924 = vld [vmem:[%s2910 + $0x34] sm:$0xf]
      %v2925 = vld [vmem:[%s2910 + $0x38] sm:$0xf]
      %v2926 = vld [vmem:[%s2910 + $0x3c] sm:$0xf]
      %v2943 = vunpack.c.l.b16 %v2911
      %v2944 = vunpack.c.l.b16 %v2912
      %v2945 = vunpack.c.l.b16 %v2913
      %v2946 = vunpack.c.l.b16 %v2914
      %v2947 = vunpack.c.l.b16 %v2915
      %v2948 = vunpack.c.l.b16 %v2916
      %v2949 = vunpack.c.l.b16 %v2917
      %v2950 = vunpack.c.l.b16 %v2918
      %v2951 = vunpack.c.l.b16 %v2919
      %v2952 = vunpack.c.l.b16 %v2920
      %v2953 = vunpack.c.l.b16 %v2921
      %v2954 = vunpack.c.l.b16 %v2922
      %v2955 = vunpack.c.l.b16 %v2923
      %v2956 = vunpack.c.l.b16 %v2924
      %v2957 = vunpack.c.l.b16 %v2925
      %v2958 = vunpack.c.l.b16 %v2926
      %v2959 = vpack.c.b16 %v2944, %v2943
      %v2960 = vpack.c.b16 %v2946, %v2945
      %v2961 = vpack.c.b16 %v2948, %v2947
      %v2962 = vpack.c.b16 %v2950, %v2949
      %v2963 = vpack.c.b16 %v2952, %v2951
      %v2964 = vpack.c.b16 %v2954, %v2953
      %v2965 = vpack.c.b16 %v2956, %v2955
      %v2966 = vpack.c.b16 %v2958, %v2957
      %2975 = vmatprep.subr.bf16.mxu0 0
      %2976 = vmatpush1.bf16.msra.mxu0 %v2959
      %2977 = vmatprep.subr.bf16.mxu0 0
      %2978 = vmatpush1.bf16.msra.mxu0 %v2960
      %2979 = vmatprep.subr.bf16.mxu0 0
      %2980 = vmatpush1.bf16.msra.mxu0 %v2961
      %2981 = vmatprep.subr.bf16.mxu0 0
      %2982 = vmatpush1.bf16.msra.mxu0 %v2962
      %2983 = vmatprep.subr.bf16.mxu0 0
      %2984 = vmatpush1.bf16.msra.mxu0 %v2963
      %2985 = vmatprep.subr.bf16.mxu0 0
      %2986 = vmatpush1.bf16.msra.mxu0 %v2964
      %2987 = vmatprep.subr.bf16.mxu0 0
      %2988 = vmatpush1.bf16.msra.mxu0 %v2965
      %2989 = vmatprep.subr.bf16.mxu0 0
      %2990 = vmatpush1.bf16.msra.mxu0 %v2966
      %2991 = vmatprep.subr.bf16.mxu0 0
      %2992 = vmatpush1.bf16.msra.mxu0 0
      %2993 = vmatprep.subr.bf16.mxu0 0
      %2994 = vmatpush1.bf16.msra.mxu0 0
      %2995 = vmatprep.subr.bf16.mxu0 0
      %2996 = vmatpush1.bf16.msra.mxu0 0
      %2997 = vmatprep.subr.bf16.mxu0 0
      %2998 = vmatpush1.bf16.msra.mxu0 0
      %2999 = vmatprep.subr.bf16.mxu0 0
      %3000 = vmatpush1.bf16.msra.mxu0 0
      %3001 = vmatprep.subr.bf16.mxu0 0
      %3002 = vmatpush1.bf16.msra.mxu0 0
      %3003 = vmatprep.subr.bf16.mxu0 0
      %3004 = vmatpush1.bf16.msra.mxu0 0
      %3005 = vmatprep.subr.bf16.mxu0 0
      %3006 = vmatpush1.bf16.msra.mxu0 0
      %3007 = vmatprep.mubr.bf16.mxu0 0
      %3008 = vmatmul.mubr.bf16.gmra.mrb[0].mxu0 %v2894
      %v3009 = vpop.f32.mrb[0].mxu0
      %v3010 = vadd.f32 0.0, %v3009
      %v3011 = vpop.f32.mrb[0].mxu0
      %v3012 = vpop.f32.mrb[0].mxu0
      %v3013 = vadd.f32 0.0, %v3012
      %v3014 = vpop.f32.mrb[0].mxu0
      %3015 = vmatprep.mubr.bf16.mxu0 0
      %3016 = vmatmul.mubr.bf16.gmra.mrb[0].mxu0 %v2895
      %v3017 = vpop.f32.mrb[0].mxu0
      %v3018 = vadd.f32 0.0, %v3017
      %v3019 = vpop.f32.mrb[0].mxu0
      %v3020 = vpop.f32.mrb[0].mxu0
      %v3021 = vadd.f32 0.0, %v3020
      %v3022 = vpop.f32.mrb[0].mxu0
      %3023 = vmatprep.mubr.bf16.mxu0 0
      %3024 = vmatmul.mubr.bf16.gmra.mrb[0].mxu0 %v2896
      %v3025 = vpop.f32.mrb[0].mxu0
      %v3026 = vadd.f32 0.0, %v3025
      %v3027 = vpop.f32.mrb[0].mxu0
      %v3028 = vpop.f32.mrb[0].mxu0
      %v3029 = vadd.f32 0.0, %v3028
      %v3030 = vpop.f32.mrb[0].mxu0
      %3031 = vmatprep.mubr.bf16.mxu0 0
      %3032 = vmatmul.mubr.bf16.gmra.mrb[0].mxu0 %v2897
      %v3033 = vpop.f32.mrb[0].mxu0
      %v3034 = vadd.f32 0.0, %v3033
      %v3035 = vpop.f32.mrb[0].mxu0
      %v3036 = vpop.f32.mrb[0].mxu0
      %v3037 = vadd.f32 0.0, %v3036
      %v3038 = vpop.f32.mrb[0].mxu0
      %3039 = vmatprep.mubr.bf16.mxu0 0
      %3040 = vmatmul.mubr.bf16.gmra.mrb[0].mxu0 %v2898
      %v3041 = vpop.f32.mrb[0].mxu0
      %v3042 = vadd.f32 0.0, %v3041
      %v3043 = vpop.f32.mrb[0].mxu0
      %v3044 = vpop.f32.mrb[0].mxu0
      %v3045 = vadd.f32 0.0, %v3044
      %v3046 = vpop.f32.mrb[0].mxu0
      %3047 = vmatprep.mubr.bf16.mxu0 0
      %3048 = vmatmul.mubr.bf16.gmra.mrb[0].mxu0 %v2899
      %v3049 = vpop.f32.mrb[0].mxu0
      %v3050 = vadd.f32 0.0, %v3049
      %v3051 = vpop.f32.mrb[0].mxu0
      %v3052 = vpop.f32.mrb[0].mxu0
      %v3053 = vadd.f32 0.0, %v3052
      %v3054 = vpop.f32.mrb[0].mxu0
      %3055 = vmatprep.mubr.bf16.mxu0 0
      %3056 = vmatmul.mubr.bf16.gmra.mrb[0].mxu0 %v2900
      %v3057 = vpop.f32.mrb[0].mxu0
      %v3058 = vadd.f32 0.0, %v3057
      %v3059 = vpop.f32.mrb[0].mxu0
      %v3060 = vpop.f32.mrb[0].mxu0
      %v3061 = vadd.f32 0.0, %v3060
      %v3062 = vpop.f32.mrb[0].mxu0
      %3063 = vmatprep.mubr.bf16.mxu0 0
      %3064 = vmatmul.mubr.bf16.gmra.mrb[0].mxu0 %v2901
      %v3065 = vpop.f32.mrb[0].mxu0
      %v3066 = vadd.f32 0.0, %v3065
      %v3067 = vpop.f32.mrb[0].mxu0
      %v3068 = vpop.f32.mrb[0].mxu0
      %v3069 = vadd.f32 0.0, %v3068
      %v3070 = vpop.f32.mrb[0].mxu0
      %3071 = vmatprep.mubr.bf16.mxu0 0
      %3072 = vmatmul.mubr.bf16.gmra.mrb[0].mxu0 %v2902
      %v3073 = vpop.f32.mrb[0].mxu0
      %v3074 = vadd.f32 0.0, %v3073
      %v3075 = vpop.f32.mrb[0].mxu0
      %v3076 = vpop.f32.mrb[0].mxu0
      %v3077 = vadd.f32 0.0, %v3076
      %v3078 = vpop.f32.mrb[0].mxu0
      %3079 = vmatprep.mubr.bf16.mxu0 0
      %3080 = vmatmul.mubr.bf16.gmra.mrb[0].mxu0 %v2903
      %v3081 = vpop.f32.mrb[0].mxu0
      %v3082 = vadd.f32 0.0, %v3081
      %v3083 = vpop.f32.mrb[0].mxu0
      %v3084 = vpop.f32.mrb[0].mxu0
      %v3085 = vadd.f32 0.0, %v3084
      %v3086 = vpop.f32.mrb[0].mxu0
      %3087 = vmatprep.mubr.bf16.mxu0 0
      %3088 = vmatmul.mubr.bf16.gmra.mrb[0].mxu0 %v2904
      %v3089 = vpop.f32.mrb[0].mxu0
      %v3090 = vadd.f32 0.0, %v3089
      %v3091 = vpop.f32.mrb[0].mxu0
      %v3092 = vpop.f32.mrb[0].mxu0
      %v3093 = vadd.f32 0.0, %v3092
      %v3094 = vpop.f32.mrb[0].mxu0
      %3095 = vmatprep.mubr.bf16.mxu0 0
      %3096 = vmatmul.mubr.bf16.gmra.mrb[0].mxu0 %v2905
      %v3097 = vpop.f32.mrb[0].mxu0
      %v3098 = vadd.f32 0.0, %v3097
      %v3099 = vpop.f32.mrb[0].mxu0
      %v3100 = vpop.f32.mrb[0].mxu0
      %v3101 = vadd.f32 0.0, %v3100
      %v3102 = vpop.f32.mrb[0].mxu0
      %3103 = vmatprep.mubr.bf16.mxu0 0
      %3104 = vmatmul.mubr.bf16.gmra.mrb[0].mxu0 %v2906
      %v3105 = vpop.f32.mrb[0].mxu0
      %v3106 = vadd.f32 0.0, %v3105
      %v3107 = vpop.f32.mrb[0].mxu0
      %v3108 = vpop.f32.mrb[0].mxu0
      %v3109 = vadd.f32 0.0, %v3108
      %v3110 = vpop.f32.mrb[0].mxu0
      %3111 = vmatprep.mubr.bf16.mxu0 0
      %3112 = vmatmul.mubr.bf16.gmra.mrb[0].mxu0 %v2907
      %v3113 = vpop.f32.mrb[0].mxu0
      %v3114 = vadd.f32 0.0, %v3113
      %v3115 = vpop.f32.mrb[0].mxu0
      %v3116 = vpop.f32.mrb[0].mxu0
      %v3117 = vadd.f32 0.0, %v3116
      %v3118 = vpop.f32.mrb[0].mxu0
      %3119 = vmatprep.mubr.bf16.mxu0 0
      %3120 = vmatmul.mubr.bf16.gmra.mrb[0].mxu0 %v2908
      %v3121 = vpop.f32.mrb[0].mxu0
      %v3122 = vadd.f32 0.0, %v3121
      %v3123 = vpop.f32.mrb[0].mxu0
      %v3124 = vpop.f32.mrb[0].mxu0
      %v3125 = vadd.f32 0.0, %v3124
      %v3126 = vpop.f32.mrb[0].mxu0
      %3127 = vmatprep.mubr.bf16.mxu0 0
      %3128 = vmatmul.mubr.bf16.gmra.mrb[0].mxu0 %v2909
      %v3129 = vpop.f32.mrb[0].mxu0
      %v3130 = vadd.f32 0.0, %v3129
      %v3131 = vpop.f32.mrb[0].mxu0
      %v3132 = vpop.f32.mrb[0].mxu0
      %v3133 = vadd.f32 0.0, %v3132
      %v3134 = vpop.f32.mrb[0].mxu0
      %3135 = vdwg.mxu0
      %v3136 = vadd.f32 %v2830, %v3010
      %v3137 = vadd.f32 %v2831, %v3013
      %v3138 = vadd.f32 %v2832, %v3018
      %v3139 = vadd.f32 %v2833, %v3021
      %v3140 = vadd.f32 %v2834, %v3026
      %v3141 = vadd.f32 %v2835, %v3029
      %v3142 = vadd.f32 %v2836, %v3034
      %v3143 = vadd.f32 %v2837, %v3037
      %v3144 = vadd.f32 %v2838, %v3042
      %v3145 = vadd.f32 %v2839, %v3045
      %v3146 = vadd.f32 %v2840, %v3050
      %v3147 = vadd.f32 %v2841, %v3053
      %v3148 = vadd.f32 %v2842, %v3058
      %v3149 = vadd.f32 %v2843, %v3061
      %v3150 = vadd.f32 %v2844, %v3066
      %v3151 = vadd.f32 %v2845, %v3069
      %v3152 = vadd.f32 %v2846, %v3074
      %v3153 = vadd.f32 %v2847, %v3077
      %v3154 = vadd.f32 %v2848, %v3082
      %v3155 = vadd.f32 %v2849, %v3085
      %v3156 = vadd.f32 %v2850, %v3090
      %v3157 = vadd.f32 %v2851, %v3093
      %v3158 = vadd.f32 %v2852, %v3098
      %v3159 = vadd.f32 %v2853, %v3101
      %v3160 = vadd.f32 %v2854, %v3106
      %v3161 = vadd.f32 %v2855, %v3109
      %v3162 = vadd.f32 %v2856, %v3114
      %v3163 = vadd.f32 %v2857, %v3117
      %v3164 = vadd.f32 %v2858, %v3122
      %v3165 = vadd.f32 %v2859, %v3125
      %v3166 = vadd.f32 %v2860, %v3130
      %v3167 = vadd.f32 %v2861, %v3133
      %v3168 = vld [vmem:[#allocation2 + $0x19] sm:$0xff]
      %v3169 = vld [vmem:[#allocation2 + $0x21] sm:$0xff]
      %v3170 = vld [vmem:[#allocation2 + $0x29] sm:$0xff]
      %v3171 = vld [vmem:[#allocation2 + $0x31] sm:$0xff]
      %v3172 = vld [vmem:[#allocation2 + $0x39] sm:$0xff]
      %v3173 = vld [vmem:[#allocation2 + $0x41] sm:$0xff]
      %v3174 = vld [vmem:[#allocation2 + $0x49] sm:$0xff]
      %v3175 = vld [vmem:[#allocation2 + $0x51] sm:$0xff]
      %v3176 = vld [vmem:[#allocation2 + $0x59] sm:$0xff]
      %v3177 = vld [vmem:[#allocation2 + $0x61] sm:$0xff]
      %v3178 = vld [vmem:[#allocation2 + $0x69] sm:$0xff]
      %v3179 = vld [vmem:[#allocation2 + $0x71] sm:$0xff]
      %v3180 = vld [vmem:[#allocation2 + $0x79] sm:$0xff]
      %v3181 = vld [vmem:[#allocation2 + $0x81] sm:$0xff]
      %v3182 = vld [vmem:[#allocation2 + $0x89] sm:$0xff]
      %v3183 = vld [vmem:[#allocation2 + $0x91] sm:$0xff]
      %v3184 = vld [vmem:[#allocation2 + $0x99] sm:$0xff]
      %v3185 = vld [vmem:[#allocation2 + $0xa1] sm:$0xff]
      %v3186 = vld [vmem:[#allocation2 + $0xa9] sm:$0xff]
      %v3187 = vld [vmem:[#allocation2 + $0xb1] sm:$0xff]
      %v3188 = vld [vmem:[#allocation2 + $0xb9] sm:$0xff]
      %v3189 = vld [vmem:[#allocation2 + $0xc1] sm:$0xff]
      %v3190 = vld [vmem:[#allocation2 + $0xc9] sm:$0xff]
      %v3191 = vld [vmem:[#allocation2 + $0xd1] sm:$0xff]
      %v3192 = vld [vmem:[#allocation2 + $0xd9] sm:$0xff]
      %v3193 = vld [vmem:[#allocation2 + $0xe1] sm:$0xff]
      %v3194 = vld [vmem:[#allocation2 + $0xe9] sm:$0xff]
      %v3195 = vld [vmem:[#allocation2 + $0xf1] sm:$0xff]
      %v3196 = vld [vmem:[#allocation2 + $0xf9] sm:$0xff]
      %v3197 = vld [vmem:[#allocation2 + $0x101] sm:$0xff]
      %v3198 = vld [vmem:[#allocation2 + $0x109] sm:$0xff]
      %v3199 = vld [vmem:[#allocation2 + $0x111] sm:$0xff]
      %v3200 = vmul.f32 %v3168, %v2061
      %v3201 = vmul.f32 %v3169, %v2066
      %v3202 = vmul.f32 %v3170, %v2071
      %v3203 = vmul.f32 %v3171, %v2076
      %v3204 = vmul.f32 %v3172, %v2081
      %v3205 = vmul.f32 %v3173, %v2086
      %v3206 = vmul.f32 %v3174, %v2091
      %v3207 = vmul.f32 %v3175, %v2096
      %v3208 = vmul.f32 %v3176, %v2101
      %v3209 = vmul.f32 %v3177, %v2106
      %v3210 = vmul.f32 %v3178, %v2111
      %v3211 = vmul.f32 %v3179, %v2116
      %v3212 = vmul.f32 %v3180, %v2121
      %v3213 = vmul.f32 %v3181, %v2126
      %v3214 = vmul.f32 %v3182, %v2131
      %v3215 = vmul.f32 %v3183, %v2136
      %v3216 = vmul.f32 %v3184, %v2141
      %v3217 = vmul.f32 %v3185, %v2146
      %v3218 = vmul.f32 %v3186, %v2151
      %v3219 = vmul.f32 %v3187, %v2156
      %v3220 = vmul.f32 %v3188, %v2161
      %v3221 = vmul.f32 %v3189, %v2166
      %v3222 = vmul.f32 %v3190, %v2171
      %v3223 = vmul.f32 %v3191, %v2176
      %v3224 = vmul.f32 %v3192, %v2181
      %v3225 = vmul.f32 %v3193, %v2186
      %v3226 = vmul.f32 %v3194, %v2191
      %v3227 = vmul.f32 %v3195, %v2196
      %v3228 = vmul.f32 %v3196, %v2201
      %v3229 = vmul.f32 %v3197, %v2206
      %v3230 = vmul.f32 %v3198, %v2211
      %v3231 = vmul.f32 %v3199, %v2216
      %v3232 = vpack.c.bf16 %v3201, %v3200
      %v3233 = vpack.c.bf16 %v3203, %v3202
      %v3234 = vpack.c.bf16 %v3205, %v3204
      %v3235 = vpack.c.bf16 %v3207, %v3206
      %v3236 = vpack.c.bf16 %v3209, %v3208
      %v3237 = vpack.c.bf16 %v3211, %v3210
      %v3238 = vpack.c.bf16 %v3213, %v3212
      %v3239 = vpack.c.bf16 %v3215, %v3214
      %v3240 = vpack.c.bf16 %v3217, %v3216
      %v3241 = vpack.c.bf16 %v3219, %v3218
      %v3242 = vpack.c.bf16 %v3221, %v3220
      %v3243 = vpack.c.bf16 %v3223, %v3222
      %v3244 = vpack.c.bf16 %v3225, %v3224
      %v3245 = vpack.c.bf16 %v3227, %v3226
      %v3246 = vpack.c.bf16 %v3229, %v3228
      %v3247 = vpack.c.bf16 %v3231, %v3230
      %s3248 = scalar_lea.vmem %s6, 320
      %v3249 = vld [vmem:[%s3248] sm:$0xf]
      %v3250 = vld [vmem:[%s3248 + $0x4] sm:$0xf]
      %v3251 = vld [vmem:[%s3248 + $0x8] sm:$0xf]
      %v3252 = vld [vmem:[%s3248 + $0xc] sm:$0xf]
      %v3253 = vld [vmem:[%s3248 + $0x10] sm:$0xf]
      %v3254 = vld [vmem:[%s3248 + $0x14] sm:$0xf]
      %v3255 = vld [vmem:[%s3248 + $0x18] sm:$0xf]
      %v3256 = vld [vmem:[%s3248 + $0x1c] sm:$0xf]
      %v3257 = vld [vmem:[%s3248 + $0x20] sm:$0xf]
      %v3258 = vld [vmem:[%s3248 + $0x24] sm:$0xf]
      %v3259 = vld [vmem:[%s3248 + $0x28] sm:$0xf]
      %v3260 = vld [vmem:[%s3248 + $0x2c] sm:$0xf]
      %v3261 = vld [vmem:[%s3248 + $0x30] sm:$0xf]
      %v3262 = vld [vmem:[%s3248 + $0x34] sm:$0xf]
      %v3263 = vld [vmem:[%s3248 + $0x38] sm:$0xf]
      %v3264 = vld [vmem:[%s3248 + $0x3c] sm:$0xf]
      %v3281 = vunpack.c.l.b16 %v3249
      %v3282 = vunpack.c.l.b16 %v3250
      %v3283 = vunpack.c.l.b16 %v3251
      %v3284 = vunpack.c.l.b16 %v3252
      %v3285 = vunpack.c.l.b16 %v3253
      %v3286 = vunpack.c.l.b16 %v3254
      %v3287 = vunpack.c.l.b16 %v3255
      %v3288 = vunpack.c.l.b16 %v3256
      %v3289 = vunpack.c.l.b16 %v3257
      %v3290 = vunpack.c.l.b16 %v3258
      %v3291 = vunpack.c.l.b16 %v3259
      %v3292 = vunpack.c.l.b16 %v3260
      %v3293 = vunpack.c.l.b16 %v3261
      %v3294 = vunpack.c.l.b16 %v3262
      %v3295 = vunpack.c.l.b16 %v3263
      %v3296 = vunpack.c.l.b16 %v3264
      %v3297 = vpack.c.b16 %v3282, %v3281
      %v3298 = vpack.c.b16 %v3284, %v3283
      %v3299 = vpack.c.b16 %v3286, %v3285
      %v3300 = vpack.c.b16 %v3288, %v3287
      %v3301 = vpack.c.b16 %v3290, %v3289
      %v3302 = vpack.c.b16 %v3292, %v3291
      %v3303 = vpack.c.b16 %v3294, %v3293
      %v3304 = vpack.c.b16 %v3296, %v3295
      %3313 = vmatprep.subr.bf16.mxu0 0
      %3314 = vmatpush1.bf16.msra.mxu0 %v3297
      %3315 = vmatprep.subr.bf16.mxu0 0
      %3316 = vmatpush1.bf16.msra.mxu0 %v3298
      %3317 = vmatprep.subr.bf16.mxu0 0
      %3318 = vmatpush1.bf16.msra.mxu0 %v3299
      %3319 = vmatprep.subr.bf16.mxu0 0
      %3320 = vmatpush1.bf16.msra.mxu0 %v3300
      %3321 = vmatprep.subr.bf16.mxu0 0
      %3322 = vmatpush1.bf16.msra.mxu0 %v3301
      %3323 = vmatprep.subr.bf16.mxu0 0
      %3324 = vmatpush1.bf16.msra.mxu0 %v3302
      %3325 = vmatprep.subr.bf16.mxu0 0
      %3326 = vmatpush1.bf16.msra.mxu0 %v3303
      %3327 = vmatprep.subr.bf16.mxu0 0
      %3328 = vmatpush1.bf16.msra.mxu0 %v3304
      %3329 = vmatprep.subr.bf16.mxu0 0
      %3330 = vmatpush1.bf16.msra.mxu0 0
      %3331 = vmatprep.subr.bf16.mxu0 0
      %3332 = vmatpush1.bf16.msra.mxu0 0
      %3333 = vmatprep.subr.bf16.mxu0 0
      %3334 = vmatpush1.bf16.msra.mxu0 0
      %3335 = vmatprep.subr.bf16.mxu0 0
      %3336 = vmatpush1.bf16.msra.mxu0 0
      %3337 = vmatprep.subr.bf16.mxu0 0
      %3338 = vmatpush1.bf16.msra.mxu0 0
      %3339 = vmatprep.subr.bf16.mxu0 0
      %3340 = vmatpush1.bf16.msra.mxu0 0
      %3341 = vmatprep.subr.bf16.mxu0 0
      %3342 = vmatpush1.bf16.msra.mxu0 0
      %3343 = vmatprep.subr.bf16.mxu0 0
      %3344 = vmatpush1.bf16.msra.mxu0 0
      %3345 = vmatprep.mubr.bf16.mxu0 0
      %3346 = vmatmul.mubr.bf16.gmra.mrb[0].mxu0 %v3232
      %v3347 = vpop.f32.mrb[0].mxu0
      %v3348 = vadd.f32 0.0, %v3347
      %v3349 = vpop.f32.mrb[0].mxu0
      %v3350 = vpop.f32.mrb[0].mxu0
      %v3351 = vadd.f32 0.0, %v3350
      %v3352 = vpop.f32.mrb[0].mxu0
      %3353 = vmatprep.mubr.bf16.mxu0 0
      %3354 = vmatmul.mubr.bf16.gmra.mrb[0].mxu0 %v3233
      %v3355 = vpop.f32.mrb[0].mxu0
      %v3356 = vadd.f32 0.0, %v3355
      %v3357 = vpop.f32.mrb[0].mxu0
      %v3358 = vpop.f32.mrb[0].mxu0
      %v3359 = vadd.f32 0.0, %v3358
      %v3360 = vpop.f32.mrb[0].mxu0
      %3361 = vmatprep.mubr.bf16.mxu0 0
      %3362 = vmatmul.mubr.bf16.gmra.mrb[0].mxu0 %v3234
      %v3363 = vpop.f32.mrb[0].mxu0
      %v3364 = vadd.f32 0.0, %v3363
      %v3365 = vpop.f32.mrb[0].mxu0
      %v3366 = vpop.f32.mrb[0].mxu0
      %v3367 = vadd.f32 0.0, %v3366
      %v3368 = vpop.f32.mrb[0].mxu0
      %3369 = vmatprep.mubr.bf16.mxu0 0
      %3370 = vmatmul.mubr.bf16.gmra.mrb[0].mxu0 %v3235
      %v3371 = vpop.f32.mrb[0].mxu0
      %v3372 = vadd.f32 0.0, %v3371
      %v3373 = vpop.f32.mrb[0].mxu0
      %v3374 = vpop.f32.mrb[0].mxu0
      %v3375 = vadd.f32 0.0, %v3374
      %v3376 = vpop.f32.mrb[0].mxu0
      %3377 = vmatprep.mubr.bf16.mxu0 0
      %3378 = vmatmul.mubr.bf16.gmra.mrb[0].mxu0 %v3236
      %v3379 = vpop.f32.mrb[0].mxu0
      %v3380 = vadd.f32 0.0, %v3379
      %v3381 = vpop.f32.mrb[0].mxu0
      %v3382 = vpop.f32.mrb[0].mxu0
      %v3383 = vadd.f32 0.0, %v3382
      %v3384 = vpop.f32.mrb[0].mxu0
      %3385 = vmatprep.mubr.bf16.mxu0 0
      %3386 = vmatmul.mubr.bf16.gmra.mrb[0].mxu0 %v3237
      %v3387 = vpop.f32.mrb[0].mxu0
      %v3388 = vadd.f32 0.0, %v3387
      %v3389 = vpop.f32.mrb[0].mxu0
      %v3390 = vpop.f32.mrb[0].mxu0
      %v3391 = vadd.f32 0.0, %v3390
      %v3392 = vpop.f32.mrb[0].mxu0
      %3393 = vmatprep.mubr.bf16.mxu0 0
      %3394 = vmatmul.mubr.bf16.gmra.mrb[0].mxu0 %v3238
      %v3395 = vpop.f32.mrb[0].mxu0
      %v3396 = vadd.f32 0.0, %v3395
      %v3397 = vpop.f32.mrb[0].mxu0
      %v3398 = vpop.f32.mrb[0].mxu0
      %v3399 = vadd.f32 0.0, %v3398
      %v3400 = vpop.f32.mrb[0].mxu0
      %3401 = vmatprep.mubr.bf16.mxu0 0
      %3402 = vmatmul.mubr.bf16.gmra.mrb[0].mxu0 %v3239
      %v3403 = vpop.f32.mrb[0].mxu0
      %v3404 = vadd.f32 0.0, %v3403
      %v3405 = vpop.f32.mrb[0].mxu0
      %v3406 = vpop.f32.mrb[0].mxu0
      %v3407 = vadd.f32 0.0, %v3406
      %v3408 = vpop.f32.mrb[0].mxu0
      %3409 = vmatprep.mubr.bf16.mxu0 0
      %3410 = vmatmul.mubr.bf16.gmra.mrb[0].mxu0 %v3240
      %v3411 = vpop.f32.mrb[0].mxu0
      %v3412 = vadd.f32 0.0, %v3411
      %v3413 = vpop.f32.mrb[0].mxu0
      %v3414 = vpop.f32.mrb[0].mxu0
      %v3415 = vadd.f32 0.0, %v3414
      %v3416 = vpop.f32.mrb[0].mxu0
      %3417 = vmatprep.mubr.bf16.mxu0 0
      %3418 = vmatmul.mubr.bf16.gmra.mrb[0].mxu0 %v3241
      %v3419 = vpop.f32.mrb[0].mxu0
      %v3420 = vadd.f32 0.0, %v3419
      %v3421 = vpop.f32.mrb[0].mxu0
      %v3422 = vpop.f32.mrb[0].mxu0
      %v3423 = vadd.f32 0.0, %v3422
      %v3424 = vpop.f32.mrb[0].mxu0
      %3425 = vmatprep.mubr.bf16.mxu0 0
      %3426 = vmatmul.mubr.bf16.gmra.mrb[0].mxu0 %v3242
      %v3427 = vpop.f32.mrb[0].mxu0
      %v3428 = vadd.f32 0.0, %v3427
      %v3429 = vpop.f32.mrb[0].mxu0
      %v3430 = vpop.f32.mrb[0].mxu0
      %v3431 = vadd.f32 0.0, %v3430
      %v3432 = vpop.f32.mrb[0].mxu0
      %3433 = vmatprep.mubr.bf16.mxu0 0
      %3434 = vmatmul.mubr.bf16.gmra.mrb[0].mxu0 %v3243
      %v3435 = vpop.f32.mrb[0].mxu0
      %v3436 = vadd.f32 0.0, %v3435
      %v3437 = vpop.f32.mrb[0].mxu0
      %v3438 = vpop.f32.mrb[0].mxu0
      %v3439 = vadd.f32 0.0, %v3438
      %v3440 = vpop.f32.mrb[0].mxu0
      %3441 = vmatprep.mubr.bf16.mxu0 0
      %3442 = vmatmul.mubr.bf16.gmra.mrb[0].mxu0 %v3244
      %v3443 = vpop.f32.mrb[0].mxu0
      %v3444 = vadd.f32 0.0, %v3443
      %v3445 = vpop.f32.mrb[0].mxu0
      %v3446 = vpop.f32.mrb[0].mxu0
      %v3447 = vadd.f32 0.0, %v3446
      %v3448 = vpop.f32.mrb[0].mxu0
      %3449 = vmatprep.mubr.bf16.mxu0 0
      %3450 = vmatmul.mubr.bf16.gmra.mrb[0].mxu0 %v3245
      %v3451 = vpop.f32.mrb[0].mxu0
      %v3452 = vadd.f32 0.0, %v3451
      %v3453 = vpop.f32.mrb[0].mxu0
      %v3454 = vpop.f32.mrb[0].mxu0
      %v3455 = vadd.f32 0.0, %v3454
      %v3456 = vpop.f32.mrb[0].mxu0
      %3457 = vmatprep.mubr.bf16.mxu0 0
      %3458 = vmatmul.mubr.bf16.gmra.mrb[0].mxu0 %v3246
      %v3459 = vpop.f32.mrb[0].mxu0
      %v3460 = vadd.f32 0.0, %v3459
      %v3461 = vpop.f32.mrb[0].mxu0
      %v3462 = vpop.f32.mrb[0].mxu0
      %v3463 = vadd.f32 0.0, %v3462
      %v3464 = vpop.f32.mrb[0].mxu0
      %3465 = vmatprep.mubr.bf16.mxu0 0
      %3466 = vmatmul.mubr.bf16.gmra.mrb[0].mxu0 %v3247
      %v3467 = vpop.f32.mrb[0].mxu0
      %v3468 = vadd.f32 0.0, %v3467
      %v3469 = vpop.f32.mrb[0].mxu0
      %v3470 = vpop.f32.mrb[0].mxu0
      %v3471 = vadd.f32 0.0, %v3470
      %v3472 = vpop.f32.mrb[0].mxu0
      %3473 = vdwg.mxu0
      %v3474 = vadd.f32 %v3136, %v3348
      %v3475 = vadd.f32 %v3137, %v3351
      %v3476 = vadd.f32 %v3138, %v3356
      %v3477 = vadd.f32 %v3139, %v3359
      %v3478 = vadd.f32 %v3140, %v3364
      %v3479 = vadd.f32 %v3141, %v3367
      %v3480 = vadd.f32 %v3142, %v3372
      %v3481 = vadd.f32 %v3143, %v3375
      %v3482 = vadd.f32 %v3144, %v3380
      %v3483 = vadd.f32 %v3145, %v3383
      %v3484 = vadd.f32 %v3146, %v3388
      %v3485 = vadd.f32 %v3147, %v3391
      %v3486 = vadd.f32 %v3148, %v3396
      %v3487 = vadd.f32 %v3149, %v3399
      %v3488 = vadd.f32 %v3150, %v3404
      %v3489 = vadd.f32 %v3151, %v3407
      %v3490 = vadd.f32 %v3152, %v3412
      %v3491 = vadd.f32 %v3153, %v3415
      %v3492 = vadd.f32 %v3154, %v3420
      %v3493 = vadd.f32 %v3155, %v3423
      %v3494 = vadd.f32 %v3156, %v3428
      %v3495 = vadd.f32 %v3157, %v3431
      %v3496 = vadd.f32 %v3158, %v3436
      %v3497 = vadd.f32 %v3159, %v3439
      %v3498 = vadd.f32 %v3160, %v3444
      %v3499 = vadd.f32 %v3161, %v3447
      %v3500 = vadd.f32 %v3162, %v3452
      %v3501 = vadd.f32 %v3163, %v3455
      %v3502 = vadd.f32 %v3164, %v3460
      %v3503 = vadd.f32 %v3165, %v3463
      %v3504 = vadd.f32 %v3166, %v3468
      %v3505 = vadd.f32 %v3167, %v3471
      %v3506 = vld [vmem:[#allocation2 + $0x27] sm:$0xff]
      %v3507 = vld [vmem:[#allocation2 + $0x2f] sm:$0xff]
      %v3508 = vld [vmem:[#allocation2 + $0x37] sm:$0xff]
      %v3509 = vld [vmem:[#allocation2 + $0x3f] sm:$0xff]
      %v3510 = vld [vmem:[#allocation2 + $0x47] sm:$0xff]
      %v3511 = vld [vmem:[#allocation2 + $0x4f] sm:$0xff]
      %v3512 = vld [vmem:[#allocation2 + $0x57] sm:$0xff]
      %v3513 = vld [vmem:[#allocation2 + $0x5f] sm:$0xff]
      %v3514 = vld [vmem:[#allocation2 + $0x67] sm:$0xff]
      %v3515 = vld [vmem:[#allocation2 + $0x6f] sm:$0xff]
      %v3516 = vld [vmem:[#allocation2 + $0x77] sm:$0xff]
      %v3517 = vld [vmem:[#allocation2 + $0x7f] sm:$0xff]
      %v3518 = vld [vmem:[#allocation2 + $0x87] sm:$0xff]
      %v3519 = vld [vmem:[#allocation2 + $0x8f] sm:$0xff]
      %v3520 = vld [vmem:[#allocation2 + $0x97] sm:$0xff]
      %v3521 = vld [vmem:[#allocation2 + $0x9f] sm:$0xff]
      %v3522 = vld [vmem:[#allocation2 + $0xa7] sm:$0xff]
      %v3523 = vld [vmem:[#allocation2 + $0xaf] sm:$0xff]
      %v3524 = vld [vmem:[#allocation2 + $0xb7] sm:$0xff]
      %v3525 = vld [vmem:[#allocation2 + $0xbf] sm:$0xff]
      %v3526 = vld [vmem:[#allocation2 + $0xc7] sm:$0xff]
      %v3527 = vld [vmem:[#allocation2 + $0xcf] sm:$0xff]
      %v3528 = vld [vmem:[#allocation2 + $0xd7] sm:$0xff]
      %v3529 = vld [vmem:[#allocation2 + $0xdf] sm:$0xff]
      %v3530 = vld [vmem:[#allocation2 + $0xe7] sm:$0xff]
      %v3531 = vld [vmem:[#allocation2 + $0xef] sm:$0xff]
      %v3532 = vld [vmem:[#allocation2 + $0xf7] sm:$0xff]
      %v3533 = vld [vmem:[#allocation2 + $0xff] sm:$0xff]
      %v3534 = vld [vmem:[#allocation2 + $0x107] sm:$0xff]
      %v3535 = vld [vmem:[#allocation2 + $0x10f] sm:$0xff]
      %v3536 = vld [vmem:[#allocation2 + $0x117] sm:$0xff]
      %v3537 = vld [vmem:[#allocation2 + $0x11f] sm:$0xff]
      %v3538 = vmul.f32 %v3506, %v1322
      %v3539 = vmul.f32 %v3507, %v1327
      %v3540 = vmul.f32 %v3508, %v1332
      %v3541 = vmul.f32 %v3509, %v1337
      %v3542 = vmul.f32 %v3510, %v1342
      %v3543 = vmul.f32 %v3511, %v1347
      %v3544 = vmul.f32 %v3512, %v1352
      %v3545 = vmul.f32 %v3513, %v1357
      %v3546 = vmul.f32 %v3514, %v1362
      %v3547 = vmul.f32 %v3515, %v1367
      %v3548 = vmul.f32 %v3516, %v1372
      %v3549 = vmul.f32 %v3517, %v1377
      %v3550 = vmul.f32 %v3518, %v1382
      %v3551 = vmul.f32 %v3519, %v1387
      %v3552 = vmul.f32 %v3520, %v1392
      %v3553 = vmul.f32 %v3521, %v1397
      %v3554 = vmul.f32 %v3522, %v1402
      %v3555 = vmul.f32 %v3523, %v1407
      %v3556 = vmul.f32 %v3524, %v1412
      %v3557 = vmul.f32 %v3525, %v1417
      %v3558 = vmul.f32 %v3526, %v1422
      %v3559 = vmul.f32 %v3527, %v1427
      %v3560 = vmul.f32 %v3528, %v1432
      %v3561 = vmul.f32 %v3529, %v1437
      %v3562 = vmul.f32 %v3530, %v1442
      %v3563 = vmul.f32 %v3531, %v1447
      %v3564 = vmul.f32 %v3532, %v1452
      %v3565 = vmul.f32 %v3533, %v1457
      %v3566 = vmul.f32 %v3534, %v1462
      %v3567 = vmul.f32 %v3535, %v1467
      %v3568 = vmul.f32 %v3536, %v1472
      %v3569 = vmul.f32 %v3537, %v1477
      %v3570 = vpack.c.bf16 %v3539, %v3538
      %v3571 = vpack.c.bf16 %v3541, %v3540
      %v3572 = vpack.c.bf16 %v3543, %v3542
      %v3573 = vpack.c.bf16 %v3545, %v3544
      %v3574 = vpack.c.bf16 %v3547, %v3546
      %v3575 = vpack.c.bf16 %v3549, %v3548
      %v3576 = vpack.c.bf16 %v3551, %v3550
      %v3577 = vpack.c.bf16 %v3553, %v3552
      %v3578 = vpack.c.bf16 %v3555, %v3554
      %v3579 = vpack.c.bf16 %v3557, %v3556
      %v3580 = vpack.c.bf16 %v3559, %v3558
      %v3581 = vpack.c.bf16 %v3561, %v3560
      %v3582 = vpack.c.bf16 %v3563, %v3562
      %v3583 = vpack.c.bf16 %v3565, %v3564
      %v3584 = vpack.c.bf16 %v3567, %v3566
      %v3585 = vpack.c.bf16 %v3569, %v3568
      %s3586 = scalar_lea.vmem %s6, 384
      %v3587 = vld [vmem:[%s3586] sm:$0xf]
      %v3588 = vld [vmem:[%s3586 + $0x4] sm:$0xf]
      %v3589 = vld [vmem:[%s3586 + $0x8] sm:$0xf]
      %v3590 = vld [vmem:[%s3586 + $0xc] sm:$0xf]
      %v3591 = vld [vmem:[%s3586 + $0x10] sm:$0xf]
      %v3592 = vld [vmem:[%s3586 + $0x14] sm:$0xf]
      %v3593 = vld [vmem:[%s3586 + $0x18] sm:$0xf]
      %v3594 = vld [vmem:[%s3586 + $0x1c] sm:$0xf]
      %v3595 = vld [vmem:[%s3586 + $0x20] sm:$0xf]
      %v3596 = vld [vmem:[%s3586 + $0x24] sm:$0xf]
      %v3597 = vld [vmem:[%s3586 + $0x28] sm:$0xf]
      %v3598 = vld [vmem:[%s3586 + $0x2c] sm:$0xf]
      %v3599 = vld [vmem:[%s3586 + $0x30] sm:$0xf]
      %v3600 = vld [vmem:[%s3586 + $0x34] sm:$0xf]
      %v3601 = vld [vmem:[%s3586 + $0x38] sm:$0xf]
      %v3602 = vld [vmem:[%s3586 + $0x3c] sm:$0xf]
      %v3619 = vunpack.c.l.b16 %v3587
      %v3620 = vunpack.c.l.b16 %v3588
      %v3621 = vunpack.c.l.b16 %v3589
      %v3622 = vunpack.c.l.b16 %v3590
      %v3623 = vunpack.c.l.b16 %v3591
      %v3624 = vunpack.c.l.b16 %v3592
      %v3625 = vunpack.c.l.b16 %v3593
      %v3626 = vunpack.c.l.b16 %v3594
      %v3627 = vunpack.c.l.b16 %v3595
      %v3628 = vunpack.c.l.b16 %v3596
      %v3629 = vunpack.c.l.b16 %v3597
      %v3630 = vunpack.c.l.b16 %v3598
      %v3631 = vunpack.c.l.b16 %v3599
      %v3632 = vunpack.c.l.b16 %v3600
      %v3633 = vunpack.c.l.b16 %v3601
      %v3634 = vunpack.c.l.b16 %v3602
      %v3635 = vpack.c.b16 %v3620, %v3619
      %v3636 = vpack.c.b16 %v3622, %v3621
      %v3637 = vpack.c.b16 %v3624, %v3623
      %v3638 = vpack.c.b16 %v3626, %v3625
      %v3639 = vpack.c.b16 %v3628, %v3627
      %v3640 = vpack.c.b16 %v3630, %v3629
      %v3641 = vpack.c.b16 %v3632, %v3631
      %v3642 = vpack.c.b16 %v3634, %v3633
      %3651 = vmatprep.subr.bf16.mxu0 0
      %3652 = vmatpush1.bf16.msra.mxu0 %v3635
      %3653 = vmatprep.subr.bf16.mxu0 0
      %3654 = vmatpush1.bf16.msra.mxu0 %v3636
      %3655 = vmatprep.subr.bf16.mxu0 0
      %3656 = vmatpush1.bf16.msra.mxu0 %v3637
      %3657 = vmatprep.subr.bf16.mxu0 0
      %3658 = vmatpush1.bf16.msra.mxu0 %v3638
      %3659 = vmatprep.subr.bf16.mxu0 0
      %3660 = vmatpush1.bf16.msra.mxu0 %v3639
      %3661 = vmatprep.subr.bf16.mxu0 0
      %3662 = vmatpush1.bf16.msra.mxu0 %v3640
      %3663 = vmatprep.subr.bf16.mxu0 0
      %3664 = vmatpush1.bf16.msra.mxu0 %v3641
      %3665 = vmatprep.subr.bf16.mxu0 0
      %3666 = vmatpush1.bf16.msra.mxu0 %v3642
      %3667 = vmatprep.subr.bf16.mxu0 0
      %3668 = vmatpush1.bf16.msra.mxu0 0
      %3669 = vmatprep.subr.bf16.mxu0 0
      %3670 = vmatpush1.bf16.msra.mxu0 0
      %3671 = vmatprep.subr.bf16.mxu0 0
      %3672 = vmatpush1.bf16.msra.mxu0 0
      %3673 = vmatprep.subr.bf16.mxu0 0
      %3674 = vmatpush1.bf16.msra.mxu0 0
      %3675 = vmatprep.subr.bf16.mxu0 0
      %3676 = vmatpush1.bf16.msra.mxu0 0
      %3677 = vmatprep.subr.bf16.mxu0 0
      %3678 = vmatpush1.bf16.msra.mxu0 0
      %3679 = vmatprep.subr.bf16.mxu0 0
      %3680 = vmatpush1.bf16.msra.mxu0 0
      %3681 = vmatprep.subr.bf16.mxu0 0
      %3682 = vmatpush1.bf16.msra.mxu0 0
      %3683 = vmatprep.mubr.bf16.mxu0 0
      %3684 = vmatmul.mubr.bf16.gmra.mrb[0].mxu0 %v3570
      %v3685 = vpop.f32.mrb[0].mxu0
      %v3686 = vadd.f32 0.0, %v3685
      %v3687 = vpop.f32.mrb[0].mxu0
      %v3688 = vpop.f32.mrb[0].mxu0
      %v3689 = vadd.f32 0.0, %v3688
      %v3690 = vpop.f32.mrb[0].mxu0
      %3691 = vmatprep.mubr.bf16.mxu0 0
      %3692 = vmatmul.mubr.bf16.gmra.mrb[0].mxu0 %v3571
      %v3693 = vpop.f32.mrb[0].mxu0
      %v3694 = vadd.f32 0.0, %v3693
      %v3695 = vpop.f32.mrb[0].mxu0
      %v3696 = vpop.f32.mrb[0].mxu0
      %v3697 = vadd.f32 0.0, %v3696
      %v3698 = vpop.f32.mrb[0].mxu0
      %3699 = vmatprep.mubr.bf16.mxu0 0
      %3700 = vmatmul.mubr.bf16.gmra.mrb[0].mxu0 %v3572
      %v3701 = vpop.f32.mrb[0].mxu0
      %v3702 = vadd.f32 0.0, %v3701
      %v3703 = vpop.f32.mrb[0].mxu0
      %v3704 = vpop.f32.mrb[0].mxu0
      %v3705 = vadd.f32 0.0, %v3704
      %v3706 = vpop.f32.mrb[0].mxu0
      %3707 = vmatprep.mubr.bf16.mxu0 0
      %3708 = vmatmul.mubr.bf16.gmra.mrb[0].mxu0 %v3573
      %v3709 = vpop.f32.mrb[0].mxu0
      %v3710 = vadd.f32 0.0, %v3709
      %v3711 = vpop.f32.mrb[0].mxu0
      %v3712 = vpop.f32.mrb[0].mxu0
      %v3713 = vadd.f32 0.0, %v3712
      %v3714 = vpop.f32.mrb[0].mxu0
      %3715 = vmatprep.mubr.bf16.mxu0 0
      %3716 = vmatmul.mubr.bf16.gmra.mrb[0].mxu0 %v3574
      %v3717 = vpop.f32.mrb[0].mxu0
      %v3718 = vadd.f32 0.0, %v3717
      %v3719 = vpop.f32.mrb[0].mxu0
      %v3720 = vpop.f32.mrb[0].mxu0
      %v3721 = vadd.f32 0.0, %v3720
      %v3722 = vpop.f32.mrb[0].mxu0
      %3723 = vmatprep.mubr.bf16.mxu0 0
      %3724 = vmatmul.mubr.bf16.gmra.mrb[0].mxu0 %v3575
      %v3725 = vpop.f32.mrb[0].mxu0
      %v3726 = vadd.f32 0.0, %v3725
      %v3727 = vpop.f32.mrb[0].mxu0
      %v3728 = vpop.f32.mrb[0].mxu0
      %v3729 = vadd.f32 0.0, %v3728
      %v3730 = vpop.f32.mrb[0].mxu0
      %3731 = vmatprep.mubr.bf16.mxu0 0
      %3732 = vmatmul.mubr.bf16.gmra.mrb[0].mxu0 %v3576
      %v3733 = vpop.f32.mrb[0].mxu0
      %v3734 = vadd.f32 0.0, %v3733
      %v3735 = vpop.f32.mrb[0].mxu0
      %v3736 = vpop.f32.mrb[0].mxu0
      %v3737 = vadd.f32 0.0, %v3736
      %v3738 = vpop.f32.mrb[0].mxu0
      %3739 = vmatprep.mubr.bf16.mxu0 0
      %3740 = vmatmul.mubr.bf16.gmra.mrb[0].mxu0 %v3577
      %v3741 = vpop.f32.mrb[0].mxu0
      %v3742 = vadd.f32 0.0, %v3741
      %v3743 = vpop.f32.mrb[0].mxu0
      %v3744 = vpop.f32.mrb[0].mxu0
      %v3745 = vadd.f32 0.0, %v3744
      %v3746 = vpop.f32.mrb[0].mxu0
      %3747 = vmatprep.mubr.bf16.mxu0 0
      %3748 = vmatmul.mubr.bf16.gmra.mrb[0].mxu0 %v3578
      %v3749 = vpop.f32.mrb[0].mxu0
      %v3750 = vadd.f32 0.0, %v3749
      %v3751 = vpop.f32.mrb[0].mxu0
      %v3752 = vpop.f32.mrb[0].mxu0
      %v3753 = vadd.f32 0.0, %v3752
      %v3754 = vpop.f32.mrb[0].mxu0
      %3755 = vmatprep.mubr.bf16.mxu0 0
      %3756 = vmatmul.mubr.bf16.gmra.mrb[0].mxu0 %v3579
      %v3757 = vpop.f32.mrb[0].mxu0
      %v3758 = vadd.f32 0.0, %v3757
      %v3759 = vpop.f32.mrb[0].mxu0
      %v3760 = vpop.f32.mrb[0].mxu0
      %v3761 = vadd.f32 0.0, %v3760
      %v3762 = vpop.f32.mrb[0].mxu0
      %3763 = vmatprep.mubr.bf16.mxu0 0
      %3764 = vmatmul.mubr.bf16.gmra.mrb[0].mxu0 %v3580
      %v3765 = vpop.f32.mrb[0].mxu0
      %v3766 = vadd.f32 0.0, %v3765
      %v3767 = vpop.f32.mrb[0].mxu0
      %v3768 = vpop.f32.mrb[0].mxu0
      %v3769 = vadd.f32 0.0, %v3768
      %v3770 = vpop.f32.mrb[0].mxu0
      %3771 = vmatprep.mubr.bf16.mxu0 0
      %3772 = vmatmul.mubr.bf16.gmra.mrb[0].mxu0 %v3581
      %v3773 = vpop.f32.mrb[0].mxu0
      %v3774 = vadd.f32 0.0, %v3773
      %v3775 = vpop.f32.mrb[0].mxu0
      %v3776 = vpop.f32.mrb[0].mxu0
      %v3777 = vadd.f32 0.0, %v3776
      %v3778 = vpop.f32.mrb[0].mxu0
      %3779 = vmatprep.mubr.bf16.mxu0 0
      %3780 = vmatmul.mubr.bf16.gmra.mrb[0].mxu0 %v3582
      %v3781 = vpop.f32.mrb[0].mxu0
      %v3782 = vadd.f32 0.0, %v3781
      %v3783 = vpop.f32.mrb[0].mxu0
      %v3784 = vpop.f32.mrb[0].mxu0
      %v3785 = vadd.f32 0.0, %v3784
      %v3786 = vpop.f32.mrb[0].mxu0
      %3787 = vmatprep.mubr.bf16.mxu0 0
      %3788 = vmatmul.mubr.bf16.gmra.mrb[0].mxu0 %v3583
      %v3789 = vpop.f32.mrb[0].mxu0
      %v3790 = vadd.f32 0.0, %v3789
      %v3791 = vpop.f32.mrb[0].mxu0
      %v3792 = vpop.f32.mrb[0].mxu0
      %v3793 = vadd.f32 0.0, %v3792
      %v3794 = vpop.f32.mrb[0].mxu0
      %3795 = vmatprep.mubr.bf16.mxu0 0
      %3796 = vmatmul.mubr.bf16.gmra.mrb[0].mxu0 %v3584
      %v3797 = vpop.f32.mrb[0].mxu0
      %v3798 = vadd.f32 0.0, %v3797
      %v3799 = vpop.f32.mrb[0].mxu0
      %v3800 = vpop.f32.mrb[0].mxu0
      %v3801 = vadd.f32 0.0, %v3800
      %v3802 = vpop.f32.mrb[0].mxu0
      %3803 = vmatprep.mubr.bf16.mxu0 0
      %3804 = vmatmul.mubr.bf16.gmra.mrb[0].mxu0 %v3585
      %v3805 = vpop.f32.mrb[0].mxu0
      %v3806 = vadd.f32 0.0, %v3805
      %v3807 = vpop.f32.mrb[0].mxu0
      %v3808 = vpop.f32.mrb[0].mxu0
      %v3809 = vadd.f32 0.0, %v3808
      %v3810 = vpop.f32.mrb[0].mxu0
      %3811 = vdwg.mxu0
      %v3812 = vadd.f32 %v3474, %v3686
      %v3813 = vadd.f32 %v3475, %v3689
      %v3814 = vadd.f32 %v3476, %v3694
      %v3815 = vadd.f32 %v3477, %v3697
      %v3816 = vadd.f32 %v3478, %v3702
      %v3817 = vadd.f32 %v3479, %v3705
      %v3818 = vadd.f32 %v3480, %v3710
      %v3819 = vadd.f32 %v3481, %v3713
      %v3820 = vadd.f32 %v3482, %v3718
      %v3821 = vadd.f32 %v3483, %v3721
      %v3822 = vadd.f32 %v3484, %v3726
      %v3823 = vadd.f32 %v3485, %v3729
      %v3824 = vadd.f32 %v3486, %v3734
      %v3825 = vadd.f32 %v3487, %v3737
      %v3826 = vadd.f32 %v3488, %v3742
      %v3827 = vadd.f32 %v3489, %v3745
      %v3828 = vadd.f32 %v3490, %v3750
      %v3829 = vadd.f32 %v3491, %v3753
      %v3830 = vadd.f32 %v3492, %v3758
      %v3831 = vadd.f32 %v3493, %v3761
      %v3832 = vadd.f32 %v3494, %v3766
      %v3833 = vadd.f32 %v3495, %v3769
      %v3834 = vadd.f32 %v3496, %v3774
      %v3835 = vadd.f32 %v3497, %v3777
      %v3836 = vadd.f32 %v3498, %v3782
      %v3837 = vadd.f32 %v3499, %v3785
      %v3838 = vadd.f32 %v3500, %v3790
      %v3839 = vadd.f32 %v3501, %v3793
      %v3840 = vadd.f32 %v3502, %v3798
      %v3841 = vadd.f32 %v3503, %v3801
      %v3842 = vadd.f32 %v3504, %v3806
      %v3843 = vadd.f32 %v3505, %v3809
      %v3844 = vld [vmem:[#allocation2 + $0x28] sm:$0xff]
      %v3845 = vld [vmem:[#allocation2 + $0x30] sm:$0xff]
      %v3846 = vld [vmem:[#allocation2 + $0x38] sm:$0xff]
      %v3847 = vld [vmem:[#allocation2 + $0x40] sm:$0xff]
      %v3848 = vld [vmem:[#allocation2 + $0x48] sm:$0xff]
      %v3849 = vld [vmem:[#allocation2 + $0x50] sm:$0xff]
      %v3850 = vld [vmem:[#allocation2 + $0x58] sm:$0xff]
      %v3851 = vld [vmem:[#allocation2 + $0x60] sm:$0xff]
      %v3852 = vld [vmem:[#allocation2 + $0x68] sm:$0xff]
      %v3853 = vld [vmem:[#allocation2 + $0x70] sm:$0xff]
      %v3854 = vld [vmem:[#allocation2 + $0x78] sm:$0xff]
      %v3855 = vld [vmem:[#allocation2 + $0x80] sm:$0xff]
      %v3856 = vld [vmem:[#allocation2 + $0x88] sm:$0xff]
      %v3857 = vld [vmem:[#allocation2 + $0x90] sm:$0xff]
      %v3858 = vld [vmem:[#allocation2 + $0x98] sm:$0xff]
      %v3859 = vld [vmem:[#allocation2 + $0xa0] sm:$0xff]
      %v3860 = vld [vmem:[#allocation2 + $0xa8] sm:$0xff]
      %v3861 = vld [vmem:[#allocation2 + $0xb0] sm:$0xff]
      %v3862 = vld [vmem:[#allocation2 + $0xb8] sm:$0xff]
      %v3863 = vld [vmem:[#allocation2 + $0xc0] sm:$0xff]
      %v3864 = vld [vmem:[#allocation2 + $0xc8] sm:$0xff]
      %v3865 = vld [vmem:[#allocation2 + $0xd0] sm:$0xff]
      %v3866 = vld [vmem:[#allocation2 + $0xd8] sm:$0xff]
      %v3867 = vld [vmem:[#allocation2 + $0xe0] sm:$0xff]
      %v3868 = vld [vmem:[#allocation2 + $0xe8] sm:$0xff]
      %v3869 = vld [vmem:[#allocation2 + $0xf0] sm:$0xff]
      %v3870 = vld [vmem:[#allocation2 + $0xf8] sm:$0xff]
      %v3871 = vld [vmem:[#allocation2 + $0x100] sm:$0xff]
      %v3872 = vld [vmem:[#allocation2 + $0x108] sm:$0xff]
      %v3873 = vld [vmem:[#allocation2 + $0x110] sm:$0xff]
      %v3874 = vld [vmem:[#allocation2 + $0x118] sm:$0xff]
      %v3875 = vld [vmem:[#allocation2 + $0x120] sm:$0xff]
      %v3876 = vpack.c.bf16 %v3845, %v3844
      %v3877 = vpack.c.bf16 %v3847, %v3846
      %v3878 = vpack.c.bf16 %v3849, %v3848
      %v3879 = vpack.c.bf16 %v3851, %v3850
      %v3880 = vpack.c.bf16 %v3853, %v3852
      %v3881 = vpack.c.bf16 %v3855, %v3854
      %v3882 = vpack.c.bf16 %v3857, %v3856
      %v3883 = vpack.c.bf16 %v3859, %v3858
      %v3884 = vpack.c.bf16 %v3861, %v3860
      %v3885 = vpack.c.bf16 %v3863, %v3862
      %v3886 = vpack.c.bf16 %v3865, %v3864
      %v3887 = vpack.c.bf16 %v3867, %v3866
      %v3888 = vpack.c.bf16 %v3869, %v3868
      %v3889 = vpack.c.bf16 %v3871, %v3870
      %v3890 = vpack.c.bf16 %v3873, %v3872
      %v3891 = vpack.c.bf16 %v3875, %v3874
      %s3892 = scalar_lea.vmem %s6, 448
      %v3893 = vld [vmem:[%s3892] sm:$0xf]
      %v3894 = vld [vmem:[%s3892 + $0x4] sm:$0xf]
      %v3895 = vld [vmem:[%s3892 + $0x8] sm:$0xf]
      %v3896 = vld [vmem:[%s3892 + $0xc] sm:$0xf]
      %v3897 = vld [vmem:[%s3892 + $0x10] sm:$0xf]
      %v3898 = vld [vmem:[%s3892 + $0x14] sm:$0xf]
      %v3899 = vld [vmem:[%s3892 + $0x18] sm:$0xf]
      %v3900 = vld [vmem:[%s3892 + $0x1c] sm:$0xf]
      %v3901 = vld [vmem:[%s3892 + $0x20] sm:$0xf]
      %v3902 = vld [vmem:[%s3892 + $0x24] sm:$0xf]
      %v3903 = vld [vmem:[%s3892 + $0x28] sm:$0xf]
      %v3904 = vld [vmem:[%s3892 + $0x2c] sm:$0xf]
      %v3905 = vld [vmem:[%s3892 + $0x30] sm:$0xf]
      %v3906 = vld [vmem:[%s3892 + $0x34] sm:$0xf]
      %v3907 = vld [vmem:[%s3892 + $0x38] sm:$0xf]
      %v3908 = vld [vmem:[%s3892 + $0x3c] sm:$0xf]
      %v3925 = vunpack.c.l.b16 %v3893
      %v3926 = vunpack.c.l.b16 %v3894
      %v3927 = vunpack.c.l.b16 %v3895
      %v3928 = vunpack.c.l.b16 %v3896
      %v3929 = vunpack.c.l.b16 %v3897
      %v3930 = vunpack.c.l.b16 %v3898
      %v3931 = vunpack.c.l.b16 %v3899
      %v3932 = vunpack.c.l.b16 %v3900
      %v3933 = vunpack.c.l.b16 %v3901
      %v3934 = vunpack.c.l.b16 %v3902
      %v3935 = vunpack.c.l.b16 %v3903
      %v3936 = vunpack.c.l.b16 %v3904
      %v3937 = vunpack.c.l.b16 %v3905
      %v3938 = vunpack.c.l.b16 %v3906
      %v3939 = vunpack.c.l.b16 %v3907
      %v3940 = vunpack.c.l.b16 %v3908
      %v3941 = vpack.c.b16 %v3926, %v3925
      %v3942 = vpack.c.b16 %v3928, %v3927
      %v3943 = vpack.c.b16 %v3930, %v3929
      %v3944 = vpack.c.b16 %v3932, %v3931
      %v3945 = vpack.c.b16 %v3934, %v3933
      %v3946 = vpack.c.b16 %v3936, %v3935
      %v3947 = vpack.c.b16 %v3938, %v3937
      %v3948 = vpack.c.b16 %v3940, %v3939
      %3957 = vmatprep.subr.bf16.mxu0 0
      %3958 = vmatpush1.bf16.msra.mxu0 %v3941
      %3959 = vmatprep.subr.bf16.mxu0 0
      %3960 = vmatpush1.bf16.msra.mxu0 %v3942
      %3961 = vmatprep.subr.bf16.mxu0 0
      %3962 = vmatpush1.bf16.msra.mxu0 %v3943
      %3963 = vmatprep.subr.bf16.mxu0 0
      %3964 = vmatpush1.bf16.msra.mxu0 %v3944
      %3965 = vmatprep.subr.bf16.mxu0 0
      %3966 = vmatpush1.bf16.msra.mxu0 %v3945
      %3967 = vmatprep.subr.bf16.mxu0 0
      %3968 = vmatpush1.bf16.msra.mxu0 %v3946
      %3969 = vmatprep.subr.bf16.mxu0 0
      %3970 = vmatpush1.bf16.msra.mxu0 %v3947
      %3971 = vmatprep.subr.bf16.mxu0 0
      %3972 = vmatpush1.bf16.msra.mxu0 %v3948
      %3973 = vmatprep.subr.bf16.mxu0 0
      %3974 = vmatpush1.bf16.msra.mxu0 0
      %3975 = vmatprep.subr.bf16.mxu0 0
      %3976 = vmatpush1.bf16.msra.mxu0 0
      %3977 = vmatprep.subr.bf16.mxu0 0
      %3978 = vmatpush1.bf16.msra.mxu0 0
      %3979 = vmatprep.subr.bf16.mxu0 0
      %3980 = vmatpush1.bf16.msra.mxu0 0
      %3981 = vmatprep.subr.bf16.mxu0 0
      %3982 = vmatpush1.bf16.msra.mxu0 0
      %3983 = vmatprep.subr.bf16.mxu0 0
      %3984 = vmatpush1.bf16.msra.mxu0 0
      %3985 = vmatprep.subr.bf16.mxu0 0
      %3986 = vmatpush1.bf16.msra.mxu0 0
      %3987 = vmatprep.subr.bf16.mxu0 0
      %3988 = vmatpush1.bf16.msra.mxu0 0
      %3989 = vmatprep.mubr.bf16.mxu0 0
      %3990 = vmatmul.mubr.bf16.gmra.mrb[0].mxu0 %v3876
      %v3991 = vpop.f32.mrb[0].mxu0
      %v3992 = vadd.f32 0.0, %v3991
      %v3993 = vpop.f32.mrb[0].mxu0
      %v3994 = vpop.f32.mrb[0].mxu0
      %v3995 = vadd.f32 0.0, %v3994
      %v3996 = vpop.f32.mrb[0].mxu0
      %3997 = vmatprep.mubr.bf16.mxu0 0
      %3998 = vmatmul.mubr.bf16.gmra.mrb[0].mxu0 %v3877
      %v3999 = vpop.f32.mrb[0].mxu0
      %v4000 = vadd.f32 0.0, %v3999
      %v4001 = vpop.f32.mrb[0].mxu0
      %v4002 = vpop.f32.mrb[0].mxu0
      %v4003 = vadd.f32 0.0, %v4002
      %v4004 = vpop.f32.mrb[0].mxu0
      %4005 = vmatprep.mubr.bf16.mxu0 0
      %4006 = vmatmul.mubr.bf16.gmra.mrb[0].mxu0 %v3878
      %v4007 = vpop.f32.mrb[0].mxu0
      %v4008 = vadd.f32 0.0, %v4007
      %v4009 = vpop.f32.mrb[0].mxu0
      %v4010 = vpop.f32.mrb[0].mxu0
      %v4011 = vadd.f32 0.0, %v4010
      %v4012 = vpop.f32.mrb[0].mxu0
      %4013 = vmatprep.mubr.bf16.mxu0 0
      %4014 = vmatmul.mubr.bf16.gmra.mrb[0].mxu0 %v3879
      %v4015 = vpop.f32.mrb[0].mxu0
      %v4016 = vadd.f32 0.0, %v4015
      %v4017 = vpop.f32.mrb[0].mxu0
      %v4018 = vpop.f32.mrb[0].mxu0
      %v4019 = vadd.f32 0.0, %v4018
      %v4020 = vpop.f32.mrb[0].mxu0
      %4021 = vmatprep.mubr.bf16.mxu0 0
      %4022 = vmatmul.mubr.bf16.gmra.mrb[0].mxu0 %v3880
      %v4023 = vpop.f32.mrb[0].mxu0
      %v4024 = vadd.f32 0.0, %v4023
      %v4025 = vpop.f32.mrb[0].mxu0
      %v4026 = vpop.f32.mrb[0].mxu0
      %v4027 = vadd.f32 0.0, %v4026
      %v4028 = vpop.f32.mrb[0].mxu0
      %4029 = vmatprep.mubr.bf16.mxu0 0
      %4030 = vmatmul.mubr.bf16.gmra.mrb[0].mxu0 %v3881
      %v4031 = vpop.f32.mrb[0].mxu0
      %v4032 = vadd.f32 0.0, %v4031
      %v4033 = vpop.f32.mrb[0].mxu0
      %v4034 = vpop.f32.mrb[0].mxu0
      %v4035 = vadd.f32 0.0, %v4034
      %v4036 = vpop.f32.mrb[0].mxu0
      %4037 = vmatprep.mubr.bf16.mxu0 0
      %4038 = vmatmul.mubr.bf16.gmra.mrb[0].mxu0 %v3882
      %v4039 = vpop.f32.mrb[0].mxu0
      %v4040 = vadd.f32 0.0, %v4039
      %v4041 = vpop.f32.mrb[0].mxu0
      %v4042 = vpop.f32.mrb[0].mxu0
      %v4043 = vadd.f32 0.0, %v4042
      %v4044 = vpop.f32.mrb[0].mxu0
      %4045 = vmatprep.mubr.bf16.mxu0 0
      %4046 = vmatmul.mubr.bf16.gmra.mrb[0].mxu0 %v3883
      %v4047 = vpop.f32.mrb[0].mxu0
      %v4048 = vadd.f32 0.0, %v4047
      %v4049 = vpop.f32.mrb[0].mxu0
      %v4050 = vpop.f32.mrb[0].mxu0
      %v4051 = vadd.f32 0.0, %v4050
      %v4052 = vpop.f32.mrb[0].mxu0
      %4053 = vmatprep.mubr.bf16.mxu0 0
      %4054 = vmatmul.mubr.bf16.gmra.mrb[0].mxu0 %v3884
      %v4055 = vpop.f32.mrb[0].mxu0
      %v4056 = vadd.f32 0.0, %v4055
      %v4057 = vpop.f32.mrb[0].mxu0
      %v4058 = vpop.f32.mrb[0].mxu0
      %v4059 = vadd.f32 0.0, %v4058
      %v4060 = vpop.f32.mrb[0].mxu0
      %4061 = vmatprep.mubr.bf16.mxu0 0
      %4062 = vmatmul.mubr.bf16.gmra.mrb[0].mxu0 %v3885
      %v4063 = vpop.f32.mrb[0].mxu0
      %v4064 = vadd.f32 0.0, %v4063
      %v4065 = vpop.f32.mrb[0].mxu0
      %v4066 = vpop.f32.mrb[0].mxu0
      %v4067 = vadd.f32 0.0, %v4066
      %v4068 = vpop.f32.mrb[0].mxu0
      %4069 = vmatprep.mubr.bf16.mxu0 0
      %4070 = vmatmul.mubr.bf16.gmra.mrb[0].mxu0 %v3886
      %v4071 = vpop.f32.mrb[0].mxu0
      %v4072 = vadd.f32 0.0, %v4071
      %v4073 = vpop.f32.mrb[0].mxu0
      %v4074 = vpop.f32.mrb[0].mxu0
      %v4075 = vadd.f32 0.0, %v4074
      %v4076 = vpop.f32.mrb[0].mxu0
      %4077 = vmatprep.mubr.bf16.mxu0 0
      %4078 = vmatmul.mubr.bf16.gmra.mrb[0].mxu0 %v3887
      %v4079 = vpop.f32.mrb[0].mxu0
      %v4080 = vadd.f32 0.0, %v4079
      %v4081 = vpop.f32.mrb[0].mxu0
      %v4082 = vpop.f32.mrb[0].mxu0
      %v4083 = vadd.f32 0.0, %v4082
      %v4084 = vpop.f32.mrb[0].mxu0
      %4085 = vmatprep.mubr.bf16.mxu0 0
      %4086 = vmatmul.mubr.bf16.gmra.mrb[0].mxu0 %v3888
      %v4087 = vpop.f32.mrb[0].mxu0
      %v4088 = vadd.f32 0.0, %v4087
      %v4089 = vpop.f32.mrb[0].mxu0
      %v4090 = vpop.f32.mrb[0].mxu0
      %v4091 = vadd.f32 0.0, %v4090
      %v4092 = vpop.f32.mrb[0].mxu0
      %4093 = vmatprep.mubr.bf16.mxu0 0
      %4094 = vmatmul.mubr.bf16.gmra.mrb[0].mxu0 %v3889
      %v4095 = vpop.f32.mrb[0].mxu0
      %v4096 = vadd.f32 0.0, %v4095
      %v4097 = vpop.f32.mrb[0].mxu0
      %v4098 = vpop.f32.mrb[0].mxu0
      %v4099 = vadd.f32 0.0, %v4098
      %v4100 = vpop.f32.mrb[0].mxu0
      %4101 = vmatprep.mubr.bf16.mxu0 0
      %4102 = vmatmul.mubr.bf16.gmra.mrb[0].mxu0 %v3890
      %v4103 = vpop.f32.mrb[0].mxu0
      %v4104 = vadd.f32 0.0, %v4103
      %v4105 = vpop.f32.mrb[0].mxu0
      %v4106 = vpop.f32.mrb[0].mxu0
      %v4107 = vadd.f32 0.0, %v4106
      %v4108 = vpop.f32.mrb[0].mxu0
      %4109 = vmatprep.mubr.bf16.mxu0 0
      %4110 = vmatmul.mubr.bf16.gmra.mrb[0].mxu0 %v3891
      %v4111 = vpop.f32.mrb[0].mxu0
      %v4112 = vadd.f32 0.0, %v4111
      %v4113 = vpop.f32.mrb[0].mxu0
      %v4114 = vpop.f32.mrb[0].mxu0
      %v4115 = vadd.f32 0.0, %v4114
      %v4116 = vpop.f32.mrb[0].mxu0
      %4117 = vdwg.mxu0
      %v4118 = vadd.f32 %v3812, %v3992
      %v4119 = vadd.f32 %v3813, %v3995
      %v4120 = vadd.f32 %v3814, %v4000
      %v4121 = vadd.f32 %v3815, %v4003
      %v4122 = vadd.f32 %v3816, %v4008
      %v4123 = vadd.f32 %v3817, %v4011
      %v4124 = vadd.f32 %v3818, %v4016
      %v4125 = vadd.f32 %v3819, %v4019
      %v4126 = vadd.f32 %v3820, %v4024
      %v4127 = vadd.f32 %v3821, %v4027
      %v4128 = vadd.f32 %v3822, %v4032
      %v4129 = vadd.f32 %v3823, %v4035
      %v4130 = vadd.f32 %v3824, %v4040
      %v4131 = vadd.f32 %v3825, %v4043
      %v4132 = vadd.f32 %v3826, %v4048
      %v4133 = vadd.f32 %v3827, %v4051
      %v4134 = vadd.f32 %v3828, %v4056
      %v4135 = vadd.f32 %v3829, %v4059
      %v4136 = vadd.f32 %v3830, %v4064
      %v4137 = vadd.f32 %v3831, %v4067
      %v4138 = vadd.f32 %v3832, %v4072
      %v4139 = vadd.f32 %v3833, %v4075
      %v4140 = vadd.f32 %v3834, %v4080
      %v4141 = vadd.f32 %v3835, %v4083
      %v4142 = vadd.f32 %v3836, %v4088
      %v4143 = vadd.f32 %v3837, %v4091
      %v4144 = vadd.f32 %v3838, %v4096
      %v4145 = vadd.f32 %v3839, %v4099
      %v4146 = vadd.f32 %v3840, %v4104
      %v4147 = vadd.f32 %v3841, %v4107
      %v4148 = vadd.f32 %v3842, %v4112
      %v4149 = vadd.f32 %v3843, %v4115
      %v4150 = vld [vmem:[#allocation2 + $0x29] sm:$0xff]
      %v4151 = vld [vmem:[#allocation2 + $0x31] sm:$0xff]
      %v4152 = vld [vmem:[#allocation2 + $0x39] sm:$0xff]
      %v4153 = vld [vmem:[#allocation2 + $0x41] sm:$0xff]
      %v4154 = vld [vmem:[#allocation2 + $0x49] sm:$0xff]
      %v4155 = vld [vmem:[#allocation2 + $0x51] sm:$0xff]
      %v4156 = vld [vmem:[#allocation2 + $0x59] sm:$0xff]
      %v4157 = vld [vmem:[#allocation2 + $0x61] sm:$0xff]
      %v4158 = vld [vmem:[#allocation2 + $0x69] sm:$0xff]
      %v4159 = vld [vmem:[#allocation2 + $0x71] sm:$0xff]
      %v4160 = vld [vmem:[#allocation2 + $0x79] sm:$0xff]
      %v4161 = vld [vmem:[#allocation2 + $0x81] sm:$0xff]
      %v4162 = vld [vmem:[#allocation2 + $0x89] sm:$0xff]
      %v4163 = vld [vmem:[#allocation2 + $0x91] sm:$0xff]
      %v4164 = vld [vmem:[#allocation2 + $0x99] sm:$0xff]
      %v4165 = vld [vmem:[#allocation2 + $0xa1] sm:$0xff]
      %v4166 = vld [vmem:[#allocation2 + $0xa9] sm:$0xff]
      %v4167 = vld [vmem:[#allocation2 + $0xb1] sm:$0xff]
      %v4168 = vld [vmem:[#allocation2 + $0xb9] sm:$0xff]
      %v4169 = vld [vmem:[#allocation2 + $0xc1] sm:$0xff]
      %v4170 = vld [vmem:[#allocation2 + $0xc9] sm:$0xff]
      %v4171 = vld [vmem:[#allocation2 + $0xd1] sm:$0xff]
      %v4172 = vld [vmem:[#allocation2 + $0xd9] sm:$0xff]
      %v4173 = vld [vmem:[#allocation2 + $0xe1] sm:$0xff]
      %v4174 = vld [vmem:[#allocation2 + $0xe9] sm:$0xff]
      %v4175 = vld [vmem:[#allocation2 + $0xf1] sm:$0xff]
      %v4176 = vld [vmem:[#allocation2 + $0xf9] sm:$0xff]
      %v4177 = vld [vmem:[#allocation2 + $0x101] sm:$0xff]
      %v4178 = vld [vmem:[#allocation2 + $0x109] sm:$0xff]
      %v4179 = vld [vmem:[#allocation2 + $0x111] sm:$0xff]
      %v4180 = vld [vmem:[#allocation2 + $0x119] sm:$0xff]
      %v4181 = vld [vmem:[#allocation2 + $0x121] sm:$0xff]
      %v4182 = vmul.f32 %v4150, %v2061
      %v4183 = vmul.f32 %v4151, %v2066
      %v4184 = vmul.f32 %v4152, %v2071
      %v4185 = vmul.f32 %v4153, %v2076
      %v4186 = vmul.f32 %v4154, %v2081
      %v4187 = vmul.f32 %v4155, %v2086
      %v4188 = vmul.f32 %v4156, %v2091
      %v4189 = vmul.f32 %v4157, %v2096
      %v4190 = vmul.f32 %v4158, %v2101
      %v4191 = vmul.f32 %v4159, %v2106
      %v4192 = vmul.f32 %v4160, %v2111
      %v4193 = vmul.f32 %v4161, %v2116
      %v4194 = vmul.f32 %v4162, %v2121
      %v4195 = vmul.f32 %v4163, %v2126
      %v4196 = vmul.f32 %v4164, %v2131
      %v4197 = vmul.f32 %v4165, %v2136
      %v4198 = vmul.f32 %v4166, %v2141
      %v4199 = vmul.f32 %v4167, %v2146
      %v4200 = vmul.f32 %v4168, %v2151
      %v4201 = vmul.f32 %v4169, %v2156
      %v4202 = vmul.f32 %v4170, %v2161
      %v4203 = vmul.f32 %v4171, %v2166
      %v4204 = vmul.f32 %v4172, %v2171
      %v4205 = vmul.f32 %v4173, %v2176
      %v4206 = vmul.f32 %v4174, %v2181
      %v4207 = vmul.f32 %v4175, %v2186
      %v4208 = vmul.f32 %v4176, %v2191
      %v4209 = vmul.f32 %v4177, %v2196
      %v4210 = vmul.f32 %v4178, %v2201
      %v4211 = vmul.f32 %v4179, %v2206
      %v4212 = vmul.f32 %v4180, %v2211
      %v4213 = vmul.f32 %v4181, %v2216
      %v4214 = vpack.c.bf16 %v4183, %v4182
      %v4215 = vpack.c.bf16 %v4185, %v4184
      %v4216 = vpack.c.bf16 %v4187, %v4186
      %v4217 = vpack.c.bf16 %v4189, %v4188
      %v4218 = vpack.c.bf16 %v4191, %v4190
      %v4219 = vpack.c.bf16 %v4193, %v4192
      %v4220 = vpack.c.bf16 %v4195, %v4194
      %v4221 = vpack.c.bf16 %v4197, %v4196
      %v4222 = vpack.c.bf16 %v4199, %v4198
      %v4223 = vpack.c.bf16 %v4201, %v4200
      %v4224 = vpack.c.bf16 %v4203, %v4202
      %v4225 = vpack.c.bf16 %v4205, %v4204
      %v4226 = vpack.c.bf16 %v4207, %v4206
      %v4227 = vpack.c.bf16 %v4209, %v4208
      %v4228 = vpack.c.bf16 %v4211, %v4210
      %v4229 = vpack.c.bf16 %v4213, %v4212
      %s4230 = scalar_lea.vmem %s6, 512
      %v4231 = vld [vmem:[%s4230] sm:$0xf]
      %v4232 = vld [vmem:[%s4230 + $0x4] sm:$0xf]
      %v4233 = vld [vmem:[%s4230 + $0x8] sm:$0xf]
      %v4234 = vld [vmem:[%s4230 + $0xc] sm:$0xf]
      %v4235 = vld [vmem:[%s4230 + $0x10] sm:$0xf]
      %v4236 = vld [vmem:[%s4230 + $0x14] sm:$0xf]
      %v4237 = vld [vmem:[%s4230 + $0x18] sm:$0xf]
      %v4238 = vld [vmem:[%s4230 + $0x1c] sm:$0xf]
      %v4239 = vld [vmem:[%s4230 + $0x20] sm:$0xf]
      %v4240 = vld [vmem:[%s4230 + $0x24] sm:$0xf]
      %v4241 = vld [vmem:[%s4230 + $0x28] sm:$0xf]
      %v4242 = vld [vmem:[%s4230 + $0x2c] sm:$0xf]
      %v4243 = vld [vmem:[%s4230 + $0x30] sm:$0xf]
      %v4244 = vld [vmem:[%s4230 + $0x34] sm:$0xf]
      %v4245 = vld [vmem:[%s4230 + $0x38] sm:$0xf]
      %v4246 = vld [vmem:[%s4230 + $0x3c] sm:$0xf]
      %v4263 = vunpack.c.l.b16 %v4231
      %v4264 = vunpack.c.l.b16 %v4232
      %v4265 = vunpack.c.l.b16 %v4233
      %v4266 = vunpack.c.l.b16 %v4234
      %v4267 = vunpack.c.l.b16 %v4235
      %v4268 = vunpack.c.l.b16 %v4236
      %v4269 = vunpack.c.l.b16 %v4237
      %v4270 = vunpack.c.l.b16 %v4238
      %v4271 = vunpack.c.l.b16 %v4239
      %v4272 = vunpack.c.l.b16 %v4240
      %v4273 = vunpack.c.l.b16 %v4241
      %v4274 = vunpack.c.l.b16 %v4242
      %v4275 = vunpack.c.l.b16 %v4243
      %v4276 = vunpack.c.l.b16 %v4244
      %v4277 = vunpack.c.l.b16 %v4245
      %v4278 = vunpack.c.l.b16 %v4246
      %v4279 = vpack.c.b16 %v4264, %v4263
      %v4280 = vpack.c.b16 %v4266, %v4265
      %v4281 = vpack.c.b16 %v4268, %v4267
      %v4282 = vpack.c.b16 %v4270, %v4269
      %v4283 = vpack.c.b16 %v4272, %v4271
      %v4284 = vpack.c.b16 %v4274, %v4273
      %v4285 = vpack.c.b16 %v4276, %v4275
      %v4286 = vpack.c.b16 %v4278, %v4277
      %4295 = vmatprep.subr.bf16.mxu0 0
      %4296 = vmatpush1.bf16.msra.mxu0 %v4279
      %4297 = vmatprep.subr.bf16.mxu0 0
      %4298 = vmatpush1.bf16.msra.mxu0 %v4280
      %4299 = vmatprep.subr.bf16.mxu0 0
      %4300 = vmatpush1.bf16.msra.mxu0 %v4281
      %4301 = vmatprep.subr.bf16.mxu0 0
      %4302 = vmatpush1.bf16.msra.mxu0 %v4282
      %4303 = vmatprep.subr.bf16.mxu0 0
      %4304 = vmatpush1.bf16.msra.mxu0 %v4283
      %4305 = vmatprep.subr.bf16.mxu0 0
      %4306 = vmatpush1.bf16.msra.mxu0 %v4284
      %4307 = vmatprep.subr.bf16.mxu0 0
      %4308 = vmatpush1.bf16.msra.mxu0 %v4285
      %4309 = vmatprep.subr.bf16.mxu0 0
      %4310 = vmatpush1.bf16.msra.mxu0 %v4286
      %4311 = vmatprep.subr.bf16.mxu0 0
      %4312 = vmatpush1.bf16.msra.mxu0 0
      %4313 = vmatprep.subr.bf16.mxu0 0
      %4314 = vmatpush1.bf16.msra.mxu0 0
      %4315 = vmatprep.subr.bf16.mxu0 0
      %4316 = vmatpush1.bf16.msra.mxu0 0
      %4317 = vmatprep.subr.bf16.mxu0 0
      %4318 = vmatpush1.bf16.msra.mxu0 0
      %4319 = vmatprep.subr.bf16.mxu0 0
      %4320 = vmatpush1.bf16.msra.mxu0 0
      %4321 = vmatprep.subr.bf16.mxu0 0
      %4322 = vmatpush1.bf16.msra.mxu0 0
      %4323 = vmatprep.subr.bf16.mxu0 0
      %4324 = vmatpush1.bf16.msra.mxu0 0
      %4325 = vmatprep.subr.bf16.mxu0 0
      %4326 = vmatpush1.bf16.msra.mxu0 0
      %4327 = vmatprep.mubr.bf16.mxu0 0
      %4328 = vmatmul.mubr.bf16.gmra.mrb[0].mxu0 %v4214
      %v4329 = vpop.f32.mrb[0].mxu0
      %v4330 = vadd.f32 0.0, %v4329
      %v4331 = vpop.f32.mrb[0].mxu0
      %v4332 = vpop.f32.mrb[0].mxu0
      %v4333 = vadd.f32 0.0, %v4332
      %v4334 = vpop.f32.mrb[0].mxu0
      %4335 = vmatprep.mubr.bf16.mxu0 0
      %4336 = vmatmul.mubr.bf16.gmra.mrb[0].mxu0 %v4215
      %v4337 = vpop.f32.mrb[0].mxu0
      %v4338 = vadd.f32 0.0, %v4337
      %v4339 = vpop.f32.mrb[0].mxu0
      %v4340 = vpop.f32.mrb[0].mxu0
      %v4341 = vadd.f32 0.0, %v4340
      %v4342 = vpop.f32.mrb[0].mxu0
      %4343 = vmatprep.mubr.bf16.mxu0 0
      %4344 = vmatmul.mubr.bf16.gmra.mrb[0].mxu0 %v4216
      %v4345 = vpop.f32.mrb[0].mxu0
      %v4346 = vadd.f32 0.0, %v4345
      %v4347 = vpop.f32.mrb[0].mxu0
      %v4348 = vpop.f32.mrb[0].mxu0
      %v4349 = vadd.f32 0.0, %v4348
      %v4350 = vpop.f32.mrb[0].mxu0
      %4351 = vmatprep.mubr.bf16.mxu0 0
      %4352 = vmatmul.mubr.bf16.gmra.mrb[0].mxu0 %v4217
      %v4353 = vpop.f32.mrb[0].mxu0
      %v4354 = vadd.f32 0.0, %v4353
      %v4355 = vpop.f32.mrb[0].mxu0
      %v4356 = vpop.f32.mrb[0].mxu0
      %v4357 = vadd.f32 0.0, %v4356
      %v4358 = vpop.f32.mrb[0].mxu0
      %4359 = vmatprep.mubr.bf16.mxu0 0
      %4360 = vmatmul.mubr.bf16.gmra.mrb[0].mxu0 %v4218
      %v4361 = vpop.f32.mrb[0].mxu0
      %v4362 = vadd.f32 0.0, %v4361
      %v4363 = vpop.f32.mrb[0].mxu0
      %v4364 = vpop.f32.mrb[0].mxu0
      %v4365 = vadd.f32 0.0, %v4364
      %v4366 = vpop.f32.mrb[0].mxu0
      %4367 = vmatprep.mubr.bf16.mxu0 0
      %4368 = vmatmul.mubr.bf16.gmra.mrb[0].mxu0 %v4219
      %v4369 = vpop.f32.mrb[0].mxu0
      %v4370 = vadd.f32 0.0, %v4369
      %v4371 = vpop.f32.mrb[0].mxu0
      %v4372 = vpop.f32.mrb[0].mxu0
      %v4373 = vadd.f32 0.0, %v4372
      %v4374 = vpop.f32.mrb[0].mxu0
      %4375 = vmatprep.mubr.bf16.mxu0 0
      %4376 = vmatmul.mubr.bf16.gmra.mrb[0].mxu0 %v4220
      %v4377 = vpop.f32.mrb[0].mxu0
      %v4378 = vadd.f32 0.0, %v4377
      %v4379 = vpop.f32.mrb[0].mxu0
      %v4380 = vpop.f32.mrb[0].mxu0
      %v4381 = vadd.f32 0.0, %v4380
      %v4382 = vpop.f32.mrb[0].mxu0
      %4383 = vmatprep.mubr.bf16.mxu0 0
      %4384 = vmatmul.mubr.bf16.gmra.mrb[0].mxu0 %v4221
      %v4385 = vpop.f32.mrb[0].mxu0
      %v4386 = vadd.f32 0.0, %v4385
      %v4387 = vpop.f32.mrb[0].mxu0
      %v4388 = vpop.f32.mrb[0].mxu0
      %v4389 = vadd.f32 0.0, %v4388
      %v4390 = vpop.f32.mrb[0].mxu0
      %4391 = vmatprep.mubr.bf16.mxu0 0
      %4392 = vmatmul.mubr.bf16.gmra.mrb[0].mxu0 %v4222
      %v4393 = vpop.f32.mrb[0].mxu0
      %v4394 = vadd.f32 0.0, %v4393
      %v4395 = vpop.f32.mrb[0].mxu0
      %v4396 = vpop.f32.mrb[0].mxu0
      %v4397 = vadd.f32 0.0, %v4396
      %v4398 = vpop.f32.mrb[0].mxu0
      %4399 = vmatprep.mubr.bf16.mxu0 0
      %4400 = vmatmul.mubr.bf16.gmra.mrb[0].mxu0 %v4223
      %v4401 = vpop.f32.mrb[0].mxu0
      %v4402 = vadd.f32 0.0, %v4401
      %v4403 = vpop.f32.mrb[0].mxu0
      %v4404 = vpop.f32.mrb[0].mxu0
      %v4405 = vadd.f32 0.0, %v4404
      %v4406 = vpop.f32.mrb[0].mxu0
      %4407 = vmatprep.mubr.bf16.mxu0 0
      %4408 = vmatmul.mubr.bf16.gmra.mrb[0].mxu0 %v4224
      %v4409 = vpop.f32.mrb[0].mxu0
      %v4410 = vadd.f32 0.0, %v4409
      %v4411 = vpop.f32.mrb[0].mxu0
      %v4412 = vpop.f32.mrb[0].mxu0
      %v4413 = vadd.f32 0.0, %v4412
      %v4414 = vpop.f32.mrb[0].mxu0
      %4415 = vmatprep.mubr.bf16.mxu0 0
      %4416 = vmatmul.mubr.bf16.gmra.mrb[0].mxu0 %v4225
      %v4417 = vpop.f32.mrb[0].mxu0
      %v4418 = vadd.f32 0.0, %v4417
      %v4419 = vpop.f32.mrb[0].mxu0
      %v4420 = vpop.f32.mrb[0].mxu0
      %v4421 = vadd.f32 0.0, %v4420
      %v4422 = vpop.f32.mrb[0].mxu0
      %4423 = vmatprep.mubr.bf16.mxu0 0
      %4424 = vmatmul.mubr.bf16.gmra.mrb[0].mxu0 %v4226
      %v4425 = vpop.f32.mrb[0].mxu0
      %v4426 = vadd.f32 0.0, %v4425
      %v4427 = vpop.f32.mrb[0].mxu0
      %v4428 = vpop.f32.mrb[0].mxu0
      %v4429 = vadd.f32 0.0, %v4428
      %v4430 = vpop.f32.mrb[0].mxu0
      %4431 = vmatprep.mubr.bf16.mxu0 0
      %4432 = vmatmul.mubr.bf16.gmra.mrb[0].mxu0 %v4227
      %v4433 = vpop.f32.mrb[0].mxu0
      %v4434 = vadd.f32 0.0, %v4433
      %v4435 = vpop.f32.mrb[0].mxu0
      %v4436 = vpop.f32.mrb[0].mxu0
      %v4437 = vadd.f32 0.0, %v4436
      %v4438 = vpop.f32.mrb[0].mxu0
      %4439 = vmatprep.mubr.bf16.mxu0 0
      %4440 = vmatmul.mubr.bf16.gmra.mrb[0].mxu0 %v4228
      %v4441 = vpop.f32.mrb[0].mxu0
      %v4442 = vadd.f32 0.0, %v4441
      %v4443 = vpop.f32.mrb[0].mxu0
      %v4444 = vpop.f32.mrb[0].mxu0
      %v4445 = vadd.f32 0.0, %v4444
      %v4446 = vpop.f32.mrb[0].mxu0
      %4447 = vmatprep.mubr.bf16.mxu0 0
      %4448 = vmatmul.mubr.bf16.gmra.mrb[0].mxu0 %v4229
      %v4449 = vpop.f32.mrb[0].mxu0
      %v4450 = vadd.f32 0.0, %v4449
      %v4451 = vpop.f32.mrb[0].mxu0
      %v4452 = vpop.f32.mrb[0].mxu0
      %v4453 = vadd.f32 0.0, %v4452
      %v4454 = vpop.f32.mrb[0].mxu0
      %4455 = vdwg.mxu0
      %v4456 = vadd.f32 %v4118, %v4330
      %v4457 = vadd.f32 %v4119, %v4333
      %v4458 = vadd.f32 %v4120, %v4338
      %v4459 = vadd.f32 %v4121, %v4341
      %v4460 = vadd.f32 %v4122, %v4346
      %v4461 = vadd.f32 %v4123, %v4349
      %v4462 = vadd.f32 %v4124, %v4354
      %v4463 = vadd.f32 %v4125, %v4357
      %v4464 = vadd.f32 %v4126, %v4362
      %v4465 = vadd.f32 %v4127, %v4365
      %v4466 = vadd.f32 %v4128, %v4370
      %v4467 = vadd.f32 %v4129, %v4373
      %v4468 = vadd.f32 %v4130, %v4378
      %v4469 = vadd.f32 %v4131, %v4381
      %v4470 = vadd.f32 %v4132, %v4386
      %v4471 = vadd.f32 %v4133, %v4389
      %v4472 = vadd.f32 %v4134, %v4394
      %v4473 = vadd.f32 %v4135, %v4397
      %v4474 = vadd.f32 %v4136, %v4402
      %v4475 = vadd.f32 %v4137, %v4405
      %v4476 = vadd.f32 %v4138, %v4410
      %v4477 = vadd.f32 %v4139, %v4413
      %v4478 = vadd.f32 %v4140, %v4418
      %v4479 = vadd.f32 %v4141, %v4421
      %v4480 = vadd.f32 %v4142, %v4426
      %v4481 = vadd.f32 %v4143, %v4429
      %v4482 = vadd.f32 %v4144, %v4434
      %v4483 = vadd.f32 %v4145, %v4437
      %v4484 = vadd.f32 %v4146, %v4442
      %v4485 = vadd.f32 %v4147, %v4445
      %v4486 = vadd.f32 %v4148, %v4450
      %v4487 = vadd.f32 %v4149, %v4453
      %v4488 = vld [vmem:[%s7] sm:$0x1]
      %v4490 = vlaneseq
      %v4491 = vshrl.u32 %v4490, 7
      %v4492 = vsub.s32 0, %v4491
      %v4493 = vrot.slane %v4488, %v4492
      %v4495 = vadd.f32 %v4456, %v4493
      %v4496 = vadd.f32 %v4457, %v4493
      %v4497 = vadd.f32 %v4458, %v4493
      %v4498 = vadd.f32 %v4459, %v4493
      %v4499 = vadd.f32 %v4460, %v4493
      %v4500 = vadd.f32 %v4461, %v4493
      %v4501 = vadd.f32 %v4462, %v4493
      %v4502 = vadd.f32 %v4463, %v4493
      %v4503 = vadd.f32 %v4464, %v4493
      %v4504 = vadd.f32 %v4465, %v4493
      %v4505 = vadd.f32 %v4466, %v4493
      %v4506 = vadd.f32 %v4467, %v4493
      %v4507 = vadd.f32 %v4468, %v4493
      %v4508 = vadd.f32 %v4469, %v4493
      %v4509 = vadd.f32 %v4470, %v4493
      %v4510 = vadd.f32 %v4471, %v4493
      %v4511 = vadd.f32 %v4472, %v4493
      %v4512 = vadd.f32 %v4473, %v4493
      %v4513 = vadd.f32 %v4474, %v4493
      %v4514 = vadd.f32 %v4475, %v4493
      %v4515 = vadd.f32 %v4476, %v4493
      %v4516 = vadd.f32 %v4477, %v4493
      %v4517 = vadd.f32 %v4478, %v4493
      %v4518 = vadd.f32 %v4479, %v4493
      %v4519 = vadd.f32 %v4480, %v4493
      %v4520 = vadd.f32 %v4481, %v4493
      %v4521 = vadd.f32 %v4482, %v4493
      %v4522 = vadd.f32 %v4483, %v4493
      %v4523 = vadd.f32 %v4484, %v4493
      %v4524 = vadd.f32 %v4485, %v4493
      %v4525 = vadd.f32 %v4486, %v4493
      %v4526 = vadd.f32 %v4487, %v4493
      %4527 = vst [vmem:[#allocation3] sm:$0xff] 0.0
      %4528 = vst [vmem:[#allocation3 + $0x8] sm:$0xff] 0.0
      %4529 = vst [vmem:[#allocation3 + $0x10] sm:$0xff] 0.0
      %4530 = vst [vmem:[#allocation3 + $0x18] sm:$0xff] 0.0
      %4531 = vst [vmem:[#allocation3 + $0x20] sm:$0xff] 0.0
      %4532 = vst [vmem:[#allocation3 + $0x128] sm:$0xff] 0.0
      %4533 = vst [vmem:[#allocation3 + $0x130] sm:$0xff] 0.0
      %4534 = vst [vmem:[#allocation3 + $0x138] sm:$0xff] 0.0
      %4535 = vst [vmem:[#allocation3 + $0x140] sm:$0xff] 0.0
      %4536 = vst [vmem:[#allocation3 + $0x148] sm:$0xff] 0.0
      %4537 = vst [vmem:[#allocation3 + $0x28] sm:$0xff] %v4495
      %4538 = vst [vmem:[#allocation3 + $0x30] sm:$0xff] %v4496
      %4539 = vst [vmem:[#allocation3 + $0x38] sm:$0xff] %v4497
      %4540 = vst [vmem:[#allocation3 + $0x40] sm:$0xff] %v4498
      %4541 = vst [vmem:[#allocation3 + $0x48] sm:$0xff] %v4499
      %4542 = vst [vmem:[#allocation3 + $0x50] sm:$0xff] %v4500
      %4543 = vst [vmem:[#allocation3 + $0x58] sm:$0xff] %v4501
      %4544 = vst [vmem:[#allocation3 + $0x60] sm:$0xff] %v4502
      %4545 = vst [vmem:[#allocation3 + $0x68] sm:$0xff] %v4503
      %4546 = vst [vmem:[#allocation3 + $0x70] sm:$0xff] %v4504
      %4547 = vst [vmem:[#allocation3 + $0x78] sm:$0xff] %v4505
      %4548 = vst [vmem:[#allocation3 + $0x80] sm:$0xff] %v4506
      %4549 = vst [vmem:[#allocation3 + $0x88] sm:$0xff] %v4507
      %4550 = vst [vmem:[#allocation3 + $0x90] sm:$0xff] %v4508
      %4551 = vst [vmem:[#allocation3 + $0x98] sm:$0xff] %v4509
      %4552 = vst [vmem:[#allocation3 + $0xa0] sm:$0xff] %v4510
      %4553 = vst [vmem:[#allocation3 + $0xa8] sm:$0xff] %v4511
      %4554 = vst [vmem:[#allocation3 + $0xb0] sm:$0xff] %v4512
      %4555 = vst [vmem:[#allocation3 + $0xb8] sm:$0xff] %v4513
      %4556 = vst [vmem:[#allocation3 + $0xc0] sm:$0xff] %v4514
      %4557 = vst [vmem:[#allocation3 + $0xc8] sm:$0xff] %v4515
      %4558 = vst [vmem:[#allocation3 + $0xd0] sm:$0xff] %v4516
      %4559 = vst [vmem:[#allocation3 + $0xd8] sm:$0xff] %v4517
      %4560 = vst [vmem:[#allocation3 + $0xe0] sm:$0xff] %v4518
      %4561 = vst [vmem:[#allocation3 + $0xe8] sm:$0xff] %v4519
      %4562 = vst [vmem:[#allocation3 + $0xf0] sm:$0xff] %v4520
      %4563 = vst [vmem:[#allocation3 + $0xf8] sm:$0xff] %v4521
      %4564 = vst [vmem:[#allocation3 + $0x100] sm:$0xff] %v4522
      %4565 = vst [vmem:[#allocation3 + $0x108] sm:$0xff] %v4523
      %4566 = vst [vmem:[#allocation3 + $0x110] sm:$0xff] %v4524
      %4567 = vst [vmem:[#allocation3 + $0x118] sm:$0xff] %v4525
      %4568 = vst [vmem:[#allocation3 + $0x120] sm:$0xff] %v4526
      %vm4569 = vcmp.ge.s32.totalorder %v555, 2
      %vm4570 = vcmp.ge.s32.totalorder %v556, 2
      %vm4571 = vcmp.ge.s32.totalorder %v557, 2
      %vm4572 = vcmp.ge.s32.totalorder %v558, 2
      %vm4573 = vcmp.ge.s32.totalorder %v559, 2
      %vm4574 = vcmp.ge.s32.totalorder %v560, 2
      %vm4575 = vcmp.ge.s32.totalorder %v561, 2
      %vm4576 = vcmp.ge.s32.totalorder %v562, 2
      %vm4577 = vcmp.ge.s32.totalorder %v563, 2
      %vm4578 = vcmp.ge.s32.totalorder %v564, 2
      %vm4579 = vcmp.ge.s32.totalorder %v565, 2
      %vm4580 = vcmp.ge.s32.totalorder %v566, 2
      %vm4581 = vcmp.ge.s32.totalorder %v567, 2
      %vm4582 = vcmp.ge.s32.totalorder %v568, 2
      %vm4583 = vcmp.ge.s32.totalorder %v569, 2
      %vm4584 = vcmp.ge.s32.totalorder %v570, 2
      %vm4585 = vcmp.ge.s32.totalorder %v571, 2
      %vm4586 = vcmp.ge.s32.totalorder %v572, 2
      %vm4587 = vcmp.ge.s32.totalorder %v573, 2
      %vm4588 = vcmp.ge.s32.totalorder %v574, 2
      %vm4589 = vcmp.ge.s32.totalorder %v575, 2
      %vm4590 = vcmp.ge.s32.totalorder %v576, 2
      %vm4591 = vcmp.ge.s32.totalorder %v577, 2
      %vm4592 = vcmp.ge.s32.totalorder %v578, 2
      %vm4593 = vcmp.ge.s32.totalorder %v579, 2
      %vm4594 = vcmp.ge.s32.totalorder %v580, 2
      %vm4595 = vcmp.ge.s32.totalorder %v581, 2
      %vm4596 = vcmp.ge.s32.totalorder %v582, 2
      %vm4597 = vcmp.ge.s32.totalorder %v583, 2
      %vm4598 = vcmp.ge.s32.totalorder %v584, 2
      %vm4599 = vcmp.ge.s32.totalorder %v585, 2
      %vm4600 = vcmp.ge.s32.totalorder %v586, 2
      %v4601 = vsel %vm4569, 1, 0
      %v4602 = vsel %vm4570, 1, 0
      %v4603 = vsel %vm4571, 1, 0
      %v4604 = vsel %vm4572, 1, 0
      %v4605 = vsel %vm4573, 1, 0
      %v4606 = vsel %vm4574, 1, 0
      %v4607 = vsel %vm4575, 1, 0
      %v4608 = vsel %vm4576, 1, 0
      %v4609 = vsel %vm4577, 1, 0
      %v4610 = vsel %vm4578, 1, 0
      %v4611 = vsel %vm4579, 1, 0
      %v4612 = vsel %vm4580, 1, 0
      %v4613 = vsel %vm4581, 1, 0
      %v4614 = vsel %vm4582, 1, 0
      %v4615 = vsel %vm4583, 1, 0
      %v4616 = vsel %vm4584, 1, 0
      %v4617 = vsel %vm4585, 1, 0
      %v4618 = vsel %vm4586, 1, 0
      %v4619 = vsel %vm4587, 1, 0
      %v4620 = vsel %vm4588, 1, 0
      %v4621 = vsel %vm4589, 1, 0
      %v4622 = vsel %vm4590, 1, 0
      %v4623 = vsel %vm4591, 1, 0
      %v4624 = vsel %vm4592, 1, 0
      %v4625 = vsel %vm4593, 1, 0
      %v4626 = vsel %vm4594, 1, 0
      %v4627 = vsel %vm4595, 1, 0
      %v4628 = vsel %vm4596, 1, 0
      %v4629 = vsel %vm4597, 1, 0
      %v4630 = vsel %vm4598, 1, 0
      %v4631 = vsel %vm4599, 1, 0
      %v4632 = vsel %vm4600, 1, 0
      %v4633 = vcvt.s32.f32 %v4601
      %v4634 = vcvt.s32.f32 %v4602
      %v4635 = vcvt.s32.f32 %v4603
      %v4636 = vcvt.s32.f32 %v4604
      %v4637 = vcvt.s32.f32 %v4605
      %v4638 = vcvt.s32.f32 %v4606
      %v4639 = vcvt.s32.f32 %v4607
      %v4640 = vcvt.s32.f32 %v4608
      %v4641 = vcvt.s32.f32 %v4609
      %v4642 = vcvt.s32.f32 %v4610
      %v4643 = vcvt.s32.f32 %v4611
      %v4644 = vcvt.s32.f32 %v4612
      %v4645 = vcvt.s32.f32 %v4613
      %v4646 = vcvt.s32.f32 %v4614
      %v4647 = vcvt.s32.f32 %v4615
      %v4648 = vcvt.s32.f32 %v4616
      %v4649 = vcvt.s32.f32 %v4617
      %v4650 = vcvt.s32.f32 %v4618
      %v4651 = vcvt.s32.f32 %v4619
      %v4652 = vcvt.s32.f32 %v4620
      %v4653 = vcvt.s32.f32 %v4621
      %v4654 = vcvt.s32.f32 %v4622
      %v4655 = vcvt.s32.f32 %v4623
      %v4656 = vcvt.s32.f32 %v4624
      %v4657 = vcvt.s32.f32 %v4625
      %v4658 = vcvt.s32.f32 %v4626
      %v4659 = vcvt.s32.f32 %v4627
      %v4660 = vcvt.s32.f32 %v4628
      %v4661 = vcvt.s32.f32 %v4629
      %v4662 = vcvt.s32.f32 %v4630
      %v4663 = vcvt.s32.f32 %v4631
      %v4664 = vcvt.s32.f32 %v4632
      %vm4665 = vcmp.le.s32.totalorder %v555, 13
      %vm4666 = vcmp.le.s32.totalorder %v556, 13
      %vm4667 = vcmp.le.s32.totalorder %v557, 13
      %vm4668 = vcmp.le.s32.totalorder %v558, 13
      %vm4669 = vcmp.le.s32.totalorder %v559, 13
      %vm4670 = vcmp.le.s32.totalorder %v560, 13
      %vm4671 = vcmp.le.s32.totalorder %v561, 13
      %vm4672 = vcmp.le.s32.totalorder %v562, 13
      %vm4673 = vcmp.le.s32.totalorder %v563, 13
      %vm4674 = vcmp.le.s32.totalorder %v564, 13
      %vm4675 = vcmp.le.s32.totalorder %v565, 13
      %vm4676 = vcmp.le.s32.totalorder %v566, 13
      %vm4677 = vcmp.le.s32.totalorder %v567, 13
      %vm4678 = vcmp.le.s32.totalorder %v568, 13
      %vm4679 = vcmp.le.s32.totalorder %v569, 13
      %vm4680 = vcmp.le.s32.totalorder %v570, 13
      %vm4681 = vcmp.le.s32.totalorder %v571, 13
      %vm4682 = vcmp.le.s32.totalorder %v572, 13
      %vm4683 = vcmp.le.s32.totalorder %v573, 13
      %vm4684 = vcmp.le.s32.totalorder %v574, 13
      %vm4685 = vcmp.le.s32.totalorder %v575, 13
      %vm4686 = vcmp.le.s32.totalorder %v576, 13
      %vm4687 = vcmp.le.s32.totalorder %v577, 13
      %vm4688 = vcmp.le.s32.totalorder %v578, 13
      %vm4689 = vcmp.le.s32.totalorder %v579, 13
      %vm4690 = vcmp.le.s32.totalorder %v580, 13
      %vm4691 = vcmp.le.s32.totalorder %v581, 13
      %vm4692 = vcmp.le.s32.totalorder %v582, 13
      %vm4693 = vcmp.le.s32.totalorder %v583, 13
      %vm4694 = vcmp.le.s32.totalorder %v584, 13
      %vm4695 = vcmp.le.s32.totalorder %v585, 13
      %vm4696 = vcmp.le.s32.totalorder %v586, 13
      %v4697 = vsel %vm4665, 1, 0
      %v4698 = vsel %vm4666, 1, 0
      %v4699 = vsel %vm4667, 1, 0
      %v4700 = vsel %vm4668, 1, 0
      %v4701 = vsel %vm4669, 1, 0
      %v4702 = vsel %vm4670, 1, 0
      %v4703 = vsel %vm4671, 1, 0
      %v4704 = vsel %vm4672, 1, 0
      %v4705 = vsel %vm4673, 1, 0
      %v4706 = vsel %vm4674, 1, 0
      %v4707 = vsel %vm4675, 1, 0
      %v4708 = vsel %vm4676, 1, 0
      %v4709 = vsel %vm4677, 1, 0
      %v4710 = vsel %vm4678, 1, 0
      %v4711 = vsel %vm4679, 1, 0
      %v4712 = vsel %vm4680, 1, 0
      %v4713 = vsel %vm4681, 1, 0
      %v4714 = vsel %vm4682, 1, 0
      %v4715 = vsel %vm4683, 1, 0
      %v4716 = vsel %vm4684, 1, 0
      %v4717 = vsel %vm4685, 1, 0
      %v4718 = vsel %vm4686, 1, 0
      %v4719 = vsel %vm4687, 1, 0
      %v4720 = vsel %vm4688, 1, 0
      %v4721 = vsel %vm4689, 1, 0
      %v4722 = vsel %vm4690, 1, 0
      %v4723 = vsel %vm4691, 1, 0
      %v4724 = vsel %vm4692, 1, 0
      %v4725 = vsel %vm4693, 1, 0
      %v4726 = vsel %vm4694, 1, 0
      %v4727 = vsel %vm4695, 1, 0
      %v4728 = vsel %vm4696, 1, 0
      %v4729 = vcvt.s32.f32 %v4697
      %v4730 = vcvt.s32.f32 %v4698
      %v4731 = vcvt.s32.f32 %v4699
      %v4732 = vcvt.s32.f32 %v4700
      %v4733 = vcvt.s32.f32 %v4701
      %v4734 = vcvt.s32.f32 %v4702
      %v4735 = vcvt.s32.f32 %v4703
      %v4736 = vcvt.s32.f32 %v4704
      %v4737 = vcvt.s32.f32 %v4705
      %v4738 = vcvt.s32.f32 %v4706
      %v4739 = vcvt.s32.f32 %v4707
      %v4740 = vcvt.s32.f32 %v4708
      %v4741 = vcvt.s32.f32 %v4709
      %v4742 = vcvt.s32.f32 %v4710
      %v4743 = vcvt.s32.f32 %v4711
      %v4744 = vcvt.s32.f32 %v4712
      %v4745 = vcvt.s32.f32 %v4713
      %v4746 = vcvt.s32.f32 %v4714
      %v4747 = vcvt.s32.f32 %v4715
      %v4748 = vcvt.s32.f32 %v4716
      %v4749 = vcvt.s32.f32 %v4717
      %v4750 = vcvt.s32.f32 %v4718
      %v4751 = vcvt.s32.f32 %v4719
      %v4752 = vcvt.s32.f32 %v4720
      %v4753 = vcvt.s32.f32 %v4721
      %v4754 = vcvt.s32.f32 %v4722
      %v4755 = vcvt.s32.f32 %v4723
      %v4756 = vcvt.s32.f32 %v4724
      %v4757 = vcvt.s32.f32 %v4725
      %v4758 = vcvt.s32.f32 %v4726
      %v4759 = vcvt.s32.f32 %v4727
      %v4760 = vcvt.s32.f32 %v4728
      %v4761 = vld [vmem:[#allocation3 + $0x6] sm:$0xff]
      %v4762 = vld [vmem:[#allocation3 + $0xe] sm:$0xff]
      %v4763 = vld [vmem:[#allocation3 + $0x16] sm:$0xff]
      %v4764 = vld [vmem:[#allocation3 + $0x1e] sm:$0xff]
      %v4765 = vld [vmem:[#allocation3 + $0x26] sm:$0xff]
      %v4766 = vld [vmem:[#allocation3 + $0x2e] sm:$0xff]
      %v4767 = vld [vmem:[#allocation3 + $0x36] sm:$0xff]
      %v4768 = vld [vmem:[#allocation3 + $0x3e] sm:$0xff]
      %v4769 = vld [vmem:[#allocation3 + $0x46] sm:$0xff]
      %v4770 = vld [vmem:[#allocation3 + $0x4e] sm:$0xff]
      %v4771 = vld [vmem:[#allocation3 + $0x56] sm:$0xff]
      %v4772 = vld [vmem:[#allocation3 + $0x5e] sm:$0xff]
      %v4773 = vld [vmem:[#allocation3 + $0x66] sm:$0xff]
      %v4774 = vld [vmem:[#allocation3 + $0x6e] sm:$0xff]
      %v4775 = vld [vmem:[#allocation3 + $0x76] sm:$0xff]
      %v4776 = vld [vmem:[#allocation3 + $0x7e] sm:$0xff]
      %v4777 = vld [vmem:[#allocation3 + $0x86] sm:$0xff]
      %v4778 = vld [vmem:[#allocation3 + $0x8e] sm:$0xff]
      %v4779 = vld [vmem:[#allocation3 + $0x96] sm:$0xff]
      %v4780 = vld [vmem:[#allocation3 + $0x9e] sm:$0xff]
      %v4781 = vld [vmem:[#allocation3 + $0xa6] sm:$0xff]
      %v4782 = vld [vmem:[#allocation3 + $0xae] sm:$0xff]
      %v4783 = vld [vmem:[#allocation3 + $0xb6] sm:$0xff]
      %v4784 = vld [vmem:[#allocation3 + $0xbe] sm:$0xff]
      %v4785 = vld [vmem:[#allocation3 + $0xc6] sm:$0xff]
      %v4786 = vld [vmem:[#allocation3 + $0xce] sm:$0xff]
      %v4787 = vld [vmem:[#allocation3 + $0xd6] sm:$0xff]
      %v4788 = vld [vmem:[#allocation3 + $0xde] sm:$0xff]
      %v4789 = vld [vmem:[#allocation3 + $0xe6] sm:$0xff]
      %v4790 = vld [vmem:[#allocation3 + $0xee] sm:$0xff]
      %v4791 = vld [vmem:[#allocation3 + $0xf6] sm:$0xff]
      %v4792 = vld [vmem:[#allocation3 + $0xfe] sm:$0xff]
      %4794 = vset.pattern.permute.xlu0 0
      %4795 = vperm.xlu0 %4794, %v4633
      %v4796 = vpop.permute.xlu0 %4795
      %4799 = vset.pattern.permute.xlu0 0
      %4800 = vperm.xlu0 %4799, %v4634
      %v4801 = vpop.permute.xlu0 %4800
      %4804 = vset.pattern.permute.xlu0 0
      %4805 = vperm.xlu0 %4804, %v4635
      %v4806 = vpop.permute.xlu0 %4805
      %4809 = vset.pattern.permute.xlu0 0
      %4810 = vperm.xlu0 %4809, %v4636
      %v4811 = vpop.permute.xlu0 %4810
      %4814 = vset.pattern.permute.xlu0 0
      %4815 = vperm.xlu0 %4814, %v4637
      %v4816 = vpop.permute.xlu0 %4815
      %4819 = vset.pattern.permute.xlu0 0
      %4820 = vperm.xlu0 %4819, %v4638
      %v4821 = vpop.permute.xlu0 %4820
      %4824 = vset.pattern.permute.xlu0 0
      %4825 = vperm.xlu0 %4824, %v4639
      %v4826 = vpop.permute.xlu0 %4825
      %4829 = vset.pattern.permute.xlu0 0
      %4830 = vperm.xlu0 %4829, %v4640
      %v4831 = vpop.permute.xlu0 %4830
      %4834 = vset.pattern.permute.xlu0 0
      %4835 = vperm.xlu0 %4834, %v4641
      %v4836 = vpop.permute.xlu0 %4835
      %4839 = vset.pattern.permute.xlu0 0
      %4840 = vperm.xlu0 %4839, %v4642
      %v4841 = vpop.permute.xlu0 %4840
      %4844 = vset.pattern.permute.xlu0 0
      %4845 = vperm.xlu0 %4844, %v4643
      %v4846 = vpop.permute.xlu0 %4845
      %4849 = vset.pattern.permute.xlu0 0
      %4850 = vperm.xlu0 %4849, %v4644
      %v4851 = vpop.permute.xlu0 %4850
      %4854 = vset.pattern.permute.xlu0 0
      %4855 = vperm.xlu0 %4854, %v4645
      %v4856 = vpop.permute.xlu0 %4855
      %4859 = vset.pattern.permute.xlu0 0
      %4860 = vperm.xlu0 %4859, %v4646
      %v4861 = vpop.permute.xlu0 %4860
      %4864 = vset.pattern.permute.xlu0 0
      %4865 = vperm.xlu0 %4864, %v4647
      %v4866 = vpop.permute.xlu0 %4865
      %4869 = vset.pattern.permute.xlu0 0
      %4870 = vperm.xlu0 %4869, %v4648
      %v4871 = vpop.permute.xlu0 %4870
      %4874 = vset.pattern.permute.xlu0 0
      %4875 = vperm.xlu0 %4874, %v4649
      %v4876 = vpop.permute.xlu0 %4875
      %4879 = vset.pattern.permute.xlu0 0
      %4880 = vperm.xlu0 %4879, %v4650
      %v4881 = vpop.permute.xlu0 %4880
      %4884 = vset.pattern.permute.xlu0 0
      %4885 = vperm.xlu0 %4884, %v4651
      %v4886 = vpop.permute.xlu0 %4885
      %4889 = vset.pattern.permute.xlu0 0
      %4890 = vperm.xlu0 %4889, %v4652
      %v4891 = vpop.permute.xlu0 %4890
      %4894 = vset.pattern.permute.xlu0 0
      %4895 = vperm.xlu0 %4894, %v4653
      %v4896 = vpop.permute.xlu0 %4895
      %4899 = vset.pattern.permute.xlu0 0
      %4900 = vperm.xlu0 %4899, %v4654
      %v4901 = vpop.permute.xlu0 %4900
      %4904 = vset.pattern.permute.xlu0 0
      %4905 = vperm.xlu0 %4904, %v4655
      %v4906 = vpop.permute.xlu0 %4905
      %4909 = vset.pattern.permute.xlu0 0
      %4910 = vperm.xlu0 %4909, %v4656
      %v4911 = vpop.permute.xlu0 %4910
      %4914 = vset.pattern.permute.xlu0 0
      %4915 = vperm.xlu0 %4914, %v4657
      %v4916 = vpop.permute.xlu0 %4915
      %4919 = vset.pattern.permute.xlu0 0
      %4920 = vperm.xlu0 %4919, %v4658
      %v4921 = vpop.permute.xlu0 %4920
      %4924 = vset.pattern.permute.xlu0 0
      %4925 = vperm.xlu0 %4924, %v4659
      %v4926 = vpop.permute.xlu0 %4925
      %4929 = vset.pattern.permute.xlu0 0
      %4930 = vperm.xlu0 %4929, %v4660
      %v4931 = vpop.permute.xlu0 %4930
      %4934 = vset.pattern.permute.xlu0 0
      %4935 = vperm.xlu0 %4934, %v4661
      %v4936 = vpop.permute.xlu0 %4935
      %4939 = vset.pattern.permute.xlu0 0
      %4940 = vperm.xlu0 %4939, %v4662
      %v4941 = vpop.permute.xlu0 %4940
      %4944 = vset.pattern.permute.xlu0 0
      %4945 = vperm.xlu0 %4944, %v4663
      %v4946 = vpop.permute.xlu0 %4945
      %4949 = vset.pattern.permute.xlu0 0
      %4950 = vperm.xlu0 %4949, %v4664
      %v4951 = vpop.permute.xlu0 %4950
      %v4953 = vmul.f32 %v4761, %v4796
      %v4954 = vmul.f32 %v4762, %v4801
      %v4955 = vmul.f32 %v4763, %v4806
      %v4956 = vmul.f32 %v4764, %v4811
      %v4957 = vmul.f32 %v4765, %v4816
      %v4958 = vmul.f32 %v4766, %v4821
      %v4959 = vmul.f32 %v4767, %v4826
      %v4960 = vmul.f32 %v4768, %v4831
      %v4961 = vmul.f32 %v4769, %v4836
      %v4962 = vmul.f32 %v4770, %v4841
      %v4963 = vmul.f32 %v4771, %v4846
      %v4964 = vmul.f32 %v4772, %v4851
      %v4965 = vmul.f32 %v4773, %v4856
      %v4966 = vmul.f32 %v4774, %v4861
      %v4967 = vmul.f32 %v4775, %v4866
      %v4968 = vmul.f32 %v4776, %v4871
      %v4969 = vmul.f32 %v4777, %v4876
      %v4970 = vmul.f32 %v4778, %v4881
      %v4971 = vmul.f32 %v4779, %v4886
      %v4972 = vmul.f32 %v4780, %v4891
      %v4973 = vmul.f32 %v4781, %v4896
      %v4974 = vmul.f32 %v4782, %v4901
      %v4975 = vmul.f32 %v4783, %v4906
      %v4976 = vmul.f32 %v4784, %v4911
      %v4977 = vmul.f32 %v4785, %v4916
      %v4978 = vmul.f32 %v4786, %v4921
      %v4979 = vmul.f32 %v4787, %v4926
      %v4980 = vmul.f32 %v4788, %v4931
      %v4981 = vmul.f32 %v4789, %v4936
      %v4982 = vmul.f32 %v4790, %v4941
      %v4983 = vmul.f32 %v4791, %v4946
      %v4984 = vmul.f32 %v4792, %v4951
      %v4985 = vpack.c.bf16 %v4954, %v4953
      %v4986 = vpack.c.bf16 %v4956, %v4955
      %v4987 = vpack.c.bf16 %v4958, %v4957
      %v4988 = vpack.c.bf16 %v4960, %v4959
      %v4989 = vpack.c.bf16 %v4962, %v4961
      %v4990 = vpack.c.bf16 %v4964, %v4963
      %v4991 = vpack.c.bf16 %v4966, %v4965
      %v4992 = vpack.c.bf16 %v4968, %v4967
      %v4993 = vpack.c.bf16 %v4970, %v4969
      %v4994 = vpack.c.bf16 %v4972, %v4971
      %v4995 = vpack.c.bf16 %v4974, %v4973
      %v4996 = vpack.c.bf16 %v4976, %v4975
      %v4997 = vpack.c.bf16 %v4978, %v4977
      %v4998 = vpack.c.bf16 %v4980, %v4979
      %v4999 = vpack.c.bf16 %v4982, %v4981
      %v5000 = vpack.c.bf16 %v4984, %v4983
      %v5001 = vld [vmem:[%s8] sm:$0xf]
      %v5002 = vld [vmem:[%s8 + $0x4] sm:$0xf]
      %v5003 = vld [vmem:[%s8 + $0x8] sm:$0xf]
      %v5004 = vld [vmem:[%s8 + $0xc] sm:$0xf]
      %v5005 = vld [vmem:[%s8 + $0x10] sm:$0xf]
      %v5006 = vld [vmem:[%s8 + $0x14] sm:$0xf]
      %v5007 = vld [vmem:[%s8 + $0x18] sm:$0xf]
      %v5008 = vld [vmem:[%s8 + $0x1c] sm:$0xf]
      %v5009 = vld [vmem:[%s8 + $0x20] sm:$0xf]
      %v5010 = vld [vmem:[%s8 + $0x24] sm:$0xf]
      %v5011 = vld [vmem:[%s8 + $0x28] sm:$0xf]
      %v5012 = vld [vmem:[%s8 + $0x2c] sm:$0xf]
      %v5013 = vld [vmem:[%s8 + $0x30] sm:$0xf]
      %v5014 = vld [vmem:[%s8 + $0x34] sm:$0xf]
      %v5015 = vld [vmem:[%s8 + $0x38] sm:$0xf]
      %v5016 = vld [vmem:[%s8 + $0x3c] sm:$0xf]
      %v5017 = vld [vmem:[#allocation3 + $0x8] sm:$0xff]
      %v5018 = vld [vmem:[#allocation3 + $0x10] sm:$0xff]
      %v5019 = vld [vmem:[#allocation3 + $0x18] sm:$0xff]
      %v5020 = vld [vmem:[#allocation3 + $0x20] sm:$0xff]
      %v5021 = vld [vmem:[#allocation3 + $0x28] sm:$0xff]
      %v5022 = vld [vmem:[#allocation3 + $0x30] sm:$0xff]
      %v5023 = vld [vmem:[#allocation3 + $0x38] sm:$0xff]
      %v5024 = vld [vmem:[#allocation3 + $0x40] sm:$0xff]
      %v5025 = vld [vmem:[#allocation3 + $0x48] sm:$0xff]
      %v5026 = vld [vmem:[#allocation3 + $0x50] sm:$0xff]
      %v5027 = vld [vmem:[#allocation3 + $0x58] sm:$0xff]
      %v5028 = vld [vmem:[#allocation3 + $0x60] sm:$0xff]
      %v5029 = vld [vmem:[#allocation3 + $0x68] sm:$0xff]
      %v5030 = vld [vmem:[#allocation3 + $0x70] sm:$0xff]
      %v5031 = vld [vmem:[#allocation3 + $0x78] sm:$0xff]
      %v5032 = vld [vmem:[#allocation3 + $0x80] sm:$0xff]
      %v5033 = vld [vmem:[#allocation3 + $0x88] sm:$0xff]
      %v5034 = vld [vmem:[#allocation3 + $0x90] sm:$0xff]
      %v5035 = vld [vmem:[#allocation3 + $0x98] sm:$0xff]
      %v5036 = vld [vmem:[#allocation3 + $0xa0] sm:$0xff]
      %v5037 = vld [vmem:[#allocation3 + $0xa8] sm:$0xff]
      %v5038 = vld [vmem:[#allocation3 + $0xb0] sm:$0xff]
      %v5039 = vld [vmem:[#allocation3 + $0xb8] sm:$0xff]
      %v5040 = vld [vmem:[#allocation3 + $0xc0] sm:$0xff]
      %v5041 = vld [vmem:[#allocation3 + $0xc8] sm:$0xff]
      %v5042 = vld [vmem:[#allocation3 + $0xd0] sm:$0xff]
      %v5043 = vld [vmem:[#allocation3 + $0xd8] sm:$0xff]
      %v5044 = vld [vmem:[#allocation3 + $0xe0] sm:$0xff]
      %v5045 = vld [vmem:[#allocation3 + $0xe8] sm:$0xff]
      %v5046 = vld [vmem:[#allocation3 + $0xf0] sm:$0xff]
      %v5047 = vld [vmem:[#allocation3 + $0xf8] sm:$0xff]
      %v5048 = vld [vmem:[#allocation3 + $0x100] sm:$0xff]
      %v5049 = vpack.c.bf16 %v5018, %v5017
      %v5050 = vpack.c.bf16 %v5020, %v5019
      %v5051 = vpack.c.bf16 %v5022, %v5021
      %v5052 = vpack.c.bf16 %v5024, %v5023
      %v5053 = vpack.c.bf16 %v5026, %v5025
      %v5054 = vpack.c.bf16 %v5028, %v5027
      %v5055 = vpack.c.bf16 %v5030, %v5029
      %v5056 = vpack.c.bf16 %v5032, %v5031
      %v5057 = vpack.c.bf16 %v5034, %v5033
      %v5058 = vpack.c.bf16 %v5036, %v5035
      %v5059 = vpack.c.bf16 %v5038, %v5037
      %v5060 = vpack.c.bf16 %v5040, %v5039
      %v5061 = vpack.c.bf16 %v5042, %v5041
      %v5062 = vpack.c.bf16 %v5044, %v5043
      %v5063 = vpack.c.bf16 %v5046, %v5045
      %v5064 = vpack.c.bf16 %v5048, %v5047
      %s5065 = scalar_lea.vmem %s8, 64
      %v5066 = vld [vmem:[%s5065] sm:$0xf]
      %v5067 = vld [vmem:[%s5065 + $0x4] sm:$0xf]
      %v5068 = vld [vmem:[%s5065 + $0x8] sm:$0xf]
      %v5069 = vld [vmem:[%s5065 + $0xc] sm:$0xf]
      %v5070 = vld [vmem:[%s5065 + $0x10] sm:$0xf]
      %v5071 = vld [vmem:[%s5065 + $0x14] sm:$0xf]
      %v5072 = vld [vmem:[%s5065 + $0x18] sm:$0xf]
      %v5073 = vld [vmem:[%s5065 + $0x1c] sm:$0xf]
      %v5074 = vld [vmem:[%s5065 + $0x20] sm:$0xf]
      %v5075 = vld [vmem:[%s5065 + $0x24] sm:$0xf]
      %v5076 = vld [vmem:[%s5065 + $0x28] sm:$0xf]
      %v5077 = vld [vmem:[%s5065 + $0x2c] sm:$0xf]
      %v5078 = vld [vmem:[%s5065 + $0x30] sm:$0xf]
      %v5079 = vld [vmem:[%s5065 + $0x34] sm:$0xf]
      %v5080 = vld [vmem:[%s5065 + $0x38] sm:$0xf]
      %v5081 = vld [vmem:[%s5065 + $0x3c] sm:$0xf]
      %v5098 = vunpack.c.l.b16 %v5066
      %v5099 = vunpack.c.l.b16 %v5067
      %v5100 = vunpack.c.l.b16 %v5068
      %v5101 = vunpack.c.l.b16 %v5069
      %v5102 = vunpack.c.l.b16 %v5070
      %v5103 = vunpack.c.l.b16 %v5071
      %v5104 = vunpack.c.l.b16 %v5072
      %v5105 = vunpack.c.l.b16 %v5073
      %v5106 = vunpack.c.l.b16 %v5074
      %v5107 = vunpack.c.l.b16 %v5075
      %v5108 = vunpack.c.l.b16 %v5076
      %v5109 = vunpack.c.l.b16 %v5077
      %v5110 = vunpack.c.l.b16 %v5078
      %v5111 = vunpack.c.l.b16 %v5079
      %v5112 = vunpack.c.l.b16 %v5080
      %v5113 = vunpack.c.l.b16 %v5081
      %v5114 = vpack.c.b16 %v5099, %v5098
      %v5115 = vpack.c.b16 %v5101, %v5100
      %v5116 = vpack.c.b16 %v5103, %v5102
      %v5117 = vpack.c.b16 %v5105, %v5104
      %v5118 = vpack.c.b16 %v5107, %v5106
      %v5119 = vpack.c.b16 %v5109, %v5108
      %v5120 = vpack.c.b16 %v5111, %v5110
      %v5121 = vpack.c.b16 %v5113, %v5112
      %5130 = vmatprep.subr.bf16.mxu0 0
      %5131 = vmatpush1.bf16.msra.mxu0 %v5114
      %5132 = vmatprep.subr.bf16.mxu0 0
      %5133 = vmatpush1.bf16.msra.mxu0 %v5115
      %5134 = vmatprep.subr.bf16.mxu0 0
      %5135 = vmatpush1.bf16.msra.mxu0 %v5116
      %5136 = vmatprep.subr.bf16.mxu0 0
      %5137 = vmatpush1.bf16.msra.mxu0 %v5117
      %5138 = vmatprep.subr.bf16.mxu0 0
      %5139 = vmatpush1.bf16.msra.mxu0 %v5118
      %5140 = vmatprep.subr.bf16.mxu0 0
      %5141 = vmatpush1.bf16.msra.mxu0 %v5119
      %5142 = vmatprep.subr.bf16.mxu0 0
      %5143 = vmatpush1.bf16.msra.mxu0 %v5120
      %5144 = vmatprep.subr.bf16.mxu0 0
      %5145 = vmatpush1.bf16.msra.mxu0 %v5121
      %5146 = vmatprep.subr.bf16.mxu0 0
      %5147 = vmatpush1.bf16.msra.mxu0 0
      %5148 = vmatprep.subr.bf16.mxu0 0
      %5149 = vmatpush1.bf16.msra.mxu0 0
      %5150 = vmatprep.subr.bf16.mxu0 0
      %5151 = vmatpush1.bf16.msra.mxu0 0
      %5152 = vmatprep.subr.bf16.mxu0 0
      %5153 = vmatpush1.bf16.msra.mxu0 0
      %5154 = vmatprep.subr.bf16.mxu0 0
      %5155 = vmatpush1.bf16.msra.mxu0 0
      %5156 = vmatprep.subr.bf16.mxu0 0
      %5157 = vmatpush1.bf16.msra.mxu0 0
      %5158 = vmatprep.subr.bf16.mxu0 0
      %5159 = vmatpush1.bf16.msra.mxu0 0
      %5160 = vmatprep.subr.bf16.mxu0 0
      %5161 = vmatpush1.bf16.msra.mxu0 0
      %5162 = vmatprep.mubr.bf16.mxu0 0
      %5163 = vmatmul.mubr.bf16.gmra.mrb[0].mxu0 %v5049
      %v5164 = vpop.f32.mrb[0].mxu0
      %v5165 = vadd.f32 0.0, %v5164
      %v5166 = vpop.f32.mrb[0].mxu0
      %v5167 = vpop.f32.mrb[0].mxu0
      %v5168 = vadd.f32 0.0, %v5167
      %v5169 = vpop.f32.mrb[0].mxu0
      %5170 = vmatprep.mubr.bf16.mxu0 0
      %5171 = vmatmul.mubr.bf16.gmra.mrb[0].mxu0 %v5050
      %v5172 = vpop.f32.mrb[0].mxu0
      %v5173 = vadd.f32 0.0, %v5172
      %v5174 = vpop.f32.mrb[0].mxu0
      %v5175 = vpop.f32.mrb[0].mxu0
      %v5176 = vadd.f32 0.0, %v5175
      %v5177 = vpop.f32.mrb[0].mxu0
      %5178 = vmatprep.mubr.bf16.mxu0 0
      %5179 = vmatmul.mubr.bf16.gmra.mrb[0].mxu0 %v5051
      %v5180 = vpop.f32.mrb[0].mxu0
      %v5181 = vadd.f32 0.0, %v5180
      %v5182 = vpop.f32.mrb[0].mxu0
      %v5183 = vpop.f32.mrb[0].mxu0
      %v5184 = vadd.f32 0.0, %v5183
      %v5185 = vpop.f32.mrb[0].mxu0
      %5186 = vmatprep.mubr.bf16.mxu0 0
      %5187 = vmatmul.mubr.bf16.gmra.mrb[0].mxu0 %v5052
      %v5188 = vpop.f32.mrb[0].mxu0
      %v5189 = vadd.f32 0.0, %v5188
      %v5190 = vpop.f32.mrb[0].mxu0
      %v5191 = vpop.f32.mrb[0].mxu0
      %v5192 = vadd.f32 0.0, %v5191
      %v5193 = vpop.f32.mrb[0].mxu0
      %5194 = vmatprep.mubr.bf16.mxu0 0
      %5195 = vmatmul.mubr.bf16.gmra.mrb[0].mxu0 %v5053
      %v5196 = vpop.f32.mrb[0].mxu0
      %v5197 = vadd.f32 0.0, %v5196
      %v5198 = vpop.f32.mrb[0].mxu0
      %v5199 = vpop.f32.mrb[0].mxu0
      %v5200 = vadd.f32 0.0, %v5199
      %v5201 = vpop.f32.mrb[0].mxu0
      %5202 = vmatprep.mubr.bf16.mxu0 0
      %5203 = vmatmul.mubr.bf16.gmra.mrb[0].mxu0 %v5054
      %v5204 = vpop.f32.mrb[0].mxu0
      %v5205 = vadd.f32 0.0, %v5204
      %v5206 = vpop.f32.mrb[0].mxu0
      %v5207 = vpop.f32.mrb[0].mxu0
      %v5208 = vadd.f32 0.0, %v5207
      %v5209 = vpop.f32.mrb[0].mxu0
      %5210 = vmatprep.mubr.bf16.mxu0 0
      %5211 = vmatmul.mubr.bf16.gmra.mrb[0].mxu0 %v5055
      %v5212 = vpop.f32.mrb[0].mxu0
      %v5213 = vadd.f32 0.0, %v5212
      %v5214 = vpop.f32.mrb[0].mxu0
      %v5215 = vpop.f32.mrb[0].mxu0
      %v5216 = vadd.f32 0.0, %v5215
      %v5217 = vpop.f32.mrb[0].mxu0
      %5218 = vmatprep.mubr.bf16.mxu0 0
      %5219 = vmatmul.mubr.bf16.gmra.mrb[0].mxu0 %v5056
      %v5220 = vpop.f32.mrb[0].mxu0
      %v5221 = vadd.f32 0.0, %v5220
      %v5222 = vpop.f32.mrb[0].mxu0
      %v5223 = vpop.f32.mrb[0].mxu0
      %v5224 = vadd.f32 0.0, %v5223
      %v5225 = vpop.f32.mrb[0].mxu0
      %5226 = vmatprep.mubr.bf16.mxu0 0
      %5227 = vmatmul.mubr.bf16.gmra.mrb[0].mxu0 %v5057
      %v5228 = vpop.f32.mrb[0].mxu0
      %v5229 = vadd.f32 0.0, %v5228
      %v5230 = vpop.f32.mrb[0].mxu0
      %v5231 = vpop.f32.mrb[0].mxu0
      %v5232 = vadd.f32 0.0, %v5231
      %v5233 = vpop.f32.mrb[0].mxu0
      %5234 = vmatprep.mubr.bf16.mxu0 0
      %5235 = vmatmul.mubr.bf16.gmra.mrb[0].mxu0 %v5058
      %v5236 = vpop.f32.mrb[0].mxu0
      %v5237 = vadd.f32 0.0, %v5236
      %v5238 = vpop.f32.mrb[0].mxu0
      %v5239 = vpop.f32.mrb[0].mxu0
      %v5240 = vadd.f32 0.0, %v5239
      %v5241 = vpop.f32.mrb[0].mxu0
      %5242 = vmatprep.mubr.bf16.mxu0 0
      %5243 = vmatmul.mubr.bf16.gmra.mrb[0].mxu0 %v5059
      %v5244 = vpop.f32.mrb[0].mxu0
      %v5245 = vadd.f32 0.0, %v5244
      %v5246 = vpop.f32.mrb[0].mxu0
      %v5247 = vpop.f32.mrb[0].mxu0
      %v5248 = vadd.f32 0.0, %v5247
      %v5249 = vpop.f32.mrb[0].mxu0
      %5250 = vmatprep.mubr.bf16.mxu0 0
      %5251 = vmatmul.mubr.bf16.gmra.mrb[0].mxu0 %v5060
      %v5252 = vpop.f32.mrb[0].mxu0
      %v5253 = vadd.f32 0.0, %v5252
      %v5254 = vpop.f32.mrb[0].mxu0
      %v5255 = vpop.f32.mrb[0].mxu0
      %v5256 = vadd.f32 0.0, %v5255
      %v5257 = vpop.f32.mrb[0].mxu0
      %5258 = vmatprep.mubr.bf16.mxu0 0
      %5259 = vmatmul.mubr.bf16.gmra.mrb[0].mxu0 %v5061
      %v5260 = vpop.f32.mrb[0].mxu0
      %v5261 = vadd.f32 0.0, %v5260
      %v5262 = vpop.f32.mrb[0].mxu0
      %v5263 = vpop.f32.mrb[0].mxu0
      %v5264 = vadd.f32 0.0, %v5263
      %v5265 = vpop.f32.mrb[0].mxu0
      %5266 = vmatprep.mubr.bf16.mxu0 0
      %5267 = vmatmul.mubr.bf16.gmra.mrb[0].mxu0 %v5062
      %v5268 = vpop.f32.mrb[0].mxu0
      %v5269 = vadd.f32 0.0, %v5268
      %v5270 = vpop.f32.mrb[0].mxu0
      %v5271 = vpop.f32.mrb[0].mxu0
      %v5272 = vadd.f32 0.0, %v5271
      %v5273 = vpop.f32.mrb[0].mxu0
      %5274 = vmatprep.mubr.bf16.mxu0 0
      %5275 = vmatmul.mubr.bf16.gmra.mrb[0].mxu0 %v5063
      %v5276 = vpop.f32.mrb[0].mxu0
      %v5277 = vadd.f32 0.0, %v5276
      %v5278 = vpop.f32.mrb[0].mxu0
      %v5279 = vpop.f32.mrb[0].mxu0
      %v5280 = vadd.f32 0.0, %v5279
      %v5281 = vpop.f32.mrb[0].mxu0
      %5282 = vmatprep.mubr.bf16.mxu0 0
      %5283 = vmatmul.mubr.bf16.gmra.mrb[0].mxu0 %v5064
      %v5284 = vpop.f32.mrb[0].mxu0
      %v5285 = vadd.f32 0.0, %v5284
      %v5286 = vpop.f32.mrb[0].mxu0
      %v5287 = vpop.f32.mrb[0].mxu0
      %v5288 = vadd.f32 0.0, %v5287
      %v5289 = vpop.f32.mrb[0].mxu0
      %5290 = vdwg.mxu0
      %v5307 = vunpack.c.l.b16 %v5001
      %v5308 = vunpack.c.l.b16 %v5002
      %v5309 = vunpack.c.l.b16 %v5003
      %v5310 = vunpack.c.l.b16 %v5004
      %v5311 = vunpack.c.l.b16 %v5005
      %v5312 = vunpack.c.l.b16 %v5006
      %v5313 = vunpack.c.l.b16 %v5007
      %v5314 = vunpack.c.l.b16 %v5008
      %v5315 = vunpack.c.l.b16 %v5009
      %v5316 = vunpack.c.l.b16 %v5010
      %v5317 = vunpack.c.l.b16 %v5011
      %v5318 = vunpack.c.l.b16 %v5012
      %v5319 = vunpack.c.l.b16 %v5013
      %v5320 = vunpack.c.l.b16 %v5014
      %v5321 = vunpack.c.l.b16 %v5015
      %v5322 = vunpack.c.l.b16 %v5016
      %v5323 = vpack.c.b16 %v5308, %v5307
      %v5324 = vpack.c.b16 %v5310, %v5309
      %v5325 = vpack.c.b16 %v5312, %v5311
      %v5326 = vpack.c.b16 %v5314, %v5313
      %v5327 = vpack.c.b16 %v5316, %v5315
      %v5328 = vpack.c.b16 %v5318, %v5317
      %v5329 = vpack.c.b16 %v5320, %v5319
      %v5330 = vpack.c.b16 %v5322, %v5321
      %5339 = vmatprep.subr.bf16.mxu0 0
      %5340 = vmatpush1.bf16.msra.mxu0 %v5323
      %5341 = vmatprep.subr.bf16.mxu0 0
      %5342 = vmatpush1.bf16.msra.mxu0 %v5324
      %5343 = vmatprep.subr.bf16.mxu0 0
      %5344 = vmatpush1.bf16.msra.mxu0 %v5325
      %5345 = vmatprep.subr.bf16.mxu0 0
      %5346 = vmatpush1.bf16.msra.mxu0 %v5326
      %5347 = vmatprep.subr.bf16.mxu0 0
      %5348 = vmatpush1.bf16.msra.mxu0 %v5327
      %5349 = vmatprep.subr.bf16.mxu0 0
      %5350 = vmatpush1.bf16.msra.mxu0 %v5328
      %5351 = vmatprep.subr.bf16.mxu0 0
      %5352 = vmatpush1.bf16.msra.mxu0 %v5329
      %5353 = vmatprep.subr.bf16.mxu0 0
      %5354 = vmatpush1.bf16.msra.mxu0 %v5330
      %5355 = vmatprep.subr.bf16.mxu0 0
      %5356 = vmatpush1.bf16.msra.mxu0 0
      %5357 = vmatprep.subr.bf16.mxu0 0
      %5358 = vmatpush1.bf16.msra.mxu0 0
      %5359 = vmatprep.subr.bf16.mxu0 0
      %5360 = vmatpush1.bf16.msra.mxu0 0
      %5361 = vmatprep.subr.bf16.mxu0 0
      %5362 = vmatpush1.bf16.msra.mxu0 0
      %5363 = vmatprep.subr.bf16.mxu0 0
      %5364 = vmatpush1.bf16.msra.mxu0 0
      %5365 = vmatprep.subr.bf16.mxu0 0
      %5366 = vmatpush1.bf16.msra.mxu0 0
      %5367 = vmatprep.subr.bf16.mxu0 0
      %5368 = vmatpush1.bf16.msra.mxu0 0
      %5369 = vmatprep.subr.bf16.mxu0 0
      %5370 = vmatpush1.bf16.msra.mxu0 0
      %5371 = vmatprep.mubr.bf16.mxu0 0
      %5372 = vmatmul.mubr.bf16.gmra.mrb[0].mxu0 %v4985
      %v5373 = vpop.f32.mrb[0].mxu0
      %v5374 = vadd.f32 %v5165, %v5373
      %v5375 = vpop.f32.mrb[0].mxu0
      %v5376 = vpop.f32.mrb[0].mxu0
      %v5377 = vadd.f32 %v5168, %v5376
      %v5378 = vpop.f32.mrb[0].mxu0
      %5379 = vmatprep.mubr.bf16.mxu0 0
      %5380 = vmatmul.mubr.bf16.gmra.mrb[0].mxu0 %v4986
      %v5381 = vpop.f32.mrb[0].mxu0
      %v5382 = vadd.f32 %v5173, %v5381
      %v5383 = vpop.f32.mrb[0].mxu0
      %v5384 = vpop.f32.mrb[0].mxu0
      %v5385 = vadd.f32 %v5176, %v5384
      %v5386 = vpop.f32.mrb[0].mxu0
      %5387 = vmatprep.mubr.bf16.mxu0 0
      %5388 = vmatmul.mubr.bf16.gmra.mrb[0].mxu0 %v4987
      %v5389 = vpop.f32.mrb[0].mxu0
      %v5390 = vadd.f32 %v5181, %v5389
      %v5391 = vpop.f32.mrb[0].mxu0
      %v5392 = vpop.f32.mrb[0].mxu0
      %v5393 = vadd.f32 %v5184, %v5392
      %v5394 = vpop.f32.mrb[0].mxu0
      %5395 = vmatprep.mubr.bf16.mxu0 0
      %5396 = vmatmul.mubr.bf16.gmra.mrb[0].mxu0 %v4988
      %v5397 = vpop.f32.mrb[0].mxu0
      %v5398 = vadd.f32 %v5189, %v5397
      %v5399 = vpop.f32.mrb[0].mxu0
      %v5400 = vpop.f32.mrb[0].mxu0
      %v5401 = vadd.f32 %v5192, %v5400
      %v5402 = vpop.f32.mrb[0].mxu0
      %5403 = vmatprep.mubr.bf16.mxu0 0
      %5404 = vmatmul.mubr.bf16.gmra.mrb[0].mxu0 %v4989
      %v5405 = vpop.f32.mrb[0].mxu0
      %v5406 = vadd.f32 %v5197, %v5405
      %v5407 = vpop.f32.mrb[0].mxu0
      %v5408 = vpop.f32.mrb[0].mxu0
      %v5409 = vadd.f32 %v5200, %v5408
      %v5410 = vpop.f32.mrb[0].mxu0
      %5411 = vmatprep.mubr.bf16.mxu0 0
      %5412 = vmatmul.mubr.bf16.gmra.mrb[0].mxu0 %v4990
      %v5413 = vpop.f32.mrb[0].mxu0
      %v5414 = vadd.f32 %v5205, %v5413
      %v5415 = vpop.f32.mrb[0].mxu0
      %v5416 = vpop.f32.mrb[0].mxu0
      %v5417 = vadd.f32 %v5208, %v5416
      %v5418 = vpop.f32.mrb[0].mxu0
      %5419 = vmatprep.mubr.bf16.mxu0 0
      %5420 = vmatmul.mubr.bf16.gmra.mrb[0].mxu0 %v4991
      %v5421 = vpop.f32.mrb[0].mxu0
      %v5422 = vadd.f32 %v5213, %v5421
      %v5423 = vpop.f32.mrb[0].mxu0
      %v5424 = vpop.f32.mrb[0].mxu0
      %v5425 = vadd.f32 %v5216, %v5424
      %v5426 = vpop.f32.mrb[0].mxu0
      %5427 = vmatprep.mubr.bf16.mxu0 0
      %5428 = vmatmul.mubr.bf16.gmra.mrb[0].mxu0 %v4992
      %v5429 = vpop.f32.mrb[0].mxu0
      %v5430 = vadd.f32 %v5221, %v5429
      %v5431 = vpop.f32.mrb[0].mxu0
      %v5432 = vpop.f32.mrb[0].mxu0
      %v5433 = vadd.f32 %v5224, %v5432
      %v5434 = vpop.f32.mrb[0].mxu0
      %5435 = vmatprep.mubr.bf16.mxu0 0
      %5436 = vmatmul.mubr.bf16.gmra.mrb[0].mxu0 %v4993
      %v5437 = vpop.f32.mrb[0].mxu0
      %v5438 = vadd.f32 %v5229, %v5437
      %v5439 = vpop.f32.mrb[0].mxu0
      %v5440 = vpop.f32.mrb[0].mxu0
      %v5441 = vadd.f32 %v5232, %v5440
      %v5442 = vpop.f32.mrb[0].mxu0
      %5443 = vmatprep.mubr.bf16.mxu0 0
      %5444 = vmatmul.mubr.bf16.gmra.mrb[0].mxu0 %v4994
      %v5445 = vpop.f32.mrb[0].mxu0
      %v5446 = vadd.f32 %v5237, %v5445
      %v5447 = vpop.f32.mrb[0].mxu0
      %v5448 = vpop.f32.mrb[0].mxu0
      %v5449 = vadd.f32 %v5240, %v5448
      %v5450 = vpop.f32.mrb[0].mxu0
      %5451 = vmatprep.mubr.bf16.mxu0 0
      %5452 = vmatmul.mubr.bf16.gmra.mrb[0].mxu0 %v4995
      %v5453 = vpop.f32.mrb[0].mxu0
      %v5454 = vadd.f32 %v5245, %v5453
      %v5455 = vpop.f32.mrb[0].mxu0
      %v5456 = vpop.f32.mrb[0].mxu0
      %v5457 = vadd.f32 %v5248, %v5456
      %v5458 = vpop.f32.mrb[0].mxu0
      %5459 = vmatprep.mubr.bf16.mxu0 0
      %5460 = vmatmul.mubr.bf16.gmra.mrb[0].mxu0 %v4996
      %v5461 = vpop.f32.mrb[0].mxu0
      %v5462 = vadd.f32 %v5253, %v5461
      %v5463 = vpop.f32.mrb[0].mxu0
      %v5464 = vpop.f32.mrb[0].mxu0
      %v5465 = vadd.f32 %v5256, %v5464
      %v5466 = vpop.f32.mrb[0].mxu0
      %5467 = vmatprep.mubr.bf16.mxu0 0
      %5468 = vmatmul.mubr.bf16.gmra.mrb[0].mxu0 %v4997
      %v5469 = vpop.f32.mrb[0].mxu0
      %v5470 = vadd.f32 %v5261, %v5469
      %v5471 = vpop.f32.mrb[0].mxu0
      %v5472 = vpop.f32.mrb[0].mxu0
      %v5473 = vadd.f32 %v5264, %v5472
      %v5474 = vpop.f32.mrb[0].mxu0
      %5475 = vmatprep.mubr.bf16.mxu0 0
      %5476 = vmatmul.mubr.bf16.gmra.mrb[0].mxu0 %v4998
      %v5477 = vpop.f32.mrb[0].mxu0
      %v5478 = vadd.f32 %v5269, %v5477
      %v5479 = vpop.f32.mrb[0].mxu0
      %v5480 = vpop.f32.mrb[0].mxu0
      %v5481 = vadd.f32 %v5272, %v5480
      %v5482 = vpop.f32.mrb[0].mxu0
      %5483 = vmatprep.mubr.bf16.mxu0 0
      %5484 = vmatmul.mubr.bf16.gmra.mrb[0].mxu0 %v4999
      %v5485 = vpop.f32.mrb[0].mxu0
      %v5486 = vadd.f32 %v5277, %v5485
      %v5487 = vpop.f32.mrb[0].mxu0
      %v5488 = vpop.f32.mrb[0].mxu0
      %v5489 = vadd.f32 %v5280, %v5488
      %v5490 = vpop.f32.mrb[0].mxu0
      %5491 = vmatprep.mubr.bf16.mxu0 0
      %5492 = vmatmul.mubr.bf16.gmra.mrb[0].mxu0 %v5000
      %v5493 = vpop.f32.mrb[0].mxu0
      %v5494 = vadd.f32 %v5285, %v5493
      %v5495 = vpop.f32.mrb[0].mxu0
      %v5496 = vpop.f32.mrb[0].mxu0
      %v5497 = vadd.f32 %v5288, %v5496
      %v5498 = vpop.f32.mrb[0].mxu0
      %5499 = vdwg.mxu0
      %v5500 = vld [vmem:[#allocation3 + $0xa] sm:$0xff]
      %v5501 = vld [vmem:[#allocation3 + $0x12] sm:$0xff]
      %v5502 = vld [vmem:[#allocation3 + $0x1a] sm:$0xff]
      %v5503 = vld [vmem:[#allocation3 + $0x22] sm:$0xff]
      %v5504 = vld [vmem:[#allocation3 + $0x2a] sm:$0xff]
      %v5505 = vld [vmem:[#allocation3 + $0x32] sm:$0xff]
      %v5506 = vld [vmem:[#allocation3 + $0x3a] sm:$0xff]
      %v5507 = vld [vmem:[#allocation3 + $0x42] sm:$0xff]
      %v5508 = vld [vmem:[#allocation3 + $0x4a] sm:$0xff]
      %v5509 = vld [vmem:[#allocation3 + $0x52] sm:$0xff]
      %v5510 = vld [vmem:[#allocation3 + $0x5a] sm:$0xff]
      %v5511 = vld [vmem:[#allocation3 + $0x62] sm:$0xff]
      %v5512 = vld [vmem:[#allocation3 + $0x6a] sm:$0xff]
      %v5513 = vld [vmem:[#allocation3 + $0x72] sm:$0xff]
      %v5514 = vld [vmem:[#allocation3 + $0x7a] sm:$0xff]
      %v5515 = vld [vmem:[#allocation3 + $0x82] sm:$0xff]
      %v5516 = vld [vmem:[#allocation3 + $0x8a] sm:$0xff]
      %v5517 = vld [vmem:[#allocation3 + $0x92] sm:$0xff]
      %v5518 = vld [vmem:[#allocation3 + $0x9a] sm:$0xff]
      %v5519 = vld [vmem:[#allocation3 + $0xa2] sm:$0xff]
      %v5520 = vld [vmem:[#allocation3 + $0xaa] sm:$0xff]
      %v5521 = vld [vmem:[#allocation3 + $0xb2] sm:$0xff]
      %v5522 = vld [vmem:[#allocation3 + $0xba] sm:$0xff]
      %v5523 = vld [vmem:[#allocation3 + $0xc2] sm:$0xff]
      %v5524 = vld [vmem:[#allocation3 + $0xca] sm:$0xff]
      %v5525 = vld [vmem:[#allocation3 + $0xd2] sm:$0xff]
      %v5526 = vld [vmem:[#allocation3 + $0xda] sm:$0xff]
      %v5527 = vld [vmem:[#allocation3 + $0xe2] sm:$0xff]
      %v5528 = vld [vmem:[#allocation3 + $0xea] sm:$0xff]
      %v5529 = vld [vmem:[#allocation3 + $0xf2] sm:$0xff]
      %v5530 = vld [vmem:[#allocation3 + $0xfa] sm:$0xff]
      %v5531 = vld [vmem:[#allocation3 + $0x102] sm:$0xff]
      %5533 = vset.pattern.permute.xlu0 0
      %5534 = vperm.xlu0 %5533, %v4729
      %v5535 = vpop.permute.xlu0 %5534
      %5538 = vset.pattern.permute.xlu0 0
      %5539 = vperm.xlu0 %5538, %v4730
      %v5540 = vpop.permute.xlu0 %5539
      %5543 = vset.pattern.permute.xlu0 0
      %5544 = vperm.xlu0 %5543, %v4731
      %v5545 = vpop.permute.xlu0 %5544
      %5548 = vset.pattern.permute.xlu0 0
      %5549 = vperm.xlu0 %5548, %v4732
      %v5550 = vpop.permute.xlu0 %5549
      %5553 = vset.pattern.permute.xlu0 0
      %5554 = vperm.xlu0 %5553, %v4733
      %v5555 = vpop.permute.xlu0 %5554
      %5558 = vset.pattern.permute.xlu0 0
      %5559 = vperm.xlu0 %5558, %v4734
      %v5560 = vpop.permute.xlu0 %5559
      %5563 = vset.pattern.permute.xlu0 0
      %5564 = vperm.xlu0 %5563, %v4735
      %v5565 = vpop.permute.xlu0 %5564
      %5568 = vset.pattern.permute.xlu0 0
      %5569 = vperm.xlu0 %5568, %v4736
      %v5570 = vpop.permute.xlu0 %5569
      %5573 = vset.pattern.permute.xlu0 0
      %5574 = vperm.xlu0 %5573, %v4737
      %v5575 = vpop.permute.xlu0 %5574
      %5578 = vset.pattern.permute.xlu0 0
      %5579 = vperm.xlu0 %5578, %v4738
      %v5580 = vpop.permute.xlu0 %5579
      %5583 = vset.pattern.permute.xlu0 0
      %5584 = vperm.xlu0 %5583, %v4739
      %v5585 = vpop.permute.xlu0 %5584
      %5588 = vset.pattern.permute.xlu0 0
      %5589 = vperm.xlu0 %5588, %v4740
      %v5590 = vpop.permute.xlu0 %5589
      %5593 = vset.pattern.permute.xlu0 0
      %5594 = vperm.xlu0 %5593, %v4741
      %v5595 = vpop.permute.xlu0 %5594
      %5598 = vset.pattern.permute.xlu0 0
      %5599 = vperm.xlu0 %5598, %v4742
      %v5600 = vpop.permute.xlu0 %5599
      %5603 = vset.pattern.permute.xlu0 0
      %5604 = vperm.xlu0 %5603, %v4743
      %v5605 = vpop.permute.xlu0 %5604
      %5608 = vset.pattern.permute.xlu0 0
      %5609 = vperm.xlu0 %5608, %v4744
      %v5610 = vpop.permute.xlu0 %5609
      %5613 = vset.pattern.permute.xlu0 0
      %5614 = vperm.xlu0 %5613, %v4745
      %v5615 = vpop.permute.xlu0 %5614
      %5618 = vset.pattern.permute.xlu0 0
      %5619 = vperm.xlu0 %5618, %v4746
      %v5620 = vpop.permute.xlu0 %5619
      %5623 = vset.pattern.permute.xlu0 0
      %5624 = vperm.xlu0 %5623, %v4747
      %v5625 = vpop.permute.xlu0 %5624
      %5628 = vset.pattern.permute.xlu0 0
      %5629 = vperm.xlu0 %5628, %v4748
      %v5630 = vpop.permute.xlu0 %5629
      %5633 = vset.pattern.permute.xlu0 0
      %5634 = vperm.xlu0 %5633, %v4749
      %v5635 = vpop.permute.xlu0 %5634
      %5638 = vset.pattern.permute.xlu0 0
      %5639 = vperm.xlu0 %5638, %v4750
      %v5640 = vpop.permute.xlu0 %5639
      %5643 = vset.pattern.permute.xlu0 0
      %5644 = vperm.xlu0 %5643, %v4751
      %v5645 = vpop.permute.xlu0 %5644
      %5648 = vset.pattern.permute.xlu0 0
      %5649 = vperm.xlu0 %5648, %v4752
      %v5650 = vpop.permute.xlu0 %5649
      %5653 = vset.pattern.permute.xlu0 0
      %5654 = vperm.xlu0 %5653, %v4753
      %v5655 = vpop.permute.xlu0 %5654
      %5658 = vset.pattern.permute.xlu0 0
      %5659 = vperm.xlu0 %5658, %v4754
      %v5660 = vpop.permute.xlu0 %5659
      %5663 = vset.pattern.permute.xlu0 0
      %5664 = vperm.xlu0 %5663, %v4755
      %v5665 = vpop.permute.xlu0 %5664
      %5668 = vset.pattern.permute.xlu0 0
      %5669 = vperm.xlu0 %5668, %v4756
      %v5670 = vpop.permute.xlu0 %5669
      %5673 = vset.pattern.permute.xlu0 0
      %5674 = vperm.xlu0 %5673, %v4757
      %v5675 = vpop.permute.xlu0 %5674
      %5678 = vset.pattern.permute.xlu0 0
      %5679 = vperm.xlu0 %5678, %v4758
      %v5680 = vpop.permute.xlu0 %5679
      %5683 = vset.pattern.permute.xlu0 0
      %5684 = vperm.xlu0 %5683, %v4759
      %v5685 = vpop.permute.xlu0 %5684
      %5688 = vset.pattern.permute.xlu0 0
      %5689 = vperm.xlu0 %5688, %v4760
      %v5690 = vpop.permute.xlu0 %5689
      %v5692 = vmul.f32 %v5500, %v5535
      %v5693 = vmul.f32 %v5501, %v5540
      %v5694 = vmul.f32 %v5502, %v5545
      %v5695 = vmul.f32 %v5503, %v5550
      %v5696 = vmul.f32 %v5504, %v5555
      %v5697 = vmul.f32 %v5505, %v5560
      %v5698 = vmul.f32 %v5506, %v5565
      %v5699 = vmul.f32 %v5507, %v5570
      %v5700 = vmul.f32 %v5508, %v5575
      %v5701 = vmul.f32 %v5509, %v5580
      %v5702 = vmul.f32 %v5510, %v5585
      %v5703 = vmul.f32 %v5511, %v5590
      %v5704 = vmul.f32 %v5512, %v5595
      %v5705 = vmul.f32 %v5513, %v5600
      %v5706 = vmul.f32 %v5514, %v5605
      %v5707 = vmul.f32 %v5515, %v5610
      %v5708 = vmul.f32 %v5516, %v5615
      %v5709 = vmul.f32 %v5517, %v5620
      %v5710 = vmul.f32 %v5518, %v5625
      %v5711 = vmul.f32 %v5519, %v5630
      %v5712 = vmul.f32 %v5520, %v5635
      %v5713 = vmul.f32 %v5521, %v5640
      %v5714 = vmul.f32 %v5522, %v5645
      %v5715 = vmul.f32 %v5523, %v5650
      %v5716 = vmul.f32 %v5524, %v5655
      %v5717 = vmul.f32 %v5525, %v5660
      %v5718 = vmul.f32 %v5526, %v5665
      %v5719 = vmul.f32 %v5527, %v5670
      %v5720 = vmul.f32 %v5528, %v5675
      %v5721 = vmul.f32 %v5529, %v5680
      %v5722 = vmul.f32 %v5530, %v5685
      %v5723 = vmul.f32 %v5531, %v5690
      %v5724 = vpack.c.bf16 %v5693, %v5692
      %v5725 = vpack.c.bf16 %v5695, %v5694
      %v5726 = vpack.c.bf16 %v5697, %v5696
      %v5727 = vpack.c.bf16 %v5699, %v5698
      %v5728 = vpack.c.bf16 %v5701, %v5700
      %v5729 = vpack.c.bf16 %v5703, %v5702
      %v5730 = vpack.c.bf16 %v5705, %v5704
      %v5731 = vpack.c.bf16 %v5707, %v5706
      %v5732 = vpack.c.bf16 %v5709, %v5708
      %v5733 = vpack.c.bf16 %v5711, %v5710
      %v5734 = vpack.c.bf16 %v5713, %v5712
      %v5735 = vpack.c.bf16 %v5715, %v5714
      %v5736 = vpack.c.bf16 %v5717, %v5716
      %v5737 = vpack.c.bf16 %v5719, %v5718
      %v5738 = vpack.c.bf16 %v5721, %v5720
      %v5739 = vpack.c.bf16 %v5723, %v5722
      %s5740 = scalar_lea.vmem %s8, 128
      %v5741 = vld [vmem:[%s5740] sm:$0xf]
      %v5742 = vld [vmem:[%s5740 + $0x4] sm:$0xf]
      %v5743 = vld [vmem:[%s5740 + $0x8] sm:$0xf]
      %v5744 = vld [vmem:[%s5740 + $0xc] sm:$0xf]
      %v5745 = vld [vmem:[%s5740 + $0x10] sm:$0xf]
      %v5746 = vld [vmem:[%s5740 + $0x14] sm:$0xf]
      %v5747 = vld [vmem:[%s5740 + $0x18] sm:$0xf]
      %v5748 = vld [vmem:[%s5740 + $0x1c] sm:$0xf]
      %v5749 = vld [vmem:[%s5740 + $0x20] sm:$0xf]
      %v5750 = vld [vmem:[%s5740 + $0x24] sm:$0xf]
      %v5751 = vld [vmem:[%s5740 + $0x28] sm:$0xf]
      %v5752 = vld [vmem:[%s5740 + $0x2c] sm:$0xf]
      %v5753 = vld [vmem:[%s5740 + $0x30] sm:$0xf]
      %v5754 = vld [vmem:[%s5740 + $0x34] sm:$0xf]
      %v5755 = vld [vmem:[%s5740 + $0x38] sm:$0xf]
      %v5756 = vld [vmem:[%s5740 + $0x3c] sm:$0xf]
      %v5773 = vunpack.c.l.b16 %v5741
      %v5774 = vunpack.c.l.b16 %v5742
      %v5775 = vunpack.c.l.b16 %v5743
      %v5776 = vunpack.c.l.b16 %v5744
      %v5777 = vunpack.c.l.b16 %v5745
      %v5778 = vunpack.c.l.b16 %v5746
      %v5779 = vunpack.c.l.b16 %v5747
      %v5780 = vunpack.c.l.b16 %v5748
      %v5781 = vunpack.c.l.b16 %v5749
      %v5782 = vunpack.c.l.b16 %v5750
      %v5783 = vunpack.c.l.b16 %v5751
      %v5784 = vunpack.c.l.b16 %v5752
      %v5785 = vunpack.c.l.b16 %v5753
      %v5786 = vunpack.c.l.b16 %v5754
      %v5787 = vunpack.c.l.b16 %v5755
      %v5788 = vunpack.c.l.b16 %v5756
      %v5789 = vpack.c.b16 %v5774, %v5773
      %v5790 = vpack.c.b16 %v5776, %v5775
      %v5791 = vpack.c.b16 %v5778, %v5777
      %v5792 = vpack.c.b16 %v5780, %v5779
      %v5793 = vpack.c.b16 %v5782, %v5781
      %v5794 = vpack.c.b16 %v5784, %v5783
      %v5795 = vpack.c.b16 %v5786, %v5785
      %v5796 = vpack.c.b16 %v5788, %v5787
      %5805 = vmatprep.subr.bf16.mxu0 0
      %5806 = vmatpush1.bf16.msra.mxu0 %v5789
      %5807 = vmatprep.subr.bf16.mxu0 0
      %5808 = vmatpush1.bf16.msra.mxu0 %v5790
      %5809 = vmatprep.subr.bf16.mxu0 0
      %5810 = vmatpush1.bf16.msra.mxu0 %v5791
      %5811 = vmatprep.subr.bf16.mxu0 0
      %5812 = vmatpush1.bf16.msra.mxu0 %v5792
      %5813 = vmatprep.subr.bf16.mxu0 0
      %5814 = vmatpush1.bf16.msra.mxu0 %v5793
      %5815 = vmatprep.subr.bf16.mxu0 0
      %5816 = vmatpush1.bf16.msra.mxu0 %v5794
      %5817 = vmatprep.subr.bf16.mxu0 0
      %5818 = vmatpush1.bf16.msra.mxu0 %v5795
      %5819 = vmatprep.subr.bf16.mxu0 0
      %5820 = vmatpush1.bf16.msra.mxu0 %v5796
      %5821 = vmatprep.subr.bf16.mxu0 0
      %5822 = vmatpush1.bf16.msra.mxu0 0
      %5823 = vmatprep.subr.bf16.mxu0 0
      %5824 = vmatpush1.bf16.msra.mxu0 0
      %5825 = vmatprep.subr.bf16.mxu0 0
      %5826 = vmatpush1.bf16.msra.mxu0 0
      %5827 = vmatprep.subr.bf16.mxu0 0
      %5828 = vmatpush1.bf16.msra.mxu0 0
      %5829 = vmatprep.subr.bf16.mxu0 0
      %5830 = vmatpush1.bf16.msra.mxu0 0
      %5831 = vmatprep.subr.bf16.mxu0 0
      %5832 = vmatpush1.bf16.msra.mxu0 0
      %5833 = vmatprep.subr.bf16.mxu0 0
      %5834 = vmatpush1.bf16.msra.mxu0 0
      %5835 = vmatprep.subr.bf16.mxu0 0
      %5836 = vmatpush1.bf16.msra.mxu0 0
      %5837 = vmatprep.mubr.bf16.mxu0 0
      %5838 = vmatmul.mubr.bf16.gmra.mrb[0].mxu0 %v5724
      %v5839 = vpop.f32.mrb[0].mxu0
      %v5840 = vadd.f32 0.0, %v5839
      %v5841 = vpop.f32.mrb[0].mxu0
      %v5842 = vpop.f32.mrb[0].mxu0
      %v5843 = vadd.f32 0.0, %v5842
      %v5844 = vpop.f32.mrb[0].mxu0
      %5845 = vmatprep.mubr.bf16.mxu0 0
      %5846 = vmatmul.mubr.bf16.gmra.mrb[0].mxu0 %v5725
      %v5847 = vpop.f32.mrb[0].mxu0
      %v5848 = vadd.f32 0.0, %v5847
      %v5849 = vpop.f32.mrb[0].mxu0
      %v5850 = vpop.f32.mrb[0].mxu0
      %v5851 = vadd.f32 0.0, %v5850
      %v5852 = vpop.f32.mrb[0].mxu0
      %5853 = vmatprep.mubr.bf16.mxu0 0
      %5854 = vmatmul.mubr.bf16.gmra.mrb[0].mxu0 %v5726
      %v5855 = vpop.f32.mrb[0].mxu0
      %v5856 = vadd.f32 0.0, %v5855
      %v5857 = vpop.f32.mrb[0].mxu0
      %v5858 = vpop.f32.mrb[0].mxu0
      %v5859 = vadd.f32 0.0, %v5858
      %v5860 = vpop.f32.mrb[0].mxu0
      %5861 = vmatprep.mubr.bf16.mxu0 0
      %5862 = vmatmul.mubr.bf16.gmra.mrb[0].mxu0 %v5727
      %v5863 = vpop.f32.mrb[0].mxu0
      %v5864 = vadd.f32 0.0, %v5863
      %v5865 = vpop.f32.mrb[0].mxu0
      %v5866 = vpop.f32.mrb[0].mxu0
      %v5867 = vadd.f32 0.0, %v5866
      %v5868 = vpop.f32.mrb[0].mxu0
      %5869 = vmatprep.mubr.bf16.mxu0 0
      %5870 = vmatmul.mubr.bf16.gmra.mrb[0].mxu0 %v5728
      %v5871 = vpop.f32.mrb[0].mxu0
      %v5872 = vadd.f32 0.0, %v5871
      %v5873 = vpop.f32.mrb[0].mxu0
      %v5874 = vpop.f32.mrb[0].mxu0
      %v5875 = vadd.f32 0.0, %v5874
      %v5876 = vpop.f32.mrb[0].mxu0
      %5877 = vmatprep.mubr.bf16.mxu0 0
      %5878 = vmatmul.mubr.bf16.gmra.mrb[0].mxu0 %v5729
      %v5879 = vpop.f32.mrb[0].mxu0
      %v5880 = vadd.f32 0.0, %v5879
      %v5881 = vpop.f32.mrb[0].mxu0
      %v5882 = vpop.f32.mrb[0].mxu0
      %v5883 = vadd.f32 0.0, %v5882
      %v5884 = vpop.f32.mrb[0].mxu0
      %5885 = vmatprep.mubr.bf16.mxu0 0
      %5886 = vmatmul.mubr.bf16.gmra.mrb[0].mxu0 %v5730
      %v5887 = vpop.f32.mrb[0].mxu0
      %v5888 = vadd.f32 0.0, %v5887
      %v5889 = vpop.f32.mrb[0].mxu0
      %v5890 = vpop.f32.mrb[0].mxu0
      %v5891 = vadd.f32 0.0, %v5890
      %v5892 = vpop.f32.mrb[0].mxu0
      %5893 = vmatprep.mubr.bf16.mxu0 0
      %5894 = vmatmul.mubr.bf16.gmra.mrb[0].mxu0 %v5731
      %v5895 = vpop.f32.mrb[0].mxu0
      %v5896 = vadd.f32 0.0, %v5895
      %v5897 = vpop.f32.mrb[0].mxu0
      %v5898 = vpop.f32.mrb[0].mxu0
      %v5899 = vadd.f32 0.0, %v5898
      %v5900 = vpop.f32.mrb[0].mxu0
      %5901 = vmatprep.mubr.bf16.mxu0 0
      %5902 = vmatmul.mubr.bf16.gmra.mrb[0].mxu0 %v5732
      %v5903 = vpop.f32.mrb[0].mxu0
      %v5904 = vadd.f32 0.0, %v5903
      %v5905 = vpop.f32.mrb[0].mxu0
      %v5906 = vpop.f32.mrb[0].mxu0
      %v5907 = vadd.f32 0.0, %v5906
      %v5908 = vpop.f32.mrb[0].mxu0
      %5909 = vmatprep.mubr.bf16.mxu0 0
      %5910 = vmatmul.mubr.bf16.gmra.mrb[0].mxu0 %v5733
      %v5911 = vpop.f32.mrb[0].mxu0
      %v5912 = vadd.f32 0.0, %v5911
      %v5913 = vpop.f32.mrb[0].mxu0
      %v5914 = vpop.f32.mrb[0].mxu0
      %v5915 = vadd.f32 0.0, %v5914
      %v5916 = vpop.f32.mrb[0].mxu0
      %5917 = vmatprep.mubr.bf16.mxu0 0
      %5918 = vmatmul.mubr.bf16.gmra.mrb[0].mxu0 %v5734
      %v5919 = vpop.f32.mrb[0].mxu0
      %v5920 = vadd.f32 0.0, %v5919
      %v5921 = vpop.f32.mrb[0].mxu0
      %v5922 = vpop.f32.mrb[0].mxu0
      %v5923 = vadd.f32 0.0, %v5922
      %v5924 = vpop.f32.mrb[0].mxu0
      %5925 = vmatprep.mubr.bf16.mxu0 0
      %5926 = vmatmul.mubr.bf16.gmra.mrb[0].mxu0 %v5735
      %v5927 = vpop.f32.mrb[0].mxu0
      %v5928 = vadd.f32 0.0, %v5927
      %v5929 = vpop.f32.mrb[0].mxu0
      %v5930 = vpop.f32.mrb[0].mxu0
      %v5931 = vadd.f32 0.0, %v5930
      %v5932 = vpop.f32.mrb[0].mxu0
      %5933 = vmatprep.mubr.bf16.mxu0 0
      %5934 = vmatmul.mubr.bf16.gmra.mrb[0].mxu0 %v5736
      %v5935 = vpop.f32.mrb[0].mxu0
      %v5936 = vadd.f32 0.0, %v5935
      %v5937 = vpop.f32.mrb[0].mxu0
      %v5938 = vpop.f32.mrb[0].mxu0
      %v5939 = vadd.f32 0.0, %v5938
      %v5940 = vpop.f32.mrb[0].mxu0
      %5941 = vmatprep.mubr.bf16.mxu0 0
      %5942 = vmatmul.mubr.bf16.gmra.mrb[0].mxu0 %v5737
      %v5943 = vpop.f32.mrb[0].mxu0
      %v5944 = vadd.f32 0.0, %v5943
      %v5945 = vpop.f32.mrb[0].mxu0
      %v5946 = vpop.f32.mrb[0].mxu0
      %v5947 = vadd.f32 0.0, %v5946
      %v5948 = vpop.f32.mrb[0].mxu0
      %5949 = vmatprep.mubr.bf16.mxu0 0
      %5950 = vmatmul.mubr.bf16.gmra.mrb[0].mxu0 %v5738
      %v5951 = vpop.f32.mrb[0].mxu0
      %v5952 = vadd.f32 0.0, %v5951
      %v5953 = vpop.f32.mrb[0].mxu0
      %v5954 = vpop.f32.mrb[0].mxu0
      %v5955 = vadd.f32 0.0, %v5954
      %v5956 = vpop.f32.mrb[0].mxu0
      %5957 = vmatprep.mubr.bf16.mxu0 0
      %5958 = vmatmul.mubr.bf16.gmra.mrb[0].mxu0 %v5739
      %v5959 = vpop.f32.mrb[0].mxu0
      %v5960 = vadd.f32 0.0, %v5959
      %v5961 = vpop.f32.mrb[0].mxu0
      %v5962 = vpop.f32.mrb[0].mxu0
      %v5963 = vadd.f32 0.0, %v5962
      %v5964 = vpop.f32.mrb[0].mxu0
      %5965 = vdwg.mxu0
      %v5966 = vadd.f32 %v5374, %v5840
      %v5967 = vadd.f32 %v5377, %v5843
      %v5968 = vadd.f32 %v5382, %v5848
      %v5969 = vadd.f32 %v5385, %v5851
      %v5970 = vadd.f32 %v5390, %v5856
      %v5971 = vadd.f32 %v5393, %v5859
      %v5972 = vadd.f32 %v5398, %v5864
      %v5973 = vadd.f32 %v5401, %v5867
      %v5974 = vadd.f32 %v5406, %v5872
      %v5975 = vadd.f32 %v5409, %v5875
      %v5976 = vadd.f32 %v5414, %v5880
      %v5977 = vadd.f32 %v5417, %v5883
      %v5978 = vadd.f32 %v5422, %v5888
      %v5979 = vadd.f32 %v5425, %v5891
      %v5980 = vadd.f32 %v5430, %v5896
      %v5981 = vadd.f32 %v5433, %v5899
      %v5982 = vadd.f32 %v5438, %v5904
      %v5983 = vadd.f32 %v5441, %v5907
      %v5984 = vadd.f32 %v5446, %v5912
      %v5985 = vadd.f32 %v5449, %v5915
      %v5986 = vadd.f32 %v5454, %v5920
      %v5987 = vadd.f32 %v5457, %v5923
      %v5988 = vadd.f32 %v5462, %v5928
      %v5989 = vadd.f32 %v5465, %v5931
      %v5990 = vadd.f32 %v5470, %v5936
      %v5991 = vadd.f32 %v5473, %v5939
      %v5992 = vadd.f32 %v5478, %v5944
      %v5993 = vadd.f32 %v5481, %v5947
      %v5994 = vadd.f32 %v5486, %v5952
      %v5995 = vadd.f32 %v5489, %v5955
      %v5996 = vadd.f32 %v5494, %v5960
      %v5997 = vadd.f32 %v5497, %v5963
      %v5998 = vld [vmem:[#allocation3 + $0x26] sm:$0xff]
      %v5999 = vld [vmem:[#allocation3 + $0x2e] sm:$0xff]
      %v6000 = vld [vmem:[#allocation3 + $0x36] sm:$0xff]
      %v6001 = vld [vmem:[#allocation3 + $0x3e] sm:$0xff]
      %v6002 = vld [vmem:[#allocation3 + $0x46] sm:$0xff]
      %v6003 = vld [vmem:[#allocation3 + $0x4e] sm:$0xff]
      %v6004 = vld [vmem:[#allocation3 + $0x56] sm:$0xff]
      %v6005 = vld [vmem:[#allocation3 + $0x5e] sm:$0xff]
      %v6006 = vld [vmem:[#allocation3 + $0x66] sm:$0xff]
      %v6007 = vld [vmem:[#allocation3 + $0x6e] sm:$0xff]
      %v6008 = vld [vmem:[#allocation3 + $0x76] sm:$0xff]
      %v6009 = vld [vmem:[#allocation3 + $0x7e] sm:$0xff]
      %v6010 = vld [vmem:[#allocation3 + $0x86] sm:$0xff]
      %v6011 = vld [vmem:[#allocation3 + $0x8e] sm:$0xff]
      %v6012 = vld [vmem:[#allocation3 + $0x96] sm:$0xff]
      %v6013 = vld [vmem:[#allocation3 + $0x9e] sm:$0xff]
      %v6014 = vld [vmem:[#allocation3 + $0xa6] sm:$0xff]
      %v6015 = vld [vmem:[#allocation3 + $0xae] sm:$0xff]
      %v6016 = vld [vmem:[#allocation3 + $0xb6] sm:$0xff]
      %v6017 = vld [vmem:[#allocation3 + $0xbe] sm:$0xff]
      %v6018 = vld [vmem:[#allocation3 + $0xc6] sm:$0xff]
      %v6019 = vld [vmem:[#allocation3 + $0xce] sm:$0xff]
      %v6020 = vld [vmem:[#allocation3 + $0xd6] sm:$0xff]
      %v6021 = vld [vmem:[#allocation3 + $0xde] sm:$0xff]
      %v6022 = vld [vmem:[#allocation3 + $0xe6] sm:$0xff]
      %v6023 = vld [vmem:[#allocation3 + $0xee] sm:$0xff]
      %v6024 = vld [vmem:[#allocation3 + $0xf6] sm:$0xff]
      %v6025 = vld [vmem:[#allocation3 + $0xfe] sm:$0xff]
      %v6026 = vld [vmem:[#allocation3 + $0x106] sm:$0xff]
      %v6027 = vld [vmem:[#allocation3 + $0x10e] sm:$0xff]
      %v6028 = vld [vmem:[#allocation3 + $0x116] sm:$0xff]
      %v6029 = vld [vmem:[#allocation3 + $0x11e] sm:$0xff]
      %v6030 = vmul.f32 %v5998, %v4796
      %v6031 = vmul.f32 %v5999, %v4801
      %v6032 = vmul.f32 %v6000, %v4806
      %v6033 = vmul.f32 %v6001, %v4811
      %v6034 = vmul.f32 %v6002, %v4816
      %v6035 = vmul.f32 %v6003, %v4821
      %v6036 = vmul.f32 %v6004, %v4826
      %v6037 = vmul.f32 %v6005, %v4831
      %v6038 = vmul.f32 %v6006, %v4836
      %v6039 = vmul.f32 %v6007, %v4841
      %v6040 = vmul.f32 %v6008, %v4846
      %v6041 = vmul.f32 %v6009, %v4851
      %v6042 = vmul.f32 %v6010, %v4856
      %v6043 = vmul.f32 %v6011, %v4861
      %v6044 = vmul.f32 %v6012, %v4866
      %v6045 = vmul.f32 %v6013, %v4871
      %v6046 = vmul.f32 %v6014, %v4876
      %v6047 = vmul.f32 %v6015, %v4881
      %v6048 = vmul.f32 %v6016, %v4886
      %v6049 = vmul.f32 %v6017, %v4891
      %v6050 = vmul.f32 %v6018, %v4896
      %v6051 = vmul.f32 %v6019, %v4901
      %v6052 = vmul.f32 %v6020, %v4906
      %v6053 = vmul.f32 %v6021, %v4911
      %v6054 = vmul.f32 %v6022, %v4916
      %v6055 = vmul.f32 %v6023, %v4921
      %v6056 = vmul.f32 %v6024, %v4926
      %v6057 = vmul.f32 %v6025, %v4931
      %v6058 = vmul.f32 %v6026, %v4936
      %v6059 = vmul.f32 %v6027, %v4941
      %v6060 = vmul.f32 %v6028, %v4946
      %v6061 = vmul.f32 %v6029, %v4951
      %v6062 = vpack.c.bf16 %v6031, %v6030
      %v6063 = vpack.c.bf16 %v6033, %v6032
      %v6064 = vpack.c.bf16 %v6035, %v6034
      %v6065 = vpack.c.bf16 %v6037, %v6036
      %v6066 = vpack.c.bf16 %v6039, %v6038
      %v6067 = vpack.c.bf16 %v6041, %v6040
      %v6068 = vpack.c.bf16 %v6043, %v6042
      %v6069 = vpack.c.bf16 %v6045, %v6044
      %v6070 = vpack.c.bf16 %v6047, %v6046
      %v6071 = vpack.c.bf16 %v6049, %v6048
      %v6072 = vpack.c.bf16 %v6051, %v6050
      %v6073 = vpack.c.bf16 %v6053, %v6052
      %v6074 = vpack.c.bf16 %v6055, %v6054
      %v6075 = vpack.c.bf16 %v6057, %v6056
      %v6076 = vpack.c.bf16 %v6059, %v6058
      %v6077 = vpack.c.bf16 %v6061, %v6060
      %s6078 = scalar_lea.vmem %s8, 192
      %v6079 = vld [vmem:[%s6078] sm:$0xf]
      %v6080 = vld [vmem:[%s6078 + $0x4] sm:$0xf]
      %v6081 = vld [vmem:[%s6078 + $0x8] sm:$0xf]
      %v6082 = vld [vmem:[%s6078 + $0xc] sm:$0xf]
      %v6083 = vld [vmem:[%s6078 + $0x10] sm:$0xf]
      %v6084 = vld [vmem:[%s6078 + $0x14] sm:$0xf]
      %v6085 = vld [vmem:[%s6078 + $0x18] sm:$0xf]
      %v6086 = vld [vmem:[%s6078 + $0x1c] sm:$0xf]
      %v6087 = vld [vmem:[%s6078 + $0x20] sm:$0xf]
      %v6088 = vld [vmem:[%s6078 + $0x24] sm:$0xf]
      %v6089 = vld [vmem:[%s6078 + $0x28] sm:$0xf]
      %v6090 = vld [vmem:[%s6078 + $0x2c] sm:$0xf]
      %v6091 = vld [vmem:[%s6078 + $0x30] sm:$0xf]
      %v6092 = vld [vmem:[%s6078 + $0x34] sm:$0xf]
      %v6093 = vld [vmem:[%s6078 + $0x38] sm:$0xf]
      %v6094 = vld [vmem:[%s6078 + $0x3c] sm:$0xf]
      %v6111 = vunpack.c.l.b16 %v6079
      %v6112 = vunpack.c.l.b16 %v6080
      %v6113 = vunpack.c.l.b16 %v6081
      %v6114 = vunpack.c.l.b16 %v6082
      %v6115 = vunpack.c.l.b16 %v6083
      %v6116 = vunpack.c.l.b16 %v6084
      %v6117 = vunpack.c.l.b16 %v6085
      %v6118 = vunpack.c.l.b16 %v6086
      %v6119 = vunpack.c.l.b16 %v6087
      %v6120 = vunpack.c.l.b16 %v6088
      %v6121 = vunpack.c.l.b16 %v6089
      %v6122 = vunpack.c.l.b16 %v6090
      %v6123 = vunpack.c.l.b16 %v6091
      %v6124 = vunpack.c.l.b16 %v6092
      %v6125 = vunpack.c.l.b16 %v6093
      %v6126 = vunpack.c.l.b16 %v6094
      %v6127 = vpack.c.b16 %v6112, %v6111
      %v6128 = vpack.c.b16 %v6114, %v6113
      %v6129 = vpack.c.b16 %v6116, %v6115
      %v6130 = vpack.c.b16 %v6118, %v6117
      %v6131 = vpack.c.b16 %v6120, %v6119
      %v6132 = vpack.c.b16 %v6122, %v6121
      %v6133 = vpack.c.b16 %v6124, %v6123
      %v6134 = vpack.c.b16 %v6126, %v6125
      %6143 = vmatprep.subr.bf16.mxu0 0
      %6144 = vmatpush1.bf16.msra.mxu0 %v6127
      %6145 = vmatprep.subr.bf16.mxu0 0
      %6146 = vmatpush1.bf16.msra.mxu0 %v6128
      %6147 = vmatprep.subr.bf16.mxu0 0
      %6148 = vmatpush1.bf16.msra.mxu0 %v6129
      %6149 = vmatprep.subr.bf16.mxu0 0
      %6150 = vmatpush1.bf16.msra.mxu0 %v6130
      %6151 = vmatprep.subr.bf16.mxu0 0
      %6152 = vmatpush1.bf16.msra.mxu0 %v6131
      %6153 = vmatprep.subr.bf16.mxu0 0
      %6154 = vmatpush1.bf16.msra.mxu0 %v6132
      %6155 = vmatprep.subr.bf16.mxu0 0
      %6156 = vmatpush1.bf16.msra.mxu0 %v6133
      %6157 = vmatprep.subr.bf16.mxu0 0
      %6158 = vmatpush1.bf16.msra.mxu0 %v6134
      %6159 = vmatprep.subr.bf16.mxu0 0
      %6160 = vmatpush1.bf16.msra.mxu0 0
      %6161 = vmatprep.subr.bf16.mxu0 0
      %6162 = vmatpush1.bf16.msra.mxu0 0
      %6163 = vmatprep.subr.bf16.mxu0 0
      %6164 = vmatpush1.bf16.msra.mxu0 0
      %6165 = vmatprep.subr.bf16.mxu0 0
      %6166 = vmatpush1.bf16.msra.mxu0 0
      %6167 = vmatprep.subr.bf16.mxu0 0
      %6168 = vmatpush1.bf16.msra.mxu0 0
      %6169 = vmatprep.subr.bf16.mxu0 0
      %6170 = vmatpush1.bf16.msra.mxu0 0
      %6171 = vmatprep.subr.bf16.mxu0 0
      %6172 = vmatpush1.bf16.msra.mxu0 0
      %6173 = vmatprep.subr.bf16.mxu0 0
      %6174 = vmatpush1.bf16.msra.mxu0 0
      %6175 = vmatprep.mubr.bf16.mxu0 0
      %6176 = vmatmul.mubr.bf16.gmra.mrb[0].mxu0 %v6062
      %v6177 = vpop.f32.mrb[0].mxu0
      %v6178 = vadd.f32 0.0, %v6177
      %v6179 = vpop.f32.mrb[0].mxu0
      %v6180 = vpop.f32.mrb[0].mxu0
      %v6181 = vadd.f32 0.0, %v6180
      %v6182 = vpop.f32.mrb[0].mxu0
      %6183 = vmatprep.mubr.bf16.mxu0 0
      %6184 = vmatmul.mubr.bf16.gmra.mrb[0].mxu0 %v6063
      %v6185 = vpop.f32.mrb[0].mxu0
      %v6186 = vadd.f32 0.0, %v6185
      %v6187 = vpop.f32.mrb[0].mxu0
      %v6188 = vpop.f32.mrb[0].mxu0
      %v6189 = vadd.f32 0.0, %v6188
      %v6190 = vpop.f32.mrb[0].mxu0
      %6191 = vmatprep.mubr.bf16.mxu0 0
      %6192 = vmatmul.mubr.bf16.gmra.mrb[0].mxu0 %v6064
      %v6193 = vpop.f32.mrb[0].mxu0
      %v6194 = vadd.f32 0.0, %v6193
      %v6195 = vpop.f32.mrb[0].mxu0
      %v6196 = vpop.f32.mrb[0].mxu0
      %v6197 = vadd.f32 0.0, %v6196
      %v6198 = vpop.f32.mrb[0].mxu0
      %6199 = vmatprep.mubr.bf16.mxu0 0
      %6200 = vmatmul.mubr.bf16.gmra.mrb[0].mxu0 %v6065
      %v6201 = vpop.f32.mrb[0].mxu0
      %v6202 = vadd.f32 0.0, %v6201
      %v6203 = vpop.f32.mrb[0].mxu0
      %v6204 = vpop.f32.mrb[0].mxu0
      %v6205 = vadd.f32 0.0, %v6204
      %v6206 = vpop.f32.mrb[0].mxu0
      %6207 = vmatprep.mubr.bf16.mxu0 0
      %6208 = vmatmul.mubr.bf16.gmra.mrb[0].mxu0 %v6066
      %v6209 = vpop.f32.mrb[0].mxu0
      %v6210 = vadd.f32 0.0, %v6209
      %v6211 = vpop.f32.mrb[0].mxu0
      %v6212 = vpop.f32.mrb[0].mxu0
      %v6213 = vadd.f32 0.0, %v6212
      %v6214 = vpop.f32.mrb[0].mxu0
      %6215 = vmatprep.mubr.bf16.mxu0 0
      %6216 = vmatmul.mubr.bf16.gmra.mrb[0].mxu0 %v6067
      %v6217 = vpop.f32.mrb[0].mxu0
      %v6218 = vadd.f32 0.0, %v6217
      %v6219 = vpop.f32.mrb[0].mxu0
      %v6220 = vpop.f32.mrb[0].mxu0
      %v6221 = vadd.f32 0.0, %v6220
      %v6222 = vpop.f32.mrb[0].mxu0
      %6223 = vmatprep.mubr.bf16.mxu0 0
      %6224 = vmatmul.mubr.bf16.gmra.mrb[0].mxu0 %v6068
      %v6225 = vpop.f32.mrb[0].mxu0
      %v6226 = vadd.f32 0.0, %v6225
      %v6227 = vpop.f32.mrb[0].mxu0
      %v6228 = vpop.f32.mrb[0].mxu0
      %v6229 = vadd.f32 0.0, %v6228
      %v6230 = vpop.f32.mrb[0].mxu0
      %6231 = vmatprep.mubr.bf16.mxu0 0
      %6232 = vmatmul.mubr.bf16.gmra.mrb[0].mxu0 %v6069
      %v6233 = vpop.f32.mrb[0].mxu0
      %v6234 = vadd.f32 0.0, %v6233
      %v6235 = vpop.f32.mrb[0].mxu0
      %v6236 = vpop.f32.mrb[0].mxu0
      %v6237 = vadd.f32 0.0, %v6236
      %v6238 = vpop.f32.mrb[0].mxu0
      %6239 = vmatprep.mubr.bf16.mxu0 0
      %6240 = vmatmul.mubr.bf16.gmra.mrb[0].mxu0 %v6070
      %v6241 = vpop.f32.mrb[0].mxu0
      %v6242 = vadd.f32 0.0, %v6241
      %v6243 = vpop.f32.mrb[0].mxu0
      %v6244 = vpop.f32.mrb[0].mxu0
      %v6245 = vadd.f32 0.0, %v6244
      %v6246 = vpop.f32.mrb[0].mxu0
      %6247 = vmatprep.mubr.bf16.mxu0 0
      %6248 = vmatmul.mubr.bf16.gmra.mrb[0].mxu0 %v6071
      %v6249 = vpop.f32.mrb[0].mxu0
      %v6250 = vadd.f32 0.0, %v6249
      %v6251 = vpop.f32.mrb[0].mxu0
      %v6252 = vpop.f32.mrb[0].mxu0
      %v6253 = vadd.f32 0.0, %v6252
      %v6254 = vpop.f32.mrb[0].mxu0
      %6255 = vmatprep.mubr.bf16.mxu0 0
      %6256 = vmatmul.mubr.bf16.gmra.mrb[0].mxu0 %v6072
      %v6257 = vpop.f32.mrb[0].mxu0
      %v6258 = vadd.f32 0.0, %v6257
      %v6259 = vpop.f32.mrb[0].mxu0
      %v6260 = vpop.f32.mrb[0].mxu0
      %v6261 = vadd.f32 0.0, %v6260
      %v6262 = vpop.f32.mrb[0].mxu0
      %6263 = vmatprep.mubr.bf16.mxu0 0
      %6264 = vmatmul.mubr.bf16.gmra.mrb[0].mxu0 %v6073
      %v6265 = vpop.f32.mrb[0].mxu0
      %v6266 = vadd.f32 0.0, %v6265
      %v6267 = vpop.f32.mrb[0].mxu0
      %v6268 = vpop.f32.mrb[0].mxu0
      %v6269 = vadd.f32 0.0, %v6268
      %v6270 = vpop.f32.mrb[0].mxu0
      %6271 = vmatprep.mubr.bf16.mxu0 0
      %6272 = vmatmul.mubr.bf16.gmra.mrb[0].mxu0 %v6074
      %v6273 = vpop.f32.mrb[0].mxu0
      %v6274 = vadd.f32 0.0, %v6273
      %v6275 = vpop.f32.mrb[0].mxu0
      %v6276 = vpop.f32.mrb[0].mxu0
      %v6277 = vadd.f32 0.0, %v6276
      %v6278 = vpop.f32.mrb[0].mxu0
      %6279 = vmatprep.mubr.bf16.mxu0 0
      %6280 = vmatmul.mubr.bf16.gmra.mrb[0].mxu0 %v6075
      %v6281 = vpop.f32.mrb[0].mxu0
      %v6282 = vadd.f32 0.0, %v6281
      %v6283 = vpop.f32.mrb[0].mxu0
      %v6284 = vpop.f32.mrb[0].mxu0
      %v6285 = vadd.f32 0.0, %v6284
      %v6286 = vpop.f32.mrb[0].mxu0
      %6287 = vmatprep.mubr.bf16.mxu0 0
      %6288 = vmatmul.mubr.bf16.gmra.mrb[0].mxu0 %v6076
      %v6289 = vpop.f32.mrb[0].mxu0
      %v6290 = vadd.f32 0.0, %v6289
      %v6291 = vpop.f32.mrb[0].mxu0
      %v6292 = vpop.f32.mrb[0].mxu0
      %v6293 = vadd.f32 0.0, %v6292
      %v6294 = vpop.f32.mrb[0].mxu0
      %6295 = vmatprep.mubr.bf16.mxu0 0
      %6296 = vmatmul.mubr.bf16.gmra.mrb[0].mxu0 %v6077
      %v6297 = vpop.f32.mrb[0].mxu0
      %v6298 = vadd.f32 0.0, %v6297
      %v6299 = vpop.f32.mrb[0].mxu0
      %v6300 = vpop.f32.mrb[0].mxu0
      %v6301 = vadd.f32 0.0, %v6300
      %v6302 = vpop.f32.mrb[0].mxu0
      %6303 = vdwg.mxu0
      %v6304 = vadd.f32 %v5966, %v6178
      %v6305 = vadd.f32 %v5967, %v6181
      %v6306 = vadd.f32 %v5968, %v6186
      %v6307 = vadd.f32 %v5969, %v6189
      %v6308 = vadd.f32 %v5970, %v6194
      %v6309 = vadd.f32 %v5971, %v6197
      %v6310 = vadd.f32 %v5972, %v6202
      %v6311 = vadd.f32 %v5973, %v6205
      %v6312 = vadd.f32 %v5974, %v6210
      %v6313 = vadd.f32 %v5975, %v6213
      %v6314 = vadd.f32 %v5976, %v6218
      %v6315 = vadd.f32 %v5977, %v6221
      %v6316 = vadd.f32 %v5978, %v6226
      %v6317 = vadd.f32 %v5979, %v6229
      %v6318 = vadd.f32 %v5980, %v6234
      %v6319 = vadd.f32 %v5981, %v6237
      %v6320 = vadd.f32 %v5982, %v6242
      %v6321 = vadd.f32 %v5983, %v6245
      %v6322 = vadd.f32 %v5984, %v6250
      %v6323 = vadd.f32 %v5985, %v6253
      %v6324 = vadd.f32 %v5986, %v6258
      %v6325 = vadd.f32 %v5987, %v6261
      %v6326 = vadd.f32 %v5988, %v6266
      %v6327 = vadd.f32 %v5989, %v6269
      %v6328 = vadd.f32 %v5990, %v6274
      %v6329 = vadd.f32 %v5991, %v6277
      %v6330 = vadd.f32 %v5992, %v6282
      %v6331 = vadd.f32 %v5993, %v6285
      %v6332 = vadd.f32 %v5994, %v6290
      %v6333 = vadd.f32 %v5995, %v6293
      %v6334 = vadd.f32 %v5996, %v6298
      %v6335 = vadd.f32 %v5997, %v6301
      %v6336 = vld [vmem:[#allocation3 + $0x28] sm:$0xff]
      %v6337 = vld [vmem:[#allocation3 + $0x30] sm:$0xff]
      %v6338 = vld [vmem:[#allocation3 + $0x38] sm:$0xff]
      %v6339 = vld [vmem:[#allocation3 + $0x40] sm:$0xff]
      %v6340 = vld [vmem:[#allocation3 + $0x48] sm:$0xff]
      %v6341 = vld [vmem:[#allocation3 + $0x50] sm:$0xff]
      %v6342 = vld [vmem:[#allocation3 + $0x58] sm:$0xff]
      %v6343 = vld [vmem:[#allocation3 + $0x60] sm:$0xff]
      %v6344 = vld [vmem:[#allocation3 + $0x68] sm:$0xff]
      %v6345 = vld [vmem:[#allocation3 + $0x70] sm:$0xff]
      %v6346 = vld [vmem:[#allocation3 + $0x78] sm:$0xff]
      %v6347 = vld [vmem:[#allocation3 + $0x80] sm:$0xff]
      %v6348 = vld [vmem:[#allocation3 + $0x88] sm:$0xff]
      %v6349 = vld [vmem:[#allocation3 + $0x90] sm:$0xff]
      %v6350 = vld [vmem:[#allocation3 + $0x98] sm:$0xff]
      %v6351 = vld [vmem:[#allocation3 + $0xa0] sm:$0xff]
      %v6352 = vld [vmem:[#allocation3 + $0xa8] sm:$0xff]
      %v6353 = vld [vmem:[#allocation3 + $0xb0] sm:$0xff]
      %v6354 = vld [vmem:[#allocation3 + $0xb8] sm:$0xff]
      %v6355 = vld [vmem:[#allocation3 + $0xc0] sm:$0xff]
      %v6356 = vld [vmem:[#allocation3 + $0xc8] sm:$0xff]
      %v6357 = vld [vmem:[#allocation3 + $0xd0] sm:$0xff]
      %v6358 = vld [vmem:[#allocation3 + $0xd8] sm:$0xff]
      %v6359 = vld [vmem:[#allocation3 + $0xe0] sm:$0xff]
      %v6360 = vld [vmem:[#allocation3 + $0xe8] sm:$0xff]
      %v6361 = vld [vmem:[#allocation3 + $0xf0] sm:$0xff]
      %v6362 = vld [vmem:[#allocation3 + $0xf8] sm:$0xff]
      %v6363 = vld [vmem:[#allocation3 + $0x100] sm:$0xff]
      %v6364 = vld [vmem:[#allocation3 + $0x108] sm:$0xff]
      %v6365 = vld [vmem:[#allocation3 + $0x110] sm:$0xff]
      %v6366 = vld [vmem:[#allocation3 + $0x118] sm:$0xff]
      %v6367 = vld [vmem:[#allocation3 + $0x120] sm:$0xff]
      %v6368 = vpack.c.bf16 %v6337, %v6336
      %v6369 = vpack.c.bf16 %v6339, %v6338
      %v6370 = vpack.c.bf16 %v6341, %v6340
      %v6371 = vpack.c.bf16 %v6343, %v6342
      %v6372 = vpack.c.bf16 %v6345, %v6344
      %v6373 = vpack.c.bf16 %v6347, %v6346
      %v6374 = vpack.c.bf16 %v6349, %v6348
      %v6375 = vpack.c.bf16 %v6351, %v6350
      %v6376 = vpack.c.bf16 %v6353, %v6352
      %v6377 = vpack.c.bf16 %v6355, %v6354
      %v6378 = vpack.c.bf16 %v6357, %v6356
      %v6379 = vpack.c.bf16 %v6359, %v6358
      %v6380 = vpack.c.bf16 %v6361, %v6360
      %v6381 = vpack.c.bf16 %v6363, %v6362
      %v6382 = vpack.c.bf16 %v6365, %v6364
      %v6383 = vpack.c.bf16 %v6367, %v6366
      %s6384 = scalar_lea.vmem %s8, 256
      %v6385 = vld [vmem:[%s6384] sm:$0xf]
      %v6386 = vld [vmem:[%s6384 + $0x4] sm:$0xf]
      %v6387 = vld [vmem:[%s6384 + $0x8] sm:$0xf]
      %v6388 = vld [vmem:[%s6384 + $0xc] sm:$0xf]
      %v6389 = vld [vmem:[%s6384 + $0x10] sm:$0xf]
      %v6390 = vld [vmem:[%s6384 + $0x14] sm:$0xf]
      %v6391 = vld [vmem:[%s6384 + $0x18] sm:$0xf]
      %v6392 = vld [vmem:[%s6384 + $0x1c] sm:$0xf]
      %v6393 = vld [vmem:[%s6384 + $0x20] sm:$0xf]
      %v6394 = vld [vmem:[%s6384 + $0x24] sm:$0xf]
      %v6395 = vld [vmem:[%s6384 + $0x28] sm:$0xf]
      %v6396 = vld [vmem:[%s6384 + $0x2c] sm:$0xf]
      %v6397 = vld [vmem:[%s6384 + $0x30] sm:$0xf]
      %v6398 = vld [vmem:[%s6384 + $0x34] sm:$0xf]
      %v6399 = vld [vmem:[%s6384 + $0x38] sm:$0xf]
      %v6400 = vld [vmem:[%s6384 + $0x3c] sm:$0xf]
      %v6417 = vunpack.c.l.b16 %v6385
      %v6418 = vunpack.c.l.b16 %v6386
      %v6419 = vunpack.c.l.b16 %v6387
      %v6420 = vunpack.c.l.b16 %v6388
      %v6421 = vunpack.c.l.b16 %v6389
      %v6422 = vunpack.c.l.b16 %v6390
      %v6423 = vunpack.c.l.b16 %v6391
      %v6424 = vunpack.c.l.b16 %v6392
      %v6425 = vunpack.c.l.b16 %v6393
      %v6426 = vunpack.c.l.b16 %v6394
      %v6427 = vunpack.c.l.b16 %v6395
      %v6428 = vunpack.c.l.b16 %v6396
      %v6429 = vunpack.c.l.b16 %v6397
      %v6430 = vunpack.c.l.b16 %v6398
      %v6431 = vunpack.c.l.b16 %v6399
      %v6432 = vunpack.c.l.b16 %v6400
      %v6433 = vpack.c.b16 %v6418, %v6417
      %v6434 = vpack.c.b16 %v6420, %v6419
      %v6435 = vpack.c.b16 %v6422, %v6421
      %v6436 = vpack.c.b16 %v6424, %v6423
      %v6437 = vpack.c.b16 %v6426, %v6425
      %v6438 = vpack.c.b16 %v6428, %v6427
      %v6439 = vpack.c.b16 %v6430, %v6429
      %v6440 = vpack.c.b16 %v6432, %v6431
      %6449 = vmatprep.subr.bf16.mxu0 0
      %6450 = vmatpush1.bf16.msra.mxu0 %v6433
      %6451 = vmatprep.subr.bf16.mxu0 0
      %6452 = vmatpush1.bf16.msra.mxu0 %v6434
      %6453 = vmatprep.subr.bf16.mxu0 0
      %6454 = vmatpush1.bf16.msra.mxu0 %v6435
      %6455 = vmatprep.subr.bf16.mxu0 0
      %6456 = vmatpush1.bf16.msra.mxu0 %v6436
      %6457 = vmatprep.subr.bf16.mxu0 0
      %6458 = vmatpush1.bf16.msra.mxu0 %v6437
      %6459 = vmatprep.subr.bf16.mxu0 0
      %6460 = vmatpush1.bf16.msra.mxu0 %v6438
      %6461 = vmatprep.subr.bf16.mxu0 0
      %6462 = vmatpush1.bf16.msra.mxu0 %v6439
      %6463 = vmatprep.subr.bf16.mxu0 0
      %6464 = vmatpush1.bf16.msra.mxu0 %v6440
      %6465 = vmatprep.subr.bf16.mxu0 0
      %6466 = vmatpush1.bf16.msra.mxu0 0
      %6467 = vmatprep.subr.bf16.mxu0 0
      %6468 = vmatpush1.bf16.msra.mxu0 0
      %6469 = vmatprep.subr.bf16.mxu0 0
      %6470 = vmatpush1.bf16.msra.mxu0 0
      %6471 = vmatprep.subr.bf16.mxu0 0
      %6472 = vmatpush1.bf16.msra.mxu0 0
      %6473 = vmatprep.subr.bf16.mxu0 0
      %6474 = vmatpush1.bf16.msra.mxu0 0
      %6475 = vmatprep.subr.bf16.mxu0 0
      %6476 = vmatpush1.bf16.msra.mxu0 0
      %6477 = vmatprep.subr.bf16.mxu0 0
      %6478 = vmatpush1.bf16.msra.mxu0 0
      %6479 = vmatprep.subr.bf16.mxu0 0
      %6480 = vmatpush1.bf16.msra.mxu0 0
      %6481 = vmatprep.mubr.bf16.mxu0 0
      %6482 = vmatmul.mubr.bf16.gmra.mrb[0].mxu0 %v6368
      %v6483 = vpop.f32.mrb[0].mxu0
      %v6484 = vadd.f32 0.0, %v6483
      %v6485 = vpop.f32.mrb[0].mxu0
      %v6486 = vpop.f32.mrb[0].mxu0
      %v6487 = vadd.f32 0.0, %v6486
      %v6488 = vpop.f32.mrb[0].mxu0
      %6489 = vmatprep.mubr.bf16.mxu0 0
      %6490 = vmatmul.mubr.bf16.gmra.mrb[0].mxu0 %v6369
      %v6491 = vpop.f32.mrb[0].mxu0
      %v6492 = vadd.f32 0.0, %v6491
      %v6493 = vpop.f32.mrb[0].mxu0
      %v6494 = vpop.f32.mrb[0].mxu0
      %v6495 = vadd.f32 0.0, %v6494
      %v6496 = vpop.f32.mrb[0].mxu0
      %6497 = vmatprep.mubr.bf16.mxu0 0
      %6498 = vmatmul.mubr.bf16.gmra.mrb[0].mxu0 %v6370
      %v6499 = vpop.f32.mrb[0].mxu0
      %v6500 = vadd.f32 0.0, %v6499
      %v6501 = vpop.f32.mrb[0].mxu0
      %v6502 = vpop.f32.mrb[0].mxu0
      %v6503 = vadd.f32 0.0, %v6502
      %v6504 = vpop.f32.mrb[0].mxu0
      %6505 = vmatprep.mubr.bf16.mxu0 0
      %6506 = vmatmul.mubr.bf16.gmra.mrb[0].mxu0 %v6371
      %v6507 = vpop.f32.mrb[0].mxu0
      %v6508 = vadd.f32 0.0, %v6507
      %v6509 = vpop.f32.mrb[0].mxu0
      %v6510 = vpop.f32.mrb[0].mxu0
      %v6511 = vadd.f32 0.0, %v6510
      %v6512 = vpop.f32.mrb[0].mxu0
      %6513 = vmatprep.mubr.bf16.mxu0 0
      %6514 = vmatmul.mubr.bf16.gmra.mrb[0].mxu0 %v6372
      %v6515 = vpop.f32.mrb[0].mxu0
      %v6516 = vadd.f32 0.0, %v6515
      %v6517 = vpop.f32.mrb[0].mxu0
      %v6518 = vpop.f32.mrb[0].mxu0
      %v6519 = vadd.f32 0.0, %v6518
      %v6520 = vpop.f32.mrb[0].mxu0
      %6521 = vmatprep.mubr.bf16.mxu0 0
      %6522 = vmatmul.mubr.bf16.gmra.mrb[0].mxu0 %v6373
      %v6523 = vpop.f32.mrb[0].mxu0
      %v6524 = vadd.f32 0.0, %v6523
      %v6525 = vpop.f32.mrb[0].mxu0
      %v6526 = vpop.f32.mrb[0].mxu0
      %v6527 = vadd.f32 0.0, %v6526
      %v6528 = vpop.f32.mrb[0].mxu0
      %6529 = vmatprep.mubr.bf16.mxu0 0
      %6530 = vmatmul.mubr.bf16.gmra.mrb[0].mxu0 %v6374
      %v6531 = vpop.f32.mrb[0].mxu0
      %v6532 = vadd.f32 0.0, %v6531
      %v6533 = vpop.f32.mrb[0].mxu0
      %v6534 = vpop.f32.mrb[0].mxu0
      %v6535 = vadd.f32 0.0, %v6534
      %v6536 = vpop.f32.mrb[0].mxu0
      %6537 = vmatprep.mubr.bf16.mxu0 0
      %6538 = vmatmul.mubr.bf16.gmra.mrb[0].mxu0 %v6375
      %v6539 = vpop.f32.mrb[0].mxu0
      %v6540 = vadd.f32 0.0, %v6539
      %v6541 = vpop.f32.mrb[0].mxu0
      %v6542 = vpop.f32.mrb[0].mxu0
      %v6543 = vadd.f32 0.0, %v6542
      %v6544 = vpop.f32.mrb[0].mxu0
      %6545 = vmatprep.mubr.bf16.mxu0 0
      %6546 = vmatmul.mubr.bf16.gmra.mrb[0].mxu0 %v6376
      %v6547 = vpop.f32.mrb[0].mxu0
      %v6548 = vadd.f32 0.0, %v6547
      %v6549 = vpop.f32.mrb[0].mxu0
      %v6550 = vpop.f32.mrb[0].mxu0
      %v6551 = vadd.f32 0.0, %v6550
      %v6552 = vpop.f32.mrb[0].mxu0
      %6553 = vmatprep.mubr.bf16.mxu0 0
      %6554 = vmatmul.mubr.bf16.gmra.mrb[0].mxu0 %v6377
      %v6555 = vpop.f32.mrb[0].mxu0
      %v6556 = vadd.f32 0.0, %v6555
      %v6557 = vpop.f32.mrb[0].mxu0
      %v6558 = vpop.f32.mrb[0].mxu0
      %v6559 = vadd.f32 0.0, %v6558
      %v6560 = vpop.f32.mrb[0].mxu0
      %6561 = vmatprep.mubr.bf16.mxu0 0
      %6562 = vmatmul.mubr.bf16.gmra.mrb[0].mxu0 %v6378
      %v6563 = vpop.f32.mrb[0].mxu0
      %v6564 = vadd.f32 0.0, %v6563
      %v6565 = vpop.f32.mrb[0].mxu0
      %v6566 = vpop.f32.mrb[0].mxu0
      %v6567 = vadd.f32 0.0, %v6566
      %v6568 = vpop.f32.mrb[0].mxu0
      %6569 = vmatprep.mubr.bf16.mxu0 0
      %6570 = vmatmul.mubr.bf16.gmra.mrb[0].mxu0 %v6379
      %v6571 = vpop.f32.mrb[0].mxu0
      %v6572 = vadd.f32 0.0, %v6571
      %v6573 = vpop.f32.mrb[0].mxu0
      %v6574 = vpop.f32.mrb[0].mxu0
      %v6575 = vadd.f32 0.0, %v6574
      %v6576 = vpop.f32.mrb[0].mxu0
      %6577 = vmatprep.mubr.bf16.mxu0 0
      %6578 = vmatmul.mubr.bf16.gmra.mrb[0].mxu0 %v6380
      %v6579 = vpop.f32.mrb[0].mxu0
      %v6580 = vadd.f32 0.0, %v6579
      %v6581 = vpop.f32.mrb[0].mxu0
      %v6582 = vpop.f32.mrb[0].mxu0
      %v6583 = vadd.f32 0.0, %v6582
      %v6584 = vpop.f32.mrb[0].mxu0
      %6585 = vmatprep.mubr.bf16.mxu0 0
      %6586 = vmatmul.mubr.bf16.gmra.mrb[0].mxu0 %v6381
      %v6587 = vpop.f32.mrb[0].mxu0
      %v6588 = vadd.f32 0.0, %v6587
      %v6589 = vpop.f32.mrb[0].mxu0
      %v6590 = vpop.f32.mrb[0].mxu0
      %v6591 = vadd.f32 0.0, %v6590
      %v6592 = vpop.f32.mrb[0].mxu0
      %6593 = vmatprep.mubr.bf16.mxu0 0
      %6594 = vmatmul.mubr.bf16.gmra.mrb[0].mxu0 %v6382
      %v6595 = vpop.f32.mrb[0].mxu0
      %v6596 = vadd.f32 0.0, %v6595
      %v6597 = vpop.f32.mrb[0].mxu0
      %v6598 = vpop.f32.mrb[0].mxu0
      %v6599 = vadd.f32 0.0, %v6598
      %v6600 = vpop.f32.mrb[0].mxu0
      %6601 = vmatprep.mubr.bf16.mxu0 0
      %6602 = vmatmul.mubr.bf16.gmra.mrb[0].mxu0 %v6383
      %v6603 = vpop.f32.mrb[0].mxu0
      %v6604 = vadd.f32 0.0, %v6603
      %v6605 = vpop.f32.mrb[0].mxu0
      %v6606 = vpop.f32.mrb[0].mxu0
      %v6607 = vadd.f32 0.0, %v6606
      %v6608 = vpop.f32.mrb[0].mxu0
      %6609 = vdwg.mxu0
      %v6610 = vadd.f32 %v6304, %v6484
      %v6611 = vadd.f32 %v6305, %v6487
      %v6612 = vadd.f32 %v6306, %v6492
      %v6613 = vadd.f32 %v6307, %v6495
      %v6614 = vadd.f32 %v6308, %v6500
      %v6615 = vadd.f32 %v6309, %v6503
      %v6616 = vadd.f32 %v6310, %v6508
      %v6617 = vadd.f32 %v6311, %v6511
      %v6618 = vadd.f32 %v6312, %v6516
      %v6619 = vadd.f32 %v6313, %v6519
      %v6620 = vadd.f32 %v6314, %v6524
      %v6621 = vadd.f32 %v6315, %v6527
      %v6622 = vadd.f32 %v6316, %v6532
      %v6623 = vadd.f32 %v6317, %v6535
      %v6624 = vadd.f32 %v6318, %v6540
      %v6625 = vadd.f32 %v6319, %v6543
      %v6626 = vadd.f32 %v6320, %v6548
      %v6627 = vadd.f32 %v6321, %v6551
      %v6628 = vadd.f32 %v6322, %v6556
      %v6629 = vadd.f32 %v6323, %v6559
      %v6630 = vadd.f32 %v6324, %v6564
      %v6631 = vadd.f32 %v6325, %v6567
      %v6632 = vadd.f32 %v6326, %v6572
      %v6633 = vadd.f32 %v6327, %v6575
      %v6634 = vadd.f32 %v6328, %v6580
      %v6635 = vadd.f32 %v6329, %v6583
      %v6636 = vadd.f32 %v6330, %v6588
      %v6637 = vadd.f32 %v6331, %v6591
      %v6638 = vadd.f32 %v6332, %v6596
      %v6639 = vadd.f32 %v6333, %v6599
      %v6640 = vadd.f32 %v6334, %v6604
      %v6641 = vadd.f32 %v6335, %v6607
      %v6642 = vld [vmem:[#allocation3 + $0x2a] sm:$0xff]
      %v6643 = vld [vmem:[#allocation3 + $0x32] sm:$0xff]
      %v6644 = vld [vmem:[#allocation3 + $0x3a] sm:$0xff]
      %v6645 = vld [vmem:[#allocation3 + $0x42] sm:$0xff]
      %v6646 = vld [vmem:[#allocation3 + $0x4a] sm:$0xff]
      %v6647 = vld [vmem:[#allocation3 + $0x52] sm:$0xff]
      %v6648 = vld [vmem:[#allocation3 + $0x5a] sm:$0xff]
      %v6649 = vld [vmem:[#allocation3 + $0x62] sm:$0xff]
      %v6650 = vld [vmem:[#allocation3 + $0x6a] sm:$0xff]
      %v6651 = vld [vmem:[#allocation3 + $0x72] sm:$0xff]
      %v6652 = vld [vmem:[#allocation3 + $0x7a] sm:$0xff]
      %v6653 = vld [vmem:[#allocation3 + $0x82] sm:$0xff]
      %v6654 = vld [vmem:[#allocation3 + $0x8a] sm:$0xff]
      %v6655 = vld [vmem:[#allocation3 + $0x92] sm:$0xff]
      %v6656 = vld [vmem:[#allocation3 + $0x9a] sm:$0xff]
      %v6657 = vld [vmem:[#allocation3 + $0xa2] sm:$0xff]
      %v6658 = vld [vmem:[#allocation3 + $0xaa] sm:$0xff]
      %v6659 = vld [vmem:[#allocation3 + $0xb2] sm:$0xff]
      %v6660 = vld [vmem:[#allocation3 + $0xba] sm:$0xff]
      %v6661 = vld [vmem:[#allocation3 + $0xc2] sm:$0xff]
      %v6662 = vld [vmem:[#allocation3 + $0xca] sm:$0xff]
      %v6663 = vld [vmem:[#allocation3 + $0xd2] sm:$0xff]
      %v6664 = vld [vmem:[#allocation3 + $0xda] sm:$0xff]
      %v6665 = vld [vmem:[#allocation3 + $0xe2] sm:$0xff]
      %v6666 = vld [vmem:[#allocation3 + $0xea] sm:$0xff]
      %v6667 = vld [vmem:[#allocation3 + $0xf2] sm:$0xff]
      %v6668 = vld [vmem:[#allocation3 + $0xfa] sm:$0xff]
      %v6669 = vld [vmem:[#allocation3 + $0x102] sm:$0xff]
      %v6670 = vld [vmem:[#allocation3 + $0x10a] sm:$0xff]
      %v6671 = vld [vmem:[#allocation3 + $0x112] sm:$0xff]
      %v6672 = vld [vmem:[#allocation3 + $0x11a] sm:$0xff]
      %v6673 = vld [vmem:[#allocation3 + $0x122] sm:$0xff]
      %v6674 = vmul.f32 %v6642, %v5535
      %v6675 = vmul.f32 %v6643, %v5540
      %v6676 = vmul.f32 %v6644, %v5545
      %v6677 = vmul.f32 %v6645, %v5550
      %v6678 = vmul.f32 %v6646, %v5555
      %v6679 = vmul.f32 %v6647, %v5560
      %v6680 = vmul.f32 %v6648, %v5565
      %v6681 = vmul.f32 %v6649, %v5570
      %v6682 = vmul.f32 %v6650, %v5575
      %v6683 = vmul.f32 %v6651, %v5580
      %v6684 = vmul.f32 %v6652, %v5585
      %v6685 = vmul.f32 %v6653, %v5590
      %v6686 = vmul.f32 %v6654, %v5595
      %v6687 = vmul.f32 %v6655, %v5600
      %v6688 = vmul.f32 %v6656, %v5605
      %v6689 = vmul.f32 %v6657, %v5610
      %v6690 = vmul.f32 %v6658, %v5615
      %v6691 = vmul.f32 %v6659, %v5620
      %v6692 = vmul.f32 %v6660, %v5625
      %v6693 = vmul.f32 %v6661, %v5630
      %v6694 = vmul.f32 %v6662, %v5635
      %v6695 = vmul.f32 %v6663, %v5640
      %v6696 = vmul.f32 %v6664, %v5645
      %v6697 = vmul.f32 %v6665, %v5650
      %v6698 = vmul.f32 %v6666, %v5655
      %v6699 = vmul.f32 %v6667, %v5660
      %v6700 = vmul.f32 %v6668, %v5665
      %v6701 = vmul.f32 %v6669, %v5670
      %v6702 = vmul.f32 %v6670, %v5675
      %v6703 = vmul.f32 %v6671, %v5680
      %v6704 = vmul.f32 %v6672, %v5685
      %v6705 = vmul.f32 %v6673, %v5690
      %v6706 = vpack.c.bf16 %v6675, %v6674
      %v6707 = vpack.c.bf16 %v6677, %v6676
      %v6708 = vpack.c.bf16 %v6679, %v6678
      %v6709 = vpack.c.bf16 %v6681, %v6680
      %v6710 = vpack.c.bf16 %v6683, %v6682
      %v6711 = vpack.c.bf16 %v6685, %v6684
      %v6712 = vpack.c.bf16 %v6687, %v6686
      %v6713 = vpack.c.bf16 %v6689, %v6688
      %v6714 = vpack.c.bf16 %v6691, %v6690
      %v6715 = vpack.c.bf16 %v6693, %v6692
      %v6716 = vpack.c.bf16 %v6695, %v6694
      %v6717 = vpack.c.bf16 %v6697, %v6696
      %v6718 = vpack.c.bf16 %v6699, %v6698
      %v6719 = vpack.c.bf16 %v6701, %v6700
      %v6720 = vpack.c.bf16 %v6703, %v6702
      %v6721 = vpack.c.bf16 %v6705, %v6704
      %s6722 = scalar_lea.vmem %s8, 320
      %v6723 = vld [vmem:[%s6722] sm:$0xf]
      %v6724 = vld [vmem:[%s6722 + $0x4] sm:$0xf]
      %v6725 = vld [vmem:[%s6722 + $0x8] sm:$0xf]
      %v6726 = vld [vmem:[%s6722 + $0xc] sm:$0xf]
      %v6727 = vld [vmem:[%s6722 + $0x10] sm:$0xf]
      %v6728 = vld [vmem:[%s6722 + $0x14] sm:$0xf]
      %v6729 = vld [vmem:[%s6722 + $0x18] sm:$0xf]
      %v6730 = vld [vmem:[%s6722 + $0x1c] sm:$0xf]
      %v6731 = vld [vmem:[%s6722 + $0x20] sm:$0xf]
      %v6732 = vld [vmem:[%s6722 + $0x24] sm:$0xf]
      %v6733 = vld [vmem:[%s6722 + $0x28] sm:$0xf]
      %v6734 = vld [vmem:[%s6722 + $0x2c] sm:$0xf]
      %v6735 = vld [vmem:[%s6722 + $0x30] sm:$0xf]
      %v6736 = vld [vmem:[%s6722 + $0x34] sm:$0xf]
      %v6737 = vld [vmem:[%s6722 + $0x38] sm:$0xf]
      %v6738 = vld [vmem:[%s6722 + $0x3c] sm:$0xf]
      %v6755 = vunpack.c.l.b16 %v6723
      %v6756 = vunpack.c.l.b16 %v6724
      %v6757 = vunpack.c.l.b16 %v6725
      %v6758 = vunpack.c.l.b16 %v6726
      %v6759 = vunpack.c.l.b16 %v6727
      %v6760 = vunpack.c.l.b16 %v6728
      %v6761 = vunpack.c.l.b16 %v6729
      %v6762 = vunpack.c.l.b16 %v6730
      %v6763 = vunpack.c.l.b16 %v6731
      %v6764 = vunpack.c.l.b16 %v6732
      %v6765 = vunpack.c.l.b16 %v6733
      %v6766 = vunpack.c.l.b16 %v6734
      %v6767 = vunpack.c.l.b16 %v6735
      %v6768 = vunpack.c.l.b16 %v6736
      %v6769 = vunpack.c.l.b16 %v6737
      %v6770 = vunpack.c.l.b16 %v6738
      %v6771 = vpack.c.b16 %v6756, %v6755
      %v6772 = vpack.c.b16 %v6758, %v6757
      %v6773 = vpack.c.b16 %v6760, %v6759
      %v6774 = vpack.c.b16 %v6762, %v6761
      %v6775 = vpack.c.b16 %v6764, %v6763
      %v6776 = vpack.c.b16 %v6766, %v6765
      %v6777 = vpack.c.b16 %v6768, %v6767
      %v6778 = vpack.c.b16 %v6770, %v6769
      %6787 = vmatprep.subr.bf16.mxu0 0
      %6788 = vmatpush1.bf16.msra.mxu0 %v6771
      %6789 = vmatprep.subr.bf16.mxu0 0
      %6790 = vmatpush1.bf16.msra.mxu0 %v6772
      %6791 = vmatprep.subr.bf16.mxu0 0
      %6792 = vmatpush1.bf16.msra.mxu0 %v6773
      %6793 = vmatprep.subr.bf16.mxu0 0
      %6794 = vmatpush1.bf16.msra.mxu0 %v6774
      %6795 = vmatprep.subr.bf16.mxu0 0
      %6796 = vmatpush1.bf16.msra.mxu0 %v6775
      %6797 = vmatprep.subr.bf16.mxu0 0
      %6798 = vmatpush1.bf16.msra.mxu0 %v6776
      %6799 = vmatprep.subr.bf16.mxu0 0
      %6800 = vmatpush1.bf16.msra.mxu0 %v6777
      %6801 = vmatprep.subr.bf16.mxu0 0
      %6802 = vmatpush1.bf16.msra.mxu0 %v6778
      %6803 = vmatprep.subr.bf16.mxu0 0
      %6804 = vmatpush1.bf16.msra.mxu0 0
      %6805 = vmatprep.subr.bf16.mxu0 0
      %6806 = vmatpush1.bf16.msra.mxu0 0
      %6807 = vmatprep.subr.bf16.mxu0 0
      %6808 = vmatpush1.bf16.msra.mxu0 0
      %6809 = vmatprep.subr.bf16.mxu0 0
      %6810 = vmatpush1.bf16.msra.mxu0 0
      %6811 = vmatprep.subr.bf16.mxu0 0
      %6812 = vmatpush1.bf16.msra.mxu0 0
      %6813 = vmatprep.subr.bf16.mxu0 0
      %6814 = vmatpush1.bf16.msra.mxu0 0
      %6815 = vmatprep.subr.bf16.mxu0 0
      %6816 = vmatpush1.bf16.msra.mxu0 0
      %6817 = vmatprep.subr.bf16.mxu0 0
      %6818 = vmatpush1.bf16.msra.mxu0 0
      %6819 = vmatprep.mubr.bf16.mxu0 0
      %6820 = vmatmul.mubr.bf16.gmra.mrb[0].mxu0 %v6706
      %v6821 = vpop.f32.mrb[0].mxu0
      %v6822 = vadd.f32 0.0, %v6821
      %v6823 = vpop.f32.mrb[0].mxu0
      %v6824 = vpop.f32.mrb[0].mxu0
      %v6825 = vadd.f32 0.0, %v6824
      %v6826 = vpop.f32.mrb[0].mxu0
      %6827 = vmatprep.mubr.bf16.mxu0 0
      %6828 = vmatmul.mubr.bf16.gmra.mrb[0].mxu0 %v6707
      %v6829 = vpop.f32.mrb[0].mxu0
      %v6830 = vadd.f32 0.0, %v6829
      %v6831 = vpop.f32.mrb[0].mxu0
      %v6832 = vpop.f32.mrb[0].mxu0
      %v6833 = vadd.f32 0.0, %v6832
      %v6834 = vpop.f32.mrb[0].mxu0
      %6835 = vmatprep.mubr.bf16.mxu0 0
      %6836 = vmatmul.mubr.bf16.gmra.mrb[0].mxu0 %v6708
      %v6837 = vpop.f32.mrb[0].mxu0
      %v6838 = vadd.f32 0.0, %v6837
      %v6839 = vpop.f32.mrb[0].mxu0
      %v6840 = vpop.f32.mrb[0].mxu0
      %v6841 = vadd.f32 0.0, %v6840
      %v6842 = vpop.f32.mrb[0].mxu0
      %6843 = vmatprep.mubr.bf16.mxu0 0
      %6844 = vmatmul.mubr.bf16.gmra.mrb[0].mxu0 %v6709
      %v6845 = vpop.f32.mrb[0].mxu0
      %v6846 = vadd.f32 0.0, %v6845
      %v6847 = vpop.f32.mrb[0].mxu0
      %v6848 = vpop.f32.mrb[0].mxu0
      %v6849 = vadd.f32 0.0, %v6848
      %v6850 = vpop.f32.mrb[0].mxu0
      %6851 = vmatprep.mubr.bf16.mxu0 0
      %6852 = vmatmul.mubr.bf16.gmra.mrb[0].mxu0 %v6710
      %v6853 = vpop.f32.mrb[0].mxu0
      %v6854 = vadd.f32 0.0, %v6853
      %v6855 = vpop.f32.mrb[0].mxu0
      %v6856 = vpop.f32.mrb[0].mxu0
      %v6857 = vadd.f32 0.0, %v6856
      %v6858 = vpop.f32.mrb[0].mxu0
      %6859 = vmatprep.mubr.bf16.mxu0 0
      %6860 = vmatmul.mubr.bf16.gmra.mrb[0].mxu0 %v6711
      %v6861 = vpop.f32.mrb[0].mxu0
      %v6862 = vadd.f32 0.0, %v6861
      %v6863 = vpop.f32.mrb[0].mxu0
      %v6864 = vpop.f32.mrb[0].mxu0
      %v6865 = vadd.f32 0.0, %v6864
      %v6866 = vpop.f32.mrb[0].mxu0
      %6867 = vmatprep.mubr.bf16.mxu0 0
      %6868 = vmatmul.mubr.bf16.gmra.mrb[0].mxu0 %v6712
      %v6869 = vpop.f32.mrb[0].mxu0
      %v6870 = vadd.f32 0.0, %v6869
      %v6871 = vpop.f32.mrb[0].mxu0
      %v6872 = vpop.f32.mrb[0].mxu0
      %v6873 = vadd.f32 0.0, %v6872
      %v6874 = vpop.f32.mrb[0].mxu0
      %6875 = vmatprep.mubr.bf16.mxu0 0
      %6876 = vmatmul.mubr.bf16.gmra.mrb[0].mxu0 %v6713
      %v6877 = vpop.f32.mrb[0].mxu0
      %v6878 = vadd.f32 0.0, %v6877
      %v6879 = vpop.f32.mrb[0].mxu0
      %v6880 = vpop.f32.mrb[0].mxu0
      %v6881 = vadd.f32 0.0, %v6880
      %v6882 = vpop.f32.mrb[0].mxu0
      %6883 = vmatprep.mubr.bf16.mxu0 0
      %6884 = vmatmul.mubr.bf16.gmra.mrb[0].mxu0 %v6714
      %v6885 = vpop.f32.mrb[0].mxu0
      %v6886 = vadd.f32 0.0, %v6885
      %v6887 = vpop.f32.mrb[0].mxu0
      %v6888 = vpop.f32.mrb[0].mxu0
      %v6889 = vadd.f32 0.0, %v6888
      %v6890 = vpop.f32.mrb[0].mxu0
      %6891 = vmatprep.mubr.bf16.mxu0 0
      %6892 = vmatmul.mubr.bf16.gmra.mrb[0].mxu0 %v6715
      %v6893 = vpop.f32.mrb[0].mxu0
      %v6894 = vadd.f32 0.0, %v6893
      %v6895 = vpop.f32.mrb[0].mxu0
      %v6896 = vpop.f32.mrb[0].mxu0
      %v6897 = vadd.f32 0.0, %v6896
      %v6898 = vpop.f32.mrb[0].mxu0
      %6899 = vmatprep.mubr.bf16.mxu0 0
      %6900 = vmatmul.mubr.bf16.gmra.mrb[0].mxu0 %v6716
      %v6901 = vpop.f32.mrb[0].mxu0
      %v6902 = vadd.f32 0.0, %v6901
      %v6903 = vpop.f32.mrb[0].mxu0
      %v6904 = vpop.f32.mrb[0].mxu0
      %v6905 = vadd.f32 0.0, %v6904
      %v6906 = vpop.f32.mrb[0].mxu0
      %6907 = vmatprep.mubr.bf16.mxu0 0
      %6908 = vmatmul.mubr.bf16.gmra.mrb[0].mxu0 %v6717
      %v6909 = vpop.f32.mrb[0].mxu0
      %v6910 = vadd.f32 0.0, %v6909
      %v6911 = vpop.f32.mrb[0].mxu0
      %v6912 = vpop.f32.mrb[0].mxu0
      %v6913 = vadd.f32 0.0, %v6912
      %v6914 = vpop.f32.mrb[0].mxu0
      %6915 = vmatprep.mubr.bf16.mxu0 0
      %6916 = vmatmul.mubr.bf16.gmra.mrb[0].mxu0 %v6718
      %v6917 = vpop.f32.mrb[0].mxu0
      %v6918 = vadd.f32 0.0, %v6917
      %v6919 = vpop.f32.mrb[0].mxu0
      %v6920 = vpop.f32.mrb[0].mxu0
      %v6921 = vadd.f32 0.0, %v6920
      %v6922 = vpop.f32.mrb[0].mxu0
      %6923 = vmatprep.mubr.bf16.mxu0 0
      %6924 = vmatmul.mubr.bf16.gmra.mrb[0].mxu0 %v6719
      %v6925 = vpop.f32.mrb[0].mxu0
      %v6926 = vadd.f32 0.0, %v6925
      %v6927 = vpop.f32.mrb[0].mxu0
      %v6928 = vpop.f32.mrb[0].mxu0
      %v6929 = vadd.f32 0.0, %v6928
      %v6930 = vpop.f32.mrb[0].mxu0
      %6931 = vmatprep.mubr.bf16.mxu0 0
      %6932 = vmatmul.mubr.bf16.gmra.mrb[0].mxu0 %v6720
      %v6933 = vpop.f32.mrb[0].mxu0
      %v6934 = vadd.f32 0.0, %v6933
      %v6935 = vpop.f32.mrb[0].mxu0
      %v6936 = vpop.f32.mrb[0].mxu0
      %v6937 = vadd.f32 0.0, %v6936
      %v6938 = vpop.f32.mrb[0].mxu0
      %6939 = vmatprep.mubr.bf16.mxu0 0
      %6940 = vmatmul.mubr.bf16.gmra.mrb[0].mxu0 %v6721
      %v6941 = vpop.f32.mrb[0].mxu0
      %v6942 = vadd.f32 0.0, %v6941
      %v6943 = vpop.f32.mrb[0].mxu0
      %v6944 = vpop.f32.mrb[0].mxu0
      %v6945 = vadd.f32 0.0, %v6944
      %v6946 = vpop.f32.mrb[0].mxu0
      %6947 = vdwg.mxu0
      %v6948 = vadd.f32 %v6610, %v6822
      %v6949 = vadd.f32 %v6611, %v6825
      %v6950 = vadd.f32 %v6612, %v6830
      %v6951 = vadd.f32 %v6613, %v6833
      %v6952 = vadd.f32 %v6614, %v6838
      %v6953 = vadd.f32 %v6615, %v6841
      %v6954 = vadd.f32 %v6616, %v6846
      %v6955 = vadd.f32 %v6617, %v6849
      %v6956 = vadd.f32 %v6618, %v6854
      %v6957 = vadd.f32 %v6619, %v6857
      %v6958 = vadd.f32 %v6620, %v6862
      %v6959 = vadd.f32 %v6621, %v6865
      %v6960 = vadd.f32 %v6622, %v6870
      %v6961 = vadd.f32 %v6623, %v6873
      %v6962 = vadd.f32 %v6624, %v6878
      %v6963 = vadd.f32 %v6625, %v6881
      %v6964 = vadd.f32 %v6626, %v6886
      %v6965 = vadd.f32 %v6627, %v6889
      %v6966 = vadd.f32 %v6628, %v6894
      %v6967 = vadd.f32 %v6629, %v6897
      %v6968 = vadd.f32 %v6630, %v6902
      %v6969 = vadd.f32 %v6631, %v6905
      %v6970 = vadd.f32 %v6632, %v6910
      %v6971 = vadd.f32 %v6633, %v6913
      %v6972 = vadd.f32 %v6634, %v6918
      %v6973 = vadd.f32 %v6635, %v6921
      %v6974 = vadd.f32 %v6636, %v6926
      %v6975 = vadd.f32 %v6637, %v6929
      %v6976 = vadd.f32 %v6638, %v6934
      %v6977 = vadd.f32 %v6639, %v6937
      %v6978 = vadd.f32 %v6640, %v6942
      %v6979 = vadd.f32 %v6641, %v6945
      %v6980 = vld [vmem:[#allocation3 + $0x46] sm:$0xff]
      %v6981 = vld [vmem:[#allocation3 + $0x4e] sm:$0xff]
      %v6982 = vld [vmem:[#allocation3 + $0x56] sm:$0xff]
      %v6983 = vld [vmem:[#allocation3 + $0x5e] sm:$0xff]
      %v6984 = vld [vmem:[#allocation3 + $0x66] sm:$0xff]
      %v6985 = vld [vmem:[#allocation3 + $0x6e] sm:$0xff]
      %v6986 = vld [vmem:[#allocation3 + $0x76] sm:$0xff]
      %v6987 = vld [vmem:[#allocation3 + $0x7e] sm:$0xff]
      %v6988 = vld [vmem:[#allocation3 + $0x86] sm:$0xff]
      %v6989 = vld [vmem:[#allocation3 + $0x8e] sm:$0xff]
      %v6990 = vld [vmem:[#allocation3 + $0x96] sm:$0xff]
      %v6991 = vld [vmem:[#allocation3 + $0x9e] sm:$0xff]
      %v6992 = vld [vmem:[#allocation3 + $0xa6] sm:$0xff]
      %v6993 = vld [vmem:[#allocation3 + $0xae] sm:$0xff]
      %v6994 = vld [vmem:[#allocation3 + $0xb6] sm:$0xff]
      %v6995 = vld [vmem:[#allocation3 + $0xbe] sm:$0xff]
      %v6996 = vld [vmem:[#allocation3 + $0xc6] sm:$0xff]
      %v6997 = vld [vmem:[#allocation3 + $0xce] sm:$0xff]
      %v6998 = vld [vmem:[#allocation3 + $0xd6] sm:$0xff]
      %v6999 = vld [vmem:[#allocation3 + $0xde] sm:$0xff]
      %v7000 = vld [vmem:[#allocation3 + $0xe6] sm:$0xff]
      %v7001 = vld [vmem:[#allocation3 + $0xee] sm:$0xff]
      %v7002 = vld [vmem:[#allocation3 + $0xf6] sm:$0xff]
      %v7003 = vld [vmem:[#allocation3 + $0xfe] sm:$0xff]
      %v7004 = vld [vmem:[#allocation3 + $0x106] sm:$0xff]
      %v7005 = vld [vmem:[#allocation3 + $0x10e] sm:$0xff]
      %v7006 = vld [vmem:[#allocation3 + $0x116] sm:$0xff]
      %v7007 = vld [vmem:[#allocation3 + $0x11e] sm:$0xff]
      %v7008 = vld [vmem:[#allocation3 + $0x126] sm:$0xff]
      %v7009 = vld [vmem:[#allocation3 + $0x12e] sm:$0xff]
      %v7010 = vld [vmem:[#allocation3 + $0x136] sm:$0xff]
      %v7011 = vld [vmem:[#allocation3 + $0x13e] sm:$0xff]
      %v7012 = vmul.f32 %v6980, %v4796
      %v7013 = vmul.f32 %v6981, %v4801
      %v7014 = vmul.f32 %v6982, %v4806
      %v7015 = vmul.f32 %v6983, %v4811
      %v7016 = vmul.f32 %v6984, %v4816
      %v7017 = vmul.f32 %v6985, %v4821
      %v7018 = vmul.f32 %v6986, %v4826
      %v7019 = vmul.f32 %v6987, %v4831
      %v7020 = vmul.f32 %v6988, %v4836
      %v7021 = vmul.f32 %v6989, %v4841
      %v7022 = vmul.f32 %v6990, %v4846
      %v7023 = vmul.f32 %v6991, %v4851
      %v7024 = vmul.f32 %v6992, %v4856
      %v7025 = vmul.f32 %v6993, %v4861
      %v7026 = vmul.f32 %v6994, %v4866
      %v7027 = vmul.f32 %v6995, %v4871
      %v7028 = vmul.f32 %v6996, %v4876
      %v7029 = vmul.f32 %v6997, %v4881
      %v7030 = vmul.f32 %v6998, %v4886
      %v7031 = vmul.f32 %v6999, %v4891
      %v7032 = vmul.f32 %v7000, %v4896
      %v7033 = vmul.f32 %v7001, %v4901
      %v7034 = vmul.f32 %v7002, %v4906
      %v7035 = vmul.f32 %v7003, %v4911
      %v7036 = vmul.f32 %v7004, %v4916
      %v7037 = vmul.f32 %v7005, %v4921
      %v7038 = vmul.f32 %v7006, %v4926
      %v7039 = vmul.f32 %v7007, %v4931
      %v7040 = vmul.f32 %v7008, %v4936
      %v7041 = vmul.f32 %v7009, %v4941
      %v7042 = vmul.f32 %v7010, %v4946
      %v7043 = vmul.f32 %v7011, %v4951
      %v7044 = vpack.c.bf16 %v7013, %v7012
      %v7045 = vpack.c.bf16 %v7015, %v7014
      %v7046 = vpack.c.bf16 %v7017, %v7016
      %v7047 = vpack.c.bf16 %v7019, %v7018
      %v7048 = vpack.c.bf16 %v7021, %v7020
      %v7049 = vpack.c.bf16 %v7023, %v7022
      %v7050 = vpack.c.bf16 %v7025, %v7024
      %v7051 = vpack.c.bf16 %v7027, %v7026
      %v7052 = vpack.c.bf16 %v7029, %v7028
      %v7053 = vpack.c.bf16 %v7031, %v7030
      %v7054 = vpack.c.bf16 %v7033, %v7032
      %v7055 = vpack.c.bf16 %v7035, %v7034
      %v7056 = vpack.c.bf16 %v7037, %v7036
      %v7057 = vpack.c.bf16 %v7039, %v7038
      %v7058 = vpack.c.bf16 %v7041, %v7040
      %v7059 = vpack.c.bf16 %v7043, %v7042
      %s7060 = scalar_lea.vmem %s8, 384
      %v7061 = vld [vmem:[%s7060] sm:$0xf]
      %v7062 = vld [vmem:[%s7060 + $0x4] sm:$0xf]
      %v7063 = vld [vmem:[%s7060 + $0x8] sm:$0xf]
      %v7064 = vld [vmem:[%s7060 + $0xc] sm:$0xf]
      %v7065 = vld [vmem:[%s7060 + $0x10] sm:$0xf]
      %v7066 = vld [vmem:[%s7060 + $0x14] sm:$0xf]
      %v7067 = vld [vmem:[%s7060 + $0x18] sm:$0xf]
      %v7068 = vld [vmem:[%s7060 + $0x1c] sm:$0xf]
      %v7069 = vld [vmem:[%s7060 + $0x20] sm:$0xf]
      %v7070 = vld [vmem:[%s7060 + $0x24] sm:$0xf]
      %v7071 = vld [vmem:[%s7060 + $0x28] sm:$0xf]
      %v7072 = vld [vmem:[%s7060 + $0x2c] sm:$0xf]
      %v7073 = vld [vmem:[%s7060 + $0x30] sm:$0xf]
      %v7074 = vld [vmem:[%s7060 + $0x34] sm:$0xf]
      %v7075 = vld [vmem:[%s7060 + $0x38] sm:$0xf]
      %v7076 = vld [vmem:[%s7060 + $0x3c] sm:$0xf]
      %v7093 = vunpack.c.l.b16 %v7061
      %v7094 = vunpack.c.l.b16 %v7062
      %v7095 = vunpack.c.l.b16 %v7063
      %v7096 = vunpack.c.l.b16 %v7064
      %v7097 = vunpack.c.l.b16 %v7065
      %v7098 = vunpack.c.l.b16 %v7066
      %v7099 = vunpack.c.l.b16 %v7067
      %v7100 = vunpack.c.l.b16 %v7068
      %v7101 = vunpack.c.l.b16 %v7069
      %v7102 = vunpack.c.l.b16 %v7070
      %v7103 = vunpack.c.l.b16 %v7071
      %v7104 = vunpack.c.l.b16 %v7072
      %v7105 = vunpack.c.l.b16 %v7073
      %v7106 = vunpack.c.l.b16 %v7074
      %v7107 = vunpack.c.l.b16 %v7075
      %v7108 = vunpack.c.l.b16 %v7076
      %v7109 = vpack.c.b16 %v7094, %v7093
      %v7110 = vpack.c.b16 %v7096, %v7095
      %v7111 = vpack.c.b16 %v7098, %v7097
      %v7112 = vpack.c.b16 %v7100, %v7099
      %v7113 = vpack.c.b16 %v7102, %v7101
      %v7114 = vpack.c.b16 %v7104, %v7103
      %v7115 = vpack.c.b16 %v7106, %v7105
      %v7116 = vpack.c.b16 %v7108, %v7107
      %7125 = vmatprep.subr.bf16.mxu0 0
      %7126 = vmatpush1.bf16.msra.mxu0 %v7109
      %7127 = vmatprep.subr.bf16.mxu0 0
      %7128 = vmatpush1.bf16.msra.mxu0 %v7110
      %7129 = vmatprep.subr.bf16.mxu0 0
      %7130 = vmatpush1.bf16.msra.mxu0 %v7111
      %7131 = vmatprep.subr.bf16.mxu0 0
      %7132 = vmatpush1.bf16.msra.mxu0 %v7112
      %7133 = vmatprep.subr.bf16.mxu0 0
      %7134 = vmatpush1.bf16.msra.mxu0 %v7113
      %7135 = vmatprep.subr.bf16.mxu0 0
      %7136 = vmatpush1.bf16.msra.mxu0 %v7114
      %7137 = vmatprep.subr.bf16.mxu0 0
      %7138 = vmatpush1.bf16.msra.mxu0 %v7115
      %7139 = vmatprep.subr.bf16.mxu0 0
      %7140 = vmatpush1.bf16.msra.mxu0 %v7116
      %7141 = vmatprep.subr.bf16.mxu0 0
      %7142 = vmatpush1.bf16.msra.mxu0 0
      %7143 = vmatprep.subr.bf16.mxu0 0
      %7144 = vmatpush1.bf16.msra.mxu0 0
      %7145 = vmatprep.subr.bf16.mxu0 0
      %7146 = vmatpush1.bf16.msra.mxu0 0
      %7147 = vmatprep.subr.bf16.mxu0 0
      %7148 = vmatpush1.bf16.msra.mxu0 0
      %7149 = vmatprep.subr.bf16.mxu0 0
      %7150 = vmatpush1.bf16.msra.mxu0 0
      %7151 = vmatprep.subr.bf16.mxu0 0
      %7152 = vmatpush1.bf16.msra.mxu0 0
      %7153 = vmatprep.subr.bf16.mxu0 0
      %7154 = vmatpush1.bf16.msra.mxu0 0
      %7155 = vmatprep.subr.bf16.mxu0 0
      %7156 = vmatpush1.bf16.msra.mxu0 0
      %7157 = vmatprep.mubr.bf16.mxu0 0
      %7158 = vmatmul.mubr.bf16.gmra.mrb[0].mxu0 %v7044
      %v7159 = vpop.f32.mrb[0].mxu0
      %v7160 = vadd.f32 0.0, %v7159
      %v7161 = vpop.f32.mrb[0].mxu0
      %v7162 = vpop.f32.mrb[0].mxu0
      %v7163 = vadd.f32 0.0, %v7162
      %v7164 = vpop.f32.mrb[0].mxu0
      %7165 = vmatprep.mubr.bf16.mxu0 0
      %7166 = vmatmul.mubr.bf16.gmra.mrb[0].mxu0 %v7045
      %v7167 = vpop.f32.mrb[0].mxu0
      %v7168 = vadd.f32 0.0, %v7167
      %v7169 = vpop.f32.mrb[0].mxu0
      %v7170 = vpop.f32.mrb[0].mxu0
      %v7171 = vadd.f32 0.0, %v7170
      %v7172 = vpop.f32.mrb[0].mxu0
      %7173 = vmatprep.mubr.bf16.mxu0 0
      %7174 = vmatmul.mubr.bf16.gmra.mrb[0].mxu0 %v7046
      %v7175 = vpop.f32.mrb[0].mxu0
      %v7176 = vadd.f32 0.0, %v7175
      %v7177 = vpop.f32.mrb[0].mxu0
      %v7178 = vpop.f32.mrb[0].mxu0
      %v7179 = vadd.f32 0.0, %v7178
      %v7180 = vpop.f32.mrb[0].mxu0
      %7181 = vmatprep.mubr.bf16.mxu0 0
      %7182 = vmatmul.mubr.bf16.gmra.mrb[0].mxu0 %v7047
      %v7183 = vpop.f32.mrb[0].mxu0
      %v7184 = vadd.f32 0.0, %v7183
      %v7185 = vpop.f32.mrb[0].mxu0
      %v7186 = vpop.f32.mrb[0].mxu0
      %v7187 = vadd.f32 0.0, %v7186
      %v7188 = vpop.f32.mrb[0].mxu0
      %7189 = vmatprep.mubr.bf16.mxu0 0
      %7190 = vmatmul.mubr.bf16.gmra.mrb[0].mxu0 %v7048
      %v7191 = vpop.f32.mrb[0].mxu0
      %v7192 = vadd.f32 0.0, %v7191
      %v7193 = vpop.f32.mrb[0].mxu0
      %v7194 = vpop.f32.mrb[0].mxu0
      %v7195 = vadd.f32 0.0, %v7194
      %v7196 = vpop.f32.mrb[0].mxu0
      %7197 = vmatprep.mubr.bf16.mxu0 0
      %7198 = vmatmul.mubr.bf16.gmra.mrb[0].mxu0 %v7049
      %v7199 = vpop.f32.mrb[0].mxu0
      %v7200 = vadd.f32 0.0, %v7199
      %v7201 = vpop.f32.mrb[0].mxu0
      %v7202 = vpop.f32.mrb[0].mxu0
      %v7203 = vadd.f32 0.0, %v7202
      %v7204 = vpop.f32.mrb[0].mxu0
      %7205 = vmatprep.mubr.bf16.mxu0 0
      %7206 = vmatmul.mubr.bf16.gmra.mrb[0].mxu0 %v7050
      %v7207 = vpop.f32.mrb[0].mxu0
      %v7208 = vadd.f32 0.0, %v7207
      %v7209 = vpop.f32.mrb[0].mxu0
      %v7210 = vpop.f32.mrb[0].mxu0
      %v7211 = vadd.f32 0.0, %v7210
      %v7212 = vpop.f32.mrb[0].mxu0
      %7213 = vmatprep.mubr.bf16.mxu0 0
      %7214 = vmatmul.mubr.bf16.gmra.mrb[0].mxu0 %v7051
      %v7215 = vpop.f32.mrb[0].mxu0
      %v7216 = vadd.f32 0.0, %v7215
      %v7217 = vpop.f32.mrb[0].mxu0
      %v7218 = vpop.f32.mrb[0].mxu0
      %v7219 = vadd.f32 0.0, %v7218
      %v7220 = vpop.f32.mrb[0].mxu0
      %7221 = vmatprep.mubr.bf16.mxu0 0
      %7222 = vmatmul.mubr.bf16.gmra.mrb[0].mxu0 %v7052
      %v7223 = vpop.f32.mrb[0].mxu0
      %v7224 = vadd.f32 0.0, %v7223
      %v7225 = vpop.f32.mrb[0].mxu0
      %v7226 = vpop.f32.mrb[0].mxu0
      %v7227 = vadd.f32 0.0, %v7226
      %v7228 = vpop.f32.mrb[0].mxu0
      %7229 = vmatprep.mubr.bf16.mxu0 0
      %7230 = vmatmul.mubr.bf16.gmra.mrb[0].mxu0 %v7053
      %v7231 = vpop.f32.mrb[0].mxu0
      %v7232 = vadd.f32 0.0, %v7231
      %v7233 = vpop.f32.mrb[0].mxu0
      %v7234 = vpop.f32.mrb[0].mxu0
      %v7235 = vadd.f32 0.0, %v7234
      %v7236 = vpop.f32.mrb[0].mxu0
      %7237 = vmatprep.mubr.bf16.mxu0 0
      %7238 = vmatmul.mubr.bf16.gmra.mrb[0].mxu0 %v7054
      %v7239 = vpop.f32.mrb[0].mxu0
      %v7240 = vadd.f32 0.0, %v7239
      %v7241 = vpop.f32.mrb[0].mxu0
      %v7242 = vpop.f32.mrb[0].mxu0
      %v7243 = vadd.f32 0.0, %v7242
      %v7244 = vpop.f32.mrb[0].mxu0
      %7245 = vmatprep.mubr.bf16.mxu0 0
      %7246 = vmatmul.mubr.bf16.gmra.mrb[0].mxu0 %v7055
      %v7247 = vpop.f32.mrb[0].mxu0
      %v7248 = vadd.f32 0.0, %v7247
      %v7249 = vpop.f32.mrb[0].mxu0
      %v7250 = vpop.f32.mrb[0].mxu0
      %v7251 = vadd.f32 0.0, %v7250
      %v7252 = vpop.f32.mrb[0].mxu0
      %7253 = vmatprep.mubr.bf16.mxu0 0
      %7254 = vmatmul.mubr.bf16.gmra.mrb[0].mxu0 %v7056
      %v7255 = vpop.f32.mrb[0].mxu0
      %v7256 = vadd.f32 0.0, %v7255
      %v7257 = vpop.f32.mrb[0].mxu0
      %v7258 = vpop.f32.mrb[0].mxu0
      %v7259 = vadd.f32 0.0, %v7258
      %v7260 = vpop.f32.mrb[0].mxu0
      %7261 = vmatprep.mubr.bf16.mxu0 0
      %7262 = vmatmul.mubr.bf16.gmra.mrb[0].mxu0 %v7057
      %v7263 = vpop.f32.mrb[0].mxu0
      %v7264 = vadd.f32 0.0, %v7263
      %v7265 = vpop.f32.mrb[0].mxu0
      %v7266 = vpop.f32.mrb[0].mxu0
      %v7267 = vadd.f32 0.0, %v7266
      %v7268 = vpop.f32.mrb[0].mxu0
      %7269 = vmatprep.mubr.bf16.mxu0 0
      %7270 = vmatmul.mubr.bf16.gmra.mrb[0].mxu0 %v7058
      %v7271 = vpop.f32.mrb[0].mxu0
      %v7272 = vadd.f32 0.0, %v7271
      %v7273 = vpop.f32.mrb[0].mxu0
      %v7274 = vpop.f32.mrb[0].mxu0
      %v7275 = vadd.f32 0.0, %v7274
      %v7276 = vpop.f32.mrb[0].mxu0
      %7277 = vmatprep.mubr.bf16.mxu0 0
      %7278 = vmatmul.mubr.bf16.gmra.mrb[0].mxu0 %v7059
      %v7279 = vpop.f32.mrb[0].mxu0
      %v7280 = vadd.f32 0.0, %v7279
      %v7281 = vpop.f32.mrb[0].mxu0
      %v7282 = vpop.f32.mrb[0].mxu0
      %v7283 = vadd.f32 0.0, %v7282
      %v7284 = vpop.f32.mrb[0].mxu0
      %7285 = vdwg.mxu0
      %v7286 = vadd.f32 %v6948, %v7160
      %v7287 = vadd.f32 %v6949, %v7163
      %v7288 = vadd.f32 %v6950, %v7168
      %v7289 = vadd.f32 %v6951, %v7171
      %v7290 = vadd.f32 %v6952, %v7176
      %v7291 = vadd.f32 %v6953, %v7179
      %v7292 = vadd.f32 %v6954, %v7184
      %v7293 = vadd.f32 %v6955, %v7187
      %v7294 = vadd.f32 %v6956, %v7192
      %v7295 = vadd.f32 %v6957, %v7195
      %v7296 = vadd.f32 %v6958, %v7200
      %v7297 = vadd.f32 %v6959, %v7203
      %v7298 = vadd.f32 %v6960, %v7208
      %v7299 = vadd.f32 %v6961, %v7211
      %v7300 = vadd.f32 %v6962, %v7216
      %v7301 = vadd.f32 %v6963, %v7219
      %v7302 = vadd.f32 %v6964, %v7224
      %v7303 = vadd.f32 %v6965, %v7227
      %v7304 = vadd.f32 %v6966, %v7232
      %v7305 = vadd.f32 %v6967, %v7235
      %v7306 = vadd.f32 %v6968, %v7240
      %v7307 = vadd.f32 %v6969, %v7243
      %v7308 = vadd.f32 %v6970, %v7248
      %v7309 = vadd.f32 %v6971, %v7251
      %v7310 = vadd.f32 %v6972, %v7256
      %v7311 = vadd.f32 %v6973, %v7259
      %v7312 = vadd.f32 %v6974, %v7264
      %v7313 = vadd.f32 %v6975, %v7267
      %v7314 = vadd.f32 %v6976, %v7272
      %v7315 = vadd.f32 %v6977, %v7275
      %v7316 = vadd.f32 %v6978, %v7280
      %v7317 = vadd.f32 %v6979, %v7283
      %v7318 = vld [vmem:[#allocation3 + $0x48] sm:$0xff]
      %v7319 = vld [vmem:[#allocation3 + $0x50] sm:$0xff]
      %v7320 = vld [vmem:[#allocation3 + $0x58] sm:$0xff]
      %v7321 = vld [vmem:[#allocation3 + $0x60] sm:$0xff]
      %v7322 = vld [vmem:[#allocation3 + $0x68] sm:$0xff]
      %v7323 = vld [vmem:[#allocation3 + $0x70] sm:$0xff]
      %v7324 = vld [vmem:[#allocation3 + $0x78] sm:$0xff]
      %v7325 = vld [vmem:[#allocation3 + $0x80] sm:$0xff]
      %v7326 = vld [vmem:[#allocation3 + $0x88] sm:$0xff]
      %v7327 = vld [vmem:[#allocation3 + $0x90] sm:$0xff]
      %v7328 = vld [vmem:[#allocation3 + $0x98] sm:$0xff]
      %v7329 = vld [vmem:[#allocation3 + $0xa0] sm:$0xff]
      %v7330 = vld [vmem:[#allocation3 + $0xa8] sm:$0xff]
      %v7331 = vld [vmem:[#allocation3 + $0xb0] sm:$0xff]
      %v7332 = vld [vmem:[#allocation3 + $0xb8] sm:$0xff]
      %v7333 = vld [vmem:[#allocation3 + $0xc0] sm:$0xff]
      %v7334 = vld [vmem:[#allocation3 + $0xc8] sm:$0xff]
      %v7335 = vld [vmem:[#allocation3 + $0xd0] sm:$0xff]
      %v7336 = vld [vmem:[#allocation3 + $0xd8] sm:$0xff]
      %v7337 = vld [vmem:[#allocation3 + $0xe0] sm:$0xff]
      %v7338 = vld [vmem:[#allocation3 + $0xe8] sm:$0xff]
      %v7339 = vld [vmem:[#allocation3 + $0xf0] sm:$0xff]
      %v7340 = vld [vmem:[#allocation3 + $0xf8] sm:$0xff]
      %v7341 = vld [vmem:[#allocation3 + $0x100] sm:$0xff]
      %v7342 = vld [vmem:[#allocation3 + $0x108] sm:$0xff]
      %v7343 = vld [vmem:[#allocation3 + $0x110] sm:$0xff]
      %v7344 = vld [vmem:[#allocation3 + $0x118] sm:$0xff]
      %v7345 = vld [vmem:[#allocation3 + $0x120] sm:$0xff]
      %v7346 = vld [vmem:[#allocation3 + $0x128] sm:$0xff]
      %v7347 = vld [vmem:[#allocation3 + $0x130] sm:$0xff]
      %v7348 = vld [vmem:[#allocation3 + $0x138] sm:$0xff]
      %v7349 = vld [vmem:[#allocation3 + $0x140] sm:$0xff]
      %v7350 = vpack.c.bf16 %v7319, %v7318
      %v7351 = vpack.c.bf16 %v7321, %v7320
      %v7352 = vpack.c.bf16 %v7323, %v7322
      %v7353 = vpack.c.bf16 %v7325, %v7324
      %v7354 = vpack.c.bf16 %v7327, %v7326
      %v7355 = vpack.c.bf16 %v7329, %v7328
      %v7356 = vpack.c.bf16 %v7331, %v7330
      %v7357 = vpack.c.bf16 %v7333, %v7332
      %v7358 = vpack.c.bf16 %v7335, %v7334
      %v7359 = vpack.c.bf16 %v7337, %v7336
      %v7360 = vpack.c.bf16 %v7339, %v7338
      %v7361 = vpack.c.bf16 %v7341, %v7340
      %v7362 = vpack.c.bf16 %v7343, %v7342
      %v7363 = vpack.c.bf16 %v7345, %v7344
      %v7364 = vpack.c.bf16 %v7347, %v7346
      %v7365 = vpack.c.bf16 %v7349, %v7348
      %s7366 = scalar_lea.vmem %s8, 448
      %v7367 = vld [vmem:[%s7366] sm:$0xf]
      %v7368 = vld [vmem:[%s7366 + $0x4] sm:$0xf]
      %v7369 = vld [vmem:[%s7366 + $0x8] sm:$0xf]
      %v7370 = vld [vmem:[%s7366 + $0xc] sm:$0xf]
      %v7371 = vld [vmem:[%s7366 + $0x10] sm:$0xf]
      %v7372 = vld [vmem:[%s7366 + $0x14] sm:$0xf]
      %v7373 = vld [vmem:[%s7366 + $0x18] sm:$0xf]
      %v7374 = vld [vmem:[%s7366 + $0x1c] sm:$0xf]
      %v7375 = vld [vmem:[%s7366 + $0x20] sm:$0xf]
      %v7376 = vld [vmem:[%s7366 + $0x24] sm:$0xf]
      %v7377 = vld [vmem:[%s7366 + $0x28] sm:$0xf]
      %v7378 = vld [vmem:[%s7366 + $0x2c] sm:$0xf]
      %v7379 = vld [vmem:[%s7366 + $0x30] sm:$0xf]
      %v7380 = vld [vmem:[%s7366 + $0x34] sm:$0xf]
      %v7381 = vld [vmem:[%s7366 + $0x38] sm:$0xf]
      %v7382 = vld [vmem:[%s7366 + $0x3c] sm:$0xf]
      %v7399 = vunpack.c.l.b16 %v7367
      %v7400 = vunpack.c.l.b16 %v7368
      %v7401 = vunpack.c.l.b16 %v7369
      %v7402 = vunpack.c.l.b16 %v7370
      %v7403 = vunpack.c.l.b16 %v7371
      %v7404 = vunpack.c.l.b16 %v7372
      %v7405 = vunpack.c.l.b16 %v7373
      %v7406 = vunpack.c.l.b16 %v7374
      %v7407 = vunpack.c.l.b16 %v7375
      %v7408 = vunpack.c.l.b16 %v7376
      %v7409 = vunpack.c.l.b16 %v7377
      %v7410 = vunpack.c.l.b16 %v7378
      %v7411 = vunpack.c.l.b16 %v7379
      %v7412 = vunpack.c.l.b16 %v7380
      %v7413 = vunpack.c.l.b16 %v7381
      %v7414 = vunpack.c.l.b16 %v7382
      %v7415 = vpack.c.b16 %v7400, %v7399
      %v7416 = vpack.c.b16 %v7402, %v7401
      %v7417 = vpack.c.b16 %v7404, %v7403
      %v7418 = vpack.c.b16 %v7406, %v7405
      %v7419 = vpack.c.b16 %v7408, %v7407
      %v7420 = vpack.c.b16 %v7410, %v7409
      %v7421 = vpack.c.b16 %v7412, %v7411
      %v7422 = vpack.c.b16 %v7414, %v7413
      %7431 = vmatprep.subr.bf16.mxu0 0
      %7432 = vmatpush1.bf16.msra.mxu0 %v7415
      %7433 = vmatprep.subr.bf16.mxu0 0
      %7434 = vmatpush1.bf16.msra.mxu0 %v7416
      %7435 = vmatprep.subr.bf16.mxu0 0
      %7436 = vmatpush1.bf16.msra.mxu0 %v7417
      %7437 = vmatprep.subr.bf16.mxu0 0
      %7438 = vmatpush1.bf16.msra.mxu0 %v7418
      %7439 = vmatprep.subr.bf16.mxu0 0
      %7440 = vmatpush1.bf16.msra.mxu0 %v7419
      %7441 = vmatprep.subr.bf16.mxu0 0
      %7442 = vmatpush1.bf16.msra.mxu0 %v7420
      %7443 = vmatprep.subr.bf16.mxu0 0
      %7444 = vmatpush1.bf16.msra.mxu0 %v7421
      %7445 = vmatprep.subr.bf16.mxu0 0
      %7446 = vmatpush1.bf16.msra.mxu0 %v7422
      %7447 = vmatprep.subr.bf16.mxu0 0
      %7448 = vmatpush1.bf16.msra.mxu0 0
      %7449 = vmatprep.subr.bf16.mxu0 0
      %7450 = vmatpush1.bf16.msra.mxu0 0
      %7451 = vmatprep.subr.bf16.mxu0 0
      %7452 = vmatpush1.bf16.msra.mxu0 0
      %7453 = vmatprep.subr.bf16.mxu0 0
      %7454 = vmatpush1.bf16.msra.mxu0 0
      %7455 = vmatprep.subr.bf16.mxu0 0
      %7456 = vmatpush1.bf16.msra.mxu0 0
      %7457 = vmatprep.subr.bf16.mxu0 0
      %7458 = vmatpush1.bf16.msra.mxu0 0
      %7459 = vmatprep.subr.bf16.mxu0 0
      %7460 = vmatpush1.bf16.msra.mxu0 0
      %7461 = vmatprep.subr.bf16.mxu0 0
      %7462 = vmatpush1.bf16.msra.mxu0 0
      %7463 = vmatprep.mubr.bf16.mxu0 0
      %7464 = vmatmul.mubr.bf16.gmra.mrb[0].mxu0 %v7350
      %v7465 = vpop.f32.mrb[0].mxu0
      %v7466 = vadd.f32 0.0, %v7465
      %v7467 = vpop.f32.mrb[0].mxu0
      %v7468 = vpop.f32.mrb[0].mxu0
      %v7469 = vadd.f32 0.0, %v7468
      %v7470 = vpop.f32.mrb[0].mxu0
      %7471 = vmatprep.mubr.bf16.mxu0 0
      %7472 = vmatmul.mubr.bf16.gmra.mrb[0].mxu0 %v7351
      %v7473 = vpop.f32.mrb[0].mxu0
      %v7474 = vadd.f32 0.0, %v7473
      %v7475 = vpop.f32.mrb[0].mxu0
      %v7476 = vpop.f32.mrb[0].mxu0
      %v7477 = vadd.f32 0.0, %v7476
      %v7478 = vpop.f32.mrb[0].mxu0
      %7479 = vmatprep.mubr.bf16.mxu0 0
      %7480 = vmatmul.mubr.bf16.gmra.mrb[0].mxu0 %v7352
      %v7481 = vpop.f32.mrb[0].mxu0
      %v7482 = vadd.f32 0.0, %v7481
      %v7483 = vpop.f32.mrb[0].mxu0
      %v7484 = vpop.f32.mrb[0].mxu0
      %v7485 = vadd.f32 0.0, %v7484
      %v7486 = vpop.f32.mrb[0].mxu0
      %7487 = vmatprep.mubr.bf16.mxu0 0
      %7488 = vmatmul.mubr.bf16.gmra.mrb[0].mxu0 %v7353
      %v7489 = vpop.f32.mrb[0].mxu0
      %v7490 = vadd.f32 0.0, %v7489
      %v7491 = vpop.f32.mrb[0].mxu0
      %v7492 = vpop.f32.mrb[0].mxu0
      %v7493 = vadd.f32 0.0, %v7492
      %v7494 = vpop.f32.mrb[0].mxu0
      %7495 = vmatprep.mubr.bf16.mxu0 0
      %7496 = vmatmul.mubr.bf16.gmra.mrb[0].mxu0 %v7354
      %v7497 = vpop.f32.mrb[0].mxu0
      %v7498 = vadd.f32 0.0, %v7497
      %v7499 = vpop.f32.mrb[0].mxu0
      %v7500 = vpop.f32.mrb[0].mxu0
      %v7501 = vadd.f32 0.0, %v7500
      %v7502 = vpop.f32.mrb[0].mxu0
      %7503 = vmatprep.mubr.bf16.mxu0 0
      %7504 = vmatmul.mubr.bf16.gmra.mrb[0].mxu0 %v7355
      %v7505 = vpop.f32.mrb[0].mxu0
      %v7506 = vadd.f32 0.0, %v7505
      %v7507 = vpop.f32.mrb[0].mxu0
      %v7508 = vpop.f32.mrb[0].mxu0
      %v7509 = vadd.f32 0.0, %v7508
      %v7510 = vpop.f32.mrb[0].mxu0
      %7511 = vmatprep.mubr.bf16.mxu0 0
      %7512 = vmatmul.mubr.bf16.gmra.mrb[0].mxu0 %v7356
      %v7513 = vpop.f32.mrb[0].mxu0
      %v7514 = vadd.f32 0.0, %v7513
      %v7515 = vpop.f32.mrb[0].mxu0
      %v7516 = vpop.f32.mrb[0].mxu0
      %v7517 = vadd.f32 0.0, %v7516
      %v7518 = vpop.f32.mrb[0].mxu0
      %7519 = vmatprep.mubr.bf16.mxu0 0
      %7520 = vmatmul.mubr.bf16.gmra.mrb[0].mxu0 %v7357
      %v7521 = vpop.f32.mrb[0].mxu0
      %v7522 = vadd.f32 0.0, %v7521
      %v7523 = vpop.f32.mrb[0].mxu0
      %v7524 = vpop.f32.mrb[0].mxu0
      %v7525 = vadd.f32 0.0, %v7524
      %v7526 = vpop.f32.mrb[0].mxu0
      %7527 = vmatprep.mubr.bf16.mxu0 0
      %7528 = vmatmul.mubr.bf16.gmra.mrb[0].mxu0 %v7358
      %v7529 = vpop.f32.mrb[0].mxu0
      %v7530 = vadd.f32 0.0, %v7529
      %v7531 = vpop.f32.mrb[0].mxu0
      %v7532 = vpop.f32.mrb[0].mxu0
      %v7533 = vadd.f32 0.0, %v7532
      %v7534 = vpop.f32.mrb[0].mxu0
      %7535 = vmatprep.mubr.bf16.mxu0 0
      %7536 = vmatmul.mubr.bf16.gmra.mrb[0].mxu0 %v7359
      %v7537 = vpop.f32.mrb[0].mxu0
      %v7538 = vadd.f32 0.0, %v7537
      %v7539 = vpop.f32.mrb[0].mxu0
      %v7540 = vpop.f32.mrb[0].mxu0
      %v7541 = vadd.f32 0.0, %v7540
      %v7542 = vpop.f32.mrb[0].mxu0
      %7543 = vmatprep.mubr.bf16.mxu0 0
      %7544 = vmatmul.mubr.bf16.gmra.mrb[0].mxu0 %v7360
      %v7545 = vpop.f32.mrb[0].mxu0
      %v7546 = vadd.f32 0.0, %v7545
      %v7547 = vpop.f32.mrb[0].mxu0
      %v7548 = vpop.f32.mrb[0].mxu0
      %v7549 = vadd.f32 0.0, %v7548
      %v7550 = vpop.f32.mrb[0].mxu0
      %7551 = vmatprep.mubr.bf16.mxu0 0
      %7552 = vmatmul.mubr.bf16.gmra.mrb[0].mxu0 %v7361
      %v7553 = vpop.f32.mrb[0].mxu0
      %v7554 = vadd.f32 0.0, %v7553
      %v7555 = vpop.f32.mrb[0].mxu0
      %v7556 = vpop.f32.mrb[0].mxu0
      %v7557 = vadd.f32 0.0, %v7556
      %v7558 = vpop.f32.mrb[0].mxu0
      %7559 = vmatprep.mubr.bf16.mxu0 0
      %7560 = vmatmul.mubr.bf16.gmra.mrb[0].mxu0 %v7362
      %v7561 = vpop.f32.mrb[0].mxu0
      %v7562 = vadd.f32 0.0, %v7561
      %v7563 = vpop.f32.mrb[0].mxu0
      %v7564 = vpop.f32.mrb[0].mxu0
      %v7565 = vadd.f32 0.0, %v7564
      %v7566 = vpop.f32.mrb[0].mxu0
      %7567 = vmatprep.mubr.bf16.mxu0 0
      %7568 = vmatmul.mubr.bf16.gmra.mrb[0].mxu0 %v7363
      %v7569 = vpop.f32.mrb[0].mxu0
      %v7570 = vadd.f32 0.0, %v7569
      %v7571 = vpop.f32.mrb[0].mxu0
      %v7572 = vpop.f32.mrb[0].mxu0
      %v7573 = vadd.f32 0.0, %v7572
      %v7574 = vpop.f32.mrb[0].mxu0
      %7575 = vmatprep.mubr.bf16.mxu0 0
      %7576 = vmatmul.mubr.bf16.gmra.mrb[0].mxu0 %v7364
      %v7577 = vpop.f32.mrb[0].mxu0
      %v7578 = vadd.f32 0.0, %v7577
      %v7579 = vpop.f32.mrb[0].mxu0
      %v7580 = vpop.f32.mrb[0].mxu0
      %v7581 = vadd.f32 0.0, %v7580
      %v7582 = vpop.f32.mrb[0].mxu0
      %7583 = vmatprep.mubr.bf16.mxu0 0
      %7584 = vmatmul.mubr.bf16.gmra.mrb[0].mxu0 %v7365
      %v7585 = vpop.f32.mrb[0].mxu0
      %v7586 = vadd.f32 0.0, %v7585
      %v7587 = vpop.f32.mrb[0].mxu0
      %v7588 = vpop.f32.mrb[0].mxu0
      %v7589 = vadd.f32 0.0, %v7588
      %v7590 = vpop.f32.mrb[0].mxu0
      %7591 = vdwg.mxu0
      %v7592 = vadd.f32 %v7286, %v7466
      %v7593 = vadd.f32 %v7287, %v7469
      %v7594 = vadd.f32 %v7288, %v7474
      %v7595 = vadd.f32 %v7289, %v7477
      %v7596 = vadd.f32 %v7290, %v7482
      %v7597 = vadd.f32 %v7291, %v7485
      %v7598 = vadd.f32 %v7292, %v7490
      %v7599 = vadd.f32 %v7293, %v7493
      %v7600 = vadd.f32 %v7294, %v7498
      %v7601 = vadd.f32 %v7295, %v7501
      %v7602 = vadd.f32 %v7296, %v7506
      %v7603 = vadd.f32 %v7297, %v7509
      %v7604 = vadd.f32 %v7298, %v7514
      %v7605 = vadd.f32 %v7299, %v7517
      %v7606 = vadd.f32 %v7300, %v7522
      %v7607 = vadd.f32 %v7301, %v7525
      %v7608 = vadd.f32 %v7302, %v7530
      %v7609 = vadd.f32 %v7303, %v7533
      %v7610 = vadd.f32 %v7304, %v7538
      %v7611 = vadd.f32 %v7305, %v7541
      %v7612 = vadd.f32 %v7306, %v7546
      %v7613 = vadd.f32 %v7307, %v7549
      %v7614 = vadd.f32 %v7308, %v7554
      %v7615 = vadd.f32 %v7309, %v7557
      %v7616 = vadd.f32 %v7310, %v7562
      %v7617 = vadd.f32 %v7311, %v7565
      %v7618 = vadd.f32 %v7312, %v7570
      %v7619 = vadd.f32 %v7313, %v7573
      %v7620 = vadd.f32 %v7314, %v7578
      %v7621 = vadd.f32 %v7315, %v7581
      %v7622 = vadd.f32 %v7316, %v7586
      %v7623 = vadd.f32 %v7317, %v7589
      %v7624 = vld [vmem:[#allocation3 + $0x4a] sm:$0xff]
      %v7625 = vld [vmem:[#allocation3 + $0x52] sm:$0xff]
      %v7626 = vld [vmem:[#allocation3 + $0x5a] sm:$0xff]
      %v7627 = vld [vmem:[#allocation3 + $0x62] sm:$0xff]
      %v7628 = vld [vmem:[#allocation3 + $0x6a] sm:$0xff]
      %v7629 = vld [vmem:[#allocation3 + $0x72] sm:$0xff]
      %v7630 = vld [vmem:[#allocation3 + $0x7a] sm:$0xff]
      %v7631 = vld [vmem:[#allocation3 + $0x82] sm:$0xff]
      %v7632 = vld [vmem:[#allocation3 + $0x8a] sm:$0xff]
      %v7633 = vld [vmem:[#allocation3 + $0x92] sm:$0xff]
      %v7634 = vld [vmem:[#allocation3 + $0x9a] sm:$0xff]
      %v7635 = vld [vmem:[#allocation3 + $0xa2] sm:$0xff]
      %v7636 = vld [vmem:[#allocation3 + $0xaa] sm:$0xff]
      %v7637 = vld [vmem:[#allocation3 + $0xb2] sm:$0xff]
      %v7638 = vld [vmem:[#allocation3 + $0xba] sm:$0xff]
      %v7639 = vld [vmem:[#allocation3 + $0xc2] sm:$0xff]
      %v7640 = vld [vmem:[#allocation3 + $0xca] sm:$0xff]
      %v7641 = vld [vmem:[#allocation3 + $0xd2] sm:$0xff]
      %v7642 = vld [vmem:[#allocation3 + $0xda] sm:$0xff]
      %v7643 = vld [vmem:[#allocation3 + $0xe2] sm:$0xff]
      %v7644 = vld [vmem:[#allocation3 + $0xea] sm:$0xff]
      %v7645 = vld [vmem:[#allocation3 + $0xf2] sm:$0xff]
      %v7646 = vld [vmem:[#allocation3 + $0xfa] sm:$0xff]
      %v7647 = vld [vmem:[#allocation3 + $0x102] sm:$0xff]
      %v7648 = vld [vmem:[#allocation3 + $0x10a] sm:$0xff]
      %v7649 = vld [vmem:[#allocation3 + $0x112] sm:$0xff]
      %v7650 = vld [vmem:[#allocation3 + $0x11a] sm:$0xff]
      %v7651 = vld [vmem:[#allocation3 + $0x122] sm:$0xff]
      %v7652 = vld [vmem:[#allocation3 + $0x12a] sm:$0xff]
      %v7653 = vld [vmem:[#allocation3 + $0x132] sm:$0xff]
      %v7654 = vld [vmem:[#allocation3 + $0x13a] sm:$0xff]
      %v7655 = vld [vmem:[#allocation3 + $0x142] sm:$0xff]
      %v7656 = vmul.f32 %v7624, %v5535
      %v7657 = vmul.f32 %v7625, %v5540
      %v7658 = vmul.f32 %v7626, %v5545
      %v7659 = vmul.f32 %v7627, %v5550
      %v7660 = vmul.f32 %v7628, %v5555
      %v7661 = vmul.f32 %v7629, %v5560
      %v7662 = vmul.f32 %v7630, %v5565
      %v7663 = vmul.f32 %v7631, %v5570
      %v7664 = vmul.f32 %v7632, %v5575
      %v7665 = vmul.f32 %v7633, %v5580
      %v7666 = vmul.f32 %v7634, %v5585
      %v7667 = vmul.f32 %v7635, %v5590
      %v7668 = vmul.f32 %v7636, %v5595
      %v7669 = vmul.f32 %v7637, %v5600
      %v7670 = vmul.f32 %v7638, %v5605
      %v7671 = vmul.f32 %v7639, %v5610
      %v7672 = vmul.f32 %v7640, %v5615
      %v7673 = vmul.f32 %v7641, %v5620
      %v7674 = vmul.f32 %v7642, %v5625
      %v7675 = vmul.f32 %v7643, %v5630
      %v7676 = vmul.f32 %v7644, %v5635
      %v7677 = vmul.f32 %v7645, %v5640
      %v7678 = vmul.f32 %v7646, %v5645
      %v7679 = vmul.f32 %v7647, %v5650
      %v7680 = vmul.f32 %v7648, %v5655
      %v7681 = vmul.f32 %v7649, %v5660
      %v7682 = vmul.f32 %v7650, %v5665
      %v7683 = vmul.f32 %v7651, %v5670
      %v7684 = vmul.f32 %v7652, %v5675
      %v7685 = vmul.f32 %v7653, %v5680
      %v7686 = vmul.f32 %v7654, %v5685
      %v7687 = vmul.f32 %v7655, %v5690
      %v7688 = vpack.c.bf16 %v7657, %v7656
      %v7689 = vpack.c.bf16 %v7659, %v7658
      %v7690 = vpack.c.bf16 %v7661, %v7660
      %v7691 = vpack.c.bf16 %v7663, %v7662
      %v7692 = vpack.c.bf16 %v7665, %v7664
      %v7693 = vpack.c.bf16 %v7667, %v7666
      %v7694 = vpack.c.bf16 %v7669, %v7668
      %v7695 = vpack.c.bf16 %v7671, %v7670
      %v7696 = vpack.c.bf16 %v7673, %v7672
      %v7697 = vpack.c.bf16 %v7675, %v7674
      %v7698 = vpack.c.bf16 %v7677, %v7676
      %v7699 = vpack.c.bf16 %v7679, %v7678
      %v7700 = vpack.c.bf16 %v7681, %v7680
      %v7701 = vpack.c.bf16 %v7683, %v7682
      %v7702 = vpack.c.bf16 %v7685, %v7684
      %v7703 = vpack.c.bf16 %v7687, %v7686
      %s7704 = scalar_lea.vmem %s8, 512
      %v7705 = vld [vmem:[%s7704] sm:$0xf]
      %v7706 = vld [vmem:[%s7704 + $0x4] sm:$0xf]
      %v7707 = vld [vmem:[%s7704 + $0x8] sm:$0xf]
      %v7708 = vld [vmem:[%s7704 + $0xc] sm:$0xf]
      %v7709 = vld [vmem:[%s7704 + $0x10] sm:$0xf]
      %v7710 = vld [vmem:[%s7704 + $0x14] sm:$0xf]
      %v7711 = vld [vmem:[%s7704 + $0x18] sm:$0xf]
      %v7712 = vld [vmem:[%s7704 + $0x1c] sm:$0xf]
      %v7713 = vld [vmem:[%s7704 + $0x20] sm:$0xf]
      %v7714 = vld [vmem:[%s7704 + $0x24] sm:$0xf]
      %v7715 = vld [vmem:[%s7704 + $0x28] sm:$0xf]
      %v7716 = vld [vmem:[%s7704 + $0x2c] sm:$0xf]
      %v7717 = vld [vmem:[%s7704 + $0x30] sm:$0xf]
      %v7718 = vld [vmem:[%s7704 + $0x34] sm:$0xf]
      %v7719 = vld [vmem:[%s7704 + $0x38] sm:$0xf]
      %v7720 = vld [vmem:[%s7704 + $0x3c] sm:$0xf]
      %v7737 = vunpack.c.l.b16 %v7705
      %v7738 = vunpack.c.l.b16 %v7706
      %v7739 = vunpack.c.l.b16 %v7707
      %v7740 = vunpack.c.l.b16 %v7708
      %v7741 = vunpack.c.l.b16 %v7709
      %v7742 = vunpack.c.l.b16 %v7710
      %v7743 = vunpack.c.l.b16 %v7711
      %v7744 = vunpack.c.l.b16 %v7712
      %v7745 = vunpack.c.l.b16 %v7713
      %v7746 = vunpack.c.l.b16 %v7714
      %v7747 = vunpack.c.l.b16 %v7715
      %v7748 = vunpack.c.l.b16 %v7716
      %v7749 = vunpack.c.l.b16 %v7717
      %v7750 = vunpack.c.l.b16 %v7718
      %v7751 = vunpack.c.l.b16 %v7719
      %v7752 = vunpack.c.l.b16 %v7720
      %v7753 = vpack.c.b16 %v7738, %v7737
      %v7754 = vpack.c.b16 %v7740, %v7739
      %v7755 = vpack.c.b16 %v7742, %v7741
      %v7756 = vpack.c.b16 %v7744, %v7743
      %v7757 = vpack.c.b16 %v7746, %v7745
      %v7758 = vpack.c.b16 %v7748, %v7747
      %v7759 = vpack.c.b16 %v7750, %v7749
      %v7760 = vpack.c.b16 %v7752, %v7751
      %7769 = vmatprep.subr.bf16.mxu0 0
      %7770 = vmatpush1.bf16.msra.mxu0 %v7753
      %7771 = vmatprep.subr.bf16.mxu0 0
      %7772 = vmatpush1.bf16.msra.mxu0 %v7754
      %7773 = vmatprep.subr.bf16.mxu0 0
      %7774 = vmatpush1.bf16.msra.mxu0 %v7755
      %7775 = vmatprep.subr.bf16.mxu0 0
      %7776 = vmatpush1.bf16.msra.mxu0 %v7756
      %7777 = vmatprep.subr.bf16.mxu0 0
      %7778 = vmatpush1.bf16.msra.mxu0 %v7757
      %7779 = vmatprep.subr.bf16.mxu0 0
      %7780 = vmatpush1.bf16.msra.mxu0 %v7758
      %7781 = vmatprep.subr.bf16.mxu0 0
      %7782 = vmatpush1.bf16.msra.mxu0 %v7759
      %7783 = vmatprep.subr.bf16.mxu0 0
      %7784 = vmatpush1.bf16.msra.mxu0 %v7760
      %7785 = vmatprep.subr.bf16.mxu0 0
      %7786 = vmatpush1.bf16.msra.mxu0 0
      %7787 = vmatprep.subr.bf16.mxu0 0
      %7788 = vmatpush1.bf16.msra.mxu0 0
      %7789 = vmatprep.subr.bf16.mxu0 0
      %7790 = vmatpush1.bf16.msra.mxu0 0
      %7791 = vmatprep.subr.bf16.mxu0 0
      %7792 = vmatpush1.bf16.msra.mxu0 0
      %7793 = vmatprep.subr.bf16.mxu0 0
      %7794 = vmatpush1.bf16.msra.mxu0 0
      %7795 = vmatprep.subr.bf16.mxu0 0
      %7796 = vmatpush1.bf16.msra.mxu0 0
      %7797 = vmatprep.subr.bf16.mxu0 0
      %7798 = vmatpush1.bf16.msra.mxu0 0
      %7799 = vmatprep.subr.bf16.mxu0 0
      %7800 = vmatpush1.bf16.msra.mxu0 0
      %7801 = vmatprep.mubr.bf16.mxu0 0
      %7802 = vmatmul.mubr.bf16.gmra.mrb[0].mxu0 %v7688
      %v7803 = vpop.f32.mrb[0].mxu0
      %v7804 = vadd.f32 0.0, %v7803
      %v7805 = vpop.f32.mrb[0].mxu0
      %v7806 = vpop.f32.mrb[0].mxu0
      %v7807 = vadd.f32 0.0, %v7806
      %v7808 = vpop.f32.mrb[0].mxu0
      %7809 = vmatprep.mubr.bf16.mxu0 0
      %7810 = vmatmul.mubr.bf16.gmra.mrb[0].mxu0 %v7689
      %v7811 = vpop.f32.mrb[0].mxu0
      %v7812 = vadd.f32 0.0, %v7811
      %v7813 = vpop.f32.mrb[0].mxu0
      %v7814 = vpop.f32.mrb[0].mxu0
      %v7815 = vadd.f32 0.0, %v7814
      %v7816 = vpop.f32.mrb[0].mxu0
      %7817 = vmatprep.mubr.bf16.mxu0 0
      %7818 = vmatmul.mubr.bf16.gmra.mrb[0].mxu0 %v7690
      %v7819 = vpop.f32.mrb[0].mxu0
      %v7820 = vadd.f32 0.0, %v7819
      %v7821 = vpop.f32.mrb[0].mxu0
      %v7822 = vpop.f32.mrb[0].mxu0
      %v7823 = vadd.f32 0.0, %v7822
      %v7824 = vpop.f32.mrb[0].mxu0
      %7825 = vmatprep.mubr.bf16.mxu0 0
      %7826 = vmatmul.mubr.bf16.gmra.mrb[0].mxu0 %v7691
      %v7827 = vpop.f32.mrb[0].mxu0
      %v7828 = vadd.f32 0.0, %v7827
      %v7829 = vpop.f32.mrb[0].mxu0
      %v7830 = vpop.f32.mrb[0].mxu0
      %v7831 = vadd.f32 0.0, %v7830
      %v7832 = vpop.f32.mrb[0].mxu0
      %7833 = vmatprep.mubr.bf16.mxu0 0
      %7834 = vmatmul.mubr.bf16.gmra.mrb[0].mxu0 %v7692
      %v7835 = vpop.f32.mrb[0].mxu0
      %v7836 = vadd.f32 0.0, %v7835
      %v7837 = vpop.f32.mrb[0].mxu0
      %v7838 = vpop.f32.mrb[0].mxu0
      %v7839 = vadd.f32 0.0, %v7838
      %v7840 = vpop.f32.mrb[0].mxu0
      %7841 = vmatprep.mubr.bf16.mxu0 0
      %7842 = vmatmul.mubr.bf16.gmra.mrb[0].mxu0 %v7693
      %v7843 = vpop.f32.mrb[0].mxu0
      %v7844 = vadd.f32 0.0, %v7843
      %v7845 = vpop.f32.mrb[0].mxu0
      %v7846 = vpop.f32.mrb[0].mxu0
      %v7847 = vadd.f32 0.0, %v7846
      %v7848 = vpop.f32.mrb[0].mxu0
      %7849 = vmatprep.mubr.bf16.mxu0 0
      %7850 = vmatmul.mubr.bf16.gmra.mrb[0].mxu0 %v7694
      %v7851 = vpop.f32.mrb[0].mxu0
      %v7852 = vadd.f32 0.0, %v7851
      %v7853 = vpop.f32.mrb[0].mxu0
      %v7854 = vpop.f32.mrb[0].mxu0
      %v7855 = vadd.f32 0.0, %v7854
      %v7856 = vpop.f32.mrb[0].mxu0
      %7857 = vmatprep.mubr.bf16.mxu0 0
      %7858 = vmatmul.mubr.bf16.gmra.mrb[0].mxu0 %v7695
      %v7859 = vpop.f32.mrb[0].mxu0
      %v7860 = vadd.f32 0.0, %v7859
      %v7861 = vpop.f32.mrb[0].mxu0
      %v7862 = vpop.f32.mrb[0].mxu0
      %v7863 = vadd.f32 0.0, %v7862
      %v7864 = vpop.f32.mrb[0].mxu0
      %7865 = vmatprep.mubr.bf16.mxu0 0
      %7866 = vmatmul.mubr.bf16.gmra.mrb[0].mxu0 %v7696
      %v7867 = vpop.f32.mrb[0].mxu0
      %v7868 = vadd.f32 0.0, %v7867
      %v7869 = vpop.f32.mrb[0].mxu0
      %v7870 = vpop.f32.mrb[0].mxu0
      %v7871 = vadd.f32 0.0, %v7870
      %v7872 = vpop.f32.mrb[0].mxu0
      %7873 = vmatprep.mubr.bf16.mxu0 0
      %7874 = vmatmul.mubr.bf16.gmra.mrb[0].mxu0 %v7697
      %v7875 = vpop.f32.mrb[0].mxu0
      %v7876 = vadd.f32 0.0, %v7875
      %v7877 = vpop.f32.mrb[0].mxu0
      %v7878 = vpop.f32.mrb[0].mxu0
      %v7879 = vadd.f32 0.0, %v7878
      %v7880 = vpop.f32.mrb[0].mxu0
      %7881 = vmatprep.mubr.bf16.mxu0 0
      %7882 = vmatmul.mubr.bf16.gmra.mrb[0].mxu0 %v7698
      %v7883 = vpop.f32.mrb[0].mxu0
      %v7884 = vadd.f32 0.0, %v7883
      %v7885 = vpop.f32.mrb[0].mxu0
      %v7886 = vpop.f32.mrb[0].mxu0
      %v7887 = vadd.f32 0.0, %v7886
      %v7888 = vpop.f32.mrb[0].mxu0
      %7889 = vmatprep.mubr.bf16.mxu0 0
      %7890 = vmatmul.mubr.bf16.gmra.mrb[0].mxu0 %v7699
      %v7891 = vpop.f32.mrb[0].mxu0
      %v7892 = vadd.f32 0.0, %v7891
      %v7893 = vpop.f32.mrb[0].mxu0
      %v7894 = vpop.f32.mrb[0].mxu0
      %v7895 = vadd.f32 0.0, %v7894
      %v7896 = vpop.f32.mrb[0].mxu0
      %7897 = vmatprep.mubr.bf16.mxu0 0
      %7898 = vmatmul.mubr.bf16.gmra.mrb[0].mxu0 %v7700
      %v7899 = vpop.f32.mrb[0].mxu0
      %v7900 = vadd.f32 0.0, %v7899
      %v7901 = vpop.f32.mrb[0].mxu0
      %v7902 = vpop.f32.mrb[0].mxu0
      %v7903 = vadd.f32 0.0, %v7902
      %v7904 = vpop.f32.mrb[0].mxu0
      %7905 = vmatprep.mubr.bf16.mxu0 0
      %7906 = vmatmul.mubr.bf16.gmra.mrb[0].mxu0 %v7701
      %v7907 = vpop.f32.mrb[0].mxu0
      %v7908 = vadd.f32 0.0, %v7907
      %v7909 = vpop.f32.mrb[0].mxu0
      %v7910 = vpop.f32.mrb[0].mxu0
      %v7911 = vadd.f32 0.0, %v7910
      %v7912 = vpop.f32.mrb[0].mxu0
      %7913 = vmatprep.mubr.bf16.mxu0 0
      %7914 = vmatmul.mubr.bf16.gmra.mrb[0].mxu0 %v7702
      %v7915 = vpop.f32.mrb[0].mxu0
      %v7916 = vadd.f32 0.0, %v7915
      %v7917 = vpop.f32.mrb[0].mxu0
      %v7918 = vpop.f32.mrb[0].mxu0
      %v7919 = vadd.f32 0.0, %v7918
      %v7920 = vpop.f32.mrb[0].mxu0
      %7921 = vmatprep.mubr.bf16.mxu0 0
      %7922 = vmatmul.mubr.bf16.gmra.mrb[0].mxu0 %v7703
      %v7923 = vpop.f32.mrb[0].mxu0
      %v7924 = vadd.f32 0.0, %v7923
      %v7925 = vpop.f32.mrb[0].mxu0
      %v7926 = vpop.f32.mrb[0].mxu0
      %v7927 = vadd.f32 0.0, %v7926
      %v7928 = vpop.f32.mrb[0].mxu0
      %7929 = vdwg.mxu0
      %v7930 = vadd.f32 %v7592, %v7804
      %v7931 = vadd.f32 %v7593, %v7807
      %v7932 = vadd.f32 %v7594, %v7812
      %v7933 = vadd.f32 %v7595, %v7815
      %v7934 = vadd.f32 %v7596, %v7820
      %v7935 = vadd.f32 %v7597, %v7823
      %v7936 = vadd.f32 %v7598, %v7828
      %v7937 = vadd.f32 %v7599, %v7831
      %v7938 = vadd.f32 %v7600, %v7836
      %v7939 = vadd.f32 %v7601, %v7839
      %v7940 = vadd.f32 %v7602, %v7844
      %v7941 = vadd.f32 %v7603, %v7847
      %v7942 = vadd.f32 %v7604, %v7852
      %v7943 = vadd.f32 %v7605, %v7855
      %v7944 = vadd.f32 %v7606, %v7860
      %v7945 = vadd.f32 %v7607, %v7863
      %v7946 = vadd.f32 %v7608, %v7868
      %v7947 = vadd.f32 %v7609, %v7871
      %v7948 = vadd.f32 %v7610, %v7876
      %v7949 = vadd.f32 %v7611, %v7879
      %v7950 = vadd.f32 %v7612, %v7884
      %v7951 = vadd.f32 %v7613, %v7887
      %v7952 = vadd.f32 %v7614, %v7892
      %v7953 = vadd.f32 %v7615, %v7895
      %v7954 = vadd.f32 %v7616, %v7900
      %v7955 = vadd.f32 %v7617, %v7903
      %v7956 = vadd.f32 %v7618, %v7908
      %v7957 = vadd.f32 %v7619, %v7911
      %v7958 = vadd.f32 %v7620, %v7916
      %v7959 = vadd.f32 %v7621, %v7919
      %v7960 = vadd.f32 %v7622, %v7924
      %v7961 = vadd.f32 %v7623, %v7927
      %v7962 = vld [vmem:[%s9] sm:$0x1]
      %v7964 = vlaneseq
      %v7965 = vshrl.u32 %v7964, 7
      %v7966 = vsub.s32 0, %v7965
      %v7967 = vrot.slane %v7962, %v7966
      %v7969 = vadd.f32 %v7930, %v7967
      %v7970 = vadd.f32 %v7931, %v7967
      %v7971 = vadd.f32 %v7932, %v7967
      %v7972 = vadd.f32 %v7933, %v7967
      %v7973 = vadd.f32 %v7934, %v7967
      %v7974 = vadd.f32 %v7935, %v7967
      %v7975 = vadd.f32 %v7936, %v7967
      %v7976 = vadd.f32 %v7937, %v7967
      %v7977 = vadd.f32 %v7938, %v7967
      %v7978 = vadd.f32 %v7939, %v7967
      %v7979 = vadd.f32 %v7940, %v7967
      %v7980 = vadd.f32 %v7941, %v7967
      %v7981 = vadd.f32 %v7942, %v7967
      %v7982 = vadd.f32 %v7943, %v7967
      %v7983 = vadd.f32 %v7944, %v7967
      %v7984 = vadd.f32 %v7945, %v7967
      %v7985 = vadd.f32 %v7946, %v7967
      %v7986 = vadd.f32 %v7947, %v7967
      %v7987 = vadd.f32 %v7948, %v7967
      %v7988 = vadd.f32 %v7949, %v7967
      %v7989 = vadd.f32 %v7950, %v7967
      %v7990 = vadd.f32 %v7951, %v7967
      %v7991 = vadd.f32 %v7952, %v7967
      %v7992 = vadd.f32 %v7953, %v7967
      %v7993 = vadd.f32 %v7954, %v7967
      %v7994 = vadd.f32 %v7955, %v7967
      %v7995 = vadd.f32 %v7956, %v7967
      %v7996 = vadd.f32 %v7957, %v7967
      %v7997 = vadd.f32 %v7958, %v7967
      %v7998 = vadd.f32 %v7959, %v7967
      %v7999 = vadd.f32 %v7960, %v7967
      %v8000 = vadd.f32 %v7961, %v7967
      %v8001 = vpack.c.bf16 %v7970, %v7969
      %v8002 = vpack.c.bf16 %v7972, %v7971
      %v8003 = vpack.c.bf16 %v7974, %v7973
      %v8004 = vpack.c.bf16 %v7976, %v7975
      %v8005 = vpack.c.bf16 %v7978, %v7977
      %v8006 = vpack.c.bf16 %v7980, %v7979
      %v8007 = vpack.c.bf16 %v7982, %v7981
      %v8008 = vpack.c.bf16 %v7984, %v7983
      %v8009 = vpack.c.bf16 %v7986, %v7985
      %v8010 = vpack.c.bf16 %v7988, %v7987
      %v8011 = vpack.c.bf16 %v7990, %v7989
      %v8012 = vpack.c.bf16 %v7992, %v7991
      %v8013 = vpack.c.bf16 %v7994, %v7993
      %v8014 = vpack.c.bf16 %v7996, %v7995
      %v8015 = vpack.c.bf16 %v7998, %v7997
      %v8016 = vpack.c.bf16 %v8000, %v7999
      %v8017 = vld [vmem:[%s10] sm:$0xf]
      %v8018 = vld [vmem:[%s10 + $0x4] sm:$0xf]
      %v8019 = vld [vmem:[%s10 + $0x8] sm:$0xf]
      %v8020 = vld [vmem:[%s10 + $0xc] sm:$0xf]
      %v8021 = vld [vmem:[%s10 + $0x10] sm:$0xf]
      %v8022 = vld [vmem:[%s10 + $0x14] sm:$0xf]
      %v8023 = vld [vmem:[%s10 + $0x18] sm:$0xf]
      %v8024 = vld [vmem:[%s10 + $0x1c] sm:$0xf]
      %v8025 = vld [vmem:[%s10 + $0x20] sm:$0xf]
      %v8026 = vld [vmem:[%s10 + $0x24] sm:$0xf]
      %v8027 = vld [vmem:[%s10 + $0x28] sm:$0xf]
      %v8028 = vld [vmem:[%s10 + $0x2c] sm:$0xf]
      %v8029 = vld [vmem:[%s10 + $0x30] sm:$0xf]
      %v8030 = vld [vmem:[%s10 + $0x34] sm:$0xf]
      %v8031 = vld [vmem:[%s10 + $0x38] sm:$0xf]
      %v8032 = vld [vmem:[%s10 + $0x3c] sm:$0xf]
      %v8033 = vld [vmem:[%s11] sm:$0x1]
      %v8035 = vlaneseq
      %v8036 = vshrl.u32 %v8035, 7
      %v8037 = vsub.s32 0, %v8036
      %v8038 = vrot.slane %v8033, %v8037
      %v8056 = vunpack.c.l.b16 %v8017
      %v8057 = vunpack.c.l.b16 %v8018
      %v8058 = vunpack.c.l.b16 %v8019
      %v8059 = vunpack.c.l.b16 %v8020
      %v8060 = vunpack.c.l.b16 %v8021
      %v8061 = vunpack.c.l.b16 %v8022
      %v8062 = vunpack.c.l.b16 %v8023
      %v8063 = vunpack.c.l.b16 %v8024
      %v8064 = vunpack.c.l.b16 %v8025
      %v8065 = vunpack.c.l.b16 %v8026
      %v8066 = vunpack.c.l.b16 %v8027
      %v8067 = vunpack.c.l.b16 %v8028
      %v8068 = vunpack.c.l.b16 %v8029
      %v8069 = vunpack.c.l.b16 %v8030
      %v8070 = vunpack.c.l.b16 %v8031
      %v8071 = vunpack.c.l.b16 %v8032
      %v8072 = vpack.c.b16 %v8057, %v8056
      %v8073 = vpack.c.b16 %v8059, %v8058
      %v8074 = vpack.c.b16 %v8061, %v8060
      %v8075 = vpack.c.b16 %v8063, %v8062
      %v8076 = vpack.c.b16 %v8065, %v8064
      %v8077 = vpack.c.b16 %v8067, %v8066
      %v8078 = vpack.c.b16 %v8069, %v8068
      %v8079 = vpack.c.b16 %v8071, %v8070
      %8088 = vmatprep.subr.bf16.mxu0 0
      %8089 = vmatpush1.bf16.msra.mxu0 %v8072
      %8090 = vmatprep.subr.bf16.mxu0 0
      %8091 = vmatpush1.bf16.msra.mxu0 %v8073
      %8092 = vmatprep.subr.bf16.mxu0 0
      %8093 = vmatpush1.bf16.msra.mxu0 %v8074
      %8094 = vmatprep.subr.bf16.mxu0 0
      %8095 = vmatpush1.bf16.msra.mxu0 %v8075
      %8096 = vmatprep.subr.bf16.mxu0 0
      %8097 = vmatpush1.bf16.msra.mxu0 %v8076
      %8098 = vmatprep.subr.bf16.mxu0 0
      %8099 = vmatpush1.bf16.msra.mxu0 %v8077
      %8100 = vmatprep.subr.bf16.mxu0 0
      %8101 = vmatpush1.bf16.msra.mxu0 %v8078
      %8102 = vmatprep.subr.bf16.mxu0 0
      %8103 = vmatpush1.bf16.msra.mxu0 %v8079
      %8104 = vmatprep.subr.bf16.mxu0 0
      %8105 = vmatpush1.bf16.msra.mxu0 0
      %8106 = vmatprep.subr.bf16.mxu0 0
      %8107 = vmatpush1.bf16.msra.mxu0 0
      %8108 = vmatprep.subr.bf16.mxu0 0
      %8109 = vmatpush1.bf16.msra.mxu0 0
      %8110 = vmatprep.subr.bf16.mxu0 0
      %8111 = vmatpush1.bf16.msra.mxu0 0
      %8112 = vmatprep.subr.bf16.mxu0 0
      %8113 = vmatpush1.bf16.msra.mxu0 0
      %8114 = vmatprep.subr.bf16.mxu0 0
      %8115 = vmatpush1.bf16.msra.mxu0 0
      %8116 = vmatprep.subr.bf16.mxu0 0
      %8117 = vmatpush1.bf16.msra.mxu0 0
      %8118 = vmatprep.subr.bf16.mxu0 0
      %8119 = vmatpush1.bf16.msra.mxu0 0
      %8120 = vmatprep.mubr.bf16.mxu0 0
      %8121 = vmatmul.mubr.bf16.gmra.mrb[0].mxu0 %v8001
      %v8122 = vpop.f32.mrb[0].mxu0
      %v8123 = vadd.f32 %v8038, %v8122
      %v8124 = vpop.f32.mrb[0].mxu0
      %v8125 = vpop.f32.mrb[0].mxu0
      %v8126 = vadd.f32 %v8038, %v8125
      %v8127 = vpop.f32.mrb[0].mxu0
      %8128 = vmatprep.mubr.bf16.mxu0 0
      %8129 = vmatmul.mubr.bf16.gmra.mrb[0].mxu0 %v8002
      %v8130 = vpop.f32.mrb[0].mxu0
      %v8131 = vadd.f32 %v8038, %v8130
      %v8132 = vpop.f32.mrb[0].mxu0
      %v8133 = vpop.f32.mrb[0].mxu0
      %v8134 = vadd.f32 %v8038, %v8133
      %v8135 = vpop.f32.mrb[0].mxu0
      %8136 = vmatprep.mubr.bf16.mxu0 0
      %8137 = vmatmul.mubr.bf16.gmra.mrb[0].mxu0 %v8003
      %v8138 = vpop.f32.mrb[0].mxu0
      %v8139 = vadd.f32 %v8038, %v8138
      %v8140 = vpop.f32.mrb[0].mxu0
      %v8141 = vpop.f32.mrb[0].mxu0
      %v8142 = vadd.f32 %v8038, %v8141
      %v8143 = vpop.f32.mrb[0].mxu0
      %8144 = vmatprep.mubr.bf16.mxu0 0
      %8145 = vmatmul.mubr.bf16.gmra.mrb[0].mxu0 %v8004
      %v8146 = vpop.f32.mrb[0].mxu0
      %v8147 = vadd.f32 %v8038, %v8146
      %v8148 = vpop.f32.mrb[0].mxu0
      %v8149 = vpop.f32.mrb[0].mxu0
      %v8150 = vadd.f32 %v8038, %v8149
      %v8151 = vpop.f32.mrb[0].mxu0
      %8152 = vmatprep.mubr.bf16.mxu0 0
      %8153 = vmatmul.mubr.bf16.gmra.mrb[0].mxu0 %v8005
      %v8154 = vpop.f32.mrb[0].mxu0
      %v8155 = vadd.f32 %v8038, %v8154
      %v8156 = vpop.f32.mrb[0].mxu0
      %v8157 = vpop.f32.mrb[0].mxu0
      %v8158 = vadd.f32 %v8038, %v8157
      %v8159 = vpop.f32.mrb[0].mxu0
      %8160 = vmatprep.mubr.bf16.mxu0 0
      %8161 = vmatmul.mubr.bf16.gmra.mrb[0].mxu0 %v8006
      %v8162 = vpop.f32.mrb[0].mxu0
      %v8163 = vadd.f32 %v8038, %v8162
      %v8164 = vpop.f32.mrb[0].mxu0
      %v8165 = vpop.f32.mrb[0].mxu0
      %v8166 = vadd.f32 %v8038, %v8165
      %v8167 = vpop.f32.mrb[0].mxu0
      %8168 = vmatprep.mubr.bf16.mxu0 0
      %8169 = vmatmul.mubr.bf16.gmra.mrb[0].mxu0 %v8007
      %v8170 = vpop.f32.mrb[0].mxu0
      %v8171 = vadd.f32 %v8038, %v8170
      %v8172 = vpop.f32.mrb[0].mxu0
      %v8173 = vpop.f32.mrb[0].mxu0
      %v8174 = vadd.f32 %v8038, %v8173
      %v8175 = vpop.f32.mrb[0].mxu0
      %8176 = vmatprep.mubr.bf16.mxu0 0
      %8177 = vmatmul.mubr.bf16.gmra.mrb[0].mxu0 %v8008
      %v8178 = vpop.f32.mrb[0].mxu0
      %v8179 = vadd.f32 %v8038, %v8178
      %v8180 = vpop.f32.mrb[0].mxu0
      %v8181 = vpop.f32.mrb[0].mxu0
      %v8182 = vadd.f32 %v8038, %v8181
      %v8183 = vpop.f32.mrb[0].mxu0
      %8184 = vmatprep.mubr.bf16.mxu0 0
      %8185 = vmatmul.mubr.bf16.gmra.mrb[0].mxu0 %v8009
      %v8186 = vpop.f32.mrb[0].mxu0
      %v8187 = vadd.f32 %v8038, %v8186
      %v8188 = vpop.f32.mrb[0].mxu0
      %v8189 = vpop.f32.mrb[0].mxu0
      %v8190 = vadd.f32 %v8038, %v8189
      %v8191 = vpop.f32.mrb[0].mxu0
      %8192 = vmatprep.mubr.bf16.mxu0 0
      %8193 = vmatmul.mubr.bf16.gmra.mrb[0].mxu0 %v8010
      %v8194 = vpop.f32.mrb[0].mxu0
      %v8195 = vadd.f32 %v8038, %v8194
      %v8196 = vpop.f32.mrb[0].mxu0
      %v8197 = vpop.f32.mrb[0].mxu0
      %v8198 = vadd.f32 %v8038, %v8197
      %v8199 = vpop.f32.mrb[0].mxu0
      %8200 = vmatprep.mubr.bf16.mxu0 0
      %8201 = vmatmul.mubr.bf16.gmra.mrb[0].mxu0 %v8011
      %v8202 = vpop.f32.mrb[0].mxu0
      %v8203 = vadd.f32 %v8038, %v8202
      %v8204 = vpop.f32.mrb[0].mxu0
      %v8205 = vpop.f32.mrb[0].mxu0
      %v8206 = vadd.f32 %v8038, %v8205
      %v8207 = vpop.f32.mrb[0].mxu0
      %8208 = vmatprep.mubr.bf16.mxu0 0
      %8209 = vmatmul.mubr.bf16.gmra.mrb[0].mxu0 %v8012
      %v8210 = vpop.f32.mrb[0].mxu0
      %v8211 = vadd.f32 %v8038, %v8210
      %v8212 = vpop.f32.mrb[0].mxu0
      %v8213 = vpop.f32.mrb[0].mxu0
      %v8214 = vadd.f32 %v8038, %v8213
      %v8215 = vpop.f32.mrb[0].mxu0
      %8216 = vmatprep.mubr.bf16.mxu0 0
      %8217 = vmatmul.mubr.bf16.gmra.mrb[0].mxu0 %v8013
      %v8218 = vpop.f32.mrb[0].mxu0
      %v8219 = vadd.f32 %v8038, %v8218
      %v8220 = vpop.f32.mrb[0].mxu0
      %v8221 = vpop.f32.mrb[0].mxu0
      %v8222 = vadd.f32 %v8038, %v8221
      %v8223 = vpop.f32.mrb[0].mxu0
      %8224 = vmatprep.mubr.bf16.mxu0 0
      %8225 = vmatmul.mubr.bf16.gmra.mrb[0].mxu0 %v8014
      %v8226 = vpop.f32.mrb[0].mxu0
      %v8227 = vadd.f32 %v8038, %v8226
      %v8228 = vpop.f32.mrb[0].mxu0
      %v8229 = vpop.f32.mrb[0].mxu0
      %v8230 = vadd.f32 %v8038, %v8229
      %v8231 = vpop.f32.mrb[0].mxu0
      %8232 = vmatprep.mubr.bf16.mxu0 0
      %8233 = vmatmul.mubr.bf16.gmra.mrb[0].mxu0 %v8015
      %v8234 = vpop.f32.mrb[0].mxu0
      %v8235 = vadd.f32 %v8038, %v8234
      %v8236 = vpop.f32.mrb[0].mxu0
      %v8237 = vpop.f32.mrb[0].mxu0
      %v8238 = vadd.f32 %v8038, %v8237
      %v8239 = vpop.f32.mrb[0].mxu0
      %8240 = vmatprep.mubr.bf16.mxu0 0
      %8241 = vmatmul.mubr.bf16.gmra.mrb[0].mxu0 %v8016
      %v8242 = vpop.f32.mrb[0].mxu0
      %v8243 = vadd.f32 %v8038, %v8242
      %v8244 = vpop.f32.mrb[0].mxu0
      %v8245 = vpop.f32.mrb[0].mxu0
      %v8246 = vadd.f32 %v8038, %v8245
      %v8247 = vpop.f32.mrb[0].mxu0
      %8248 = vdwg.mxu0
      %v8249 = vxor.u32 %v8123, 2147483648
      %v8250 = vxor.u32 %v8126, 2147483648
      %v8251 = vxor.u32 %v8131, 2147483648
      %v8252 = vxor.u32 %v8134, 2147483648
      %v8253 = vxor.u32 %v8139, 2147483648
      %v8254 = vxor.u32 %v8142, 2147483648
      %v8255 = vxor.u32 %v8147, 2147483648
      %v8256 = vxor.u32 %v8150, 2147483648
      %v8257 = vxor.u32 %v8155, 2147483648
      %v8258 = vxor.u32 %v8158, 2147483648
      %v8259 = vxor.u32 %v8163, 2147483648
      %v8260 = vxor.u32 %v8166, 2147483648
      %v8261 = vxor.u32 %v8171, 2147483648
      %v8262 = vxor.u32 %v8174, 2147483648
      %v8263 = vxor.u32 %v8179, 2147483648
      %v8264 = vxor.u32 %v8182, 2147483648
      %v8265 = vxor.u32 %v8187, 2147483648
      %v8266 = vxor.u32 %v8190, 2147483648
      %v8267 = vxor.u32 %v8195, 2147483648
      %v8268 = vxor.u32 %v8198, 2147483648
      %v8269 = vxor.u32 %v8203, 2147483648
      %v8270 = vxor.u32 %v8206, 2147483648
      %v8271 = vxor.u32 %v8211, 2147483648
      %v8272 = vxor.u32 %v8214, 2147483648
      %v8273 = vxor.u32 %v8219, 2147483648
      %v8274 = vxor.u32 %v8222, 2147483648
      %v8275 = vxor.u32 %v8227, 2147483648
      %v8276 = vxor.u32 %v8230, 2147483648
      %v8277 = vxor.u32 %v8235, 2147483648
      %v8278 = vxor.u32 %v8238, 2147483648
      %v8279 = vxor.u32 %v8243, 2147483648
      %v8280 = vxor.u32 %v8246, 2147483648
      %v8281 = vmul.f32 %v8249, 1.442695
      %v8282 = vpow.pop %v8281
      %v8283 = vmul.f32 %v8250, 1.442695
      %v8284 = vpow.pop %v8283
      %v8285 = vmul.f32 %v8251, 1.442695
      %v8286 = vpow.pop %v8285
      %v8287 = vmul.f32 %v8252, 1.442695
      %v8288 = vpow.pop %v8287
      %v8289 = vmul.f32 %v8253, 1.442695
      %v8290 = vpow.pop %v8289
      %v8291 = vmul.f32 %v8254, 1.442695
      %v8292 = vpow.pop %v8291
      %v8293 = vmul.f32 %v8255, 1.442695
      %v8294 = vpow.pop %v8293
      %v8295 = vmul.f32 %v8256, 1.442695
      %v8296 = vpow.pop %v8295
      %v8297 = vmul.f32 %v8257, 1.442695
      %v8298 = vpow.pop %v8297
      %v8299 = vmul.f32 %v8258, 1.442695
      %v8300 = vpow.pop %v8299
      %v8301 = vmul.f32 %v8259, 1.442695
      %v8302 = vpow.pop %v8301
      %v8303 = vmul.f32 %v8260, 1.442695
      %v8304 = vpow.pop %v8303
      %v8305 = vmul.f32 %v8261, 1.442695
      %v8306 = vpow.pop %v8305
      %v8307 = vmul.f32 %v8262, 1.442695
      %v8308 = vpow.pop %v8307
      %v8309 = vmul.f32 %v8263, 1.442695
      %v8310 = vpow.pop %v8309
      %v8311 = vmul.f32 %v8264, 1.442695
      %v8312 = vpow.pop %v8311
      %v8313 = vmul.f32 %v8265, 1.442695
      %v8314 = vpow.pop %v8313
      %v8315 = vmul.f32 %v8266, 1.442695
      %v8316 = vpow.pop %v8315
      %v8317 = vmul.f32 %v8267, 1.442695
      %v8318 = vpow.pop %v8317
      %v8319 = vmul.f32 %v8268, 1.442695
      %v8320 = vpow.pop %v8319
      %v8321 = vmul.f32 %v8269, 1.442695
      %v8322 = vpow.pop %v8321
      %v8323 = vmul.f32 %v8270, 1.442695
      %v8324 = vpow.pop %v8323
      %v8325 = vmul.f32 %v8271, 1.442695
      %v8326 = vpow.pop %v8325
      %v8327 = vmul.f32 %v8272, 1.442695
      %v8328 = vpow.pop %v8327
      %v8329 = vmul.f32 %v8273, 1.442695
      %v8330 = vpow.pop %v8329
      %v8331 = vmul.f32 %v8274, 1.442695
      %v8332 = vpow.pop %v8331
      %v8333 = vmul.f32 %v8275, 1.442695
      %v8334 = vpow.pop %v8333
      %v8335 = vmul.f32 %v8276, 1.442695
      %v8336 = vpow.pop %v8335
      %v8337 = vmul.f32 %v8277, 1.442695
      %v8338 = vpow.pop %v8337
      %v8339 = vmul.f32 %v8278, 1.442695
      %v8340 = vpow.pop %v8339
      %v8341 = vmul.f32 %v8279, 1.442695
      %v8342 = vpow.pop %v8341
      %v8343 = vmul.f32 %v8280, 1.442695
      %v8344 = vpow.pop %v8343
      %v8345 = vadd.f32 %v8282, 1.0
      %v8346 = vadd.f32 %v8284, 1.0
      %v8347 = vadd.f32 %v8286, 1.0
      %v8348 = vadd.f32 %v8288, 1.0
      %v8349 = vadd.f32 %v8290, 1.0
      %v8350 = vadd.f32 %v8292, 1.0
      %v8351 = vadd.f32 %v8294, 1.0
      %v8352 = vadd.f32 %v8296, 1.0
      %v8353 = vadd.f32 %v8298, 1.0
      %v8354 = vadd.f32 %v8300, 1.0
      %v8355 = vadd.f32 %v8302, 1.0
      %v8356 = vadd.f32 %v8304, 1.0
      %v8357 = vadd.f32 %v8306, 1.0
      %v8358 = vadd.f32 %v8308, 1.0
      %v8359 = vadd.f32 %v8310, 1.0
      %v8360 = vadd.f32 %v8312, 1.0
      %v8361 = vadd.f32 %v8314, 1.0
      %v8362 = vadd.f32 %v8316, 1.0
      %v8363 = vadd.f32 %v8318, 1.0
      %v8364 = vadd.f32 %v8320, 1.0
      %v8365 = vadd.f32 %v8322, 1.0
      %v8366 = vadd.f32 %v8324, 1.0
      %v8367 = vadd.f32 %v8326, 1.0
      %v8368 = vadd.f32 %v8328, 1.0
      %v8369 = vadd.f32 %v8330, 1.0
      %v8370 = vadd.f32 %v8332, 1.0
      %v8371 = vadd.f32 %v8334, 1.0
      %v8372 = vadd.f32 %v8336, 1.0
      %v8373 = vadd.f32 %v8338, 1.0
      %v8374 = vadd.f32 %v8340, 1.0
      %v8375 = vadd.f32 %v8342, 1.0
      %v8376 = vadd.f32 %v8344, 1.0
      %v8377 = vrcp.pop %v8345
      %v8378 = vmul.f32 1.0, %v8377
      %v8379 = vrcp.pop %v8346
      %v8380 = vmul.f32 1.0, %v8379
      %v8381 = vrcp.pop %v8347
      %v8382 = vmul.f32 1.0, %v8381
      %v8383 = vrcp.pop %v8348
      %v8384 = vmul.f32 1.0, %v8383
      %v8385 = vrcp.pop %v8349
      %v8386 = vmul.f32 1.0, %v8385
      %v8387 = vrcp.pop %v8350
      %v8388 = vmul.f32 1.0, %v8387
      %v8389 = vrcp.pop %v8351
      %v8390 = vmul.f32 1.0, %v8389
      %v8391 = vrcp.pop %v8352
      %v8392 = vmul.f32 1.0, %v8391
      %v8393 = vrcp.pop %v8353
      %v8394 = vmul.f32 1.0, %v8393
      %v8395 = vrcp.pop %v8354
      %v8396 = vmul.f32 1.0, %v8395
      %v8397 = vrcp.pop %v8355
      %v8398 = vmul.f32 1.0, %v8397
      %v8399 = vrcp.pop %v8356
      %v8400 = vmul.f32 1.0, %v8399
      %v8401 = vrcp.pop %v8357
      %v8402 = vmul.f32 1.0, %v8401
      %v8403 = vrcp.pop %v8358
      %v8404 = vmul.f32 1.0, %v8403
      %v8405 = vrcp.pop %v8359
      %v8406 = vmul.f32 1.0, %v8405
      %v8407 = vrcp.pop %v8360
      %v8408 = vmul.f32 1.0, %v8407
      %v8409 = vrcp.pop %v8361
      %v8410 = vmul.f32 1.0, %v8409
      %v8411 = vrcp.pop %v8362
      %v8412 = vmul.f32 1.0, %v8411
      %v8413 = vrcp.pop %v8363
      %v8414 = vmul.f32 1.0, %v8413
      %v8415 = vrcp.pop %v8364
      %v8416 = vmul.f32 1.0, %v8415
      %v8417 = vrcp.pop %v8365
      %v8418 = vmul.f32 1.0, %v8417
      %v8419 = vrcp.pop %v8366
      %v8420 = vmul.f32 1.0, %v8419
      %v8421 = vrcp.pop %v8367
      %v8422 = vmul.f32 1.0, %v8421
      %v8423 = vrcp.pop %v8368
      %v8424 = vmul.f32 1.0, %v8423
      %v8425 = vrcp.pop %v8369
      %v8426 = vmul.f32 1.0, %v8425
      %v8427 = vrcp.pop %v8370
      %v8428 = vmul.f32 1.0, %v8427
      %v8429 = vrcp.pop %v8371
      %v8430 = vmul.f32 1.0, %v8429
      %v8431 = vrcp.pop %v8372
      %v8432 = vmul.f32 1.0, %v8431
      %v8433 = vrcp.pop %v8373
      %v8434 = vmul.f32 1.0, %v8433
      %v8435 = vrcp.pop %v8374
      %v8436 = vmul.f32 1.0, %v8435
      %v8437 = vrcp.pop %v8375
      %v8438 = vmul.f32 1.0, %v8437
      %v8439 = vrcp.pop %v8376
      %v8440 = vmul.f32 1.0, %v8439
      %v8441 = vmul.f32 %v6336, %v8378
      %v8442 = vmul.f32 %v6337, %v8380
      %v8443 = vmul.f32 %v6338, %v8382
      %v8444 = vmul.f32 %v6339, %v8384
      %v8445 = vmul.f32 %v6340, %v8386
      %v8446 = vmul.f32 %v6341, %v8388
      %v8447 = vmul.f32 %v6342, %v8390
      %v8448 = vmul.f32 %v6343, %v8392
      %v8449 = vmul.f32 %v6344, %v8394
      %v8450 = vmul.f32 %v6345, %v8396
      %v8451 = vmul.f32 %v6346, %v8398
      %v8452 = vmul.f32 %v6347, %v8400
      %v8453 = vmul.f32 %v6348, %v8402
      %v8454 = vmul.f32 %v6349, %v8404
      %v8455 = vmul.f32 %v6350, %v8406
      %v8456 = vmul.f32 %v6351, %v8408
      %v8457 = vmul.f32 %v6352, %v8410
      %v8458 = vmul.f32 %v6353, %v8412
      %v8459 = vmul.f32 %v6354, %v8414
      %v8460 = vmul.f32 %v6355, %v8416
      %v8461 = vmul.f32 %v6356, %v8418
      %v8462 = vmul.f32 %v6357, %v8420
      %v8463 = vmul.f32 %v6358, %v8422
      %v8464 = vmul.f32 %v6359, %v8424
      %v8465 = vmul.f32 %v6360, %v8426
      %v8466 = vmul.f32 %v6361, %v8428
      %v8467 = vmul.f32 %v6362, %v8430
      %v8468 = vmul.f32 %v6363, %v8432
      %v8469 = vmul.f32 %v6364, %v8434
      %v8470 = vmul.f32 %v6365, %v8436
      %v8471 = vmul.f32 %v6366, %v8438
      %v8472 = vmul.f32 %v6367, %v8440
      %v8473 = vpack.c.bf16 %v8442, %v8441
      %v8474 = vpack.c.bf16 %v8444, %v8443
      %v8475 = vpack.c.bf16 %v8446, %v8445
      %v8476 = vpack.c.bf16 %v8448, %v8447
      %v8477 = vpack.c.bf16 %v8450, %v8449
      %v8478 = vpack.c.bf16 %v8452, %v8451
      %v8479 = vpack.c.bf16 %v8454, %v8453
      %v8480 = vpack.c.bf16 %v8456, %v8455
      %v8481 = vpack.c.bf16 %v8458, %v8457
      %v8482 = vpack.c.bf16 %v8460, %v8459
      %v8483 = vpack.c.bf16 %v8462, %v8461
      %v8484 = vpack.c.bf16 %v8464, %v8463
      %v8485 = vpack.c.bf16 %v8466, %v8465
      %v8486 = vpack.c.bf16 %v8468, %v8467
      %v8487 = vpack.c.bf16 %v8470, %v8469
      %v8488 = vpack.c.bf16 %v8472, %v8471
      %v8489 = vld [vmem:[%s12] sm:$0xf]
      %v8490 = vld [vmem:[%s12 + $0x4] sm:$0xf]
      %v8491 = vld [vmem:[%s12 + $0x8] sm:$0xf]
      %v8492 = vld [vmem:[%s12 + $0xc] sm:$0xf]
      %v8493 = vld [vmem:[%s12 + $0x10] sm:$0xf]
      %v8494 = vld [vmem:[%s12 + $0x14] sm:$0xf]
      %v8495 = vld [vmem:[%s12 + $0x18] sm:$0xf]
      %v8496 = vld [vmem:[%s12 + $0x1c] sm:$0xf]
      %v8497 = vld [vmem:[%s12 + $0x20] sm:$0xf]
      %v8498 = vld [vmem:[%s12 + $0x24] sm:$0xf]
      %v8499 = vld [vmem:[%s12 + $0x28] sm:$0xf]
      %v8500 = vld [vmem:[%s12 + $0x2c] sm:$0xf]
      %v8501 = vld [vmem:[%s12 + $0x30] sm:$0xf]
      %v8502 = vld [vmem:[%s12 + $0x34] sm:$0xf]
      %v8503 = vld [vmem:[%s12 + $0x38] sm:$0xf]
      %v8504 = vld [vmem:[%s12 + $0x3c] sm:$0xf]
      %v8505 = vld [vmem:[%s13] sm:$0x1]
      %v8507 = vlaneseq
      %v8508 = vshrl.u32 %v8507, 7
      %v8509 = vsub.s32 0, %v8508
      %v8510 = vrot.slane %v8505, %v8509
      %v8528 = vunpack.c.l.b16 %v8489
      %v8529 = vunpack.c.l.b16 %v8490
      %v8530 = vunpack.c.l.b16 %v8491
      %v8531 = vunpack.c.l.b16 %v8492
      %v8532 = vunpack.c.l.b16 %v8493
      %v8533 = vunpack.c.l.b16 %v8494
      %v8534 = vunpack.c.l.b16 %v8495
      %v8535 = vunpack.c.l.b16 %v8496
      %v8536 = vunpack.c.l.b16 %v8497
      %v8537 = vunpack.c.l.b16 %v8498
      %v8538 = vunpack.c.l.b16 %v8499
      %v8539 = vunpack.c.l.b16 %v8500
      %v8540 = vunpack.c.l.b16 %v8501
      %v8541 = vunpack.c.l.b16 %v8502
      %v8542 = vunpack.c.l.b16 %v8503
      %v8543 = vunpack.c.l.b16 %v8504
      %v8544 = vpack.c.b16 %v8529, %v8528
      %v8545 = vpack.c.b16 %v8531, %v8530
      %v8546 = vpack.c.b16 %v8533, %v8532
      %v8547 = vpack.c.b16 %v8535, %v8534
      %v8548 = vpack.c.b16 %v8537, %v8536
      %v8549 = vpack.c.b16 %v8539, %v8538
      %v8550 = vpack.c.b16 %v8541, %v8540
      %v8551 = vpack.c.b16 %v8543, %v8542
      %8560 = vmatprep.subr.bf16.mxu0 0
      %8561 = vmatpush1.bf16.msra.mxu0 %v8544
      %8562 = vmatprep.subr.bf16.mxu0 0
      %8563 = vmatpush1.bf16.msra.mxu0 %v8545
      %8564 = vmatprep.subr.bf16.mxu0 0
      %8565 = vmatpush1.bf16.msra.mxu0 %v8546
      %8566 = vmatprep.subr.bf16.mxu0 0
      %8567 = vmatpush1.bf16.msra.mxu0 %v8547
      %8568 = vmatprep.subr.bf16.mxu0 0
      %8569 = vmatpush1.bf16.msra.mxu0 %v8548
      %8570 = vmatprep.subr.bf16.mxu0 0
      %8571 = vmatpush1.bf16.msra.mxu0 %v8549
      %8572 = vmatprep.subr.bf16.mxu0 0
      %8573 = vmatpush1.bf16.msra.mxu0 %v8550
      %8574 = vmatprep.subr.bf16.mxu0 0
      %8575 = vmatpush1.bf16.msra.mxu0 %v8551
      %8576 = vmatprep.subr.bf16.mxu0 0
      %8577 = vmatpush1.bf16.msra.mxu0 0
      %8578 = vmatprep.subr.bf16.mxu0 0
      %8579 = vmatpush1.bf16.msra.mxu0 0
      %8580 = vmatprep.subr.bf16.mxu0 0
      %8581 = vmatpush1.bf16.msra.mxu0 0
      %8582 = vmatprep.subr.bf16.mxu0 0
      %8583 = vmatpush1.bf16.msra.mxu0 0
      %8584 = vmatprep.subr.bf16.mxu0 0
      %8585 = vmatpush1.bf16.msra.mxu0 0
      %8586 = vmatprep.subr.bf16.mxu0 0
      %8587 = vmatpush1.bf16.msra.mxu0 0
      %8588 = vmatprep.subr.bf16.mxu0 0
      %8589 = vmatpush1.bf16.msra.mxu0 0
      %8590 = vmatprep.subr.bf16.mxu0 0
      %8591 = vmatpush1.bf16.msra.mxu0 0
      %8592 = vmatprep.mubr.bf16.mxu0 0
      %8593 = vmatmul.mubr.bf16.gmra.mrb[0].mxu0 %v8473
      %v8594 = vpop.f32.mrb[0].mxu0
      %v8595 = vadd.f32 %v8510, %v8594
      %v8596 = vpop.f32.mrb[0].mxu0
      %v8597 = vpop.f32.mrb[0].mxu0
      %v8598 = vadd.f32 %v8510, %v8597
      %v8599 = vpop.f32.mrb[0].mxu0
      %8600 = vmatprep.mubr.bf16.mxu0 0
      %8601 = vmatmul.mubr.bf16.gmra.mrb[0].mxu0 %v8474
      %v8602 = vpop.f32.mrb[0].mxu0
      %v8603 = vadd.f32 %v8510, %v8602
      %v8604 = vpop.f32.mrb[0].mxu0
      %v8605 = vpop.f32.mrb[0].mxu0
      %v8606 = vadd.f32 %v8510, %v8605
      %v8607 = vpop.f32.mrb[0].mxu0
      %8608 = vmatprep.mubr.bf16.mxu0 0
      %8609 = vmatmul.mubr.bf16.gmra.mrb[0].mxu0 %v8475
      %v8610 = vpop.f32.mrb[0].mxu0
      %v8611 = vadd.f32 %v8510, %v8610
      %v8612 = vpop.f32.mrb[0].mxu0
      %v8613 = vpop.f32.mrb[0].mxu0
      %v8614 = vadd.f32 %v8510, %v8613
      %v8615 = vpop.f32.mrb[0].mxu0
      %8616 = vmatprep.mubr.bf16.mxu0 0
      %8617 = vmatmul.mubr.bf16.gmra.mrb[0].mxu0 %v8476
      %v8618 = vpop.f32.mrb[0].mxu0
      %v8619 = vadd.f32 %v8510, %v8618
      %v8620 = vpop.f32.mrb[0].mxu0
      %v8621 = vpop.f32.mrb[0].mxu0
      %v8622 = vadd.f32 %v8510, %v8621
      %v8623 = vpop.f32.mrb[0].mxu0
      %8624 = vmatprep.mubr.bf16.mxu0 0
      %8625 = vmatmul.mubr.bf16.gmra.mrb[0].mxu0 %v8477
      %v8626 = vpop.f32.mrb[0].mxu0
      %v8627 = vadd.f32 %v8510, %v8626
      %v8628 = vpop.f32.mrb[0].mxu0
      %v8629 = vpop.f32.mrb[0].mxu0
      %v8630 = vadd.f32 %v8510, %v8629
      %v8631 = vpop.f32.mrb[0].mxu0
      %8632 = vmatprep.mubr.bf16.mxu0 0
      %8633 = vmatmul.mubr.bf16.gmra.mrb[0].mxu0 %v8478
      %v8634 = vpop.f32.mrb[0].mxu0
      %v8635 = vadd.f32 %v8510, %v8634
      %v8636 = vpop.f32.mrb[0].mxu0
      %v8637 = vpop.f32.mrb[0].mxu0
      %v8638 = vadd.f32 %v8510, %v8637
      %v8639 = vpop.f32.mrb[0].mxu0
      %8640 = vmatprep.mubr.bf16.mxu0 0
      %8641 = vmatmul.mubr.bf16.gmra.mrb[0].mxu0 %v8479
      %v8642 = vpop.f32.mrb[0].mxu0
      %v8643 = vadd.f32 %v8510, %v8642
      %v8644 = vpop.f32.mrb[0].mxu0
      %v8645 = vpop.f32.mrb[0].mxu0
      %v8646 = vadd.f32 %v8510, %v8645
      %v8647 = vpop.f32.mrb[0].mxu0
      %8648 = vmatprep.mubr.bf16.mxu0 0
      %8649 = vmatmul.mubr.bf16.gmra.mrb[0].mxu0 %v8480
      %v8650 = vpop.f32.mrb[0].mxu0
      %v8651 = vadd.f32 %v8510, %v8650
      %v8652 = vpop.f32.mrb[0].mxu0
      %v8653 = vpop.f32.mrb[0].mxu0
      %v8654 = vadd.f32 %v8510, %v8653
      %v8655 = vpop.f32.mrb[0].mxu0
      %8656 = vmatprep.mubr.bf16.mxu0 0
      %8657 = vmatmul.mubr.bf16.gmra.mrb[0].mxu0 %v8481
      %v8658 = vpop.f32.mrb[0].mxu0
      %v8659 = vadd.f32 %v8510, %v8658
      %v8660 = vpop.f32.mrb[0].mxu0
      %v8661 = vpop.f32.mrb[0].mxu0
      %v8662 = vadd.f32 %v8510, %v8661
      %v8663 = vpop.f32.mrb[0].mxu0
      %8664 = vmatprep.mubr.bf16.mxu0 0
      %8665 = vmatmul.mubr.bf16.gmra.mrb[0].mxu0 %v8482
      %v8666 = vpop.f32.mrb[0].mxu0
      %v8667 = vadd.f32 %v8510, %v8666
      %v8668 = vpop.f32.mrb[0].mxu0
      %v8669 = vpop.f32.mrb[0].mxu0
      %v8670 = vadd.f32 %v8510, %v8669
      %v8671 = vpop.f32.mrb[0].mxu0
      %8672 = vmatprep.mubr.bf16.mxu0 0
      %8673 = vmatmul.mubr.bf16.gmra.mrb[0].mxu0 %v8483
      %v8674 = vpop.f32.mrb[0].mxu0
      %v8675 = vadd.f32 %v8510, %v8674
      %v8676 = vpop.f32.mrb[0].mxu0
      %v8677 = vpop.f32.mrb[0].mxu0
      %v8678 = vadd.f32 %v8510, %v8677
      %v8679 = vpop.f32.mrb[0].mxu0
      %8680 = vmatprep.mubr.bf16.mxu0 0
      %8681 = vmatmul.mubr.bf16.gmra.mrb[0].mxu0 %v8484
      %v8682 = vpop.f32.mrb[0].mxu0
      %v8683 = vadd.f32 %v8510, %v8682
      %v8684 = vpop.f32.mrb[0].mxu0
      %v8685 = vpop.f32.mrb[0].mxu0
      %v8686 = vadd.f32 %v8510, %v8685
      %v8687 = vpop.f32.mrb[0].mxu0
      %8688 = vmatprep.mubr.bf16.mxu0 0
      %8689 = vmatmul.mubr.bf16.gmra.mrb[0].mxu0 %v8485
      %v8690 = vpop.f32.mrb[0].mxu0
      %v8691 = vadd.f32 %v8510, %v8690
      %v8692 = vpop.f32.mrb[0].mxu0
      %v8693 = vpop.f32.mrb[0].mxu0
      %v8694 = vadd.f32 %v8510, %v8693
      %v8695 = vpop.f32.mrb[0].mxu0
      %8696 = vmatprep.mubr.bf16.mxu0 0
      %8697 = vmatmul.mubr.bf16.gmra.mrb[0].mxu0 %v8486
      %v8698 = vpop.f32.mrb[0].mxu0
      %v8699 = vadd.f32 %v8510, %v8698
      %v8700 = vpop.f32.mrb[0].mxu0
      %v8701 = vpop.f32.mrb[0].mxu0
      %v8702 = vadd.f32 %v8510, %v8701
      %v8703 = vpop.f32.mrb[0].mxu0
      %8704 = vmatprep.mubr.bf16.mxu0 0
      %8705 = vmatmul.mubr.bf16.gmra.mrb[0].mxu0 %v8487
      %v8706 = vpop.f32.mrb[0].mxu0
      %v8707 = vadd.f32 %v8510, %v8706
      %v8708 = vpop.f32.mrb[0].mxu0
      %v8709 = vpop.f32.mrb[0].mxu0
      %v8710 = vadd.f32 %v8510, %v8709
      %v8711 = vpop.f32.mrb[0].mxu0
      %8712 = vmatprep.mubr.bf16.mxu0 0
      %8713 = vmatmul.mubr.bf16.gmra.mrb[0].mxu0 %v8488
      %v8714 = vpop.f32.mrb[0].mxu0
      %v8715 = vadd.f32 %v8510, %v8714
      %v8716 = vpop.f32.mrb[0].mxu0
      %v8717 = vpop.f32.mrb[0].mxu0
      %v8718 = vadd.f32 %v8510, %v8717
      %v8719 = vpop.f32.mrb[0].mxu0
      %8720 = vdwg.mxu0
      %v8721 = vld [vmem:[%s14] sm:$0xf]
      %v8722 = vld [vmem:[%s14 + $0x4] sm:$0xf]
      %v8723 = vld [vmem:[%s14 + $0x8] sm:$0xf]
      %v8724 = vld [vmem:[%s14 + $0xc] sm:$0xf]
      %v8725 = vld [vmem:[%s14 + $0x10] sm:$0xf]
      %v8726 = vld [vmem:[%s14 + $0x14] sm:$0xf]
      %v8727 = vld [vmem:[%s14 + $0x18] sm:$0xf]
      %v8728 = vld [vmem:[%s14 + $0x1c] sm:$0xf]
      %v8729 = vld [vmem:[%s14 + $0x20] sm:$0xf]
      %v8730 = vld [vmem:[%s14 + $0x24] sm:$0xf]
      %v8731 = vld [vmem:[%s14 + $0x28] sm:$0xf]
      %v8732 = vld [vmem:[%s14 + $0x2c] sm:$0xf]
      %v8733 = vld [vmem:[%s14 + $0x30] sm:$0xf]
      %v8734 = vld [vmem:[%s14 + $0x34] sm:$0xf]
      %v8735 = vld [vmem:[%s14 + $0x38] sm:$0xf]
      %v8736 = vld [vmem:[%s14 + $0x3c] sm:$0xf]
      %v8737 = vld [vmem:[%s15] sm:$0x1]
      %v8739 = vlaneseq
      %v8740 = vshrl.u32 %v8739, 7
      %v8741 = vsub.s32 0, %v8740
      %v8742 = vrot.slane %v8737, %v8741
      %v8760 = vunpack.c.l.b16 %v8721
      %v8761 = vunpack.c.l.b16 %v8722
      %v8762 = vunpack.c.l.b16 %v8723
      %v8763 = vunpack.c.l.b16 %v8724
      %v8764 = vunpack.c.l.b16 %v8725
      %v8765 = vunpack.c.l.b16 %v8726
      %v8766 = vunpack.c.l.b16 %v8727
      %v8767 = vunpack.c.l.b16 %v8728
      %v8768 = vunpack.c.l.b16 %v8729
      %v8769 = vunpack.c.l.b16 %v8730
      %v8770 = vunpack.c.l.b16 %v8731
      %v8771 = vunpack.c.l.b16 %v8732
      %v8772 = vunpack.c.l.b16 %v8733
      %v8773 = vunpack.c.l.b16 %v8734
      %v8774 = vunpack.c.l.b16 %v8735
      %v8775 = vunpack.c.l.b16 %v8736
      %v8776 = vpack.c.b16 %v8761, %v8760
      %v8777 = vpack.c.b16 %v8763, %v8762
      %v8778 = vpack.c.b16 %v8765, %v8764
      %v8779 = vpack.c.b16 %v8767, %v8766
      %v8780 = vpack.c.b16 %v8769, %v8768
      %v8781 = vpack.c.b16 %v8771, %v8770
      %v8782 = vpack.c.b16 %v8773, %v8772
      %v8783 = vpack.c.b16 %v8775, %v8774
      %8792 = vmatprep.subr.bf16.mxu0 0
      %8793 = vmatpush1.bf16.msra.mxu0 %v8776
      %8794 = vmatprep.subr.bf16.mxu0 0
      %8795 = vmatpush1.bf16.msra.mxu0 %v8777
      %8796 = vmatprep.subr.bf16.mxu0 0
      %8797 = vmatpush1.bf16.msra.mxu0 %v8778
      %8798 = vmatprep.subr.bf16.mxu0 0
      %8799 = vmatpush1.bf16.msra.mxu0 %v8779
      %8800 = vmatprep.subr.bf16.mxu0 0
      %8801 = vmatpush1.bf16.msra.mxu0 %v8780
      %8802 = vmatprep.subr.bf16.mxu0 0
      %8803 = vmatpush1.bf16.msra.mxu0 %v8781
      %8804 = vmatprep.subr.bf16.mxu0 0
      %8805 = vmatpush1.bf16.msra.mxu0 %v8782
      %8806 = vmatprep.subr.bf16.mxu0 0
      %8807 = vmatpush1.bf16.msra.mxu0 %v8783
      %8808 = vmatprep.subr.bf16.mxu0 0
      %8809 = vmatpush1.bf16.msra.mxu0 0
      %8810 = vmatprep.subr.bf16.mxu0 0
      %8811 = vmatpush1.bf16.msra.mxu0 0
      %8812 = vmatprep.subr.bf16.mxu0 0
      %8813 = vmatpush1.bf16.msra.mxu0 0
      %8814 = vmatprep.subr.bf16.mxu0 0
      %8815 = vmatpush1.bf16.msra.mxu0 0
      %8816 = vmatprep.subr.bf16.mxu0 0
      %8817 = vmatpush1.bf16.msra.mxu0 0
      %8818 = vmatprep.subr.bf16.mxu0 0
      %8819 = vmatpush1.bf16.msra.mxu0 0
      %8820 = vmatprep.subr.bf16.mxu0 0
      %8821 = vmatpush1.bf16.msra.mxu0 0
      %8822 = vmatprep.subr.bf16.mxu0 0
      %8823 = vmatpush1.bf16.msra.mxu0 0
      %8824 = vmatprep.mubr.bf16.mxu0 0
      %8825 = vmatmul.mubr.bf16.gmra.mrb[0].mxu0 %v674
      %v8826 = vpop.f32.mrb[0].mxu0
      %v8827 = vadd.f32 %v8742, %v8826
      %v8828 = vpop.f32.mrb[0].mxu0
      %v8829 = vpop.f32.mrb[0].mxu0
      %v8830 = vadd.f32 %v8742, %v8829
      %v8831 = vpop.f32.mrb[0].mxu0
      %8832 = vmatprep.mubr.bf16.mxu0 0
      %8833 = vmatmul.mubr.bf16.gmra.mrb[0].mxu0 %v675
      %v8834 = vpop.f32.mrb[0].mxu0
      %v8835 = vadd.f32 %v8742, %v8834
      %v8836 = vpop.f32.mrb[0].mxu0
      %v8837 = vpop.f32.mrb[0].mxu0
      %v8838 = vadd.f32 %v8742, %v8837
      %v8839 = vpop.f32.mrb[0].mxu0
      %8840 = vmatprep.mubr.bf16.mxu0 0
      %8841 = vmatmul.mubr.bf16.gmra.mrb[0].mxu0 %v676
      %v8842 = vpop.f32.mrb[0].mxu0
      %v8843 = vadd.f32 %v8742, %v8842
      %v8844 = vpop.f32.mrb[0].mxu0
      %v8845 = vpop.f32.mrb[0].mxu0
      %v8846 = vadd.f32 %v8742, %v8845
      %v8847 = vpop.f32.mrb[0].mxu0
      %8848 = vmatprep.mubr.bf16.mxu0 0
      %8849 = vmatmul.mubr.bf16.gmra.mrb[0].mxu0 %v677
      %v8850 = vpop.f32.mrb[0].mxu0
      %v8851 = vadd.f32 %v8742, %v8850
      %v8852 = vpop.f32.mrb[0].mxu0
      %v8853 = vpop.f32.mrb[0].mxu0
      %v8854 = vadd.f32 %v8742, %v8853
      %v8855 = vpop.f32.mrb[0].mxu0
      %8856 = vmatprep.mubr.bf16.mxu0 0
      %8857 = vmatmul.mubr.bf16.gmra.mrb[0].mxu0 %v678
      %v8858 = vpop.f32.mrb[0].mxu0
      %v8859 = vadd.f32 %v8742, %v8858
      %v8860 = vpop.f32.mrb[0].mxu0
      %v8861 = vpop.f32.mrb[0].mxu0
      %v8862 = vadd.f32 %v8742, %v8861
      %v8863 = vpop.f32.mrb[0].mxu0
      %8864 = vmatprep.mubr.bf16.mxu0 0
      %8865 = vmatmul.mubr.bf16.gmra.mrb[0].mxu0 %v679
      %v8866 = vpop.f32.mrb[0].mxu0
      %v8867 = vadd.f32 %v8742, %v8866
      %v8868 = vpop.f32.mrb[0].mxu0
      %v8869 = vpop.f32.mrb[0].mxu0
      %v8870 = vadd.f32 %v8742, %v8869
      %v8871 = vpop.f32.mrb[0].mxu0
      %8872 = vmatprep.mubr.bf16.mxu0 0
      %8873 = vmatmul.mubr.bf16.gmra.mrb[0].mxu0 %v680
      %v8874 = vpop.f32.mrb[0].mxu0
      %v8875 = vadd.f32 %v8742, %v8874
      %v8876 = vpop.f32.mrb[0].mxu0
      %v8877 = vpop.f32.mrb[0].mxu0
      %v8878 = vadd.f32 %v8742, %v8877
      %v8879 = vpop.f32.mrb[0].mxu0
      %8880 = vmatprep.mubr.bf16.mxu0 0
      %8881 = vmatmul.mubr.bf16.gmra.mrb[0].mxu0 %v681
      %v8882 = vpop.f32.mrb[0].mxu0
      %v8883 = vadd.f32 %v8742, %v8882
      %v8884 = vpop.f32.mrb[0].mxu0
      %v8885 = vpop.f32.mrb[0].mxu0
      %v8886 = vadd.f32 %v8742, %v8885
      %v8887 = vpop.f32.mrb[0].mxu0
      %8888 = vmatprep.mubr.bf16.mxu0 0
      %8889 = vmatmul.mubr.bf16.gmra.mrb[0].mxu0 %v682
      %v8890 = vpop.f32.mrb[0].mxu0
      %v8891 = vadd.f32 %v8742, %v8890
      %v8892 = vpop.f32.mrb[0].mxu0
      %v8893 = vpop.f32.mrb[0].mxu0
      %v8894 = vadd.f32 %v8742, %v8893
      %v8895 = vpop.f32.mrb[0].mxu0
      %8896 = vmatprep.mubr.bf16.mxu0 0
      %8897 = vmatmul.mubr.bf16.gmra.mrb[0].mxu0 %v683
      %v8898 = vpop.f32.mrb[0].mxu0
      %v8899 = vadd.f32 %v8742, %v8898
      %v8900 = vpop.f32.mrb[0].mxu0
      %v8901 = vpop.f32.mrb[0].mxu0
      %v8902 = vadd.f32 %v8742, %v8901
      %v8903 = vpop.f32.mrb[0].mxu0
      %8904 = vmatprep.mubr.bf16.mxu0 0
      %8905 = vmatmul.mubr.bf16.gmra.mrb[0].mxu0 %v684
      %v8906 = vpop.f32.mrb[0].mxu0
      %v8907 = vadd.f32 %v8742, %v8906
      %v8908 = vpop.f32.mrb[0].mxu0
      %v8909 = vpop.f32.mrb[0].mxu0
      %v8910 = vadd.f32 %v8742, %v8909
      %v8911 = vpop.f32.mrb[0].mxu0
      %8912 = vmatprep.mubr.bf16.mxu0 0
      %8913 = vmatmul.mubr.bf16.gmra.mrb[0].mxu0 %v685
      %v8914 = vpop.f32.mrb[0].mxu0
      %v8915 = vadd.f32 %v8742, %v8914
      %v8916 = vpop.f32.mrb[0].mxu0
      %v8917 = vpop.f32.mrb[0].mxu0
      %v8918 = vadd.f32 %v8742, %v8917
      %v8919 = vpop.f32.mrb[0].mxu0
      %8920 = vmatprep.mubr.bf16.mxu0 0
      %8921 = vmatmul.mubr.bf16.gmra.mrb[0].mxu0 %v686
      %v8922 = vpop.f32.mrb[0].mxu0
      %v8923 = vadd.f32 %v8742, %v8922
      %v8924 = vpop.f32.mrb[0].mxu0
      %v8925 = vpop.f32.mrb[0].mxu0
      %v8926 = vadd.f32 %v8742, %v8925
      %v8927 = vpop.f32.mrb[0].mxu0
      %8928 = vmatprep.mubr.bf16.mxu0 0
      %8929 = vmatmul.mubr.bf16.gmra.mrb[0].mxu0 %v687
      %v8930 = vpop.f32.mrb[0].mxu0
      %v8931 = vadd.f32 %v8742, %v8930
      %v8932 = vpop.f32.mrb[0].mxu0
      %v8933 = vpop.f32.mrb[0].mxu0
      %v8934 = vadd.f32 %v8742, %v8933
      %v8935 = vpop.f32.mrb[0].mxu0
      %8936 = vmatprep.mubr.bf16.mxu0 0
      %8937 = vmatmul.mubr.bf16.gmra.mrb[0].mxu0 %v688
      %v8938 = vpop.f32.mrb[0].mxu0
      %v8939 = vadd.f32 %v8742, %v8938
      %v8940 = vpop.f32.mrb[0].mxu0
      %v8941 = vpop.f32.mrb[0].mxu0
      %v8942 = vadd.f32 %v8742, %v8941
      %v8943 = vpop.f32.mrb[0].mxu0
      %8944 = vmatprep.mubr.bf16.mxu0 0
      %8945 = vmatmul.mubr.bf16.gmra.mrb[0].mxu0 %v689
      %v8946 = vpop.f32.mrb[0].mxu0
      %v8947 = vadd.f32 %v8742, %v8946
      %v8948 = vpop.f32.mrb[0].mxu0
      %v8949 = vpop.f32.mrb[0].mxu0
      %v8950 = vadd.f32 %v8742, %v8949
      %v8951 = vpop.f32.mrb[0].mxu0
      %8952 = vdwg.mxu0
      %v8953 = vadd.f32 %v8595, %v8827
      %v8954 = vadd.f32 %v8598, %v8830
      %v8955 = vadd.f32 %v8603, %v8835
      %v8956 = vadd.f32 %v8606, %v8838
      %v8957 = vadd.f32 %v8611, %v8843
      %v8958 = vadd.f32 %v8614, %v8846
      %v8959 = vadd.f32 %v8619, %v8851
      %v8960 = vadd.f32 %v8622, %v8854
      %v8961 = vadd.f32 %v8627, %v8859
      %v8962 = vadd.f32 %v8630, %v8862
      %v8963 = vadd.f32 %v8635, %v8867
      %v8964 = vadd.f32 %v8638, %v8870
      %v8965 = vadd.f32 %v8643, %v8875
      %v8966 = vadd.f32 %v8646, %v8878
      %v8967 = vadd.f32 %v8651, %v8883
      %v8968 = vadd.f32 %v8654, %v8886
      %v8969 = vadd.f32 %v8659, %v8891
      %v8970 = vadd.f32 %v8662, %v8894
      %v8971 = vadd.f32 %v8667, %v8899
      %v8972 = vadd.f32 %v8670, %v8902
      %v8973 = vadd.f32 %v8675, %v8907
      %v8974 = vadd.f32 %v8678, %v8910
      %v8975 = vadd.f32 %v8683, %v8915
      %v8976 = vadd.f32 %v8686, %v8918
      %v8977 = vadd.f32 %v8691, %v8923
      %v8978 = vadd.f32 %v8694, %v8926
      %v8979 = vadd.f32 %v8699, %v8931
      %v8980 = vadd.f32 %v8702, %v8934
      %v8981 = vadd.f32 %v8707, %v8939
      %v8982 = vadd.f32 %v8710, %v8942
      %v8983 = vadd.f32 %v8715, %v8947
      %v8984 = vadd.f32 %v8718, %v8950
      %8985 = vst [vmem:[%s521] sm:$0xff] %v8953
      %8986 = vst [vmem:[%s521 + $0x8] sm:$0xff] %v8954
      %8987 = vst [vmem:[%s521 + $0x10] sm:$0xff] %v8955
      %8988 = vst [vmem:[%s521 + $0x18] sm:$0xff] %v8956
      %8989 = vst [vmem:[%s521 + $0x20] sm:$0xff] %v8957
      %8990 = vst [vmem:[%s521 + $0x28] sm:$0xff] %v8958
      %8991 = vst [vmem:[%s521 + $0x30] sm:$0xff] %v8959
      %8992 = vst [vmem:[%s521 + $0x38] sm:$0xff] %v8960
      %8993 = vst [vmem:[%s521 + $0x40] sm:$0xff] %v8961
      %8994 = vst [vmem:[%s521 + $0x48] sm:$0xff] %v8962
      %8995 = vst [vmem:[%s521 + $0x50] sm:$0xff] %v8963
      %8996 = vst [vmem:[%s521 + $0x58] sm:$0xff] %v8964
      %8997 = vst [vmem:[%s521 + $0x60] sm:$0xff] %v8965
      %8998 = vst [vmem:[%s521 + $0x68] sm:$0xff] %v8966
      %8999 = vst [vmem:[%s521 + $0x70] sm:$0xff] %v8967
      %9000 = vst [vmem:[%s521 + $0x78] sm:$0xff] %v8968
      %9001 = vst [vmem:[%s521 + $0x80] sm:$0xff] %v8969
      %9002 = vst [vmem:[%s521 + $0x88] sm:$0xff] %v8970
      %9003 = vst [vmem:[%s521 + $0x90] sm:$0xff] %v8971
      %9004 = vst [vmem:[%s521 + $0x98] sm:$0xff] %v8972
      %9005 = vst [vmem:[%s521 + $0xa0] sm:$0xff] %v8973
      %9006 = vst [vmem:[%s521 + $0xa8] sm:$0xff] %v8974
      %9007 = vst [vmem:[%s521 + $0xb0] sm:$0xff] %v8975
      %9008 = vst [vmem:[%s521 + $0xb8] sm:$0xff] %v8976
      %9009 = vst [vmem:[%s521 + $0xc0] sm:$0xff] %v8977
      %9010 = vst [vmem:[%s521 + $0xc8] sm:$0xff] %v8978
      %9011 = vst [vmem:[%s521 + $0xd0] sm:$0xff] %v8979
      %9012 = vst [vmem:[%s521 + $0xd8] sm:$0xff] %v8980
      %9013 = vst [vmem:[%s521 + $0xe0] sm:$0xff] %v8981
      %9014 = vst [vmem:[%s521 + $0xe8] sm:$0xff] %v8982
      %9015 = vst [vmem:[%s521 + $0xf0] sm:$0xff] %v8983
      %9016 = vst [vmem:[%s521 + $0xf8] sm:$0xff] %v8984
      %p9017 = scmp.lt.s32.totalorder %s27, 1
      %s9018 = scalar_select %p9017, %s27, 1
      %s9019 = smul.addr %s9018, 32
      %s9020 = smul.addr %s9019, 8
      %s9021 = scalar_lea.vmem %s16, %s9020
      // Predicated region
      $region85: #{down_forward.4} parent=83 // pred_check
        %p9022 = pneg %p386
      $region86: #{down_forward.4} parent=83 // pred_check_branch
        %9024 = sbr.rel (%p9022) target = $region88
      $region87: #{down_forward.4} parent=83 // pred_region
        _
      $region88: #{down_forward.4} parent=83 // pred_fallthru
        _
    $region84: #{down_forward.4} parent=5 // pred_fallthru
      _
    %p9025 = scmp.le.s32.totalorder 2, %s22
    // Predicated region
    $region89: #{down_forward.4} parent=5 // pred_check
      %p9026 = pneg %p9025
    $region90: #{down_forward.4} parent=5 // pred_check_branch
      %9028 = sbr.rel (%p9026) target = $region92
    $region91: #{down_forward.4} parent=5 // pred_region
      %s9029 = ssub.s32 %s22, 2
      // Predicated region
      $region93: #{down_forward.4} parent=91 // pred_check
        %p9030 = pneg %p392
      $region94: #{down_forward.4} parent=91 // pred_check_branch
        %9032 = sbr.rel (%p9030) target = $region96
      $region95: #{down_forward.4} parent=91 // pred_region
        %p9033 = scmp.lt.s32.totalorder %s28, 1
        %s9034 = scalar_select %p9033, %s28, 1
        %s9035 = smul.addr %s9034, 32
        %s9036 = smul.addr %s9035, 8
        %s9037 = scalar_lea.vmem %s16, %s9036
      $region96: #{down_forward.4} parent=91 // pred_fallthru
        _
    $region92: #{down_forward.4} parent=5 // pred_fallthru
      _
  $region6: #{down_forward.4} parent=0 // loop_footer
    %s26 = sadd.s32 1, %s22
  $region7: #{down_forward.4} parent=0 // loop_footer_branch
    %21 = sbr.rel target = $region3
  $region8: #{down_forward.4} parent=0 // loop_exit
    _

</llo_original>
